<compile_context>
chip_gen: v7x
topology: tpu7x:2x2x1
jax: 0.10.0
libtpu: 0.0.40
codegen_flags: <defaults>
</compile_context>

<pallas_src>
import functools
import math

import jax
import jax.numpy as jnp
from jax import lax
from jax.experimental import pallas as pl
from jax.experimental.pallas import tpu as pltpu

# LowFormerBlock / ConvAttention static configuration (defaults, stage_num=-1).
ATT_STRIDE = 4
ATT_KERNEL = 7                      # -> conv_proj padding 3
UP_KERNEL = 2 * ATT_STRIDE          # dconvkernel=True -> 8
UP_PAD = ATT_STRIDE // 2            # -> 2
EXPAND_RATIO = 4                    # MBConv expand_ratio
BN_EPS = 1e-5

_VMEM_LIMIT = 32 * 1024 * 1024      # ample for all generations incl. v7x


def _hardswish(x):
    return x * jnp.clip(x + 3.0, 0.0, 6.0) * (1.0 / 6.0)


# ---------------------------------------------------------------------------
# Kernel A: per-head QKV projection + multi-head SDPA + output projection
# (grid over batch; per-head weight slabs avoid misaligned lane slices)
# ---------------------------------------------------------------------------
def _attention_kernel(x_ref, wq_ref, wk_ref, wv_ref, wo_ref, bo_ref, o_ref):
    num_heads = wq_ref.shape[0]
    head_dim = wq_ref.shape[2]
    s = x_ref.shape[0]
    c = wo_ref.shape[2]
    inv_sqrt_d = 1.0 / math.sqrt(head_dim)

    x = x_ref[...].astype(jnp.bfloat16)                              # (S, C)
    acc = jnp.zeros((s, c), jnp.float32)
    for h in range(num_heads):
        q = jnp.dot(x, wq_ref[h], preferred_element_type=jnp.float32)
        k = jnp.dot(x, wk_ref[h], preferred_element_type=jnp.float32)
        v = jnp.dot(x, wv_ref[h], preferred_element_type=jnp.float32)
        logits = lax.dot_general(
            q, k, (((1,), (1,)), ((), ())),
            preferred_element_type=jnp.float32) * inv_sqrt_d         # (S, S)
        logits = logits - jnp.max(logits, axis=-1, keepdims=True)
        p = jnp.exp(logits)
        p = p * pl.reciprocal(jnp.sum(p, axis=-1, keepdims=True), approx=True)
        vals = jnp.dot(p.astype(jnp.bfloat16), v.astype(jnp.bfloat16),
                       preferred_element_type=jnp.float32)           # (S, hd)
        # o_proj input channels are head-major, so the projection is a sum of
        # per-head (hd, C) matmuls -> no concat / lane relayout.
        acc = acc + jnp.dot(vals.astype(jnp.bfloat16), wo_ref[h],
                            preferred_element_type=jnp.float32)
    o_ref[...] = (acc + bo_ref[...]).astype(o_ref.dtype)


def _attention_call(xc, wq, wk, wv, wo, bo):
    n, s, c = xc.shape
    num_heads, _, head_dim = wq.shape
    return pl.pallas_call(
        _attention_kernel,
        out_shape=jax.ShapeDtypeStruct((n, s, c), xc.dtype),
        grid=(n,),
        in_specs=[
            pl.BlockSpec((None, s, c), lambda i: (i, 0, 0)),
            pl.BlockSpec((num_heads, c, head_dim), lambda i: (0, 0, 0)),
            pl.BlockSpec((num_heads, c, head_dim), lambda i: (0, 0, 0)),
            pl.BlockSpec((num_heads, c, head_dim), lambda i: (0, 0, 0)),
            pl.BlockSpec((num_heads, head_dim, c), lambda i: (0, 0, 0)),
            pl.BlockSpec((1, c), lambda i: (0, 0)),
        ],
        out_specs=pl.BlockSpec((None, s, c), lambda i: (i, 0, 0)),
        compiler_params=pltpu.CompilerParams(
            dimension_semantics=("parallel",),
            vmem_limit_bytes=_VMEM_LIMIT),
    )(xc, wq, wk, wv, wo, bo)


# ---------------------------------------------------------------------------
# Kernel B (fused MBConv): residual add + expand 1x1 + hardswish
#                          + depthwise 3x3 + bias + hardswish
#                          + project 1x1 (BN folded) + shift + residual
# The 4C "mid" tensor stays in VMEM scratch for the whole grid step.
# ---------------------------------------------------------------------------
def _mbconv_fused_kernel(x_ref, up_ref, w1_ref, b1_ref, wdw_ref, bdw_ref,
                         w2_ref, shift_ref, o_ref, midp_ref, dw_ref):
    height, width, c = x_ref.shape
    cm = w1_ref.shape[1]
    m = height * width

    # ---- y = x + upsampled attention; expand 1x1 + bias + hardswish --------
    y = (x_ref[...] + up_ref[...]).reshape(m, c)                     # f32
    h1 = jnp.dot(y.astype(jnp.bfloat16), w1_ref[...],
                 preferred_element_type=jnp.float32) + b1_ref[...]   # (M, 4C)
    mid = _hardswish(h1)

    # Zero-padded copy of mid, kept entirely in VMEM (replaces the XLA pad +
    # HBM round trip of the previous version).
    midp_ref[...] = jnp.zeros_like(midp_ref)
    midp_ref[1:height + 1, 1:width + 1, :] = mid.reshape(height, width, cm)

    # ---- depthwise 3x3 + bias + hardswish (per-row accumulation) -----------
    wdw = wdw_ref[...]                                               # (9, 4C)
    taps = [jnp.broadcast_to(wdw[k].reshape(1, cm), (width, cm))
            for k in range(9)]                                       # hoisted
    bias = jnp.broadcast_to(bdw_ref[...], (width, cm))               # hoisted
    for r in range(height):
        acc = bias
        for ky in range(3):
            row = midp_ref[r + ky]                                   # (W+2, 4C)
            for kx in range(3):
                acc = acc + row[kx:kx + width, :] * taps[3 * ky + kx]
        dw_ref[r * width:(r + 1) * width, :] = _hardswish(acc)

    # ---- project 1x1 (BN folded into w2) + shift + residual ----------------
    z = jnp.dot(dw_ref[...].astype(jnp.bfloat16), w2_ref[...],
                preferred_element_type=jnp.float32)                  # (M, C)
    z = z + shift_ref[...] + (x_ref[...] + up_ref[...]).reshape(m, c)
    o_ref[...] = z.reshape(height, width, c).astype(o_ref.dtype)


def _mbconv_fused_call(x_nhwc, up_nhwc, w1, b1, wdw, bdw, w2, shift):
    n, h, w, c = x_nhwc.shape
    cm = w1.shape[1]
    return pl.pallas_call(
        _mbconv_fused_kernel,
        out_shape=jax.ShapeDtypeStruct((n, h, w, c), x_nhwc.dtype),
        grid=(n,),
        in_specs=[
            pl.BlockSpec((None, h, w, c), lambda i: (i, 0, 0, 0)),
            pl.BlockSpec((None, h, w, c), lambda i: (i, 0, 0, 0)),
            pl.BlockSpec((c, cm), lambda i: (0, 0)),
            pl.BlockSpec((1, cm), lambda i: (0, 0)),
            pl.BlockSpec((9, cm), lambda i: (0, 0)),
            pl.BlockSpec((1, cm), lambda i: (0, 0)),
            pl.BlockSpec((cm, c), lambda i: (0, 0)),
            pl.BlockSpec((1, c), lambda i: (0, 0)),
        ],
        out_specs=pl.BlockSpec((None, h, w, c), lambda i: (i, 0, 0, 0)),
        scratch_shapes=[
            pltpu.VMEM((h + 2, w + 2, cm), jnp.float32),   # padded mid
            pltpu.VMEM((h * w, cm), jnp.float32),          # dw3x3 output
        ],
        compiler_params=pltpu.CompilerParams(
            dimension_semantics=("parallel",),
            vmem_limit_bytes=_VMEM_LIMIT),
    )(x_nhwc, up_nhwc, w1, b1, wdw, bdw, w2, shift)


# ---------------------------------------------------------------------------
# Full LowFormerBlock forward (kernel-ready params)
# ---------------------------------------------------------------------------
def lowformer_block_forward(x_nchw, kp):
    n, c, hin, win = x_nchw.shape
    # Single NCHW -> NHWC conversion; everything stays channels-last after it.
    x = jnp.transpose(x_nchw, (0, 2, 3, 1))

    # ---- context module: x + ConvAttention(x) -----------------------------
    # TODO(synk): the strided depthwise 7x7 conv (+folded BN) and the depthwise
    # transposed upsampling conv stay on XLA; there is no profitable Pallas
    # tiling for tiny strided spatial depthwise convs at these sizes.
    pad7 = ATT_KERNEL // 2
    xc = lax.conv_general_dilated(
        x, kp["w_dw7"], window_strides=(ATT_STRIDE, ATT_STRIDE),
        padding=((pad7, pad7), (pad7, pad7)),
        dimension_numbers=("NHWC", "HWIO", "NHWC"),
        feature_group_count=c) + kp["b_dw7"]
    ha, wa = xc.shape[1], xc.shape[2]

    att = _attention_call(xc.reshape(n, ha * wa, c),
                          kp["wq"], kp["wk"], kp["wv"], kp["wo"], kp["bo"])

    padt = UP_KERNEL - 1 - UP_PAD
    up = lax.conv_general_dilated(
        att.reshape(n, ha, wa, c), kp["w_up"], window_strides=(1, 1),
        padding=((padt, padt), (padt, padt)),
        lhs_dilation=(ATT_STRIDE, ATT_STRIDE),
        dimension_numbers=("NHWC", "HWIO", "NHWC"),
        feature_group_count=c) + kp["b_up"]
    up = up[:, :hin, :win, :]                    # torch: o[:N, :C, :H, :W]

    # ---- local module: y + MBConv(y), fully fused in one Pallas kernel -----
    z = _mbconv_fused_call(x, up, kp["w1"], kp["b1"], kp["wdw3"], kp["bdw3"],
                           kp["w2"], kp["bn2_shift"])
    return jnp.transpose(z, (0, 3, 1, 2))


# ---------------------------------------------------------------------------
# Pure-JAX reference (no Pallas) for correctness checking
# ---------------------------------------------------------------------------
def reference_forward(x_nchw, p, *, num_heads, head_dim):
    n, c, hin, win = x_nchw.shape
    x = jnp.transpose(x_nchw, (0, 2, 3, 1))
    pad7 = ATT_KERNEL // 2
    xc = lax.conv_general_dilated(
        x, p["w_dw7"], window_strides=(ATT_STRIDE, ATT_STRIDE),
        padding=((pad7, pad7), (pad7, pad7)),
        dimension_numbers=("NHWC", "HWIO", "NHWC"),
        feature_group_count=c) + p["b_dw7"]
    ha, wa = xc.shape[1], xc.shape[2]
    xcf = xc.reshape(n, ha * wa, c)
    qkv = jnp.einsum("nsc,cd->nsd", xcf, p["wqkv_t"])
    outs = []
    for hd in range(num_heads):
        base = 3 * head_dim * hd
        q = qkv[..., base:base + head_dim]
        k = qkv[..., base + head_dim:base + 2 * head_dim]
        v = qkv[..., base + 2 * head_dim:base + 3 * head_dim]
        logits = jnp.einsum("nqd,nkd->nqk", q, k) / math.sqrt(head_dim)
        outs.append(jnp.einsum("nqk,nkd->nqd",
                               jax.nn.softmax(logits, axis=-1), v))
    vals = jnp.concatenate(outs, axis=-1)
    o = jnp.einsum("nsc,cd->nsd", vals, p["wo_t"]) + p["bo"]
    padt = UP_KERNEL - 1 - UP_PAD
    up = lax.conv_general_dilated(
        o.reshape(n, ha, wa, c), p["w_up"], window_strides=(1, 1),
        padding=((padt, padt), (padt, padt)),
        lhs_dilation=(ATT_STRIDE, ATT_STRIDE),
        dimension_numbers=("NHWC", "HWIO", "NHWC"),
        feature_group_count=c) + p["b_up"]
    up = up[:, :hin, :win, :]
    y = x + up
    h1 = jnp.einsum("nhwc,cd->nhwd", y, p["w1_t"]) + p["b1"][0]
    h1 = h1 * jnp.clip(h1 + 3.0, 0.0, 6.0) / 6.0
    dw = lax.conv_general_dilated(
        h1, p["w_dw3"][:, :, None, :], (1, 1), ((1, 1), (1, 1)),
        dimension_numbers=("NHWC", "HWIO", "NHWC"),
        feature_group_count=h1.shape[-1]) + p["b_dw3"][0, 0]
    dw = dw * jnp.clip(dw + 3.0, 0.0, 6.0) / 6.0
    z = jnp.einsum("nhwm,mc->nhwc", dw, p["w2_t"]) + p["bn2_shift"][0] + y
    return jnp.transpose(z, (0, 3, 1, 2))


# ---------------------------------------------------------------------------
# Deterministic synthetic parameters (torch layouts, pre-transposed / BN-folded)
# ---------------------------------------------------------------------------
def make_params(key, c, num_heads, head_dim):
    cm = c * EXPAND_RATIO
    total_dim = 3 * num_heads * head_dim
    ks = jax.random.split(key, 20)

    def rnd(i, shape, scale=0.1):
        return scale * jax.random.normal(ks[i], shape, dtype=jnp.float32)

    # conv_proj: depthwise 7x7 stride-4 (no bias) + BatchNorm2d (folded)
    w7 = rnd(0, (c, 1, ATT_KERNEL, ATT_KERNEL))
    g1, be1, mu1 = 1.0 + rnd(1, (c,)), rnd(2, (c,)), rnd(3, (c,))
    var1 = jax.random.uniform(ks[4], (c,), jnp.float32, 0.5, 1.5)
    s1 = g1 / jnp.sqrt(var1 + BN_EPS)
    w_dw7 = jnp.transpose(w7 * s1[:, None, None, None], (2, 3, 1, 0))
    b_dw7 = be1 - mu1 * s1

    # pwise: 1x1 conv C -> 3C (QKV, no bias), columns in torch channel order
    wqkv_t = jnp.transpose(rnd(5, (total_dim, c)))                   # (C, 3C)

    # o_proj: 1x1 conv C -> C (+bias)
    wo_t = jnp.transpose(rnd(6, (c, num_heads * head_dim)))
    bo = rnd(7, (1, c))

    # upsampling: depthwise ConvTranspose2d k=8 s=4 p=2 (+bias), expressed as an
    # lhs-dilated conv with a spatially flipped per-channel kernel
    w_up_raw = rnd(8, (c, 1, UP_KERNEL, UP_KERNEL))
    w_up = jnp.transpose(jnp.flip(w_up_raw, axis=(2, 3)), (2, 3, 1, 0))
    b_up = rnd(9, (c,))

    # MBConv inverted_conv: 1x1 C -> 4C (+bias)
    w1_t = jnp.transpose(rnd(10, (cm, c)))                           # (C, 4C)
    b1 = rnd(11, (1, cm))

    # MBConv depth_conv: depthwise 3x3 (+bias)
    w3 = rnd(12, (cm, 1, 3, 3))
    w_dw3 = jnp.transpose(w3, (2, 3, 1, 0)).reshape(3, 3, cm)
    b_dw3 = rnd(13, (1, 1, cm))

    # MBConv point_conv: 1x1 4C -> C (no bias) + BatchNorm2d (folded)
    w2 = rnd(14, (c, cm))
    g2, be2, mu2 = 1.0 + rnd(15, (c,)), rnd(16, (c,)), rnd(17, (c,))
    var2 = jax.random.uniform(ks[18], (c,), jnp.float32, 0.5, 1.5)
    s2 = g2 / jnp.sqrt(var2 + BN_EPS)
    w2_t = jnp.transpose(w2 * s2[:, None])                           # (4C, C)
    bn2_shift = (be2 - mu2 * s2).reshape(1, c)

    return dict(w_dw7=w_dw7, b_dw7=b_dw7, wqkv_t=wqkv_t, wo_t=wo_t, bo=bo,
                w_up=w_up, b_up=b_up, w1_t=w1_t, b1=b1, w_dw3=w_dw3,
                b_dw3=b_dw3, w2_t=w2_t, bn2_shift=bn2_shift)


def prepare_kernel_params(p, num_heads, head_dim):
    """Derive kernel-ready weights: per-head Q/K/V/O slabs, bf16 matmul
    operands, (9, 4C) dw3x3 tap layout.  Called once, outside jit."""
    hd = head_dim
    wqkv_t = p["wqkv_t"]
    wq = jnp.stack([wqkv_t[:, 3 * hd * h:3 * hd * h + hd]
                    for h in range(num_heads)])
    wk = jnp.stack([wqkv_t[:, 3 * hd * h + hd:3 * hd * h + 2 * hd]
                    for h in range(num_heads)])
    wv = jnp.stack([wqkv_t[:, 3 * hd * h + 2 * hd:3 * hd * h + 3 * hd]
                    for h in range(num_heads)])
    wo = jnp.stack([p["wo_t"][h * hd:(h + 1) * hd, :]
                    for h in range(num_heads)])
    cm = p["w1_t"].shape[1]
    return dict(
        w_dw7=p["w_dw7"], b_dw7=p["b_dw7"], w_up=p["w_up"], b_up=p["b_up"],
        wq=wq.astype(jnp.bfloat16), wk=wk.astype(jnp.bfloat16),
        wv=wv.astype(jnp.bfloat16), wo=wo.astype(jnp.bfloat16),
        bo=p["bo"],
        w1=p["w1_t"].astype(jnp.bfloat16), b1=p["b1"],
        wdw3=p["w_dw3"].reshape(9, cm), bdw3=p["b_dw3"].reshape(1, cm),
        w2=p["w2_t"].astype(jnp.bfloat16), bn2_shift=p["bn2_shift"])


if __name__ == "__main__":
    N, C, H, W = 2, 64, 16, 16
    # ConvAttention head config (head_dim_mul = 1.0), mirroring torch exactly.
    num_heads = int(max(1, (C * 1.0) // 30))          # -> 2
    head_dim = int(C // num_heads * 1.0)              # -> 32

    key = jax.random.PRNGKey(0)
    kx, kp = jax.random.split(key)
    x = jax.random.normal(kx, (N, C, H, W), dtype=jnp.float32)
    params = make_params(kp, C, num_heads, head_dim)
    kparams = prepare_kernel_params(params, num_heads, head_dim)

    fwd = jax.jit(lowformer_block_forward)
    out = jax.block_until_ready(fwd(x, kparams))

    ref = reference_forward(x, params, num_heads=num_heads, head_dim=head_dim)
    assert out.shape == (N, C, H, W), out.shape
    # Tolerance dominated by bf16 matmul operands (same rounding as TPU's
    # default f32 matmul path, which the reference einsums also use).
    assert jnp.allclose(out, ref, atol=1e-2, rtol=1e-2), \
        float(jnp.max(jnp.abs(out - ref)))

    print("KERNEL_OK")
</pallas_src>

<mosaic_0001>
module attributes {stable_mosaic.version = 11 : i64} {
  func.func @_attention_kernel(%arg0: i32, %arg1: memref<1x16x64xf32, #tpu.memory_space<vmem>>, %arg2: memref<2x64x32xbf16, #tpu.memory_space<vmem>>, %arg3: memref<2x64x32xbf16, #tpu.memory_space<vmem>>, %arg4: memref<2x64x32xbf16, #tpu.memory_space<vmem>>, %arg5: memref<2x32x64xbf16, #tpu.memory_space<vmem>>, %arg6: memref<1x64xf32, #tpu.memory_space<vmem>>, %arg7: memref<1x16x64xf32, #tpu.memory_space<vmem>>) attributes {dimension_semantics = [#tpu.dimension_semantics<parallel>], iteration_bounds = array<i64: 2>, scalar_prefetch = 0 : i64, scratch_operands = 0 : i64, tpu.core_type = #tpu.core_type<tc>, window_params = [{transform_indices = @transform_0, window_bounds = array<i64: 1, 16, 64>}, {pipeline_mode = #tpu.pipeline_mode<synchronous>, transform_indices = @transform_1, window_bounds = array<i64: 2, 64, 32>}, {pipeline_mode = #tpu.pipeline_mode<synchronous>, transform_indices = @transform_2, window_bounds = array<i64: 2, 64, 32>}, {pipeline_mode = #tpu.pipeline_mode<synchronous>, transform_indices = @transform_3, window_bounds = array<i64: 2, 64, 32>}, {pipeline_mode = #tpu.pipeline_mode<synchronous>, transform_indices = @transform_4, window_bounds = array<i64: 2, 32, 64>}, {pipeline_mode = #tpu.pipeline_mode<synchronous>, transform_indices = @transform_5, window_bounds = array<i64: 1, 64>}, {transform_indices = @transform_6, window_bounds = array<i64: 1, 16, 64>}]} {
    %c0 = arith.constant 0 : index
    %c0_0 = arith.constant 0 : index
    %c0_1 = arith.constant 0 : index
    %0 = vector.load %arg1[%c0, %c0_0, %c0_1] : memref<1x16x64xf32, #tpu.memory_space<vmem>>, vector<1x16x64xf32>
    %1 = vector.shape_cast %0 : vector<1x16x64xf32> to vector<16x64xf32>
    %2 = arith.truncf %1 : vector<16x64xf32> to vector<16x64xbf16>
    %cst = arith.constant 0.000000e+00 : f32
    %3 = vector.broadcast %cst : f32 to vector<16x64xf32>
    %c0_2 = arith.constant 0 : index
    %c0_3 = arith.constant 0 : index
    %c0_4 = arith.constant 0 : index
    %4 = vector.load %arg2[%c0_2, %c0_3, %c0_4] : memref<2x64x32xbf16, #tpu.memory_space<vmem>>, vector<1x64x32xbf16>
    %5 = vector.shape_cast %4 : vector<1x64x32xbf16> to vector<64x32xbf16>
    %cst_5 = arith.constant dense<0.000000e+00> : vector<16x32xf32>
    %6 = tpu.matmul %2, %5, %cst_5 {dimension_numbers = #tpu.dot_dimension_numbers<[1], [0], [0], [1], [0, 0, 1, 1], [], []>} : vector<16x64xbf16>, vector<64x32xbf16>, vector<16x32xf32> -> vector<16x32xf32>
    %c0_6 = arith.constant 0 : index
    %c0_7 = arith.constant 0 : index
    %c0_8 = arith.constant 0 : index
    %7 = vector.load %arg3[%c0_6, %c0_7, %c0_8] : memref<2x64x32xbf16, #tpu.memory_space<vmem>>, vector<1x64x32xbf16>
    %8 = vector.shape_cast %7 : vector<1x64x32xbf16> to vector<64x32xbf16>
    %cst_9 = arith.constant dense<0.000000e+00> : vector<16x32xf32>
    %9 = tpu.matmul %2, %8, %cst_9 {dimension_numbers = #tpu.dot_dimension_numbers<[1], [0], [0], [1], [0, 0, 1, 1], [], []>} : vector<16x64xbf16>, vector<64x32xbf16>, vector<16x32xf32> -> vector<16x32xf32>
    %c0_10 = arith.constant 0 : index
    %c0_11 = arith.constant 0 : index
    %c0_12 = arith.constant 0 : index
    %10 = vector.load %arg4[%c0_10, %c0_11, %c0_12] : memref<2x64x32xbf16, #tpu.memory_space<vmem>>, vector<1x64x32xbf16>
    %11 = vector.shape_cast %10 : vector<1x64x32xbf16> to vector<64x32xbf16>
    %cst_13 = arith.constant dense<0.000000e+00> : vector<16x32xf32>
    %12 = tpu.matmul %2, %11, %cst_13 {dimension_numbers = #tpu.dot_dimension_numbers<[1], [0], [0], [1], [0, 0, 1, 1], [], []>} : vector<16x64xbf16>, vector<64x32xbf16>, vector<16x32xf32> -> vector<16x32xf32>
    %cst_14 = arith.constant dense<0.000000e+00> : vector<16x16xf32>
    %13 = tpu.matmul %6, %9, %cst_14 {dimension_numbers = #tpu.dot_dimension_numbers<[1], [1], [0], [0], [0, 0, 1, 0], [], []>} : vector<16x32xf32>, vector<16x32xf32>, vector<16x16xf32> -> vector<16x16xf32>
    %cst_15 = arith.constant 0.176776692 : f32
    %14 = vector.broadcast %cst_15 : f32 to vector<16x16xf32>
    %15 = arith.mulf %13, %14 : vector<16x16xf32>
    %cst_16 = arith.constant dense<0xFF800000> : vector<16xf32>
    %16 = vector.multi_reduction <maximumf>, %15, %cst_16 [1] : vector<16x16xf32> to vector<16xf32>
    %17 = vector.shape_cast %16 : vector<16xf32> to vector<16x1xf32>
    %18 = vector.broadcast %17 : vector<16x1xf32> to vector<16x16xf32>
    %19 = arith.subf %15, %18 : vector<16x16xf32>
    %20 = math.exp %19 : vector<16x16xf32>
    %cst_17 = arith.constant dense<0.000000e+00> : vector<16xf32>
    %21 = vector.multi_reduction <add>, %20, %cst_17 [1] : vector<16x16xf32> to vector<16xf32>
    %22 = vector.shape_cast %21 : vector<16xf32> to vector<16x1xf32>
    %23 = tpu.reciprocal %22 {approx = true} : vector<16x1xf32> -> vector<16x1xf32>
    %24 = vector.broadcast %23 : vector<16x1xf32> to vector<16x16xf32>
    %25 = arith.mulf %20, %24 : vector<16x16xf32>
    %26 = arith.truncf %25 : vector<16x16xf32> to vector<16x16xbf16>
    %27 = arith.truncf %12 : vector<16x32xf32> to vector<16x32xbf16>
    %cst_18 = arith.constant dense<0.000000e+00> : vector<16x32xf32>
    %28 = tpu.matmul %26, %27, %cst_18 {dimension_numbers = #tpu.dot_dimension_numbers<[1], [0], [0], [1], [0, 0, 1, 1], [], []>} : vector<16x16xbf16>, vector<16x32xbf16>, vector<16x32xf32> -> vector<16x32xf32>
    %29 = arith.truncf %28 : vector<16x32xf32> to vector<16x32xbf16>
    %c0_19 = arith.constant 0 : index
    %c0_20 = arith.constant 0 : index
    %c0_21 = arith.constant 0 : index
    %30 = vector.load %arg5[%c0_19, %c0_20, %c0_21] : memref<2x32x64xbf16, #tpu.memory_space<vmem>>, vector<1x32x64xbf16>
    %31 = vector.shape_cast %30 : vector<1x32x64xbf16> to vector<32x64xbf16>
    %cst_22 = arith.constant dense<0.000000e+00> : vector<16x64xf32>
    %32 = tpu.matmul %29, %31, %cst_22 {dimension_numbers = #tpu.dot_dimension_numbers<[1], [0], [0], [1], [0, 0, 1, 1], [], []>} : vector<16x32xbf16>, vector<32x64xbf16>, vector<16x64xf32> -> vector<16x64xf32>
    %33 = arith.addf %3, %32 : vector<16x64xf32>
    %c1 = arith.constant 1 : index
    %c0_23 = arith.constant 0 : index
    %c0_24 = arith.constant 0 : index
    %34 = vector.load %arg2[%c1, %c0_23, %c0_24] : memref<2x64x32xbf16, #tpu.memory_space<vmem>>, vector<1x64x32xbf16>
    %35 = vector.shape_cast %34 : vector<1x64x32xbf16> to vector<64x32xbf16>
    %cst_25 = arith.constant dense<0.000000e+00> : vector<16x32xf32>
    %36 = tpu.matmul %2, %35, %cst_25 {dimension_numbers = #tpu.dot_dimension_numbers<[1], [0], [0], [1], [0, 0, 1, 1], [], []>} : vector<16x64xbf16>, vector<64x32xbf16>, vector<16x32xf32> -> vector<16x32xf32>
    %c1_26 = arith.constant 1 : index
    %c0_27 = arith.constant 0 : index
    %c0_28 = arith.constant 0 : index
    %37 = vector.load %arg3[%c1_26, %c0_27, %c0_28] : memref<2x64x32xbf16, #tpu.memory_space<vmem>>, vector<1x64x32xbf16>
    %38 = vector.shape_cast %37 : vector<1x64x32xbf16> to vector<64x32xbf16>
    %cst_29 = arith.constant dense<0.000000e+00> : vector<16x32xf32>
    %39 = tpu.matmul %2, %38, %cst_29 {dimension_numbers = #tpu.dot_dimension_numbers<[1], [0], [0], [1], [0, 0, 1, 1], [], []>} : vector<16x64xbf16>, vector<64x32xbf16>, vector<16x32xf32> -> vector<16x32xf32>
    %c1_30 = arith.constant 1 : index
    %c0_31 = arith.constant 0 : index
    %c0_32 = arith.constant 0 : index
    %40 = vector.load %arg4[%c1_30, %c0_31, %c0_32] : memref<2x64x32xbf16, #tpu.memory_space<vmem>>, vector<1x64x32xbf16>
    %41 = vector.shape_cast %40 : vector<1x64x32xbf16> to vector<64x32xbf16>
    %cst_33 = arith.constant dense<0.000000e+00> : vector<16x32xf32>
    %42 = tpu.matmul %2, %41, %cst_33 {dimension_numbers = #tpu.dot_dimension_numbers<[1], [0], [0], [1], [0, 0, 1, 1], [], []>} : vector<16x64xbf16>, vector<64x32xbf16>, vector<16x32xf32> -> vector<16x32xf32>
    %cst_34 = arith.constant dense<0.000000e+00> : vector<16x16xf32>
    %43 = tpu.matmul %36, %39, %cst_34 {dimension_numbers = #tpu.dot_dimension_numbers<[1], [1], [0], [0], [0, 0, 1, 0], [], []>} : vector<16x32xf32>, vector<16x32xf32>, vector<16x16xf32> -> vector<16x16xf32>
    %cst_35 = arith.constant 0.176776692 : f32
    %44 = vector.broadcast %cst_35 : f32 to vector<16x16xf32>
    %45 = arith.mulf %43, %44 : vector<16x16xf32>
    %cst_36 = arith.constant dense<0xFF800000> : vector<16xf32>
    %46 = vector.multi_reduction <maximumf>, %45, %cst_36 [1] : vector<16x16xf32> to vector<16xf32>
    %47 = vector.shape_cast %46 : vector<16xf32> to vector<16x1xf32>
    %48 = vector.broadcast %47 : vector<16x1xf32> to vector<16x16xf32>
    %49 = arith.subf %45, %48 : vector<16x16xf32>
    %50 = math.exp %49 : vector<16x16xf32>
    %cst_37 = arith.constant dense<0.000000e+00> : vector<16xf32>
    %51 = vector.multi_reduction <add>, %50, %cst_37 [1] : vector<16x16xf32> to vector<16xf32>
    %52 = vector.shape_cast %51 : vector<16xf32> to vector<16x1xf32>
    %53 = tpu.reciprocal %52 {approx = true} : vector<16x1xf32> -> vector<16x1xf32>
    %54 = vector.broadcast %53 : vector<16x1xf32> to vector<16x16xf32>
    %55 = arith.mulf %50, %54 : vector<16x16xf32>
    %56 = arith.truncf %55 : vector<16x16xf32> to vector<16x16xbf16>
    %57 = arith.truncf %42 : vector<16x32xf32> to vector<16x32xbf16>
    %cst_38 = arith.constant dense<0.000000e+00> : vector<16x32xf32>
    %58 = tpu.matmul %56, %57, %cst_38 {dimension_numbers = #tpu.dot_dimension_numbers<[1], [0], [0], [1], [0, 0, 1, 1], [], []>} : vector<16x16xbf16>, vector<16x32xbf16>, vector<16x32xf32> -> vector<16x32xf32>
    %59 = arith.truncf %58 : vector<16x32xf32> to vector<16x32xbf16>
    %c1_39 = arith.constant 1 : index
    %c0_40 = arith.constant 0 : index
    %c0_41 = arith.constant 0 : index
    %60 = vector.load %arg5[%c1_39, %c0_40, %c0_41] : memref<2x32x64xbf16, #tpu.memory_space<vmem>>, vector<1x32x64xbf16>
    %61 = vector.shape_cast %60 : vector<1x32x64xbf16> to vector<32x64xbf16>
    %cst_42 = arith.constant dense<0.000000e+00> : vector<16x64xf32>
    %62 = tpu.matmul %59, %61, %cst_42 {dimension_numbers = #tpu.dot_dimension_numbers<[1], [0], [0], [1], [0, 0, 1, 1], [], []>} : vector<16x32xbf16>, vector<32x64xbf16>, vector<16x64xf32> -> vector<16x64xf32>
    %63 = arith.addf %33, %62 : vector<16x64xf32>
    %c0_43 = arith.constant 0 : index
    %c0_44 = arith.constant 0 : index
    %64 = vector.load %arg6[%c0_43, %c0_44] : memref<1x64xf32, #tpu.memory_space<vmem>>, vector<1x64xf32>
    %65 = vector.broadcast %64 : vector<1x64xf32> to vector<16x64xf32>
    %66 = arith.addf %63, %65 : vector<16x64xf32>
    %c0_45 = arith.constant 0 : index
    %c0_46 = arith.constant 0 : index
    %c0_47 = arith.constant 0 : index
    %67 = vector.load %arg7[%c0_45, %c0_46, %c0_47] : memref<1x16x64xf32, #tpu.memory_space<vmem>>, vector<1x16x64xf32>
    %68 = vector.shape_cast %67 : vector<1x16x64xf32> to vector<16x64xf32>
    %69 = vector.shape_cast %66 : vector<16x64xf32> to vector<1x16x64xf32>
    tpu.vector_store %arg7[%c0_45, %c0_46, %c0_47], %69 {strides = array<i32>} : memref<1x16x64xf32, #tpu.memory_space<vmem>>, vector<1x16x64xf32>,
    return
  }
  func.func @transform_0(%arg0: i32) -> (i32, i32, i32) {
    %c0_i32 = arith.constant 0 : i32
    %c0_i32_0 = arith.constant 0 : i32
    %c0_i32_1 = arith.constant 0 : i32
    return %arg0, %c0_i32, %c0_i32_0 : i32, i32, i32
  }
  func.func @transform_1(%arg0: i32) -> (i32, i32, i32) {
    %c0_i32 = arith.constant 0 : i32
    %c0_i32_0 = arith.constant 0 : i32
    %c0_i32_1 = arith.constant 0 : i32
    %c0_i32_2 = arith.constant 0 : i32
    return %c0_i32, %c0_i32_0, %c0_i32_1 : i32, i32, i32
  }
  func.func @transform_2(%arg0: i32) -> (i32, i32, i32) {
    %c0_i32 = arith.constant 0 : i32
    %c0_i32_0 = arith.constant 0 : i32
    %c0_i32_1 = arith.constant 0 : i32
    %c0_i32_2 = arith.constant 0 : i32
    return %c0_i32, %c0_i32_0, %c0_i32_1 : i32, i32, i32
  }
  func.func @transform_3(%arg0: i32) -> (i32, i32, i32) {
    %c0_i32 = arith.constant 0 : i32
    %c0_i32_0 = arith.constant 0 : i32
    %c0_i32_1 = arith.constant 0 : i32
    %c0_i32_2 = arith.constant 0 : i32
    return %c0_i32, %c0_i32_0, %c0_i32_1 : i32, i32, i32
  }
  func.func @transform_4(%arg0: i32) -> (i32, i32, i32) {
    %c0_i32 = arith.constant 0 : i32
    %c0_i32_0 = arith.constant 0 : i32
    %c0_i32_1 = arith.constant 0 : i32
    %c0_i32_2 = arith.constant 0 : i32
    return %c0_i32, %c0_i32_0, %c0_i32_1 : i32, i32, i32
  }
  func.func @transform_5(%arg0: i32) -> (i32, i32) {
    %c0_i32 = arith.constant 0 : i32
    %c0_i32_0 = arith.constant 0 : i32
    %c0_i32_1 = arith.constant 0 : i32
    return %c0_i32, %c0_i32_0 : i32, i32
  }
  func.func @transform_6(%arg0: i32) -> (i32, i32, i32) {
    %c0_i32 = arith.constant 0 : i32
    %c0_i32_0 = arith.constant 0 : i32
    %c0_i32_1 = arith.constant 0 : i32
    return %arg0, %c0_i32, %c0_i32_0 : i32, i32, i32
  }
}

module attributes {stable_mosaic.version = 11 : i64} {
  func.func @_mbconv_fused_kernel(%arg0: i32, %arg1: memref<1x16x16x64xf32, #tpu.memory_space<vmem>>, %arg2: memref<1x16x16x64xf32, #tpu.memory_space<vmem>>, %arg3: memref<64x256xbf16, #tpu.memory_space<vmem>>, %arg4: memref<1x256xf32, #tpu.memory_space<vmem>>, %arg5: memref<9x256xf32, #tpu.memory_space<vmem>>, %arg6: memref<1x256xf32, #tpu.memory_space<vmem>>, %arg7: memref<256x64xbf16, #tpu.memory_space<vmem>>, %arg8: memref<1x64xf32, #tpu.memory_space<vmem>>, %arg9: memref<1x16x16x64xf32, #tpu.memory_space<vmem>>, %arg10: memref<18x18x256xf32, #tpu.memory_space<vmem>>, %arg11: memref<256x256xf32, #tpu.memory_space<vmem>>) attributes {dimension_semantics = [#tpu.dimension_semantics<parallel>], iteration_bounds = array<i64: 2>, scalar_prefetch = 0 : i64, scratch_operands = 2 : i64, tpu.core_type = #tpu.core_type<tc>, window_params = [{transform_indices = @transform_0, window_bounds = array<i64: 1, 16, 16, 64>}, {transform_indices = @transform_1, window_bounds = array<i64: 1, 16, 16, 64>}, {pipeline_mode = #tpu.pipeline_mode<synchronous>, transform_indices = @transform_2, window_bounds = array<i64: 64, 256>}, {pipeline_mode = #tpu.pipeline_mode<synchronous>, transform_indices = @transform_3, window_bounds = array<i64: 1, 256>}, {pipeline_mode = #tpu.pipeline_mode<synchronous>, transform_indices = @transform_4, window_bounds = array<i64: 9, 256>}, {pipeline_mode = #tpu.pipeline_mode<synchronous>, transform_indices = @transform_5, window_bounds = array<i64: 1, 256>}, {pipeline_mode = #tpu.pipeline_mode<synchronous>, transform_indices = @transform_6, window_bounds = array<i64: 256, 64>}, {pipeline_mode = #tpu.pipeline_mode<synchronous>, transform_indices = @transform_7, window_bounds = array<i64: 1, 64>}, {transform_indices = @transform_8, window_bounds = array<i64: 1, 16, 16, 64>}]} {
    %c0 = arith.constant 0 : index
    %c0_0 = arith.constant 0 : index
    %c0_1 = arith.constant 0 : index
    %c0_2 = arith.constant 0 : index
    %0 = vector.load %arg1[%c0, %c0_0, %c0_1, %c0_2] : memref<1x16x16x64xf32, #tpu.memory_space<vmem>>, vector<1x16x16x64xf32>
    %1 = vector.shape_cast %0 : vector<1x16x16x64xf32> to vector<16x16x64xf32>
    %c0_3 = arith.constant 0 : index
    %c0_4 = arith.constant 0 : index
    %c0_5 = arith.constant 0 : index
    %c0_6 = arith.constant 0 : index
    %2 = vector.load %arg2[%c0_3, %c0_4, %c0_5, %c0_6] : memref<1x16x16x64xf32, #tpu.memory_space<vmem>>, vector<1x16x16x64xf32>
    %3 = vector.shape_cast %2 : vector<1x16x16x64xf32> to vector<16x16x64xf32>
    %4 = arith.addf %1, %3 : vector<16x16x64xf32>
    %5 = vector.shape_cast %4 : vector<16x16x64xf32> to vector<256x64xf32>
    %6 = arith.truncf %5 : vector<256x64xf32> to vector<256x64xbf16>
    %c0_7 = arith.constant 0 : index
    %c0_8 = arith.constant 0 : index
    %7 = vector.load %arg3[%c0_7, %c0_8] : memref<64x256xbf16, #tpu.memory_space<vmem>>, vector<64x256xbf16>
    %cst = arith.constant dense<0.000000e+00> : vector<256x256xf32>
    %8 = tpu.matmul %6, %7, %cst {dimension_numbers = #tpu.dot_dimension_numbers<[1], [0], [0], [1], [0, 0, 1, 1], [], []>} : vector<256x64xbf16>, vector<64x256xbf16>, vector<256x256xf32> -> vector<256x256xf32>
    %c0_9 = arith.constant 0 : index
    %c0_10 = arith.constant 0 : index
    %9 = vector.load %arg4[%c0_9, %c0_10] : memref<1x256xf32, #tpu.memory_space<vmem>>, vector<1x256xf32>
    %10 = vector.broadcast %9 : vector<1x256xf32> to vector<256x256xf32>
    %11 = arith.addf %8, %10 : vector<256x256xf32>
    %cst_11 = arith.constant 3.000000e+00 : f32
    %12 = vector.broadcast %cst_11 : f32 to vector<256x256xf32>
    %13 = arith.addf %11, %12 : vector<256x256xf32>
    %cst_12 = arith.constant 0.000000e+00 : f32
    %cst_13 = arith.constant 6.000000e+00 : f32
    %14 = vector.broadcast %cst_12 : f32 to vector<256x256xf32>
    %15 = arith.maximumf %14, %13 : vector<256x256xf32>
    %16 = vector.broadcast %cst_13 : f32 to vector<256x256xf32>
    %17 = arith.minimumf %16, %15 : vector<256x256xf32>
    %18 = arith.mulf %11, %17 : vector<256x256xf32>
    %cst_14 = arith.constant 0.166666672 : f32
    %19 = vector.broadcast %cst_14 : f32 to vector<256x256xf32>
    %20 = arith.mulf %18, %19 : vector<256x256xf32>
    %cst_15 = arith.constant 0.000000e+00 : f32
    %21 = vector.broadcast %cst_15 : f32 to vector<18x18x256xf32>
    %c0_16 = arith.constant 0 : index
    %c0_17 = arith.constant 0 : index
    %c0_18 = arith.constant 0 : index
    %22 = vector.load %arg10[%c0_16, %c0_17, %c0_18] : memref<18x18x256xf32, #tpu.memory_space<vmem>>, vector<18x18x256xf32>
    tpu.vector_store %arg10[%c0_16, %c0_17, %c0_18], %21 {strides = array<i32>} : memref<18x18x256xf32, #tpu.memory_space<vmem>>, vector<18x18x256xf32>,
    %23 = vector.shape_cast %20 : vector<256x256xf32> to vector<16x16x256xf32>
    %c1 = arith.constant 1 : index
    %c1_19 = arith.constant 1 : index
    %c0_20 = arith.constant 0 : index
    %24 = vector.load %arg10[%c1, %c1_19, %c0_20] : memref<18x18x256xf32, #tpu.memory_space<vmem>>, vector<16x16x256xf32>
    tpu.vector_store %arg10[%c1, %c1_19, %c0_20], %23 {strides = array<i32>} : memref<18x18x256xf32, #tpu.memory_space<vmem>>, vector<16x16x256xf32>,
    %c0_21 = arith.constant 0 : index
    %c0_22 = arith.constant 0 : index
    %25 = vector.load %arg5[%c0_21, %c0_22] : memref<9x256xf32, #tpu.memory_space<vmem>>, vector<9x256xf32>
    %26 = vector.extract_strided_slice %25 {offsets = [0, 0], sizes = [1, 256], strides = [1, 1]} : vector<9x256xf32> to vector<1x256xf32>
    %27 = vector.shape_cast %26 : vector<1x256xf32> to vector<256xf32>
    %28 = vector.shape_cast %27 : vector<256xf32> to vector<1x256xf32>
    %29 = vector.shape_cast %28 : vector<1x256xf32> to vector<1x256xf32>
    %30 = vector.broadcast %29 : vector<1x256xf32> to vector<16x256xf32>
    %31 = vector.extract_strided_slice %25 {offsets = [1, 0], sizes = [1, 256], strides = [1, 1]} : vector<9x256xf32> to vector<1x256xf32>
    %32 = vector.shape_cast %31 : vector<1x256xf32> to vector<256xf32>
    %33 = vector.shape_cast %32 : vector<256xf32> to vector<1x256xf32>
    %34 = vector.shape_cast %33 : vector<1x256xf32> to vector<1x256xf32>
    %35 = vector.broadcast %34 : vector<1x256xf32> to vector<16x256xf32>
    %36 = vector.extract_strided_slice %25 {offsets = [2, 0], sizes = [1, 256], strides = [1, 1]} : vector<9x256xf32> to vector<1x256xf32>
    %37 = vector.shape_cast %36 : vector<1x256xf32> to vector<256xf32>
    %38 = vector.shape_cast %37 : vector<256xf32> to vector<1x256xf32>
    %39 = vector.shape_cast %38 : vector<1x256xf32> to vector<1x256xf32>
    %40 = vector.broadcast %39 : vector<1x256xf32> to vector<16x256xf32>
    %41 = vector.extract_strided_slice %25 {offsets = [3, 0], sizes = [1, 256], strides = [1, 1]} : vector<9x256xf32> to vector<1x256xf32>
    %42 = vector.shape_cast %41 : vector<1x256xf32> to vector<256xf32>
    %43 = vector.shape_cast %42 : vector<256xf32> to vector<1x256xf32>
    %44 = vector.shape_cast %43 : vector<1x256xf32> to vector<1x256xf32>
    %45 = vector.broadcast %44 : vector<1x256xf32> to vector<16x256xf32>
    %46 = vector.extract_strided_slice %25 {offsets = [4, 0], sizes = [1, 256], strides = [1, 1]} : vector<9x256xf32> to vector<1x256xf32>
    %47 = vector.shape_cast %46 : vector<1x256xf32> to vector<256xf32>
    %48 = vector.shape_cast %47 : vector<256xf32> to vector<1x256xf32>
    %49 = vector.shape_cast %48 : vector<1x256xf32> to vector<1x256xf32>
    %50 = vector.broadcast %49 : vector<1x256xf32> to vector<16x256xf32>
    %51 = vector.extract_strided_slice %25 {offsets = [5, 0], sizes = [1, 256], strides = [1, 1]} : vector<9x256xf32> to vector<1x256xf32>
    %52 = vector.shape_cast %51 : vector<1x256xf32> to vector<256xf32>
    %53 = vector.shape_cast %52 : vector<256xf32> to vector<1x256xf32>
    %54 = vector.shape_cast %53 : vector<1x256xf32> to vector<1x256xf32>
    %55 = vector.broadcast %54 : vector<1x256xf32> to vector<16x256xf32>
    %56 = vector.extract_strided_slice %25 {offsets = [6, 0], sizes = [1, 256], strides = [1, 1]} : vector<9x256xf32> to vector<1x256xf32>
    %57 = vector.shape_cast %56 : vector<1x256xf32> to vector<256xf32>
    %58 = vector.shape_cast %57 : vector<256xf32> to vector<1x256xf32>
    %59 = vector.shape_cast %58 : vector<1x256xf32> to vector<1x256xf32>
    %60 = vector.broadcast %59 : vector<1x256xf32> to vector<16x256xf32>
    %61 = vector.extract_strided_slice %25 {offsets = [7, 0], sizes = [1, 256], strides = [1, 1]} : vector<9x256xf32> to vector<1x256xf32>
    %62 = vector.shape_cast %61 : vector<1x256xf32> to vector<256xf32>
    %63 = vector.shape_cast %62 : vector<256xf32> to vector<1x256xf32>
    %64 = vector.shape_cast %63 : vector<1x256xf32> to vector<1x256xf32>
    %65 = vector.broadcast %64 : vector<1x256xf32> to vector<16x256xf32>
    %66 = vector.extract_strided_slice %25 {offsets = [8, 0], sizes = [1, 256], strides = [1, 1]} : vector<9x256xf32> to vector<1x256xf32>
    %67 = vector.shape_cast %66 : vector<1x256xf32> to vector<256xf32>
    %68 = vector.shape_cast %67 : vector<256xf32> to vector<1x256xf32>
    %69 = vector.shape_cast %68 : vector<1x256xf32> to vector<1x256xf32>
    %70 = vector.broadcast %69 : vector<1x256xf32> to vector<16x256xf32>
    %c0_23 = arith.constant 0 : index
    %c0_24 = arith.constant 0 : index
    %71 = vector.load %arg6[%c0_23, %c0_24] : memref<1x256xf32, #tpu.memory_space<vmem>>, vector<1x256xf32>
    %72 = vector.shape_cast %71 : vector<1x256xf32> to vector<1x256xf32>
    %73 = vector.broadcast %72 : vector<1x256xf32> to vector<16x256xf32>
    %c0_25 = arith.constant 0 : index
    %c0_26 = arith.constant 0 : index
    %c0_27 = arith.constant 0 : index
    %74 = vector.load %arg10[%c0_25, %c0_26, %c0_27] : memref<18x18x256xf32, #tpu.memory_space<vmem>>, vector<1x18x256xf32>
    %75 = vector.shape_cast %74 : vector<1x18x256xf32> to vector<18x256xf32>
    %76 = vector.extract_strided_slice %75 {offsets = [0, 0], sizes = [16, 256], strides = [1, 1]} : vector<18x256xf32> to vector<16x256xf32>
    %77 = arith.mulf %76, %30 : vector<16x256xf32>
    %78 = arith.addf %73, %77 : vector<16x256xf32>
    %79 = vector.extract_strided_slice %75 {offsets = [1, 0], sizes = [16, 256], strides = [1, 1]} : vector<18x256xf32> to vector<16x256xf32>
    %80 = arith.mulf %79, %35 : vector<16x256xf32>
    %81 = arith.addf %78, %80 : vector<16x256xf32>
    %82 = vector.extract_strided_slice %75 {offsets = [2, 0], sizes = [16, 256], strides = [1, 1]} : vector<18x256xf32> to vector<16x256xf32>
    %83 = arith.mulf %82, %40 : vector<16x256xf32>
    %84 = arith.addf %81, %83 : vector<16x256xf32>
    %c1_28 = arith.constant 1 : index
    %c0_29 = arith.constant 0 : index
    %c0_30 = arith.constant 0 : index
    %85 = vector.load %arg10[%c1_28, %c0_29, %c0_30] : memref<18x18x256xf32, #tpu.memory_space<vmem>>, vector<1x18x256xf32>
    %86 = vector.shape_cast %85 : vector<1x18x256xf32> to vector<18x256xf32>
    %87 = vector.extract_strided_slice %86 {offsets = [0, 0], sizes = [16, 256], strides = [1, 1]} : vector<18x256xf32> to vector<16x256xf32>
    %88 = arith.mulf %87, %45 : vector<16x256xf32>
    %89 = arith.addf %84, %88 : vector<16x256xf32>
    %90 = vector.extract_strided_slice %86 {offsets = [1, 0], sizes = [16, 256], strides = [1, 1]} : vector<18x256xf32> to vector<16x256xf32>
    %91 = arith.mulf %90, %50 : vector<16x256xf32>
    %92 = arith.addf %89, %91 : vector<16x256xf32>
    %93 = vector.extract_strided_slice %86 {offsets = [2, 0], sizes = [16, 256], strides = [1, 1]} : vector<18x256xf32> to vector<16x256xf32>
    %94 = arith.mulf %93, %55 : vector<16x256xf32>
    %95 = arith.addf %92, %94 : vector<16x256xf32>
    %c2 = arith.constant 2 : index
    %c0_31 = arith.constant 0 : index
    %c0_32 = arith.constant 0 : index
    %96 = vector.load %arg10[%c2, %c0_31, %c0_32] : memref<18x18x256xf32, #tpu.memory_space<vmem>>, vector<1x18x256xf32>
    %97 = vector.shape_cast %96 : vector<1x18x256xf32> to vector<18x256xf32>
    %98 = vector.extract_strided_slice %97 {offsets = [0, 0], sizes = [16, 256], strides = [1, 1]} : vector<18x256xf32> to vector<16x256xf32>
    %99 = arith.mulf %98, %60 : vector<16x256xf32>
    %100 = arith.addf %95, %99 : vector<16x256xf32>
    %101 = vector.extract_strided_slice %97 {offsets = [1, 0], sizes = [16, 256], strides = [1, 1]} : vector<18x256xf32> to vector<16x256xf32>
    %102 = arith.mulf %101, %65 : vector<16x256xf32>
    %103 = arith.addf %100, %102 : vector<16x256xf32>
    %104 = vector.extract_strided_slice %97 {offsets = [2, 0], sizes = [16, 256], strides = [1, 1]} : vector<18x256xf32> to vector<16x256xf32>
    %105 = arith.mulf %104, %70 : vector<16x256xf32>
    %106 = arith.addf %103, %105 : vector<16x256xf32>
    %cst_33 = arith.constant 3.000000e+00 : f32
    %107 = vector.broadcast %cst_33 : f32 to vector<16x256xf32>
    %108 = arith.addf %106, %107 : vector<16x256xf32>
    %cst_34 = arith.constant 0.000000e+00 : f32
    %cst_35 = arith.constant 6.000000e+00 : f32
    %109 = vector.broadcast %cst_34 : f32 to vector<16x256xf32>
    %110 = arith.maximumf %109, %108 : vector<16x256xf32>
    %111 = vector.broadcast %cst_35 : f32 to vector<16x256xf32>
    %112 = arith.minimumf %111, %110 : vector<16x256xf32>
    %113 = arith.mulf %106, %112 : vector<16x256xf32>
    %cst_36 = arith.constant 0.166666672 : f32
    %114 = vector.broadcast %cst_36 : f32 to vector<16x256xf32>
    %115 = arith.mulf %113, %114 : vector<16x256xf32>
    %c0_37 = arith.constant 0 : index
    %c0_38 = arith.constant 0 : index
    %116 = vector.load %arg11[%c0_37, %c0_38] : memref<256x256xf32, #tpu.memory_space<vmem>>, vector<16x256xf32>
    tpu.vector_store %arg11[%c0_37, %c0_38], %115 {strides = array<i32>} : memref<256x256xf32, #tpu.memory_space<vmem>>, vector<16x256xf32>,
    %c1_39 = arith.constant 1 : index
    %c0_40 = arith.constant 0 : index
    %c0_41 = arith.constant 0 : index
    %117 = vector.load %arg10[%c1_39, %c0_40, %c0_41] : memref<18x18x256xf32, #tpu.memory_space<vmem>>, vector<1x18x256xf32>
    %118 = vector.shape_cast %117 : vector<1x18x256xf32> to vector<18x256xf32>
    %119 = vector.extract_strided_slice %118 {offsets = [0, 0], sizes = [16, 256], strides = [1, 1]} : vector<18x256xf32> to vector<16x256xf32>
    %120 = arith.mulf %119, %30 : vector<16x256xf32>
    %121 = arith.addf %73, %120 : vector<16x256xf32>
    %122 = vector.extract_strided_slice %118 {offsets = [1, 0], sizes = [16, 256], strides = [1, 1]} : vector<18x256xf32> to vector<16x256xf32>
    %123 = arith.mulf %122, %35 : vector<16x256xf32>
    %124 = arith.addf %121, %123 : vector<16x256xf32>
    %125 = vector.extract_strided_slice %118 {offsets = [2, 0], sizes = [16, 256], strides = [1, 1]} : vector<18x256xf32> to vector<16x256xf32>
    %126 = arith.mulf %125, %40 : vector<16x256xf32>
    %127 = arith.addf %124, %126 : vector<16x256xf32>
    %c2_42 = arith.constant 2 : index
    %c0_43 = arith.constant 0 : index
    %c0_44 = arith.constant 0 : index
    %128 = vector.load %arg10[%c2_42, %c0_43, %c0_44] : memref<18x18x256xf32, #tpu.memory_space<vmem>>, vector<1x18x256xf32>
    %129 = vector.shape_cast %128 : vector<1x18x256xf32> to vector<18x256xf32>
    %130 = vector.extract_strided_slice %129 {offsets = [0, 0], sizes = [16, 256], strides = [1, 1]} : vector<18x256xf32> to vector<16x256xf32>
    %131 = arith.mulf %130, %45 : vector<16x256xf32>
    %132 = arith.addf %127, %131 : vector<16x256xf32>
    %133 = vector.extract_strided_slice %129 {offsets = [1, 0], sizes = [16, 256], strides = [1, 1]} : vector<18x256xf32> to vector<16x256xf32>
    %134 = arith.mulf %133, %50 : vector<16x256xf32>
    %135 = arith.addf %132, %134 : vector<16x256xf32>
    %136 = vector.extract_strided_slice %129 {offsets = [2, 0], sizes = [16, 256], strides = [1, 1]} : vector<18x256xf32> to vector<16x256xf32>
    %137 = arith.mulf %136, %55 : vector<16x256xf32>
    %138 = arith.addf %135, %137 : vector<16x256xf32>
    %c3 = arith.constant 3 : index
    %c0_45 = arith.constant 0 : index
    %c0_46 = arith.constant 0 : index
    %139 = vector.load %arg10[%c3, %c0_45, %c0_46] : memref<18x18x256xf32, #tpu.memory_space<vmem>>, vector<1x18x256xf32>
    %140 = vector.shape_cast %139 : vector<1x18x256xf32> to vector<18x256xf32>
    %141 = vector.extract_strided_slice %140 {offsets = [0, 0], sizes = [16, 256], strides = [1, 1]} : vector<18x256xf32> to vector<16x256xf32>
    %142 = arith.mulf %141, %60 : vector<16x256xf32>
    %143 = arith.addf %138, %142 : vector<16x256xf32>
    %144 = vector.extract_strided_slice %140 {offsets = [1, 0], sizes = [16, 256], strides = [1, 1]} : vector<18x256xf32> to vector<16x256xf32>
    %145 = arith.mulf %144, %65 : vector<16x256xf32>
    %146 = arith.addf %143, %145 : vector<16x256xf32>
    %147 = vector.extract_strided_slice %140 {offsets = [2, 0], sizes = [16, 256], strides = [1, 1]} : vector<18x256xf32> to vector<16x256xf32>
    %148 = arith.mulf %147, %70 : vector<16x256xf32>
    %149 = arith.addf %146, %148 : vector<16x256xf32>
    %cst_47 = arith.constant 3.000000e+00 : f32
    %150 = vector.broadcast %cst_47 : f32 to vector<16x256xf32>
    %151 = arith.addf %149, %150 : vector<16x256xf32>
    %cst_48 = arith.constant 0.000000e+00 : f32
    %cst_49 = arith.constant 6.000000e+00 : f32
    %152 = vector.broadcast %cst_48 : f32 to vector<16x256xf32>
    %153 = arith.maximumf %152, %151 : vector<16x256xf32>
    %154 = vector.broadcast %cst_49 : f32 to vector<16x256xf32>
    %155 = arith.minimumf %154, %153 : vector<16x256xf32>
    %156 = arith.mulf %149, %155 : vector<16x256xf32>
    %cst_50 = arith.constant 0.166666672 : f32
    %157 = vector.broadcast %cst_50 : f32 to vector<16x256xf32>
    %158 = arith.mulf %156, %157 : vector<16x256xf32>
    %c16 = arith.constant 16 : index
    %c0_51 = arith.constant 0 : index
    %159 = vector.load %arg11[%c16, %c0_51] : memref<256x256xf32, #tpu.memory_space<vmem>>, vector<16x256xf32>
    tpu.vector_store %arg11[%c16, %c0_51], %158 {strides = array<i32>} : memref<256x256xf32, #tpu.memory_space<vmem>>, vector<16x256xf32>,
    %c2_52 = arith.constant 2 : index
    %c0_53 = arith.constant 0 : index
    %c0_54 = arith.constant 0 : index
    %160 = vector.load %arg10[%c2_52, %c0_53, %c0_54] : memref<18x18x256xf32, #tpu.memory_space<vmem>>, vector<1x18x256xf32>
    %161 = vector.shape_cast %160 : vector<1x18x256xf32> to vector<18x256xf32>
    %162 = vector.extract_strided_slice %161 {offsets = [0, 0], sizes = [16, 256], strides = [1, 1]} : vector<18x256xf32> to vector<16x256xf32>
    %163 = arith.mulf %162, %30 : vector<16x256xf32>
    %164 = arith.addf %73, %163 : vector<16x256xf32>
    %165 = vector.extract_strided_slice %161 {offsets = [1, 0], sizes = [16, 256], strides = [1, 1]} : vector<18x256xf32> to vector<16x256xf32>
    %166 = arith.mulf %165, %35 : vector<16x256xf32>
    %167 = arith.addf %164, %166 : vector<16x256xf32>
    %168 = vector.extract_strided_slice %161 {offsets = [2, 0], sizes = [16, 256], strides = [1, 1]} : vector<18x256xf32> to vector<16x256xf32>
    %169 = arith.mulf %168, %40 : vector<16x256xf32>
    %170 = arith.addf %167, %169 : vector<16x256xf32>
    %c3_55 = arith.constant 3 : index
    %c0_56 = arith.constant 0 : index
    %c0_57 = arith.constant 0 : index
    %171 = vector.load %arg10[%c3_55, %c0_56, %c0_57] : memref<18x18x256xf32, #tpu.memory_space<vmem>>, vector<1x18x256xf32>
    %172 = vector.shape_cast %171 : vector<1x18x256xf32> to vector<18x256xf32>
    %173 = vector.extract_strided_slice %172 {offsets = [0, 0], sizes = [16, 256], strides = [1, 1]} : vector<18x256xf32> to vector<16x256xf32>
    %174 = arith.mulf %173, %45 : vector<16x256xf32>
    %175 = arith.addf %170, %174 : vector<16x256xf32>
    %176 = vector.extract_strided_slice %172 {offsets = [1, 0], sizes = [16, 256], strides = [1, 1]} : vector<18x256xf32> to vector<16x256xf32>
    %177 = arith.mulf %176, %50 : vector<16x256xf32>
    %178 = arith.addf %175, %177 : vector<16x256xf32>
    %179 = vector.extract_strided_slice %172 {offsets = [2, 0], sizes = [16, 256], strides = [1, 1]} : vector<18x256xf32> to vector<16x256xf32>
    %180 = arith.mulf %179, %55 : vector<16x256xf32>
    %181 = arith.addf %178, %180 : vector<16x256xf32>
    %c4 = arith.constant 4 : index
    %c0_58 = arith.constant 0 : index
    %c0_59 = arith.constant 0 : index
    %182 = vector.load %arg10[%c4, %c0_58, %c0_59] : memref<18x18x256xf32, #tpu.memory_space<vmem>>, vector<1x18x256xf32>
    %183 = vector.shape_cast %182 : vector<1x18x256xf32> to vector<18x256xf32>
    %184 = vector.extract_strided_slice %183 {offsets = [0, 0], sizes = [16, 256], strides = [1, 1]} : vector<18x256xf32> to vector<16x256xf32>
    %185 = arith.mulf %184, %60 : vector<16x256xf32>
    %186 = arith.addf %181, %185 : vector<16x256xf32>
    %187 = vector.extract_strided_slice %183 {offsets = [1, 0], sizes = [16, 256], strides = [1, 1]} : vector<18x256xf32> to vector<16x256xf32>
    %188 = arith.mulf %187, %65 : vector<16x256xf32>
    %189 = arith.addf %186, %188 : vector<16x256xf32>
    %190 = vector.extract_strided_slice %183 {offsets = [2, 0], sizes = [16, 256], strides = [1, 1]} : vector<18x256xf32> to vector<16x256xf32>
    %191 = arith.mulf %190, %70 : vector<16x256xf32>
    %192 = arith.addf %189, %191 : vector<16x256xf32>
    %cst_60 = arith.constant 3.000000e+00 : f32
    %193 = vector.broadcast %cst_60 : f32 to vector<16x256xf32>
    %194 = arith.addf %192, %193 : vector<16x256xf32>
    %cst_61 = arith.constant 0.000000e+00 : f32
    %cst_62 = arith.constant 6.000000e+00 : f32
    %195 = vector.broadcast %cst_61 : f32 to vector<16x256xf32>
    %196 = arith.maximumf %195, %194 : vector<16x256xf32>
    %197 = vector.broadcast %cst_62 : f32 to vector<16x256xf32>
    %198 = arith.minimumf %197, %196 : vector<16x256xf32>
    %199 = arith.mulf %192, %198 : vector<16x256xf32>
    %cst_63 = arith.constant 0.166666672 : f32
    %200 = vector.broadcast %cst_63 : f32 to vector<16x256xf32>
    %201 = arith.mulf %199, %200 : vector<16x256xf32>
    %c32 = arith.constant 32 : index
    %c0_64 = arith.constant 0 : index
    %202 = vector.load %arg11[%c32, %c0_64] : memref<256x256xf32, #tpu.memory_space<vmem>>, vector<16x256xf32>
    tpu.vector_store %arg11[%c32, %c0_64], %201 {strides = array<i32>} : memref<256x256xf32, #tpu.memory_space<vmem>>, vector<16x256xf32>,
    %c3_65 = arith.constant 3 : index
    %c0_66 = arith.constant 0 : index
    %c0_67 = arith.constant 0 : index
    %203 = vector.load %arg10[%c3_65, %c0_66, %c0_67] : memref<18x18x256xf32, #tpu.memory_space<vmem>>, vector<1x18x256xf32>
    %204 = vector.shape_cast %203 : vector<1x18x256xf32> to vector<18x256xf32>
    %205 = vector.extract_strided_slice %204 {offsets = [0, 0], sizes = [16, 256], strides = [1, 1]} : vector<18x256xf32> to vector<16x256xf32>
    %206 = arith.mulf %205, %30 : vector<16x256xf32>
    %207 = arith.addf %73, %206 : vector<16x256xf32>
    %208 = vector.extract_strided_slice %204 {offsets = [1, 0], sizes = [16, 256], strides = [1, 1]} : vector<18x256xf32> to vector<16x256xf32>
    %209 = arith.mulf %208, %35 : vector<16x256xf32>
    %210 = arith.addf %207, %209 : vector<16x256xf32>
    %211 = vector.extract_strided_slice %204 {offsets = [2, 0], sizes = [16, 256], strides = [1, 1]} : vector<18x256xf32> to vector<16x256xf32>
    %212 = arith.mulf %211, %40 : vector<16x256xf32>
    %213 = arith.addf %210, %212 : vector<16x256xf32>
    %c4_68 = arith.constant 4 : index
    %c0_69 = arith.constant 0 : index
    %c0_70 = arith.constant 0 : index
    %214 = vector.load %arg10[%c4_68, %c0_69, %c0_70] : memref<18x18x256xf32, #tpu.memory_space<vmem>>, vector<1x18x256xf32>
    %215 = vector.shape_cast %214 : vector<1x18x256xf32> to vector<18x256xf32>
    %216 = vector.extract_strided_slice %215 {offsets = [0, 0], sizes = [16, 256], strides = [1, 1]} : vector<18x256xf32> to vector<16x256xf32>
    %217 = arith.mulf %216, %45 : vector<16x256xf32>
    %218 = arith.addf %213, %217 : vector<16x256xf32>
    %219 = vector.extract_strided_slice %215 {offsets = [1, 0], sizes = [16, 256], strides = [1, 1]} : vector<18x256xf32> to vector<16x256xf32>
    %220 = arith.mulf %219, %50 : vector<16x256xf32>
    %221 = arith.addf %218, %220 : vector<16x256xf32>
    %222 = vector.extract_strided_slice %215 {offsets = [2, 0], sizes = [16, 256], strides = [1, 1]} : vector<18x256xf32> to vector<16x256xf32>
    %223 = arith.mulf %222, %55 : vector<16x256xf32>
    %224 = arith.addf %221, %223 : vector<16x256xf32>
    %c5 = arith.constant 5 : index
    %c0_71 = arith.constant 0 : index
    %c0_72 = arith.constant 0 : index
    %225 = vector.load %arg10[%c5, %c0_71, %c0_72] : memref<18x18x256xf32, #tpu.memory_space<vmem>>, vector<1x18x256xf32>
    %226 = vector.shape_cast %225 : vector<1x18x256xf32> to vector<18x256xf32>
    %227 = vector.extract_strided_slice %226 {offsets = [0, 0], sizes = [16, 256], strides = [1, 1]} : vector<18x256xf32> to vector<16x256xf32>
    %228 = arith.mulf %227, %60 : vector<16x256xf32>
    %229 = arith.addf %224, %228 : vector<16x256xf32>
    %230 = vector.extract_strided_slice %226 {offsets = [1, 0], sizes = [16, 256], strides = [1, 1]} : vector<18x256xf32> to vector<16x256xf32>
    %231 = arith.mulf %230, %65 : vector<16x256xf32>
    %232 = arith.addf %229, %231 : vector<16x256xf32>
    %233 = vector.extract_strided_slice %226 {offsets = [2, 0], sizes = [16, 256], strides = [1, 1]} : vector<18x256xf32> to vector<16x256xf32>
    %234 = arith.mulf %233, %70 : vector<16x256xf32>
    %235 = arith.addf %232, %234 : vector<16x256xf32>
    %cst_73 = arith.constant 3.000000e+00 : f32
    %236 = vector.broadcast %cst_73 : f32 to vector<16x256xf32>
    %237 = arith.addf %235, %236 : vector<16x256xf32>
    %cst_74 = arith.constant 0.000000e+00 : f32
    %cst_75 = arith.constant 6.000000e+00 : f32
    %238 = vector.broadcast %cst_74 : f32 to vector<16x256xf32>
    %239 = arith.maximumf %238, %237 : vector<16x256xf32>
    %240 = vector.broadcast %cst_75 : f32 to vector<16x256xf32>
    %241 = arith.minimumf %240, %239 : vector<16x256xf32>
    %242 = arith.mulf %235, %241 : vector<16x256xf32>
    %cst_76 = arith.constant 0.166666672 : f32
    %243 = vector.broadcast %cst_76 : f32 to vector<16x256xf32>
    %244 = arith.mulf %242, %243 : vector<16x256xf32>
    %c48 = arith.constant 48 : index
    %c0_77 = arith.constant 0 : index
    %245 = vector.load %arg11[%c48, %c0_77] : memref<256x256xf32, #tpu.memory_space<vmem>>, vector<16x256xf32>
    tpu.vector_store %arg11[%c48, %c0_77], %244 {strides = array<i32>} : memref<256x256xf32, #tpu.memory_space<vmem>>, vector<16x256xf32>,
    %c4_78 = arith.constant 4 : index
    %c0_79 = arith.constant 0 : index
    %c0_80 = arith.constant 0 : index
    %246 = vector.load %arg10[%c4_78, %c0_79, %c0_80] : memref<18x18x256xf32, #tpu.memory_space<vmem>>, vector<1x18x256xf32>
    %247 = vector.shape_cast %246 : vector<1x18x256xf32> to vector<18x256xf32>
    %248 = vector.extract_strided_slice %247 {offsets = [0, 0], sizes = [16, 256], strides = [1, 1]} : vector<18x256xf32> to vector<16x256xf32>
    %249 = arith.mulf %248, %30 : vector<16x256xf32>
    %250 = arith.addf %73, %249 : vector<16x256xf32>
    %251 = vector.extract_strided_slice %247 {offsets = [1, 0], sizes = [16, 256], strides = [1, 1]} : vector<18x256xf32> to vector<16x256xf32>
    %252 = arith.mulf %251, %35 : vector<16x256xf32>
    %253 = arith.addf %250, %252 : vector<16x256xf32>
    %254 = vector.extract_strided_slice %247 {offsets = [2, 0], sizes = [16, 256], strides = [1, 1]} : vector<18x256xf32> to vector<16x256xf32>
    %255 = arith.mulf %254, %40 : vector<16x256xf32>
    %256 = arith.addf %253, %255 : vector<16x256xf32>
    %c5_81 = arith.constant 5 : index
    %c0_82 = arith.constant 0 : index
    %c0_83 = arith.constant 0 : index
    %257 = vector.load %arg10[%c5_81, %c0_82, %c0_83] : memref<18x18x256xf32, #tpu.memory_space<vmem>>, vector<1x18x256xf32>
    %258 = vector.shape_cast %257 : vector<1x18x256xf32> to vector<18x256xf32>
    %259 = vector.extract_strided_slice %258 {offsets = [0, 0], sizes = [16, 256], strides = [1, 1]} : vector<18x256xf32> to vector<16x256xf32>
    %260 = arith.mulf %259, %45 : vector<16x256xf32>
    %261 = arith.addf %256, %260 : vector<16x256xf32>
    %262 = vector.extract_strided_slice %258 {offsets = [1, 0], sizes = [16, 256], strides = [1, 1]} : vector<18x256xf32> to vector<16x256xf32>
    %263 = arith.mulf %262, %50 : vector<16x256xf32>
    %264 = arith.addf %261, %263 : vector<16x256xf32>
    %265 = vector.extract_strided_slice %258 {offsets = [2, 0], sizes = [16, 256], strides = [1, 1]} : vector<18x256xf32> to vector<16x256xf32>
    %266 = arith.mulf %265, %55 : vector<16x256xf32>
    %267 = arith.addf %264, %266 : vector<16x256xf32>
    %c6 = arith.constant 6 : index
    %c0_84 = arith.constant 0 : index
    %c0_85 = arith.constant 0 : index
    %268 = vector.load %arg10[%c6, %c0_84, %c0_85] : memref<18x18x256xf32, #tpu.memory_space<vmem>>, vector<1x18x256xf32>
    %269 = vector.shape_cast %268 : vector<1x18x256xf32> to vector<18x256xf32>
    %270 = vector.extract_strided_slice %269 {offsets = [0, 0], sizes = [16, 256], strides = [1, 1]} : vector<18x256xf32> to vector<16x256xf32>
    %271 = arith.mulf %270, %60 : vector<16x256xf32>
    %272 = arith.addf %267, %271 : vector<16x256xf32>
    %273 = vector.extract_strided_slice %269 {offsets = [1, 0], sizes = [16, 256], strides = [1, 1]} : vector<18x256xf32> to vector<16x256xf32>
    %274 = arith.mulf %273, %65 : vector<16x256xf32>
    %275 = arith.addf %272, %274 : vector<16x256xf32>
    %276 = vector.extract_strided_slice %269 {offsets = [2, 0], sizes = [16, 256], strides = [1, 1]} : vector<18x256xf32> to vector<16x256xf32>
    %277 = arith.mulf %276, %70 : vector<16x256xf32>
    %278 = arith.addf %275, %277 : vector<16x256xf32>
    %cst_86 = arith.constant 3.000000e+00 : f32
    %279 = vector.broadcast %cst_86 : f32 to vector<16x256xf32>
    %280 = arith.addf %278, %279 : vector<16x256xf32>
    %cst_87 = arith.constant 0.000000e+00 : f32
    %cst_88 = arith.constant 6.000000e+00 : f32
    %281 = vector.broadcast %cst_87 : f32 to vector<16x256xf32>
    %282 = arith.maximumf %281, %280 : vector<16x256xf32>
    %283 = vector.broadcast %cst_88 : f32 to vector<16x256xf32>
    %284 = arith.minimumf %283, %282 : vector<16x256xf32>
    %285 = arith.mulf %278, %284 : vector<16x256xf32>
    %cst_89 = arith.constant 0.166666672 : f32
    %286 = vector.broadcast %cst_89 : f32 to vector<16x256xf32>
    %287 = arith.mulf %285, %286 : vector<16x256xf32>
    %c64 = arith.constant 64 : index
    %c0_90 = arith.constant 0 : index
    %288 = vector.load %arg11[%c64, %c0_90] : memref<256x256xf32, #tpu.memory_space<vmem>>, vector<16x256xf32>
    tpu.vector_store %arg11[%c64, %c0_90], %287 {strides = array<i32>} : memref<256x256xf32, #tpu.memory_space<vmem>>, vector<16x256xf32>,
    %c5_91 = arith.constant 5 : index
    %c0_92 = arith.constant 0 : index
    %c0_93 = arith.constant 0 : index
    %289 = vector.load %arg10[%c5_91, %c0_92, %c0_93] : memref<18x18x256xf32, #tpu.memory_space<vmem>>, vector<1x18x256xf32>
    %290 = vector.shape_cast %289 : vector<1x18x256xf32> to vector<18x256xf32>
    %291 = vector.extract_strided_slice %290 {offsets = [0, 0], sizes = [16, 256], strides = [1, 1]} : vector<18x256xf32> to vector<16x256xf32>
    %292 = arith.mulf %291, %30 : vector<16x256xf32>
    %293 = arith.addf %73, %292 : vector<16x256xf32>
    %294 = vector.extract_strided_slice %290 {offsets = [1, 0], sizes = [16, 256], strides = [1, 1]} : vector<18x256xf32> to vector<16x256xf32>
    %295 = arith.mulf %294, %35 : vector<16x256xf32>
    %296 = arith.addf %293, %295 : vector<16x256xf32>
    %297 = vector.extract_strided_slice %290 {offsets = [2, 0], sizes = [16, 256], strides = [1, 1]} : vector<18x256xf32> to vector<16x256xf32>
    %298 = arith.mulf %297, %40 : vector<16x256xf32>
    %299 = arith.addf %296, %298 : vector<16x256xf32>
    %c6_94 = arith.constant 6 : index
    %c0_95 = arith.constant 0 : index
    %c0_96 = arith.constant 0 : index
    %300 = vector.load %arg10[%c6_94, %c0_95, %c0_96] : memref<18x18x256xf32, #tpu.memory_space<vmem>>, vector<1x18x256xf32>
    %301 = vector.shape_cast %300 : vector<1x18x256xf32> to vector<18x256xf32>
    %302 = vector.extract_strided_slice %301 {offsets = [0, 0], sizes = [16, 256], strides = [1, 1]} : vector<18x256xf32> to vector<16x256xf32>
    %303 = arith.mulf %302, %45 : vector<16x256xf32>
    %304 = arith.addf %299, %303 : vector<16x256xf32>
    %305 = vector.extract_strided_slice %301 {offsets = [1, 0], sizes = [16, 256], strides = [1, 1]} : vector<18x256xf32> to vector<16x256xf32>
    %306 = arith.mulf %305, %50 : vector<16x256xf32>
    %307 = arith.addf %304, %306 : vector<16x256xf32>
    %308 = vector.extract_strided_slice %301 {offsets = [2, 0], sizes = [16, 256], strides = [1, 1]} : vector<18x256xf32> to vector<16x256xf32>
    %309 = arith.mulf %308, %55 : vector<16x256xf32>
    %310 = arith.addf %307, %309 : vector<16x256xf32>
    %c7 = arith.constant 7 : index
    %c0_97 = arith.constant 0 : index
    %c0_98 = arith.constant 0 : index
    %311 = vector.load %arg10[%c7, %c0_97, %c0_98] : memref<18x18x256xf32, #tpu.memory_space<vmem>>, vector<1x18x256xf32>
    %312 = vector.shape_cast %311 : vector<1x18x256xf32> to vector<18x256xf32>
    %313 = vector.extract_strided_slice %312 {offsets = [0, 0], sizes = [16, 256], strides = [1, 1]} : vector<18x256xf32> to vector<16x256xf32>
    %314 = arith.mulf %313, %60 : vector<16x256xf32>
    %315 = arith.addf %310, %314 : vector<16x256xf32>
    %316 = vector.extract_strided_slice %312 {offsets = [1, 0], sizes = [16, 256], strides = [1, 1]} : vector<18x256xf32> to vector<16x256xf32>
    %317 = arith.mulf %316, %65 : vector<16x256xf32>
    %318 = arith.addf %315, %317 : vector<16x256xf32>
    %319 = vector.extract_strided_slice %312 {offsets = [2, 0], sizes = [16, 256], strides = [1, 1]} : vector<18x256xf32> to vector<16x256xf32>
    %320 = arith.mulf %319, %70 : vector<16x256xf32>
    %321 = arith.addf %318, %320 : vector<16x256xf32>
    %cst_99 = arith.constant 3.000000e+00 : f32
    %322 = vector.broadcast %cst_99 : f32 to vector<16x256xf32>
    %323 = arith.addf %321, %322 : vector<16x256xf32>
    %cst_100 = arith.constant 0.000000e+00 : f32
    %cst_101 = arith.constant 6.000000e+00 : f32
    %324 = vector.broadcast %cst_100 : f32 to vector<16x256xf32>
    %325 = arith.maximumf %324, %323 : vector<16x256xf32>
    %326 = vector.broadcast %cst_101 : f32 to vector<16x256xf32>
    %327 = arith.minimumf %326, %325 : vector<16x256xf32>
    %328 = arith.mulf %321, %327 : vector<16x256xf32>
    %cst_102 = arith.constant 0.166666672 : f32
    %329 = vector.broadcast %cst_102 : f32 to vector<16x256xf32>
    %330 = arith.mulf %328, %329 : vector<16x256xf32>
    %c80 = arith.constant 80 : index
    %c0_103 = arith.constant 0 : index
    %331 = vector.load %arg11[%c80, %c0_103] : memref<256x256xf32, #tpu.memory_space<vmem>>, vector<16x256xf32>
    tpu.vector_store %arg11[%c80, %c0_103], %330 {strides = array<i32>} : memref<256x256xf32, #tpu.memory_space<vmem>>, vector<16x256xf32>,
    %c6_104 = arith.constant 6 : index
    %c0_105 = arith.constant 0 : index
    %c0_106 = arith.constant 0 : index
    %332 = vector.load %arg10[%c6_104, %c0_105, %c0_106] : memref<18x18x256xf32, #tpu.memory_space<vmem>>, vector<1x18x256xf32>
    %333 = vector.shape_cast %332 : vector<1x18x256xf32> to vector<18x256xf32>
    %334 = vector.extract_strided_slice %333 {offsets = [0, 0], sizes = [16, 256], strides = [1, 1]} : vector<18x256xf32> to vector<16x256xf32>
    %335 = arith.mulf %334, %30 : vector<16x256xf32>
    %336 = arith.addf %73, %335 : vector<16x256xf32>
    %337 = vector.extract_strided_slice %333 {offsets = [1, 0], sizes = [16, 256], strides = [1, 1]} : vector<18x256xf32> to vector<16x256xf32>
    %338 = arith.mulf %337, %35 : vector<16x256xf32>
    %339 = arith.addf %336, %338 : vector<16x256xf32>
    %340 = vector.extract_strided_slice %333 {offsets = [2, 0], sizes = [16, 256], strides = [1, 1]} : vector<18x256xf32> to vector<16x256xf32>
    %341 = arith.mulf %340, %40 : vector<16x256xf32>
    %342 = arith.addf %339, %341 : vector<16x256xf32>
    %c7_107 = arith.constant 7 : index
    %c0_108 = arith.constant 0 : index
    %c0_109 = arith.constant 0 : index
    %343 = vector.load %arg10[%c7_107, %c0_108, %c0_109] : memref<18x18x256xf32, #tpu.memory_space<vmem>>, vector<1x18x256xf32>
    %344 = vector.shape_cast %343 : vector<1x18x256xf32> to vector<18x256xf32>
    %345 = vector.extract_strided_slice %344 {offsets = [0, 0], sizes = [16, 256], strides = [1, 1]} : vector<18x256xf32> to vector<16x256xf32>
    %346 = arith.mulf %345, %45 : vector<16x256xf32>
    %347 = arith.addf %342, %346 : vector<16x256xf32>
    %348 = vector.extract_strided_slice %344 {offsets = [1, 0], sizes = [16, 256], strides = [1, 1]} : vector<18x256xf32> to vector<16x256xf32>
    %349 = arith.mulf %348, %50 : vector<16x256xf32>
    %350 = arith.addf %347, %349 : vector<16x256xf32>
    %351 = vector.extract_strided_slice %344 {offsets = [2, 0], sizes = [16, 256], strides = [1, 1]} : vector<18x256xf32> to vector<16x256xf32>
    %352 = arith.mulf %351, %55 : vector<16x256xf32>
    %353 = arith.addf %350, %352 : vector<16x256xf32>
    %c8 = arith.constant 8 : index
    %c0_110 = arith.constant 0 : index
    %c0_111 = arith.constant 0 : index
    %354 = vector.load %arg10[%c8, %c0_110, %c0_111] : memref<18x18x256xf32, #tpu.memory_space<vmem>>, vector<1x18x256xf32>
    %355 = vector.shape_cast %354 : vector<1x18x256xf32> to vector<18x256xf32>
    %356 = vector.extract_strided_slice %355 {offsets = [0, 0], sizes = [16, 256], strides = [1, 1]} : vector<18x256xf32> to vector<16x256xf32>
    %357 = arith.mulf %356, %60 : vector<16x256xf32>
    %358 = arith.addf %353, %357 : vector<16x256xf32>
    %359 = vector.extract_strided_slice %355 {offsets = [1, 0], sizes = [16, 256], strides = [1, 1]} : vector<18x256xf32> to vector<16x256xf32>
    %360 = arith.mulf %359, %65 : vector<16x256xf32>
    %361 = arith.addf %358, %360 : vector<16x256xf32>
    %362 = vector.extract_strided_slice %355 {offsets = [2, 0], sizes = [16, 256], strides = [1, 1]} : vector<18x256xf32> to vector<16x256xf32>
    %363 = arith.mulf %362, %70 : vector<16x256xf32>
    %364 = arith.addf %361, %363 : vector<16x256xf32>
    %cst_112 = arith.constant 3.000000e+00 : f32
    %365 = vector.broadcast %cst_112 : f32 to vector<16x256xf32>
    %366 = arith.addf %364, %365 : vector<16x256xf32>
    %cst_113 = arith.constant 0.000000e+00 : f32
    %cst_114 = arith.constant 6.000000e+00 : f32
    %367 = vector.broadcast %cst_113 : f32 to vector<16x256xf32>
    %368 = arith.maximumf %367, %366 : vector<16x256xf32>
    %369 = vector.broadcast %cst_114 : f32 to vector<16x256xf32>
    %370 = arith.minimumf %369, %368 : vector<16x256xf32>
    %371 = arith.mulf %364, %370 : vector<16x256xf32>
    %cst_115 = arith.constant 0.166666672 : f32
    %372 = vector.broadcast %cst_115 : f32 to vector<16x256xf32>
    %373 = arith.mulf %371, %372 : vector<16x256xf32>
    %c96 = arith.constant 96 : index
    %c0_116 = arith.constant 0 : index
    %374 = vector.load %arg11[%c96, %c0_116] : memref<256x256xf32, #tpu.memory_space<vmem>>, vector<16x256xf32>
    tpu.vector_store %arg11[%c96, %c0_116], %373 {strides = array<i32>} : memref<256x256xf32, #tpu.memory_space<vmem>>, vector<16x256xf32>,
    %c7_117 = arith.constant 7 : index
    %c0_118 = arith.constant 0 : index
    %c0_119 = arith.constant 0 : index
    %375 = vector.load %arg10[%c7_117, %c0_118, %c0_119] : memref<18x18x256xf32, #tpu.memory_space<vmem>>, vector<1x18x256xf32>
    %376 = vector.shape_cast %375 : vector<1x18x256xf32> to vector<18x256xf32>
    %377 = vector.extract_strided_slice %376 {offsets = [0, 0], sizes = [16, 256], strides = [1, 1]} : vector<18x256xf32> to vector<16x256xf32>
    %378 = arith.mulf %377, %30 : vector<16x256xf32>
    %379 = arith.addf %73, %378 : vector<16x256xf32>
    %380 = vector.extract_strided_slice %376 {offsets = [1, 0], sizes = [16, 256], strides = [1, 1]} : vector<18x256xf32> to vector<16x256xf32>
    %381 = arith.mulf %380, %35 : vector<16x256xf32>
    %382 = arith.addf %379, %381 : vector<16x256xf32>
    %383 = vector.extract_strided_slice %376 {offsets = [2, 0], sizes = [16, 256], strides = [1, 1]} : vector<18x256xf32> to vector<16x256xf32>
    %384 = arith.mulf %383, %40 : vector<16x256xf32>
    %385 = arith.addf %382, %384 : vector<16x256xf32>
    %c8_120 = arith.constant 8 : index
    %c0_121 = arith.constant 0 : index
    %c0_122 = arith.constant 0 : index
    %386 = vector.load %arg10[%c8_120, %c0_121, %c0_122] : memref<18x18x256xf32, #tpu.memory_space<vmem>>, vector<1x18x256xf32>
    %387 = vector.shape_cast %386 : vector<1x18x256xf32> to vector<18x256xf32>
    %388 = vector.extract_strided_slice %387 {offsets = [0, 0], sizes = [16, 256], strides = [1, 1]} : vector<18x256xf32> to vector<16x256xf32>
    %389 = arith.mulf %388, %45 : vector<16x256xf32>
    %390 = arith.addf %385, %389 : vector<16x256xf32>
    %391 = vector.extract_strided_slice %387 {offsets = [1, 0], sizes = [16, 256], strides = [1, 1]} : vector<18x256xf32> to vector<16x256xf32>
    %392 = arith.mulf %391, %50 : vector<16x256xf32>
    %393 = arith.addf %390, %392 : vector<16x256xf32>
    %394 = vector.extract_strided_slice %387 {offsets = [2, 0], sizes = [16, 256], strides = [1, 1]} : vector<18x256xf32> to vector<16x256xf32>
    %395 = arith.mulf %394, %55 : vector<16x256xf32>
    %396 = arith.addf %393, %395 : vector<16x256xf32>
    %c9 = arith.constant 9 : index
    %c0_123 = arith.constant 0 : index
    %c0_124 = arith.constant 0 : index
    %397 = vector.load %arg10[%c9, %c0_123, %c0_124] : memref<18x18x256xf32, #tpu.memory_space<vmem>>, vector<1x18x256xf32>
    %398 = vector.shape_cast %397 : vector<1x18x256xf32> to vector<18x256xf32>
    %399 = vector.extract_strided_slice %398 {offsets = [0, 0], sizes = [16, 256], strides = [1, 1]} : vector<18x256xf32> to vector<16x256xf32>
    %400 = arith.mulf %399, %60 : vector<16x256xf32>
    %401 = arith.addf %396, %400 : vector<16x256xf32>
    %402 = vector.extract_strided_slice %398 {offsets = [1, 0], sizes = [16, 256], strides = [1, 1]} : vector<18x256xf32> to vector<16x256xf32>
    %403 = arith.mulf %402, %65 : vector<16x256xf32>
    %404 = arith.addf %401, %403 : vector<16x256xf32>
    %405 = vector.extract_strided_slice %398 {offsets = [2, 0], sizes = [16, 256], strides = [1, 1]} : vector<18x256xf32> to vector<16x256xf32>
    %406 = arith.mulf %405, %70 : vector<16x256xf32>
    %407 = arith.addf %404, %406 : vector<16x256xf32>
    %cst_125 = arith.constant 3.000000e+00 : f32
    %408 = vector.broadcast %cst_125 : f32 to vector<16x256xf32>
    %409 = arith.addf %407, %408 : vector<16x256xf32>
    %cst_126 = arith.constant 0.000000e+00 : f32
    %cst_127 = arith.constant 6.000000e+00 : f32
    %410 = vector.broadcast %cst_126 : f32 to vector<16x256xf32>
    %411 = arith.maximumf %410, %409 : vector<16x256xf32>
    %412 = vector.broadcast %cst_127 : f32 to vector<16x256xf32>
    %413 = arith.minimumf %412, %411 : vector<16x256xf32>
    %414 = arith.mulf %407, %413 : vector<16x256xf32>
    %cst_128 = arith.constant 0.166666672 : f32
    %415 = vector.broadcast %cst_128 : f32 to vector<16x256xf32>
    %416 = arith.mulf %414, %415 : vector<16x256xf32>
    %c112 = arith.constant 112 : index
    %c0_129 = arith.constant 0 : index
    %417 = vector.load %arg11[%c112, %c0_129] : memref<256x256xf32, #tpu.memory_space<vmem>>, vector<16x256xf32>
    tpu.vector_store %arg11[%c112, %c0_129], %416 {strides = array<i32>} : memref<256x256xf32, #tpu.memory_space<vmem>>, vector<16x256xf32>,
    %c8_130 = arith.constant 8 : index
    %c0_131 = arith.constant 0 : index
    %c0_132 = arith.constant 0 : index
    %418 = vector.load %arg10[%c8_130, %c0_131, %c0_132] : memref<18x18x256xf32, #tpu.memory_space<vmem>>, vector<1x18x256xf32>
    %419 = vector.shape_cast %418 : vector<1x18x256xf32> to vector<18x256xf32>
    %420 = vector.extract_strided_slice %419 {offsets = [0, 0], sizes = [16, 256], strides = [1, 1]} : vector<18x256xf32> to vector<16x256xf32>
    %421 = arith.mulf %420, %30 : vector<16x256xf32>
    %422 = arith.addf %73, %421 : vector<16x256xf32>
    %423 = vector.extract_strided_slice %419 {offsets = [1, 0], sizes = [16, 256], strides = [1, 1]} : vector<18x256xf32> to vector<16x256xf32>
    %424 = arith.mulf %423, %35 : vector<16x256xf32>
    %425 = arith.addf %422, %424 : vector<16x256xf32>
    %426 = vector.extract_strided_slice %419 {offsets = [2, 0], sizes = [16, 256], strides = [1, 1]} : vector<18x256xf32> to vector<16x256xf32>
    %427 = arith.mulf %426, %40 : vector<16x256xf32>
    %428 = arith.addf %425, %427 : vector<16x256xf32>
    %c9_133 = arith.constant 9 : index
    %c0_134 = arith.constant 0 : index
    %c0_135 = arith.constant 0 : index
    %429 = vector.load %arg10[%c9_133, %c0_134, %c0_135] : memref<18x18x256xf32, #tpu.memory_space<vmem>>, vector<1x18x256xf32>
    %430 = vector.shape_cast %429 : vector<1x18x256xf32> to vector<18x256xf32>
    %431 = vector.extract_strided_slice %430 {offsets = [0, 0], sizes = [16, 256], strides = [1, 1]} : vector<18x256xf32> to vector<16x256xf32>
    %432 = arith.mulf %431, %45 : vector<16x256xf32>
    %433 = arith.addf %428, %432 : vector<16x256xf32>
    %434 = vector.extract_strided_slice %430 {offsets = [1, 0], sizes = [16, 256], strides = [1, 1]} : vector<18x256xf32> to vector<16x256xf32>
    %435 = arith.mulf %434, %50 : vector<16x256xf32>
    %436 = arith.addf %433, %435 : vector<16x256xf32>
    %437 = vector.extract_strided_slice %430 {offsets = [2, 0], sizes = [16, 256], strides = [1, 1]} : vector<18x256xf32> to vector<16x256xf32>
    %438 = arith.mulf %437, %55 : vector<16x256xf32>
    %439 = arith.addf %436, %438 : vector<16x256xf32>
    %c10 = arith.constant 10 : index
    %c0_136 = arith.constant 0 : index
    %c0_137 = arith.constant 0 : index
    %440 = vector.load %arg10[%c10, %c0_136, %c0_137] : memref<18x18x256xf32, #tpu.memory_space<vmem>>, vector<1x18x256xf32>
    %441 = vector.shape_cast %440 : vector<1x18x256xf32> to vector<18x256xf32>
    %442 = vector.extract_strided_slice %441 {offsets = [0, 0], sizes = [16, 256], strides = [1, 1]} : vector<18x256xf32> to vector<16x256xf32>
    %443 = arith.mulf %442, %60 : vector<16x256xf32>
    %444 = arith.addf %439, %443 : vector<16x256xf32>
    %445 = vector.extract_strided_slice %441 {offsets = [1, 0], sizes = [16, 256], strides = [1, 1]} : vector<18x256xf32> to vector<16x256xf32>
    %446 = arith.mulf %445, %65 : vector<16x256xf32>
    %447 = arith.addf %444, %446 : vector<16x256xf32>
    %448 = vector.extract_strided_slice %441 {offsets = [2, 0], sizes = [16, 256], strides = [1, 1]} : vector<18x256xf32> to vector<16x256xf32>
    %449 = arith.mulf %448, %70 : vector<16x256xf32>
    %450 = arith.addf %447, %449 : vector<16x256xf32>
    %cst_138 = arith.constant 3.000000e+00 : f32
    %451 = vector.broadcast %cst_138 : f32 to vector<16x256xf32>
    %452 = arith.addf %450, %451 : vector<16x256xf32>
    %cst_139 = arith.constant 0.000000e+00 : f32
    %cst_140 = arith.constant 6.000000e+00 : f32
    %453 = vector.broadcast %cst_139 : f32 to vector<16x256xf32>
    %454 = arith.maximumf %453, %452 : vector<16x256xf32>
    %455 = vector.broadcast %cst_140 : f32 to vector<16x256xf32>
    %456 = arith.minimumf %455, %454 : vector<16x256xf32>
    %457 = arith.mulf %450, %456 : vector<16x256xf32>
    %cst_141 = arith.constant 0.166666672 : f32
    %458 = vector.broadcast %cst_141 : f32 to vector<16x256xf32>
    %459 = arith.mulf %457, %458 : vector<16x256xf32>
    %c128 = arith.constant 128 : index
    %c0_142 = arith.constant 0 : index
    %460 = vector.load %arg11[%c128, %c0_142] : memref<256x256xf32, #tpu.memory_space<vmem>>, vector<16x256xf32>
    tpu.vector_store %arg11[%c128, %c0_142], %459 {strides = array<i32>} : memref<256x256xf32, #tpu.memory_space<vmem>>, vector<16x256xf32>,
    %c9_143 = arith.constant 9 : index
    %c0_144 = arith.constant 0 : index
    %c0_145 = arith.constant 0 : index
    %461 = vector.load %arg10[%c9_143, %c0_144, %c0_145] : memref<18x18x256xf32, #tpu.memory_space<vmem>>, vector<1x18x256xf32>
    %462 = vector.shape_cast %461 : vector<1x18x256xf32> to vector<18x256xf32>
    %463 = vector.extract_strided_slice %462 {offsets = [0, 0], sizes = [16, 256], strides = [1, 1]} : vector<18x256xf32> to vector<16x256xf32>
    %464 = arith.mulf %463, %30 : vector<16x256xf32>
    %465 = arith.addf %73, %464 : vector<16x256xf32>
    %466 = vector.extract_strided_slice %462 {offsets = [1, 0], sizes = [16, 256], strides = [1, 1]} : vector<18x256xf32> to vector<16x256xf32>
    %467 = arith.mulf %466, %35 : vector<16x256xf32>
    %468 = arith.addf %465, %467 : vector<16x256xf32>
    %469 = vector.extract_strided_slice %462 {offsets = [2, 0], sizes = [16, 256], strides = [1, 1]} : vector<18x256xf32> to vector<16x256xf32>
    %470 = arith.mulf %469, %40 : vector<16x256xf32>
    %471 = arith.addf %468, %470 : vector<16x256xf32>
    %c10_146 = arith.constant 10 : index
    %c0_147 = arith.constant 0 : index
    %c0_148 = arith.constant 0 : index
    %472 = vector.load %arg10[%c10_146, %c0_147, %c0_148] : memref<18x18x256xf32, #tpu.memory_space<vmem>>, vector<1x18x256xf32>
    %473 = vector.shape_cast %472 : vector<1x18x256xf32> to vector<18x256xf32>
    %474 = vector.extract_strided_slice %473 {offsets = [0, 0], sizes = [16, 256], strides = [1, 1]} : vector<18x256xf32> to vector<16x256xf32>
    %475 = arith.mulf %474, %45 : vector<16x256xf32>
    %476 = arith.addf %471, %475 : vector<16x256xf32>
    %477 = vector.extract_strided_slice %473 {offsets = [1, 0], sizes = [16, 256], strides = [1, 1]} : vector<18x256xf32> to vector<16x256xf32>
    %478 = arith.mulf %477, %50 : vector<16x256xf32>
    %479 = arith.addf %476, %478 : vector<16x256xf32>
    %480 = vector.extract_strided_slice %473 {offsets = [2, 0], sizes = [16, 256], strides = [1, 1]} : vector<18x256xf32> to vector<16x256xf32>
    %481 = arith.mulf %480, %55 : vector<16x256xf32>
    %482 = arith.addf %479, %481 : vector<16x256xf32>
    %c11 = arith.constant 11 : index
    %c0_149 = arith.constant 0 : index
    %c0_150 = arith.constant 0 : index
    %483 = vector.load %arg10[%c11, %c0_149, %c0_150] : memref<18x18x256xf32, #tpu.memory_space<vmem>>, vector<1x18x256xf32>
    %484 = vector.shape_cast %483 : vector<1x18x256xf32> to vector<18x256xf32>
    %485 = vector.extract_strided_slice %484 {offsets = [0, 0], sizes = [16, 256], strides = [1, 1]} : vector<18x256xf32> to vector<16x256xf32>
    %486 = arith.mulf %485, %60 : vector<16x256xf32>
    %487 = arith.addf %482, %486 : vector<16x256xf32>
    %488 = vector.extract_strided_slice %484 {offsets = [1, 0], sizes = [16, 256], strides = [1, 1]} : vector<18x256xf32> to vector<16x256xf32>
    %489 = arith.mulf %488, %65 : vector<16x256xf32>
    %490 = arith.addf %487, %489 : vector<16x256xf32>
    %491 = vector.extract_strided_slice %484 {offsets = [2, 0], sizes = [16, 256], strides = [1, 1]} : vector<18x256xf32> to vector<16x256xf32>
    %492 = arith.mulf %491, %70 : vector<16x256xf32>
    %493 = arith.addf %490, %492 : vector<16x256xf32>
    %cst_151 = arith.constant 3.000000e+00 : f32
    %494 = vector.broadcast %cst_151 : f32 to vector<16x256xf32>
    %495 = arith.addf %493, %494 : vector<16x256xf32>
    %cst_152 = arith.constant 0.000000e+00 : f32
    %cst_153 = arith.constant 6.000000e+00 : f32
    %496 = vector.broadcast %cst_152 : f32 to vector<16x256xf32>
    %497 = arith.maximumf %496, %495 : vector<16x256xf32>
    %498 = vector.broadcast %cst_153 : f32 to vector<16x256xf32>
    %499 = arith.minimumf %498, %497 : vector<16x256xf32>
    %500 = arith.mulf %493, %499 : vector<16x256xf32>
    %cst_154 = arith.constant 0.166666672 : f32
    %501 = vector.broadcast %cst_154 : f32 to vector<16x256xf32>
    %502 = arith.mulf %500, %501 : vector<16x256xf32>
    %c144 = arith.constant 144 : index
    %c0_155 = arith.constant 0 : index
    %503 = vector.load %arg11[%c144, %c0_155] : memref<256x256xf32, #tpu.memory_space<vmem>>, vector<16x256xf32>
    tpu.vector_store %arg11[%c144, %c0_155], %502 {strides = array<i32>} : memref<256x256xf32, #tpu.memory_space<vmem>>, vector<16x256xf32>,
    %c10_156 = arith.constant 10 : index
    %c0_157 = arith.constant 0 : index
    %c0_158 = arith.constant 0 : index
    %504 = vector.load %arg10[%c10_156, %c0_157, %c0_158] : memref<18x18x256xf32, #tpu.memory_space<vmem>>, vector<1x18x256xf32>
    %505 = vector.shape_cast %504 : vector<1x18x256xf32> to vector<18x256xf32>
    %506 = vector.extract_strided_slice %505 {offsets = [0, 0], sizes = [16, 256], strides = [1, 1]} : vector<18x256xf32> to vector<16x256xf32>
    %507 = arith.mulf %506, %30 : vector<16x256xf32>
    %508 = arith.addf %73, %507 : vector<16x256xf32>
    %509 = vector.extract_strided_slice %505 {offsets = [1, 0], sizes = [16, 256], strides = [1, 1]} : vector<18x256xf32> to vector<16x256xf32>
    %510 = arith.mulf %509, %35 : vector<16x256xf32>
    %511 = arith.addf %508, %510 : vector<16x256xf32>
    %512 = vector.extract_strided_slice %505 {offsets = [2, 0], sizes = [16, 256], strides = [1, 1]} : vector<18x256xf32> to vector<16x256xf32>
    %513 = arith.mulf %512, %40 : vector<16x256xf32>
    %514 = arith.addf %511, %513 : vector<16x256xf32>
    %c11_159 = arith.constant 11 : index
    %c0_160 = arith.constant 0 : index
    %c0_161 = arith.constant 0 : index
    %515 = vector.load %arg10[%c11_159, %c0_160, %c0_161] : memref<18x18x256xf32, #tpu.memory_space<vmem>>, vector<1x18x256xf32>
    %516 = vector.shape_cast %515 : vector<1x18x256xf32> to vector<18x256xf32>
    %517 = vector.extract_strided_slice %516 {offsets = [0, 0], sizes = [16, 256], strides = [1, 1]} : vector<18x256xf32> to vector<16x256xf32>
    %518 = arith.mulf %517, %45 : vector<16x256xf32>
    %519 = arith.addf %514, %518 : vector<16x256xf32>
    %520 = vector.extract_strided_slice %516 {offsets = [1, 0], sizes = [16, 256], strides = [1, 1]} : vector<18x256xf32> to vector<16x256xf32>
    %521 = arith.mulf %520, %50 : vector<16x256xf32>
    %522 = arith.addf %519, %521 : vector<16x256xf32>
    %523 = vector.extract_strided_slice %516 {offsets = [2, 0], sizes = [16, 256], strides = [1, 1]} : vector<18x256xf32> to vector<16x256xf32>
    %524 = arith.mulf %523, %55 : vector<16x256xf32>
    %525 = arith.addf %522, %524 : vector<16x256xf32>
    %c12 = arith.constant 12 : index
    %c0_162 = arith.constant 0 : index
    %c0_163 = arith.constant 0 : index
    %526 = vector.load %arg10[%c12, %c0_162, %c0_163] : memref<18x18x256xf32, #tpu.memory_space<vmem>>, vector<1x18x256xf32>
    %527 = vector.shape_cast %526 : vector<1x18x256xf32> to vector<18x256xf32>
    %528 = vector.extract_strided_slice %527 {offsets = [0, 0], sizes = [16, 256], strides = [1, 1]} : vector<18x256xf32> to vector<16x256xf32>
    %529 = arith.mulf %528, %60 : vector<16x256xf32>
    %530 = arith.addf %525, %529 : vector<16x256xf32>
    %531 = vector.extract_strided_slice %527 {offsets = [1, 0], sizes = [16, 256], strides = [1, 1]} : vector<18x256xf32> to vector<16x256xf32>
    %532 = arith.mulf %531, %65 : vector<16x256xf32>
    %533 = arith.addf %530, %532 : vector<16x256xf32>
    %534 = vector.extract_strided_slice %527 {offsets = [2, 0], sizes = [16, 256], strides = [1, 1]} : vector<18x256xf32> to vector<16x256xf32>
    %535 = arith.mulf %534, %70 : vector<16x256xf32>
    %536 = arith.addf %533, %535 : vector<16x256xf32>
    %cst_164 = arith.constant 3.000000e+00 : f32
    %537 = vector.broadcast %cst_164 : f32 to vector<16x256xf32>
    %538 = arith.addf %536, %537 : vector<16x256xf32>
    %cst_165 = arith.constant 0.000000e+00 : f32
    %cst_166 = arith.constant 6.000000e+00 : f32
    %539 = vector.broadcast %cst_165 : f32 to vector<16x256xf32>
    %540 = arith.maximumf %539, %538 : vector<16x256xf32>
    %541 = vector.broadcast %cst_166 : f32 to vector<16x256xf32>
    %542 = arith.minimumf %541, %540 : vector<16x256xf32>
    %543 = arith.mulf %536, %542 : vector<16x256xf32>
    %cst_167 = arith.constant 0.166666672 : f32
    %544 = vector.broadcast %cst_167 : f32 to vector<16x256xf32>
    %545 = arith.mulf %543, %544 : vector<16x256xf32>
    %c160 = arith.constant 160 : index
    %c0_168 = arith.constant 0 : index
    %546 = vector.load %arg11[%c160, %c0_168] : memref<256x256xf32, #tpu.memory_space<vmem>>, vector<16x256xf32>
    tpu.vector_store %arg11[%c160, %c0_168], %545 {strides = array<i32>} : memref<256x256xf32, #tpu.memory_space<vmem>>, vector<16x256xf32>,
    %c11_169 = arith.constant 11 : index
    %c0_170 = arith.constant 0 : index
    %c0_171 = arith.constant 0 : index
    %547 = vector.load %arg10[%c11_169, %c0_170, %c0_171] : memref<18x18x256xf32, #tpu.memory_space<vmem>>, vector<1x18x256xf32>
    %548 = vector.shape_cast %547 : vector<1x18x256xf32> to vector<18x256xf32>
    %549 = vector.extract_strided_slice %548 {offsets = [0, 0], sizes = [16, 256], strides = [1, 1]} : vector<18x256xf32> to vector<16x256xf32>
    %550 = arith.mulf %549, %30 : vector<16x256xf32>
    %551 = arith.addf %73, %550 : vector<16x256xf32>
    %552 = vector.extract_strided_slice %548 {offsets = [1, 0], sizes = [16, 256], strides = [1, 1]} : vector<18x256xf32> to vector<16x256xf32>
    %553 = arith.mulf %552, %35 : vector<16x256xf32>
    %554 = arith.addf %551, %553 : vector<16x256xf32>
    %555 = vector.extract_strided_slice %548 {offsets = [2, 0], sizes = [16, 256], strides = [1, 1]} : vector<18x256xf32> to vector<16x256xf32>
    %556 = arith.mulf %555, %40 : vector<16x256xf32>
    %557 = arith.addf %554, %556 : vector<16x256xf32>
    %c12_172 = arith.constant 12 : index
    %c0_173 = arith.constant 0 : index
    %c0_174 = arith.constant 0 : index
    %558 = vector.load %arg10[%c12_172, %c0_173, %c0_174] : memref<18x18x256xf32, #tpu.memory_space<vmem>>, vector<1x18x256xf32>
    %559 = vector.shape_cast %558 : vector<1x18x256xf32> to vector<18x256xf32>
    %560 = vector.extract_strided_slice %559 {offsets = [0, 0], sizes = [16, 256], strides = [1, 1]} : vector<18x256xf32> to vector<16x256xf32>
    %561 = arith.mulf %560, %45 : vector<16x256xf32>
    %562 = arith.addf %557, %561 : vector<16x256xf32>
    %563 = vector.extract_strided_slice %559 {offsets = [1, 0], sizes = [16, 256], strides = [1, 1]} : vector<18x256xf32> to vector<16x256xf32>
    %564 = arith.mulf %563, %50 : vector<16x256xf32>
    %565 = arith.addf %562, %564 : vector<16x256xf32>
    %566 = vector.extract_strided_slice %559 {offsets = [2, 0], sizes = [16, 256], strides = [1, 1]} : vector<18x256xf32> to vector<16x256xf32>
    %567 = arith.mulf %566, %55 : vector<16x256xf32>
    %568 = arith.addf %565, %567 : vector<16x256xf32>
    %c13 = arith.constant 13 : index
    %c0_175 = arith.constant 0 : index
    %c0_176 = arith.constant 0 : index
    %569 = vector.load %arg10[%c13, %c0_175, %c0_176] : memref<18x18x256xf32, #tpu.memory_space<vmem>>, vector<1x18x256xf32>
    %570 = vector.shape_cast %569 : vector<1x18x256xf32> to vector<18x256xf32>
    %571 = vector.extract_strided_slice %570 {offsets = [0, 0], sizes = [16, 256], strides = [1, 1]} : vector<18x256xf32> to vector<16x256xf32>
    %572 = arith.mulf %571, %60 : vector<16x256xf32>
    %573 = arith.addf %568, %572 : vector<16x256xf32>
    %574 = vector.extract_strided_slice %570 {offsets = [1, 0], sizes = [16, 256], strides = [1, 1]} : vector<18x256xf32> to vector<16x256xf32>
    %575 = arith.mulf %574, %65 : vector<16x256xf32>
    %576 = arith.addf %573, %575 : vector<16x256xf32>
    %577 = vector.extract_strided_slice %570 {offsets = [2, 0], sizes = [16, 256], strides = [1, 1]} : vector<18x256xf32> to vector<16x256xf32>
    %578 = arith.mulf %577, %70 : vector<16x256xf32>
    %579 = arith.addf %576, %578 : vector<16x256xf32>
    %cst_177 = arith.constant 3.000000e+00 : f32
    %580 = vector.broadcast %cst_177 : f32 to vector<16x256xf32>
    %581 = arith.addf %579, %580 : vector<16x256xf32>
    %cst_178 = arith.constant 0.000000e+00 : f32
    %cst_179 = arith.constant 6.000000e+00 : f32
    %582 = vector.broadcast %cst_178 : f32 to vector<16x256xf32>
    %583 = arith.maximumf %582, %581 : vector<16x256xf32>
    %584 = vector.broadcast %cst_179 : f32 to vector<16x256xf32>
    %585 = arith.minimumf %584, %583 : vector<16x256xf32>
    %586 = arith.mulf %579, %585 : vector<16x256xf32>
    %cst_180 = arith.constant 0.166666672 : f32
    %587 = vector.broadcast %cst_180 : f32 to vector<16x256xf32>
    %588 = arith.mulf %586, %587 : vector<16x256xf32>
    %c176 = arith.constant 176 : index
    %c0_181 = arith.constant 0 : index
    %589 = vector.load %arg11[%c176, %c0_181] : memref<256x256xf32, #tpu.memory_space<vmem>>, vector<16x256xf32>
    tpu.vector_store %arg11[%c176, %c0_181], %588 {strides = array<i32>} : memref<256x256xf32, #tpu.memory_space<vmem>>, vector<16x256xf32>,
    %c12_182 = arith.constant 12 : index
    %c0_183 = arith.constant 0 : index
    %c0_184 = arith.constant 0 : index
    %590 = vector.load %arg10[%c12_182, %c0_183, %c0_184] : memref<18x18x256xf32, #tpu.memory_space<vmem>>, vector<1x18x256xf32>
    %591 = vector.shape_cast %590 : vector<1x18x256xf32> to vector<18x256xf32>
    %592 = vector.extract_strided_slice %591 {offsets = [0, 0], sizes = [16, 256], strides = [1, 1]} : vector<18x256xf32> to vector<16x256xf32>
    %593 = arith.mulf %592, %30 : vector<16x256xf32>
    %594 = arith.addf %73, %593 : vector<16x256xf32>
    %595 = vector.extract_strided_slice %591 {offsets = [1, 0], sizes = [16, 256], strides = [1, 1]} : vector<18x256xf32> to vector<16x256xf32>
    %596 = arith.mulf %595, %35 : vector<16x256xf32>
    %597 = arith.addf %594, %596 : vector<16x256xf32>
    %598 = vector.extract_strided_slice %591 {offsets = [2, 0], sizes = [16, 256], strides = [1, 1]} : vector<18x256xf32> to vector<16x256xf32>
    %599 = arith.mulf %598, %40 : vector<16x256xf32>
    %600 = arith.addf %597, %599 : vector<16x256xf32>
    %c13_185 = arith.constant 13 : index
    %c0_186 = arith.constant 0 : index
    %c0_187 = arith.constant 0 : index
    %601 = vector.load %arg10[%c13_185, %c0_186, %c0_187] : memref<18x18x256xf32, #tpu.memory_space<vmem>>, vector<1x18x256xf32>
    %602 = vector.shape_cast %601 : vector<1x18x256xf32> to vector<18x256xf32>
    %603 = vector.extract_strided_slice %602 {offsets = [0, 0], sizes = [16, 256], strides = [1, 1]} : vector<18x256xf32> to vector<16x256xf32>
    %604 = arith.mulf %603, %45 : vector<16x256xf32>
    %605 = arith.addf %600, %604 : vector<16x256xf32>
    %606 = vector.extract_strided_slice %602 {offsets = [1, 0], sizes = [16, 256], strides = [1, 1]} : vector<18x256xf32> to vector<16x256xf32>
    %607 = arith.mulf %606, %50 : vector<16x256xf32>
    %608 = arith.addf %605, %607 : vector<16x256xf32>
    %609 = vector.extract_strided_slice %602 {offsets = [2, 0], sizes = [16, 256], strides = [1, 1]} : vector<18x256xf32> to vector<16x256xf32>
    %610 = arith.mulf %609, %55 : vector<16x256xf32>
    %611 = arith.addf %608, %610 : vector<16x256xf32>
    %c14 = arith.constant 14 : index
    %c0_188 = arith.constant 0 : index
    %c0_189 = arith.constant 0 : index
    %612 = vector.load %arg10[%c14, %c0_188, %c0_189] : memref<18x18x256xf32, #tpu.memory_space<vmem>>, vector<1x18x256xf32>
    %613 = vector.shape_cast %612 : vector<1x18x256xf32> to vector<18x256xf32>
    %614 = vector.extract_strided_slice %613 {offsets = [0, 0], sizes = [16, 256], strides = [1, 1]} : vector<18x256xf32> to vector<16x256xf32>
    %615 = arith.mulf %614, %60 : vector<16x256xf32>
    %616 = arith.addf %611, %615 : vector<16x256xf32>
    %617 = vector.extract_strided_slice %613 {offsets = [1, 0], sizes = [16, 256], strides = [1, 1]} : vector<18x256xf32> to vector<16x256xf32>
    %618 = arith.mulf %617, %65 : vector<16x256xf32>
    %619 = arith.addf %616, %618 : vector<16x256xf32>
    %620 = vector.extract_strided_slice %613 {offsets = [2, 0], sizes = [16, 256], strides = [1, 1]} : vector<18x256xf32> to vector<16x256xf32>
    %621 = arith.mulf %620, %70 : vector<16x256xf32>
    %622 = arith.addf %619, %621 : vector<16x256xf32>
    %cst_190 = arith.constant 3.000000e+00 : f32
    %623 = vector.broadcast %cst_190 : f32 to vector<16x256xf32>
    %624 = arith.addf %622, %623 : vector<16x256xf32>
    %cst_191 = arith.constant 0.000000e+00 : f32
    %cst_192 = arith.constant 6.000000e+00 : f32
    %625 = vector.broadcast %cst_191 : f32 to vector<16x256xf32>
    %626 = arith.maximumf %625, %624 : vector<16x256xf32>
    %627 = vector.broadcast %cst_192 : f32 to vector<16x256xf32>
    %628 = arith.minimumf %627, %626 : vector<16x256xf32>
    %629 = arith.mulf %622, %628 : vector<16x256xf32>
    %cst_193 = arith.constant 0.166666672 : f32
    %630 = vector.broadcast %cst_193 : f32 to vector<16x256xf32>
    %631 = arith.mulf %629, %630 : vector<16x256xf32>
    %c192 = arith.constant 192 : index
    %c0_194 = arith.constant 0 : index
    %632 = vector.load %arg11[%c192, %c0_194] : memref<256x256xf32, #tpu.memory_space<vmem>>, vector<16x256xf32>
    tpu.vector_store %arg11[%c192, %c0_194], %631 {strides = array<i32>} : memref<256x256xf32, #tpu.memory_space<vmem>>, vector<16x256xf32>,
    %c13_195 = arith.constant 13 : index
    %c0_196 = arith.constant 0 : index
    %c0_197 = arith.constant 0 : index
    %633 = vector.load %arg10[%c13_195, %c0_196, %c0_197] : memref<18x18x256xf32, #tpu.memory_space<vmem>>, vector<1x18x256xf32>
    %634 = vector.shape_cast %633 : vector<1x18x256xf32> to vector<18x256xf32>
    %635 = vector.extract_strided_slice %634 {offsets = [0, 0], sizes = [16, 256], strides = [1, 1]} : vector<18x256xf32> to vector<16x256xf32>
    %636 = arith.mulf %635, %30 : vector<16x256xf32>
    %637 = arith.addf %73, %636 : vector<16x256xf32>
    %638 = vector.extract_strided_slice %634 {offsets = [1, 0], sizes = [16, 256], strides = [1, 1]} : vector<18x256xf32> to vector<16x256xf32>
    %639 = arith.mulf %638, %35 : vector<16x256xf32>
    %640 = arith.addf %637, %639 : vector<16x256xf32>
    %641 = vector.extract_strided_slice %634 {offsets = [2, 0], sizes = [16, 256], strides = [1, 1]} : vector<18x256xf32> to vector<16x256xf32>
    %642 = arith.mulf %641, %40 : vector<16x256xf32>
    %643 = arith.addf %640, %642 : vector<16x256xf32>
    %c14_198 = arith.constant 14 : index
    %c0_199 = arith.constant 0 : index
    %c0_200 = arith.constant 0 : index
    %644 = vector.load %arg10[%c14_198, %c0_199, %c0_200] : memref<18x18x256xf32, #tpu.memory_space<vmem>>, vector<1x18x256xf32>
    %645 = vector.shape_cast %644 : vector<1x18x256xf32> to vector<18x256xf32>
    %646 = vector.extract_strided_slice %645 {offsets = [0, 0], sizes = [16, 256], strides = [1, 1]} : vector<18x256xf32> to vector<16x256xf32>
    %647 = arith.mulf %646, %45 : vector<16x256xf32>
    %648 = arith.addf %643, %647 : vector<16x256xf32>
    %649 = vector.extract_strided_slice %645 {offsets = [1, 0], sizes = [16, 256], strides = [1, 1]} : vector<18x256xf32> to vector<16x256xf32>
    %650 = arith.mulf %649, %50 : vector<16x256xf32>
    %651 = arith.addf %648, %650 : vector<16x256xf32>
    %652 = vector.extract_strided_slice %645 {offsets = [2, 0], sizes = [16, 256], strides = [1, 1]} : vector<18x256xf32> to vector<16x256xf32>
    %653 = arith.mulf %652, %55 : vector<16x256xf32>
    %654 = arith.addf %651, %653 : vector<16x256xf32>
    %c15 = arith.constant 15 : index
    %c0_201 = arith.constant 0 : index
    %c0_202 = arith.constant 0 : index
    %655 = vector.load %arg10[%c15, %c0_201, %c0_202] : memref<18x18x256xf32, #tpu.memory_space<vmem>>, vector<1x18x256xf32>
    %656 = vector.shape_cast %655 : vector<1x18x256xf32> to vector<18x256xf32>
    %657 = vector.extract_strided_slice %656 {offsets = [0, 0], sizes = [16, 256], strides = [1, 1]} : vector<18x256xf32> to vector<16x256xf32>
    %658 = arith.mulf %657, %60 : vector<16x256xf32>
    %659 = arith.addf %654, %658 : vector<16x256xf32>
    %660 = vector.extract_strided_slice %656 {offsets = [1, 0], sizes = [16, 256], strides = [1, 1]} : vector<18x256xf32> to vector<16x256xf32>
    %661 = arith.mulf %660, %65 : vector<16x256xf32>
    %662 = arith.addf %659, %661 : vector<16x256xf32>
    %663 = vector.extract_strided_slice %656 {offsets = [2, 0], sizes = [16, 256], strides = [1, 1]} : vector<18x256xf32> to vector<16x256xf32>
    %664 = arith.mulf %663, %70 : vector<16x256xf32>
    %665 = arith.addf %662, %664 : vector<16x256xf32>
    %cst_203 = arith.constant 3.000000e+00 : f32
    %666 = vector.broadcast %cst_203 : f32 to vector<16x256xf32>
    %667 = arith.addf %665, %666 : vector<16x256xf32>
    %cst_204 = arith.constant 0.000000e+00 : f32
    %cst_205 = arith.constant 6.000000e+00 : f32
    %668 = vector.broadcast %cst_204 : f32 to vector<16x256xf32>
    %669 = arith.maximumf %668, %667 : vector<16x256xf32>
    %670 = vector.broadcast %cst_205 : f32 to vector<16x256xf32>
    %671 = arith.minimumf %670, %669 : vector<16x256xf32>
    %672 = arith.mulf %665, %671 : vector<16x256xf32>
    %cst_206 = arith.constant 0.166666672 : f32
    %673 = vector.broadcast %cst_206 : f32 to vector<16x256xf32>
    %674 = arith.mulf %672, %673 : vector<16x256xf32>
    %c208 = arith.constant 208 : index
    %c0_207 = arith.constant 0 : index
    %675 = vector.load %arg11[%c208, %c0_207] : memref<256x256xf32, #tpu.memory_space<vmem>>, vector<16x256xf32>
    tpu.vector_store %arg11[%c208, %c0_207], %674 {strides = array<i32>} : memref<256x256xf32, #tpu.memory_space<vmem>>, vector<16x256xf32>,
    %c14_208 = arith.constant 14 : index
    %c0_209 = arith.constant 0 : index
    %c0_210 = arith.constant 0 : index
    %676 = vector.load %arg10[%c14_208, %c0_209, %c0_210] : memref<18x18x256xf32, #tpu.memory_space<vmem>>, vector<1x18x256xf32>
    %677 = vector.shape_cast %676 : vector<1x18x256xf32> to vector<18x256xf32>
    %678 = vector.extract_strided_slice %677 {offsets = [0, 0], sizes = [16, 256], strides = [1, 1]} : vector<18x256xf32> to vector<16x256xf32>
    %679 = arith.mulf %678, %30 : vector<16x256xf32>
    %680 = arith.addf %73, %679 : vector<16x256xf32>
    %681 = vector.extract_strided_slice %677 {offsets = [1, 0], sizes = [16, 256], strides = [1, 1]} : vector<18x256xf32> to vector<16x256xf32>
    %682 = arith.mulf %681, %35 : vector<16x256xf32>
    %683 = arith.addf %680, %682 : vector<16x256xf32>
    %684 = vector.extract_strided_slice %677 {offsets = [2, 0], sizes = [16, 256], strides = [1, 1]} : vector<18x256xf32> to vector<16x256xf32>
    %685 = arith.mulf %684, %40 : vector<16x256xf32>
    %686 = arith.addf %683, %685 : vector<16x256xf32>
    %c15_211 = arith.constant 15 : index
    %c0_212 = arith.constant 0 : index
    %c0_213 = arith.constant 0 : index
    %687 = vector.load %arg10[%c15_211, %c0_212, %c0_213] : memref<18x18x256xf32, #tpu.memory_space<vmem>>, vector<1x18x256xf32>
    %688 = vector.shape_cast %687 : vector<1x18x256xf32> to vector<18x256xf32>
    %689 = vector.extract_strided_slice %688 {offsets = [0, 0], sizes = [16, 256], strides = [1, 1]} : vector<18x256xf32> to vector<16x256xf32>
    %690 = arith.mulf %689, %45 : vector<16x256xf32>
    %691 = arith.addf %686, %690 : vector<16x256xf32>
    %692 = vector.extract_strided_slice %688 {offsets = [1, 0], sizes = [16, 256], strides = [1, 1]} : vector<18x256xf32> to vector<16x256xf32>
    %693 = arith.mulf %692, %50 : vector<16x256xf32>
    %694 = arith.addf %691, %693 : vector<16x256xf32>
    %695 = vector.extract_strided_slice %688 {offsets = [2, 0], sizes = [16, 256], strides = [1, 1]} : vector<18x256xf32> to vector<16x256xf32>
    %696 = arith.mulf %695, %55 : vector<16x256xf32>
    %697 = arith.addf %694, %696 : vector<16x256xf32>
    %c16_214 = arith.constant 16 : index
    %c0_215 = arith.constant 0 : index
    %c0_216 = arith.constant 0 : index
    %698 = vector.load %arg10[%c16_214, %c0_215, %c0_216] : memref<18x18x256xf32, #tpu.memory_space<vmem>>, vector<1x18x256xf32>
    %699 = vector.shape_cast %698 : vector<1x18x256xf32> to vector<18x256xf32>
    %700 = vector.extract_strided_slice %699 {offsets = [0, 0], sizes = [16, 256], strides = [1, 1]} : vector<18x256xf32> to vector<16x256xf32>
    %701 = arith.mulf %700, %60 : vector<16x256xf32>
    %702 = arith.addf %697, %701 : vector<16x256xf32>
    %703 = vector.extract_strided_slice %699 {offsets = [1, 0], sizes = [16, 256], strides = [1, 1]} : vector<18x256xf32> to vector<16x256xf32>
    %704 = arith.mulf %703, %65 : vector<16x256xf32>
    %705 = arith.addf %702, %704 : vector<16x256xf32>
    %706 = vector.extract_strided_slice %699 {offsets = [2, 0], sizes = [16, 256], strides = [1, 1]} : vector<18x256xf32> to vector<16x256xf32>
    %707 = arith.mulf %706, %70 : vector<16x256xf32>
    %708 = arith.addf %705, %707 : vector<16x256xf32>
    %cst_217 = arith.constant 3.000000e+00 : f32
    %709 = vector.broadcast %cst_217 : f32 to vector<16x256xf32>
    %710 = arith.addf %708, %709 : vector<16x256xf32>
    %cst_218 = arith.constant 0.000000e+00 : f32
    %cst_219 = arith.constant 6.000000e+00 : f32
    %711 = vector.broadcast %cst_218 : f32 to vector<16x256xf32>
    %712 = arith.maximumf %711, %710 : vector<16x256xf32>
    %713 = vector.broadcast %cst_219 : f32 to vector<16x256xf32>
    %714 = arith.minimumf %713, %712 : vector<16x256xf32>
    %715 = arith.mulf %708, %714 : vector<16x256xf32>
    %cst_220 = arith.constant 0.166666672 : f32
    %716 = vector.broadcast %cst_220 : f32 to vector<16x256xf32>
    %717 = arith.mulf %715, %716 : vector<16x256xf32>
    %c224 = arith.constant 224 : index
    %c0_221 = arith.constant 0 : index
    %718 = vector.load %arg11[%c224, %c0_221] : memref<256x256xf32, #tpu.memory_space<vmem>>, vector<16x256xf32>
    tpu.vector_store %arg11[%c224, %c0_221], %717 {strides = array<i32>} : memref<256x256xf32, #tpu.memory_space<vmem>>, vector<16x256xf32>,
    %c15_222 = arith.constant 15 : index
    %c0_223 = arith.constant 0 : index
    %c0_224 = arith.constant 0 : index
    %719 = vector.load %arg10[%c15_222, %c0_223, %c0_224] : memref<18x18x256xf32, #tpu.memory_space<vmem>>, vector<1x18x256xf32>
    %720 = vector.shape_cast %719 : vector<1x18x256xf32> to vector<18x256xf32>
    %721 = vector.extract_strided_slice %720 {offsets = [0, 0], sizes = [16, 256], strides = [1, 1]} : vector<18x256xf32> to vector<16x256xf32>
    %722 = arith.mulf %721, %30 : vector<16x256xf32>
    %723 = arith.addf %73, %722 : vector<16x256xf32>
    %724 = vector.extract_strided_slice %720 {offsets = [1, 0], sizes = [16, 256], strides = [1, 1]} : vector<18x256xf32> to vector<16x256xf32>
    %725 = arith.mulf %724, %35 : vector<16x256xf32>
    %726 = arith.addf %723, %725 : vector<16x256xf32>
    %727 = vector.extract_strided_slice %720 {offsets = [2, 0], sizes = [16, 256], strides = [1, 1]} : vector<18x256xf32> to vector<16x256xf32>
    %728 = arith.mulf %727, %40 : vector<16x256xf32>
    %729 = arith.addf %726, %728 : vector<16x256xf32>
    %c16_225 = arith.constant 16 : index
    %c0_226 = arith.constant 0 : index
    %c0_227 = arith.constant 0 : index
    %730 = vector.load %arg10[%c16_225, %c0_226, %c0_227] : memref<18x18x256xf32, #tpu.memory_space<vmem>>, vector<1x18x256xf32>
    %731 = vector.shape_cast %730 : vector<1x18x256xf32> to vector<18x256xf32>
    %732 = vector.extract_strided_slice %731 {offsets = [0, 0], sizes = [16, 256], strides = [1, 1]} : vector<18x256xf32> to vector<16x256xf32>
    %733 = arith.mulf %732, %45 : vector<16x256xf32>
    %734 = arith.addf %729, %733 : vector<16x256xf32>
    %735 = vector.extract_strided_slice %731 {offsets = [1, 0], sizes = [16, 256], strides = [1, 1]} : vector<18x256xf32> to vector<16x256xf32>
    %736 = arith.mulf %735, %50 : vector<16x256xf32>
    %737 = arith.addf %734, %736 : vector<16x256xf32>
    %738 = vector.extract_strided_slice %731 {offsets = [2, 0], sizes = [16, 256], strides = [1, 1]} : vector<18x256xf32> to vector<16x256xf32>
    %739 = arith.mulf %738, %55 : vector<16x256xf32>
    %740 = arith.addf %737, %739 : vector<16x256xf32>
    %c17 = arith.constant 17 : index
    %c0_228 = arith.constant 0 : index
    %c0_229 = arith.constant 0 : index
    %741 = vector.load %arg10[%c17, %c0_228, %c0_229] : memref<18x18x256xf32, #tpu.memory_space<vmem>>, vector<1x18x256xf32>
    %742 = vector.shape_cast %741 : vector<1x18x256xf32> to vector<18x256xf32>
    %743 = vector.extract_strided_slice %742 {offsets = [0, 0], sizes = [16, 256], strides = [1, 1]} : vector<18x256xf32> to vector<16x256xf32>
    %744 = arith.mulf %743, %60 : vector<16x256xf32>
    %745 = arith.addf %740, %744 : vector<16x256xf32>
    %746 = vector.extract_strided_slice %742 {offsets = [1, 0], sizes = [16, 256], strides = [1, 1]} : vector<18x256xf32> to vector<16x256xf32>
    %747 = arith.mulf %746, %65 : vector<16x256xf32>
    %748 = arith.addf %745, %747 : vector<16x256xf32>
    %749 = vector.extract_strided_slice %742 {offsets = [2, 0], sizes = [16, 256], strides = [1, 1]} : vector<18x256xf32> to vector<16x256xf32>
    %750 = arith.mulf %749, %70 : vector<16x256xf32>
    %751 = arith.addf %748, %750 : vector<16x256xf32>
    %cst_230 = arith.constant 3.000000e+00 : f32
    %752 = vector.broadcast %cst_230 : f32 to vector<16x256xf32>
    %753 = arith.addf %751, %752 : vector<16x256xf32>
    %cst_231 = arith.constant 0.000000e+00 : f32
    %cst_232 = arith.constant 6.000000e+00 : f32
    %754 = vector.broadcast %cst_231 : f32 to vector<16x256xf32>
    %755 = arith.maximumf %754, %753 : vector<16x256xf32>
    %756 = vector.broadcast %cst_232 : f32 to vector<16x256xf32>
    %757 = arith.minimumf %756, %755 : vector<16x256xf32>
    %758 = arith.mulf %751, %757 : vector<16x256xf32>
    %cst_233 = arith.constant 0.166666672 : f32
    %759 = vector.broadcast %cst_233 : f32 to vector<16x256xf32>
    %760 = arith.mulf %758, %759 : vector<16x256xf32>
    %c240 = arith.constant 240 : index
    %c0_234 = arith.constant 0 : index
    %761 = vector.load %arg11[%c240, %c0_234] : memref<256x256xf32, #tpu.memory_space<vmem>>, vector<16x256xf32>
    tpu.vector_store %arg11[%c240, %c0_234], %760 {strides = array<i32>} : memref<256x256xf32, #tpu.memory_space<vmem>>, vector<16x256xf32>,
    %c0_235 = arith.constant 0 : index
    %c0_236 = arith.constant 0 : index
    %762 = vector.load %arg11[%c0_235, %c0_236] : memref<256x256xf32, #tpu.memory_space<vmem>>, vector<256x256xf32>
    %763 = arith.truncf %762 : vector<256x256xf32> to vector<256x256xbf16>
    %c0_237 = arith.constant 0 : index
    %c0_238 = arith.constant 0 : index
    %764 = vector.load %arg7[%c0_237, %c0_238] : memref<256x64xbf16, #tpu.memory_space<vmem>>, vector<256x64xbf16>
    %cst_239 = arith.constant dense<0.000000e+00> : vector<256x64xf32>
    %765 = tpu.matmul %763, %764, %cst_239 {dimension_numbers = #tpu.dot_dimension_numbers<[1], [0], [0], [1], [0, 0, 1, 1], [], []>} : vector<256x256xbf16>, vector<256x64xbf16>, vector<256x64xf32> -> vector<256x64xf32>
    %c0_240 = arith.constant 0 : index
    %c0_241 = arith.constant 0 : index
    %766 = vector.load %arg8[%c0_240, %c0_241] : memref<1x64xf32, #tpu.memory_space<vmem>>, vector<1x64xf32>
    %767 = vector.broadcast %766 : vector<1x64xf32> to vector<256x64xf32>
    %768 = arith.addf %765, %767 : vector<256x64xf32>
    %c0_242 = arith.constant 0 : index
    %c0_243 = arith.constant 0 : index
    %c0_244 = arith.constant 0 : index
    %c0_245 = arith.constant 0 : index
    %769 = vector.load %arg1[%c0_242, %c0_243, %c0_244, %c0_245] : memref<1x16x16x64xf32, #tpu.memory_space<vmem>>, vector<1x16x16x64xf32>
    %770 = vector.shape_cast %769 : vector<1x16x16x64xf32> to vector<16x16x64xf32>
    %c0_246 = arith.constant 0 : index
    %c0_247 = arith.constant 0 : index
    %c0_248 = arith.constant 0 : index
    %c0_249 = arith.constant 0 : index
    %771 = vector.load %arg2[%c0_246, %c0_247, %c0_248, %c0_249] : memref<1x16x16x64xf32, #tpu.memory_space<vmem>>, vector<1x16x16x64xf32>
    %772 = vector.shape_cast %771 : vector<1x16x16x64xf32> to vector<16x16x64xf32>
    %773 = arith.addf %770, %772 : vector<16x16x64xf32>
    %774 = vector.shape_cast %773 : vector<16x16x64xf32> to vector<256x64xf32>
    %775 = arith.addf %768, %774 : vector<256x64xf32>
    %776 = vector.shape_cast %775 : vector<256x64xf32> to vector<16x16x64xf32>
    %c0_250 = arith.constant 0 : index
    %c0_251 = arith.constant 0 : index
    %c0_252 = arith.constant 0 : index
    %c0_253 = arith.constant 0 : index
    %777 = vector.load %arg9[%c0_250, %c0_251, %c0_252, %c0_253] : memref<1x16x16x64xf32, #tpu.memory_space<vmem>>, vector<1x16x16x64xf32>
    %778 = vector.shape_cast %777 : vector<1x16x16x64xf32> to vector<16x16x64xf32>
    %779 = vector.shape_cast %776 : vector<16x16x64xf32> to vector<1x16x16x64xf32>
    tpu.vector_store %arg9[%c0_250, %c0_251, %c0_252, %c0_253], %779 {strides = array<i32>} : memref<1x16x16x64xf32, #tpu.memory_space<vmem>>, vector<1x16x16x64xf32>,
    return
  }
  func.func @transform_0(%arg0: i32) -> (i32, i32, i32, i32) {
    %c0_i32 = arith.constant 0 : i32
    %c0_i32_0 = arith.constant 0 : i32
    %c0_i32_1 = arith.constant 0 : i32
    %c0_i32_2 = arith.constant 0 : i32
    return %arg0, %c0_i32, %c0_i32_0, %c0_i32_1 : i32, i32, i32, i32
  }
  func.func @transform_1(%arg0: i32) -> (i32, i32, i32, i32) {
    %c0_i32 = arith.constant 0 : i32
    %c0_i32_0 = arith.constant 0 : i32
    %c0_i32_1 = arith.constant 0 : i32
    %c0_i32_2 = arith.constant 0 : i32
    return %arg0, %c0_i32, %c0_i32_0, %c0_i32_1 : i32, i32, i32, i32
  }
  func.func @transform_2(%arg0: i32) -> (i32, i32) {
    %c0_i32 = arith.constant 0 : i32
    %c0_i32_0 = arith.constant 0 : i32
    %c0_i32_1 = arith.constant 0 : i32
    return %c0_i32, %c0_i32_0 : i32, i32
  }
  func.func @transform_3(%arg0: i32) -> (i32, i32) {
    %c0_i32 = arith.constant 0 : i32
    %c0_i32_0 = arith.constant 0 : i32
    %c0_i32_1 = arith.constant 0 : i32
    return %c0_i32, %c0_i32_0 : i32, i32
  }
  func.func @transform_4(%arg0: i32) -> (i32, i32) {
    %c0_i32 = arith.constant 0 : i32
    %c0_i32_0 = arith.constant 0 : i32
    %c0_i32_1 = arith.constant 0 : i32
    return %c0_i32, %c0_i32_0 : i32, i32
  }
  func.func @transform_5(%arg0: i32) -> (i32, i32) {
    %c0_i32 = arith.constant 0 : i32
    %c0_i32_0 = arith.constant 0 : i32
    %c0_i32_1 = arith.constant 0 : i32
    return %c0_i32, %c0_i32_0 : i32, i32
  }
  func.func @transform_6(%arg0: i32) -> (i32, i32) {
    %c0_i32 = arith.constant 0 : i32
    %c0_i32_0 = arith.constant 0 : i32
    %c0_i32_1 = arith.constant 0 : i32
    return %c0_i32, %c0_i32_0 : i32, i32
  }
  func.func @transform_7(%arg0: i32) -> (i32, i32) {
    %c0_i32 = arith.constant 0 : i32
    %c0_i32_0 = arith.constant 0 : i32
    %c0_i32_1 = arith.constant 0 : i32
    return %c0_i32, %c0_i32_0 : i32, i32
  }
  func.func @transform_8(%arg0: i32) -> (i32, i32, i32, i32) {
    %c0_i32 = arith.constant 0 : i32
    %c0_i32_0 = arith.constant 0 : i32
    %c0_i32_1 = arith.constant 0 : i32
    %c0_i32_2 = arith.constant 0 : i32
    return %arg0, %c0_i32, %c0_i32_0, %c0_i32_1 : i32, i32, i32, i32
  }
}

</mosaic_0001>

<llo_original>
// kernel: lowformer_block_forward.2
$region0: #{lowformer_block_forward.2}
  #allocation0 [shape = 'u32[]', space=smem, size = 0x4, offset = 0x4, fixed_abs, tag = 'smem constant byte address 0x4 - core index']
  #allocation1 [shape = 'u32[144,128]{1,0:T(1,128)}', space=vmem, size = 0x12000, scoped, tag = 'internal scratch']
  %s0 = inlined_call_operand.vmem [shape: f32[2,16,64], index: 0, kind: input, shape index: {}]
  %s1 = inlined_call_operand.vmem [shape: bf16[2,64,32], index: 1, kind: input, shape index: {}]
  %s2 = inlined_call_operand.vmem [shape: bf16[2,64,32], index: 2, kind: input, shape index: {}]
  %s3 = inlined_call_operand.vmem [shape: bf16[2,64,32], index: 3, kind: input, shape index: {}]
  %s4 = inlined_call_operand.vmem [shape: bf16[2,32,64], index: 4, kind: input, shape index: {}]
  %s5 = inlined_call_operand.vmem [shape: f32[1,64], index: 5, kind: input, shape index: {}]
  %s6 = inlined_call_operand.vmem [shape: f32[2,16,64], index: 6, kind: output, shape index: {}]
  %s7 = sld [smem:[#allocation0]]
  $region57: #{lowformer_block_forward.2} parent=0
    _
  %s9 = ssub.s32 1, %s7
  %s10 = scalar_select 0, %s9, %s7
  loop: start=0, step=1, limit=4
  $region2: #{lowformer_block_forward.2} parent=0 // loop_pre_header
    _
  $region3: #{lowformer_block_forward.2} parent=0 // loop_header
    %s12 = sphi 0, %s16
    %p13 = scmp.ge.s32.totalorder %s12, 4
    %s22 = sphi 0, %s24
    %s25 = sphi 0, %s22
    %s26 = sphi 0, %s25
    %s42 = sphi 0, %s26
    %s46 = sphi 0, %s46
    %s48 = sphi 0, %s46
    %s49 = sphi 0, %s48
    %s63 = sphi 0, %s49
    %s67 = sphi 0, %s67
    %s69 = sphi 0, %s67
    %s70 = sphi 0, %s69
    %s84 = sphi 0, %s70
    %s88 = sphi 0, %s88
    %s90 = sphi 0, %s88
    %s91 = sphi 0, %s90
    %s105 = sphi 0, %s91
    %s109 = sphi 0, %s109
    %s111 = sphi 0, %s109
    %s112 = sphi 0, %s111
    %s126 = sphi 0, %s112
    %s130 = sphi 0, %s130
    %s132 = sphi 0, %s130
    %s133 = sphi 0, %s132
    %s147 = sphi 0, %s133
    %s153 = sphi 0, %s155
    %s156 = sphi 0, %s153
    %s157 = sphi 0, %s156
    %s173 = sphi 0, %s157
  $region4: #{lowformer_block_forward.2} parent=0 // loop_header_branch
    %15 = sbr.rel (%p13) target = $region8
  $region5: #{lowformer_block_forward.2} parent=0 // loop_body
    %s17 = ssub.s32 %s12, 1
    %s18 = ssub.s32 %s12, 2
    %s19 = sadd.s32 %s12, 1
    %s20 = ssub.s32 %s12, %s19
    %p21 = scmp.eq.s32.totalorder %s20, 0
    %s23 = sadd.s32 %s22, 1
    %s24 = scalar_select %p21, %s22, %s23
    %p27 = pneg %p21
    %p28 = scmp.eq.s32.totalorder %s12, 1
    %p29 = por %p27, %p28
    %p30 = scmp.ne.s32.totalorder %s22, %s25
    %p31 = scmp.eq.s32.totalorder %s12, 0
    %p32 = por %p30, %p31
    %p33 = scmp.ne.s32.totalorder %s22, %s25
    %p34 = scmp.eq.s32.totalorder %s17, 1
    %p35 = por %p33, %p34
    %p36 = scmp.ne.s32.totalorder %s25, %s26
    %p37 = scmp.eq.s32.totalorder %s17, 0
    %p38 = por %p36, %p37
    %p39 = scmp.ne.s32.totalorder %s25, %s26
    %p40 = scmp.eq.s32.totalorder %s18, 1
    %p41 = por %p39, %p40
    %p43 = scmp.ne.s32.totalorder %s26, %s42
    %p44 = scmp.eq.s32.totalorder %s18, 0
    %p45 = por %p43, %p44
    %s47 = sadd.s32 %s46, 1
    %p50 = scmp.eq.s32.totalorder %s12, 1
    %p51 = scmp.ne.s32.totalorder %s46, %s48
    %p52 = scmp.eq.s32.totalorder %s12, 0
    %p53 = por %p51, %p52
    %p54 = scmp.ne.s32.totalorder %s46, %s48
    %p55 = scmp.eq.s32.totalorder %s17, 1
    %p56 = por %p54, %p55
    %p57 = scmp.ne.s32.totalorder %s48, %s49
    %p58 = scmp.eq.s32.totalorder %s17, 0
    %p59 = por %p57, %p58
    %p60 = scmp.ne.s32.totalorder %s48, %s49
    %p61 = scmp.eq.s32.totalorder %s18, 1
    %p62 = por %p60, %p61
    %p64 = scmp.ne.s32.totalorder %s49, %s63
    %p65 = scmp.eq.s32.totalorder %s18, 0
    %p66 = por %p64, %p65
    %s68 = sadd.s32 %s67, 1
    %p71 = scmp.eq.s32.totalorder %s12, 1
    %p72 = scmp.ne.s32.totalorder %s67, %s69
    %p73 = scmp.eq.s32.totalorder %s12, 0
    %p74 = por %p72, %p73
    %p75 = scmp.ne.s32.totalorder %s67, %s69
    %p76 = scmp.eq.s32.totalorder %s17, 1
    %p77 = por %p75, %p76
    %p78 = scmp.ne.s32.totalorder %s69, %s70
    %p79 = scmp.eq.s32.totalorder %s17, 0
    %p80 = por %p78, %p79
    %p81 = scmp.ne.s32.totalorder %s69, %s70
    %p82 = scmp.eq.s32.totalorder %s18, 1
    %p83 = por %p81, %p82
    %p85 = scmp.ne.s32.totalorder %s70, %s84
    %p86 = scmp.eq.s32.totalorder %s18, 0
    %p87 = por %p85, %p86
    %s89 = sadd.s32 %s88, 1
    %p92 = scmp.eq.s32.totalorder %s12, 1
    %p93 = scmp.ne.s32.totalorder %s88, %s90
    %p94 = scmp.eq.s32.totalorder %s12, 0
    %p95 = por %p93, %p94
    %p96 = scmp.ne.s32.totalorder %s88, %s90
    %p97 = scmp.eq.s32.totalorder %s17, 1
    %p98 = por %p96, %p97
    %p99 = scmp.ne.s32.totalorder %s90, %s91
    %p100 = scmp.eq.s32.totalorder %s17, 0
    %p101 = por %p99, %p100
    %p102 = scmp.ne.s32.totalorder %s90, %s91
    %p103 = scmp.eq.s32.totalorder %s18, 1
    %p104 = por %p102, %p103
    %p106 = scmp.ne.s32.totalorder %s91, %s105
    %p107 = scmp.eq.s32.totalorder %s18, 0
    %p108 = por %p106, %p107
    %s110 = sadd.s32 %s109, 1
    %p113 = scmp.eq.s32.totalorder %s12, 1
    %p114 = scmp.ne.s32.totalorder %s109, %s111
    %p115 = scmp.eq.s32.totalorder %s12, 0
    %p116 = por %p114, %p115
    %p117 = scmp.ne.s32.totalorder %s109, %s111
    %p118 = scmp.eq.s32.totalorder %s17, 1
    %p119 = por %p117, %p118
    %p120 = scmp.ne.s32.totalorder %s111, %s112
    %p121 = scmp.eq.s32.totalorder %s17, 0
    %p122 = por %p120, %p121
    %p123 = scmp.ne.s32.totalorder %s111, %s112
    %p124 = scmp.eq.s32.totalorder %s18, 1
    %p125 = por %p123, %p124
    %p127 = scmp.ne.s32.totalorder %s112, %s126
    %p128 = scmp.eq.s32.totalorder %s18, 0
    %p129 = por %p127, %p128
    %s131 = sadd.s32 %s130, 1
    %p134 = scmp.eq.s32.totalorder %s12, 1
    %p135 = scmp.ne.s32.totalorder %s130, %s132
    %p136 = scmp.eq.s32.totalorder %s12, 0
    %p137 = por %p135, %p136
    %p138 = scmp.ne.s32.totalorder %s130, %s132
    %p139 = scmp.eq.s32.totalorder %s17, 1
    %p140 = por %p138, %p139
    %p141 = scmp.ne.s32.totalorder %s132, %s133
    %p142 = scmp.eq.s32.totalorder %s17, 0
    %p143 = por %p141, %p142
    %p144 = scmp.ne.s32.totalorder %s132, %s133
    %p145 = scmp.eq.s32.totalorder %s18, 1
    %p146 = por %p144, %p145
    %p148 = scmp.ne.s32.totalorder %s133, %s147
    %p149 = scmp.eq.s32.totalorder %s18, 0
    %p150 = por %p148, %p149
    %s151 = ssub.s32 %s12, %s19
    %p152 = scmp.eq.s32.totalorder %s151, 0
    %s154 = sadd.s32 %s153, 1
    %s155 = scalar_select %p152, %s153, %s154
    %p158 = pneg %p152
    %p159 = scmp.eq.s32.totalorder %s12, 1
    %p160 = por %p158, %p159
    %p161 = scmp.ne.s32.totalorder %s153, %s156
    %p162 = scmp.eq.s32.totalorder %s12, 0
    %p163 = por %p161, %p162
    %p164 = scmp.ne.s32.totalorder %s153, %s156
    %p165 = scmp.eq.s32.totalorder %s17, 1
    %p166 = por %p164, %p165
    %p167 = scmp.ne.s32.totalorder %s156, %s157
    %p168 = scmp.eq.s32.totalorder %s17, 0
    %p169 = por %p167, %p168
    %p170 = scmp.ne.s32.totalorder %s156, %s157
    %p171 = scmp.eq.s32.totalorder %s18, 1
    %p172 = por %p170, %p171
    %p174 = scmp.ne.s32.totalorder %s157, %s173
    %p175 = scmp.eq.s32.totalorder %s18, 0
    %p176 = por %p174, %p175
    %p177 = scmp.le.s32.totalorder 1, %s12
    %p178 = scmp.lt.s32.totalorder %s12, 3
    %p179 = pnand %p177, %p178
    %p180 = pneg %p179
    // Predicated region
    $region9: #{lowformer_block_forward.2} parent=5 // pred_check
      _
    $region10: #{lowformer_block_forward.2} parent=5 // pred_check_branch
      %182 = sbr.rel (%p179) target = $region12
    $region11: #{lowformer_block_forward.2} parent=5 // pred_region
      %s183 = ssub.s32 %s12, 1
      // Predicated region
      $region13: #{lowformer_block_forward.2} parent=11 // pred_check
        %p184 = pneg %p59
      $region14: #{lowformer_block_forward.2} parent=11 // pred_check_branch
        %186 = sbr.rel (%p184) target = $region16
      $region15: #{lowformer_block_forward.2} parent=11 // pred_region
        _
      $region16: #{lowformer_block_forward.2} parent=11 // pred_fallthru
        _
      // Predicated region
      $region17: #{lowformer_block_forward.2} parent=11 // pred_check
        %p187 = pneg %p80
      $region18: #{lowformer_block_forward.2} parent=11 // pred_check_branch
        %189 = sbr.rel (%p187) target = $region20
      $region19: #{lowformer_block_forward.2} parent=11 // pred_region
        _
      $region20: #{lowformer_block_forward.2} parent=11 // pred_fallthru
        _
      // Predicated region
      $region21: #{lowformer_block_forward.2} parent=11 // pred_check
        %p190 = pneg %p101
      $region22: #{lowformer_block_forward.2} parent=11 // pred_check_branch
        %192 = sbr.rel (%p190) target = $region24
      $region23: #{lowformer_block_forward.2} parent=11 // pred_region
        _
      $region24: #{lowformer_block_forward.2} parent=11 // pred_fallthru
        _
      // Predicated region
      $region25: #{lowformer_block_forward.2} parent=11 // pred_check
        %p193 = pneg %p122
      $region26: #{lowformer_block_forward.2} parent=11 // pred_check_branch
        %195 = sbr.rel (%p193) target = $region28
      $region27: #{lowformer_block_forward.2} parent=11 // pred_region
        _
      $region28: #{lowformer_block_forward.2} parent=11 // pred_fallthru
        _
      // Predicated region
      $region29: #{lowformer_block_forward.2} parent=11 // pred_check
        %p196 = pneg %p143
      $region30: #{lowformer_block_forward.2} parent=11 // pred_check_branch
        %198 = sbr.rel (%p196) target = $region32
      $region31: #{lowformer_block_forward.2} parent=11 // pred_region
        _
      $region32: #{lowformer_block_forward.2} parent=11 // pred_fallthru
        _
    $region12: #{lowformer_block_forward.2} parent=5 // pred_fallthru
      _
    %p199 = scmp.lt.s32.totalorder %s12, 2
    // Predicated region
    $region33: #{lowformer_block_forward.2} parent=5 // pred_check
      %p200 = pneg %p199
    $region34: #{lowformer_block_forward.2} parent=5 // pred_check_branch
      %202 = sbr.rel (%p200) target = $region36
    $region35: #{lowformer_block_forward.2} parent=5 // pred_region
      // Predicated region
      $region37: #{lowformer_block_forward.2} parent=35 // pred_check
        %p203 = pneg %p32
      $region38: #{lowformer_block_forward.2} parent=35 // pred_check_branch
        %205 = sbr.rel (%p203) target = $region40
      $region39: #{lowformer_block_forward.2} parent=35 // pred_region
        %p206 = scmp.lt.s32.totalorder %s12, 1
        %s207 = scalar_select %p206, %s12, 1
        %s208 = smul.addr %s207, 2
        %s209 = smul.addr %s208, 8
        %s210 = scalar_lea.vmem %s0, %s209
      $region40: #{lowformer_block_forward.2} parent=35 // pred_fallthru
        _
    $region36: #{lowformer_block_forward.2} parent=5 // pred_fallthru
      _
    %p211 = scmp.le.s32.totalorder 1, %s12
    %p212 = scmp.lt.s32.totalorder %s12, 3
    %p213 = pnand %p211, %p212
    %p214 = pneg %p213
    // Predicated region
    $region41: #{lowformer_block_forward.2} parent=5 // pred_check
      _
    $region42: #{lowformer_block_forward.2} parent=5 // pred_check_branch
      %216 = sbr.rel (%p213) target = $region44
    $region43: #{lowformer_block_forward.2} parent=5 // pred_region
      %s217 = ssub.s32 %s12, 1
      %p218 = scmp.lt.s32.totalorder %s17, 1
      %s219 = scalar_select %p218, %s17, 1
      %s220 = smul.addr %s219, 2
      %s221 = smul.addr %s220, 8
      %s222 = scalar_lea.vmem %s0, %s221
      %p223 = pneg %p38
      %p224 = pneg %p35
      %p225 = pneg %p59
      %p226 = pneg %p56
      %p227 = pneg %p80
      %p228 = pneg %p77
      %p229 = pneg %p101
      %p230 = pneg %p98
      %p231 = pneg %p122
      %p232 = pneg %p119
      %p233 = pneg %p143
      %p234 = pneg %p140
      %p235 = pneg %p169
      %p236 = pneg %p166
      %p237 = scmp.lt.s32.totalorder %s17, 1
      %s238 = scalar_select %p237, %s17, 1
      %s239 = smul.addr %s238, 2
      %s240 = smul.addr %s239, 8
      %s241 = scalar_lea.vmem %s6, %s240
      %p242 = scmp.lt.s32.totalorder %s17, 1
      %s243 = scalar_select %p242, %s17, 1
      %s244 = smul.addr %s243, 2
      %s245 = smul.addr %s244, 8
      %s246 = scalar_lea.vmem %s0, %s245
      %p247 = scmp.lt.s32.totalorder %s17, 1
      %s248 = scalar_select %p247, %s17, 1
      %s249 = smul.addr %s248, 2
      %s250 = smul.addr %s249, 8
      %s251 = scalar_lea.vmem %s6, %s250
      %v253 = vld [vmem:[%s246] sm:$0xff]
      %v254 = vld [vmem:[%s246 + $0x8] sm:$0xff]
      %v255 = vpack.c.bf16 %v254, %v253
      %v256 = vld [vmem:[%s1] sm:$0xf]
      %v257 = vld [vmem:[%s1 + $0x4] sm:$0xf]
      %v258 = vld [vmem:[%s1 + $0x8] sm:$0xf]
      %v259 = vld [vmem:[%s1 + $0xc] sm:$0xf]
      %v260 = vld [vmem:[%s1 + $0x10] sm:$0xf]
      %v261 = vld [vmem:[%s1 + $0x14] sm:$0xf]
      %v262 = vld [vmem:[%s1 + $0x18] sm:$0xf]
      %v263 = vld [vmem:[%s1 + $0x1c] sm:$0xf]
      %v272 = vunpack.c.l.b16 %v256
      %v273 = vunpack.c.l.b16 %v257
      %v274 = vunpack.c.l.b16 %v258
      %v275 = vunpack.c.l.b16 %v259
      %v276 = vunpack.c.l.b16 %v260
      %v277 = vunpack.c.l.b16 %v261
      %v278 = vunpack.c.l.b16 %v262
      %v279 = vunpack.c.l.b16 %v263
      %v280 = vpack.c.b16 %v273, %v272
      %v281 = vpack.c.b16 %v275, %v274
      %v282 = vpack.c.b16 %v277, %v276
      %v283 = vpack.c.b16 %v279, %v278
      %vm288 = vcmask 523264
      %v290 = vsel %vm288, %v255, 0
      %292 = vmatprep.subr.bf16.mxu0 0
      %293 = vmatpush1.bf16.msra.mxu0 %v280
      %294 = vmatprep.subr.bf16.mxu0 0
      %295 = vmatpush1.bf16.msra.mxu0 %v281
      %296 = vmatprep.subr.bf16.mxu0 0
      %297 = vmatpush1.bf16.msra.mxu0 %v282
      %298 = vmatprep.subr.bf16.mxu0 0
      %299 = vmatpush1.bf16.msra.mxu0 %v283
      %300 = vmatprep.subr.bf16.mxu0 0
      %301 = vmatpush1.bf16.msra.mxu0 0
      %302 = vmatprep.subr.bf16.mxu0 0
      %303 = vmatpush1.bf16.msra.mxu0 0
      %304 = vmatprep.subr.bf16.mxu0 0
      %305 = vmatpush1.bf16.msra.mxu0 0
      %306 = vmatprep.subr.bf16.mxu0 0
      %307 = vmatpush1.bf16.msra.mxu0 0
      %308 = vmatprep.subr.bf16.mxu0 0
      %309 = vmatpush1.bf16.msra.mxu0 0
      %310 = vmatprep.subr.bf16.mxu0 0
      %311 = vmatpush1.bf16.msra.mxu0 0
      %312 = vmatprep.subr.bf16.mxu0 0
      %313 = vmatpush1.bf16.msra.mxu0 0
      %314 = vmatprep.subr.bf16.mxu0 0
      %315 = vmatpush1.bf16.msra.mxu0 0
      %316 = vmatprep.subr.bf16.mxu0 0
      %317 = vmatpush1.bf16.msra.mxu0 0
      %318 = vmatprep.subr.bf16.mxu0 0
      %319 = vmatpush1.bf16.msra.mxu0 0
      %320 = vmatprep.subr.bf16.mxu0 0
      %321 = vmatpush1.bf16.msra.mxu0 0
      %322 = vmatprep.subr.bf16.mxu0 0
      %323 = vmatpush1.bf16.msra.mxu0 0
      %324 = vmatprep.mubr.bf16.mxu0 0
      %325 = vmatmul.mubr.bf16.gmra.mrb[0].mxu0 %v290
      %v326 = vpop.f32.mrb[0].mxu0
      %v327 = vadd.f32 0.0, %v326
      %v328 = vpop.f32.mrb[0].mxu0
      %v329 = vpop.f32.mrb[0].mxu0
      %v330 = vadd.f32 0.0, %v329
      %v331 = vpop.f32.mrb[0].mxu0
      %332 = vdwg.mxu0
      %v333 = vld [vmem:[%s2] sm:$0xf]
      %v334 = vld [vmem:[%s2 + $0x4] sm:$0xf]
      %v335 = vld [vmem:[%s2 + $0x8] sm:$0xf]
      %v336 = vld [vmem:[%s2 + $0xc] sm:$0xf]
      %v337 = vld [vmem:[%s2 + $0x10] sm:$0xf]
      %v338 = vld [vmem:[%s2 + $0x14] sm:$0xf]
      %v339 = vld [vmem:[%s2 + $0x18] sm:$0xf]
      %v340 = vld [vmem:[%s2 + $0x1c] sm:$0xf]
      %v349 = vunpack.c.l.b16 %v333
      %v350 = vunpack.c.l.b16 %v334
      %v351 = vunpack.c.l.b16 %v335
      %v352 = vunpack.c.l.b16 %v336
      %v353 = vunpack.c.l.b16 %v337
      %v354 = vunpack.c.l.b16 %v338
      %v355 = vunpack.c.l.b16 %v339
      %v356 = vunpack.c.l.b16 %v340
      %v357 = vpack.c.b16 %v350, %v349
      %v358 = vpack.c.b16 %v352, %v351
      %v359 = vpack.c.b16 %v354, %v353
      %v360 = vpack.c.b16 %v356, %v355
      %365 = vmatprep.subr.bf16.mxu0 0
      %366 = vmatpush1.bf16.msra.mxu0 %v357
      %367 = vmatprep.subr.bf16.mxu0 0
      %368 = vmatpush1.bf16.msra.mxu0 %v358
      %369 = vmatprep.subr.bf16.mxu0 0
      %370 = vmatpush1.bf16.msra.mxu0 %v359
      %371 = vmatprep.subr.bf16.mxu0 0
      %372 = vmatpush1.bf16.msra.mxu0 %v360
      %373 = vmatprep.subr.bf16.mxu0 0
      %374 = vmatpush1.bf16.msra.mxu0 0
      %375 = vmatprep.subr.bf16.mxu0 0
      %376 = vmatpush1.bf16.msra.mxu0 0
      %377 = vmatprep.subr.bf16.mxu0 0
      %378 = vmatpush1.bf16.msra.mxu0 0
      %379 = vmatprep.subr.bf16.mxu0 0
      %380 = vmatpush1.bf16.msra.mxu0 0
      %381 = vmatprep.subr.bf16.mxu0 0
      %382 = vmatpush1.bf16.msra.mxu0 0
      %383 = vmatprep.subr.bf16.mxu0 0
      %384 = vmatpush1.bf16.msra.mxu0 0
      %385 = vmatprep.subr.bf16.mxu0 0
      %386 = vmatpush1.bf16.msra.mxu0 0
      %387 = vmatprep.subr.bf16.mxu0 0
      %388 = vmatpush1.bf16.msra.mxu0 0
      %389 = vmatprep.subr.bf16.mxu0 0
      %390 = vmatpush1.bf16.msra.mxu0 0
      %391 = vmatprep.subr.bf16.mxu0 0
      %392 = vmatpush1.bf16.msra.mxu0 0
      %393 = vmatprep.subr.bf16.mxu0 0
      %394 = vmatpush1.bf16.msra.mxu0 0
      %395 = vmatprep.subr.bf16.mxu0 0
      %396 = vmatpush1.bf16.msra.mxu0 0
      %397 = vmatprep.mubr.bf16.mxu0 0
      %398 = vmatmul.mubr.bf16.gmra.mrb[0].mxu0 %v290
      %v399 = vpop.f32.mrb[0].mxu0
      %v400 = vadd.f32 0.0, %v399
      %v401 = vpop.f32.mrb[0].mxu0
      %v402 = vpop.f32.mrb[0].mxu0
      %v403 = vadd.f32 0.0, %v402
      %v404 = vpop.f32.mrb[0].mxu0
      %405 = vdwg.mxu0
      %v406 = vld [vmem:[%s3] sm:$0xf]
      %v407 = vld [vmem:[%s3 + $0x4] sm:$0xf]
      %v408 = vld [vmem:[%s3 + $0x8] sm:$0xf]
      %v409 = vld [vmem:[%s3 + $0xc] sm:$0xf]
      %v410 = vld [vmem:[%s3 + $0x10] sm:$0xf]
      %v411 = vld [vmem:[%s3 + $0x14] sm:$0xf]
      %v412 = vld [vmem:[%s3 + $0x18] sm:$0xf]
      %v413 = vld [vmem:[%s3 + $0x1c] sm:$0xf]
      %v422 = vunpack.c.l.b16 %v406
      %v423 = vunpack.c.l.b16 %v407
      %v424 = vunpack.c.l.b16 %v408
      %v425 = vunpack.c.l.b16 %v409
      %v426 = vunpack.c.l.b16 %v410
      %v427 = vunpack.c.l.b16 %v411
      %v428 = vunpack.c.l.b16 %v412
      %v429 = vunpack.c.l.b16 %v413
      %v430 = vpack.c.b16 %v423, %v422
      %v431 = vpack.c.b16 %v425, %v424
      %v432 = vpack.c.b16 %v427, %v426
      %v433 = vpack.c.b16 %v429, %v428
      %438 = vmatprep.subr.bf16.mxu0 0
      %439 = vmatpush1.bf16.msra.mxu0 %v430
      %440 = vmatprep.subr.bf16.mxu0 0
      %441 = vmatpush1.bf16.msra.mxu0 %v431
      %442 = vmatprep.subr.bf16.mxu0 0
      %443 = vmatpush1.bf16.msra.mxu0 %v432
      %444 = vmatprep.subr.bf16.mxu0 0
      %445 = vmatpush1.bf16.msra.mxu0 %v433
      %446 = vmatprep.subr.bf16.mxu0 0
      %447 = vmatpush1.bf16.msra.mxu0 0
      %448 = vmatprep.subr.bf16.mxu0 0
      %449 = vmatpush1.bf16.msra.mxu0 0
      %450 = vmatprep.subr.bf16.mxu0 0
      %451 = vmatpush1.bf16.msra.mxu0 0
      %452 = vmatprep.subr.bf16.mxu0 0
      %453 = vmatpush1.bf16.msra.mxu0 0
      %454 = vmatprep.subr.bf16.mxu0 0
      %455 = vmatpush1.bf16.msra.mxu0 0
      %456 = vmatprep.subr.bf16.mxu0 0
      %457 = vmatpush1.bf16.msra.mxu0 0
      %458 = vmatprep.subr.bf16.mxu0 0
      %459 = vmatpush1.bf16.msra.mxu0 0
      %460 = vmatprep.subr.bf16.mxu0 0
      %461 = vmatpush1.bf16.msra.mxu0 0
      %462 = vmatprep.subr.bf16.mxu0 0
      %463 = vmatpush1.bf16.msra.mxu0 0
      %464 = vmatprep.subr.bf16.mxu0 0
      %465 = vmatpush1.bf16.msra.mxu0 0
      %466 = vmatprep.subr.bf16.mxu0 0
      %467 = vmatpush1.bf16.msra.mxu0 0
      %468 = vmatprep.subr.bf16.mxu0 0
      %469 = vmatpush1.bf16.msra.mxu0 0
      %470 = vmatprep.mubr.bf16.mxu0 0
      %471 = vmatmul.mubr.bf16.gmra.mrb[0].mxu0 %v290
      %v472 = vpop.f32.mrb[0].mxu0
      %v473 = vadd.f32 0.0, %v472
      %v474 = vpop.f32.mrb[0].mxu0
      %v475 = vpop.f32.mrb[0].mxu0
      %v476 = vadd.f32 0.0, %v475
      %v477 = vpop.f32.mrb[0].mxu0
      %478 = vdwg.mxu0
      %vm479 = vcmask 261120
      %v481 = vsel %vm479, %v327, 0
      %v484 = vsel %vm479, %v330, 0
      %v487 = vsel %vm479, %v400, 0
      %v490 = vsel %vm479, %v403, 0
      %492 = vmatprep.subr.mxu0 0.0
      %493 = vmatpush1.xpose.msra.mxu0 %v487
      %494 = vmatprep.subr.mxu0 0.0
      %495 = vmatpush1.xpose.msra.mxu0 %v490
      %496 = vmatprep.subr.mxu0 0.0
      %497 = vmatpush1.xpose.msra.mxu0 0.0
      %498 = vmatprep.subr.mxu0 0.0
      %499 = vmatpush1.xpose.msra.mxu0 0.0
      %500 = vmatprep.subr.mxu0 0.0
      %501 = vmatpush1.xpose.msra.mxu0 0.0
      %502 = vmatprep.subr.mxu0 0.0
      %503 = vmatpush1.xpose.msra.mxu0 0.0
      %504 = vmatprep.subr.mxu0 0.0
      %505 = vmatpush1.xpose.msra.mxu0 0.0
      %506 = vmatprep.subr.mxu0 0.0
      %507 = vmatpush1.xpose.msra.mxu0 0.0
      %508 = vmatprep.subr.mxu0 0.0
      %509 = vmatpush1.xpose.msra.mxu0 0.0
      %510 = vmatprep.subr.mxu0 0.0
      %511 = vmatpush1.xpose.msra.mxu0 0.0
      %512 = vmatprep.subr.mxu0 0.0
      %513 = vmatpush1.xpose.msra.mxu0 0.0
      %514 = vmatprep.subr.mxu0 0.0
      %515 = vmatpush1.xpose.msra.mxu0 0.0
      %516 = vmatprep.subr.mxu0 0.0
      %517 = vmatpush1.xpose.msra.mxu0 0.0
      %518 = vmatprep.subr.mxu0 0.0
      %519 = vmatpush1.xpose.msra.mxu0 0.0
      %520 = vmatprep.subr.mxu0 0.0
      %521 = vmatpush1.xpose.msra.mxu0 0.0
      %522 = vmatprep.subr.mxu0 0.0
      %523 = vmatpush1.xpose.msra.mxu0 0.0
      %524 = vmatprep.subr.mxu0 0.0
      %525 = vmatpush1.xpose.msra.mxu0 0.0
      %526 = vmatprep.subr.mxu0 0.0
      %527 = vmatpush1.xpose.msra.mxu0 0.0
      %528 = vmatprep.subr.mxu0 0.0
      %529 = vmatpush1.xpose.msra.mxu0 0.0
      %530 = vmatprep.subr.mxu0 0.0
      %531 = vmatpush1.xpose.msra.mxu0 0.0
      %532 = vmatprep.subr.mxu0 0.0
      %533 = vmatpush1.xpose.msra.mxu0 0.0
      %534 = vmatprep.subr.mxu0 0.0
      %535 = vmatpush1.xpose.msra.mxu0 0.0
      %536 = vmatprep.subr.mxu0 0.0
      %537 = vmatpush1.xpose.msra.mxu0 0.0
      %538 = vmatprep.subr.mxu0 0.0
      %539 = vmatpush1.xpose.msra.mxu0 0.0
      %540 = vmatprep.subr.mxu0 0.0
      %541 = vmatpush1.xpose.msra.mxu0 0.0
      %542 = vmatprep.subr.mxu0 0.0
      %543 = vmatpush1.xpose.msra.mxu0 0.0
      %544 = vmatprep.subr.mxu0 0.0
      %545 = vmatpush1.xpose.msra.mxu0 0.0
      %546 = vmatprep.subr.mxu0 0.0
      %547 = vmatpush1.xpose.msra.mxu0 0.0
      %548 = vmatprep.subr.mxu0 0.0
      %549 = vmatpush1.xpose.msra.mxu0 0.0
      %550 = vmatprep.subr.mxu0 0.0
      %551 = vmatpush1.xpose.msra.mxu0 0.0
      %552 = vmatprep.subr.mxu0 0.0
      %553 = vmatpush1.xpose.msra.mxu0 0.0
      %554 = vmatprep.subr.mxu0 0.0
      %555 = vmatpush1.xpose.msra.mxu0 0.0
      %556 = vmatprep.mubr.f32.mxu0 0.0
      %557 = vmatmul.mubr.f32.gmra.mrb[0].mxu0 %v481
      %v558 = vpop.f32.mrb[0].mxu0
      %v559 = vadd.f32 0.0, %v558
      %v560 = vpop.f32.mrb[0].mxu0
      %561 = vmatprep.mubr.f32.mxu0 0.0
      %562 = vmatmul.mubr.f32.gmra.mrb[0].mxu0 %v484
      %v563 = vpop.f32.mrb[0].mxu0
      %v564 = vadd.f32 0.0, %v563
      %v565 = vpop.f32.mrb[0].mxu0
      %566 = vdwg.mxu0
      %v567 = vmul.f32 %v559, 0.17677669
      %v568 = vmul.f32 %v564, 0.17677669
      %vm569 = vcmask 130048
      %v570 = vsel %vm569, %v567, -inf
      %571 = vmax.xlane.f32.xlu0 %v570
      %v572 = vpop.xlane.xlu0 %571
      %v573 = vsel %vm569, %v568, -inf
      %574 = vmax.xlane.f32.xlu0 %v573
      %v575 = vpop.xlane.xlu0 %574
      %v576 = vsub.f32 %v567, %v572
      %v577 = vsub.f32 %v568, %v575
      %v578 = vmul.f32 %v576, 1.442695
      %v579 = vpow.pop %v578
      %v580 = vmul.f32 %v577, 1.442695
      %v581 = vpow.pop %v580
      %v582 = vsel %vm569, %v579, 0.0
      %583 = vadd.xlane.f32.xlu0 %v582
      %v584 = vpop.xlane.xlu0 %583
      %v585 = vsel %vm569, %v581, 0.0
      %586 = vadd.xlane.f32.xlu0 %v585
      %v587 = vpop.xlane.xlu0 %586
      %v588 = vrcp.pop %v584
      %v589 = vrcp.pop %v587
      %v590 = vmul.f32 %v579, %v588
      %v591 = vmul.f32 %v581, %v589
      %v592 = vpack.c.bf16 %v591, %v590
      %v593 = vpack.c.bf16 %v476, %v473
      %v595 = vsel %vm569, %v592, 0
      %597 = vmatprep.subr.bf16.mxu0 0
      %598 = vmatpush1.bf16.msra.mxu0 %v593
      %599 = vmatprep.subr.bf16.mxu0 0
      %600 = vmatpush1.bf16.msra.mxu0 0
      %601 = vmatprep.subr.bf16.mxu0 0
      %602 = vmatpush1.bf16.msra.mxu0 0
      %603 = vmatprep.subr.bf16.mxu0 0
      %604 = vmatpush1.bf16.msra.mxu0 0
      %605 = vmatprep.subr.bf16.mxu0 0
      %606 = vmatpush1.bf16.msra.mxu0 0
      %607 = vmatprep.subr.bf16.mxu0 0
      %608 = vmatpush1.bf16.msra.mxu0 0
      %609 = vmatprep.subr.bf16.mxu0 0
      %610 = vmatpush1.bf16.msra.mxu0 0
      %611 = vmatprep.subr.bf16.mxu0 0
      %612 = vmatpush1.bf16.msra.mxu0 0
      %613 = vmatprep.subr.bf16.mxu0 0
      %614 = vmatpush1.bf16.msra.mxu0 0
      %615 = vmatprep.subr.bf16.mxu0 0
      %616 = vmatpush1.bf16.msra.mxu0 0
      %617 = vmatprep.subr.bf16.mxu0 0
      %618 = vmatpush1.bf16.msra.mxu0 0
      %619 = vmatprep.subr.bf16.mxu0 0
      %620 = vmatpush1.bf16.msra.mxu0 0
      %621 = vmatprep.subr.bf16.mxu0 0
      %622 = vmatpush1.bf16.msra.mxu0 0
      %623 = vmatprep.subr.bf16.mxu0 0
      %624 = vmatpush1.bf16.msra.mxu0 0
      %625 = vmatprep.subr.bf16.mxu0 0
      %626 = vmatpush1.bf16.msra.mxu0 0
      %627 = vmatprep.subr.bf16.mxu0 0
      %628 = vmatpush1.bf16.msra.mxu0 0
      %629 = vmatprep.mubr.bf16.mxu0 0
      %630 = vmatmul.mubr.bf16.gmra.mrb[0].mxu0 %v595
      %v631 = vpop.f32.mrb[0].mxu0
      %v632 = vadd.f32 0.0, %v631
      %v633 = vpop.f32.mrb[0].mxu0
      %v634 = vpop.f32.mrb[0].mxu0
      %v635 = vadd.f32 0.0, %v634
      %v636 = vpop.f32.mrb[0].mxu0
      %637 = vdwg.mxu0
      %v638 = vpack.c.bf16 %v635, %v632
      %v639 = vld [vmem:[%s4] sm:$0xf]
      %v640 = vld [vmem:[%s4 + $0x4] sm:$0xf]
      %v641 = vld [vmem:[%s4 + $0x8] sm:$0xf]
      %v642 = vld [vmem:[%s4 + $0xc] sm:$0xf]
      %s643 = scalar_lea.vmem %s1, 32
      %v644 = vld [vmem:[%s643] sm:$0xf]
      %v645 = vld [vmem:[%s643 + $0x4] sm:$0xf]
      %v646 = vld [vmem:[%s643 + $0x8] sm:$0xf]
      %v647 = vld [vmem:[%s643 + $0xc] sm:$0xf]
      %v648 = vld [vmem:[%s643 + $0x10] sm:$0xf]
      %v649 = vld [vmem:[%s643 + $0x14] sm:$0xf]
      %v650 = vld [vmem:[%s643 + $0x18] sm:$0xf]
      %v651 = vld [vmem:[%s643 + $0x1c] sm:$0xf]
      %v660 = vunpack.c.l.b16 %v644
      %v661 = vunpack.c.l.b16 %v645
      %v662 = vunpack.c.l.b16 %v646
      %v663 = vunpack.c.l.b16 %v647
      %v664 = vunpack.c.l.b16 %v648
      %v665 = vunpack.c.l.b16 %v649
      %v666 = vunpack.c.l.b16 %v650
      %v667 = vunpack.c.l.b16 %v651
      %v668 = vpack.c.b16 %v661, %v660
      %v669 = vpack.c.b16 %v663, %v662
      %v670 = vpack.c.b16 %v665, %v664
      %v671 = vpack.c.b16 %v667, %v666
      %676 = vmatprep.subr.bf16.mxu0 0
      %677 = vmatpush1.bf16.msra.mxu0 %v668
      %678 = vmatprep.subr.bf16.mxu0 0
      %679 = vmatpush1.bf16.msra.mxu0 %v669
      %680 = vmatprep.subr.bf16.mxu0 0
      %681 = vmatpush1.bf16.msra.mxu0 %v670
      %682 = vmatprep.subr.bf16.mxu0 0
      %683 = vmatpush1.bf16.msra.mxu0 %v671
      %684 = vmatprep.subr.bf16.mxu0 0
      %685 = vmatpush1.bf16.msra.mxu0 0
      %686 = vmatprep.subr.bf16.mxu0 0
      %687 = vmatpush1.bf16.msra.mxu0 0
      %688 = vmatprep.subr.bf16.mxu0 0
      %689 = vmatpush1.bf16.msra.mxu0 0
      %690 = vmatprep.subr.bf16.mxu0 0
      %691 = vmatpush1.bf16.msra.mxu0 0
      %692 = vmatprep.subr.bf16.mxu0 0
      %693 = vmatpush1.bf16.msra.mxu0 0
      %694 = vmatprep.subr.bf16.mxu0 0
      %695 = vmatpush1.bf16.msra.mxu0 0
      %696 = vmatprep.subr.bf16.mxu0 0
      %697 = vmatpush1.bf16.msra.mxu0 0
      %698 = vmatprep.subr.bf16.mxu0 0
      %699 = vmatpush1.bf16.msra.mxu0 0
      %700 = vmatprep.subr.bf16.mxu0 0
      %701 = vmatpush1.bf16.msra.mxu0 0
      %702 = vmatprep.subr.bf16.mxu0 0
      %703 = vmatpush1.bf16.msra.mxu0 0
      %704 = vmatprep.subr.bf16.mxu0 0
      %705 = vmatpush1.bf16.msra.mxu0 0
      %706 = vmatprep.subr.bf16.mxu0 0
      %707 = vmatpush1.bf16.msra.mxu0 0
      %708 = vmatprep.mubr.bf16.mxu0 0
      %709 = vmatmul.mubr.bf16.gmra.mrb[0].mxu0 %v290
      %v710 = vpop.f32.mrb[0].mxu0
      %v711 = vadd.f32 0.0, %v710
      %v712 = vpop.f32.mrb[0].mxu0
      %v713 = vpop.f32.mrb[0].mxu0
      %v714 = vadd.f32 0.0, %v713
      %v715 = vpop.f32.mrb[0].mxu0
      %716 = vdwg.mxu0
      %s717 = scalar_lea.vmem %s2, 32
      %v718 = vld [vmem:[%s717] sm:$0xf]
      %v719 = vld [vmem:[%s717 + $0x4] sm:$0xf]
      %v720 = vld [vmem:[%s717 + $0x8] sm:$0xf]
      %v721 = vld [vmem:[%s717 + $0xc] sm:$0xf]
      %v722 = vld [vmem:[%s717 + $0x10] sm:$0xf]
      %v723 = vld [vmem:[%s717 + $0x14] sm:$0xf]
      %v724 = vld [vmem:[%s717 + $0x18] sm:$0xf]
      %v725 = vld [vmem:[%s717 + $0x1c] sm:$0xf]
      %v734 = vunpack.c.l.b16 %v718
      %v735 = vunpack.c.l.b16 %v719
      %v736 = vunpack.c.l.b16 %v720
      %v737 = vunpack.c.l.b16 %v721
      %v738 = vunpack.c.l.b16 %v722
      %v739 = vunpack.c.l.b16 %v723
      %v740 = vunpack.c.l.b16 %v724
      %v741 = vunpack.c.l.b16 %v725
      %v742 = vpack.c.b16 %v735, %v734
      %v743 = vpack.c.b16 %v737, %v736
      %v744 = vpack.c.b16 %v739, %v738
      %v745 = vpack.c.b16 %v741, %v740
      %750 = vmatprep.subr.bf16.mxu0 0
      %751 = vmatpush1.bf16.msra.mxu0 %v742
      %752 = vmatprep.subr.bf16.mxu0 0
      %753 = vmatpush1.bf16.msra.mxu0 %v743
      %754 = vmatprep.subr.bf16.mxu0 0
      %755 = vmatpush1.bf16.msra.mxu0 %v744
      %756 = vmatprep.subr.bf16.mxu0 0
      %757 = vmatpush1.bf16.msra.mxu0 %v745
      %758 = vmatprep.subr.bf16.mxu0 0
      %759 = vmatpush1.bf16.msra.mxu0 0
      %760 = vmatprep.subr.bf16.mxu0 0
      %761 = vmatpush1.bf16.msra.mxu0 0
      %762 = vmatprep.subr.bf16.mxu0 0
      %763 = vmatpush1.bf16.msra.mxu0 0
      %764 = vmatprep.subr.bf16.mxu0 0
      %765 = vmatpush1.bf16.msra.mxu0 0
      %766 = vmatprep.subr.bf16.mxu0 0
      %767 = vmatpush1.bf16.msra.mxu0 0
      %768 = vmatprep.subr.bf16.mxu0 0
      %769 = vmatpush1.bf16.msra.mxu0 0
      %770 = vmatprep.subr.bf16.mxu0 0
      %771 = vmatpush1.bf16.msra.mxu0 0
      %772 = vmatprep.subr.bf16.mxu0 0
      %773 = vmatpush1.bf16.msra.mxu0 0
      %774 = vmatprep.subr.bf16.mxu0 0
      %775 = vmatpush1.bf16.msra.mxu0 0
      %776 = vmatprep.subr.bf16.mxu0 0
      %777 = vmatpush1.bf16.msra.mxu0 0
      %778 = vmatprep.subr.bf16.mxu0 0
      %779 = vmatpush1.bf16.msra.mxu0 0
      %780 = vmatprep.subr.bf16.mxu0 0
      %781 = vmatpush1.bf16.msra.mxu0 0
      %782 = vmatprep.mubr.bf16.mxu0 0
      %783 = vmatmul.mubr.bf16.gmra.mrb[0].mxu0 %v290
      %v784 = vpop.f32.mrb[0].mxu0
      %v785 = vadd.f32 0.0, %v784
      %v786 = vpop.f32.mrb[0].mxu0
      %v787 = vpop.f32.mrb[0].mxu0
      %v788 = vadd.f32 0.0, %v787
      %v789 = vpop.f32.mrb[0].mxu0
      %790 = vdwg.mxu0
      %s791 = scalar_lea.vmem %s3, 32
      %v792 = vld [vmem:[%s791] sm:$0xf]
      %v793 = vld [vmem:[%s791 + $0x4] sm:$0xf]
      %v794 = vld [vmem:[%s791 + $0x8] sm:$0xf]
      %v795 = vld [vmem:[%s791 + $0xc] sm:$0xf]
      %v796 = vld [vmem:[%s791 + $0x10] sm:$0xf]
      %v797 = vld [vmem:[%s791 + $0x14] sm:$0xf]
      %v798 = vld [vmem:[%s791 + $0x18] sm:$0xf]
      %v799 = vld [vmem:[%s791 + $0x1c] sm:$0xf]
      %v808 = vunpack.c.l.b16 %v792
      %v809 = vunpack.c.l.b16 %v793
      %v810 = vunpack.c.l.b16 %v794
      %v811 = vunpack.c.l.b16 %v795
      %v812 = vunpack.c.l.b16 %v796
      %v813 = vunpack.c.l.b16 %v797
      %v814 = vunpack.c.l.b16 %v798
      %v815 = vunpack.c.l.b16 %v799
      %v816 = vpack.c.b16 %v809, %v808
      %v817 = vpack.c.b16 %v811, %v810
      %v818 = vpack.c.b16 %v813, %v812
      %v819 = vpack.c.b16 %v815, %v814
      %824 = vmatprep.subr.bf16.mxu0 0
      %825 = vmatpush1.bf16.msra.mxu0 %v816
      %826 = vmatprep.subr.bf16.mxu0 0
      %827 = vmatpush1.bf16.msra.mxu0 %v817
      %828 = vmatprep.subr.bf16.mxu0 0
      %829 = vmatpush1.bf16.msra.mxu0 %v818
      %830 = vmatprep.subr.bf16.mxu0 0
      %831 = vmatpush1.bf16.msra.mxu0 %v819
      %832 = vmatprep.subr.bf16.mxu0 0
      %833 = vmatpush1.bf16.msra.mxu0 0
      %834 = vmatprep.subr.bf16.mxu0 0
      %835 = vmatpush1.bf16.msra.mxu0 0
      %836 = vmatprep.subr.bf16.mxu0 0
      %837 = vmatpush1.bf16.msra.mxu0 0
      %838 = vmatprep.subr.bf16.mxu0 0
      %839 = vmatpush1.bf16.msra.mxu0 0
      %840 = vmatprep.subr.bf16.mxu0 0
      %841 = vmatpush1.bf16.msra.mxu0 0
      %842 = vmatprep.subr.bf16.mxu0 0
      %843 = vmatpush1.bf16.msra.mxu0 0
      %844 = vmatprep.subr.bf16.mxu0 0
      %845 = vmatpush1.bf16.msra.mxu0 0
      %846 = vmatprep.subr.bf16.mxu0 0
      %847 = vmatpush1.bf16.msra.mxu0 0
      %848 = vmatprep.subr.bf16.mxu0 0
      %849 = vmatpush1.bf16.msra.mxu0 0
      %850 = vmatprep.subr.bf16.mxu0 0
      %851 = vmatpush1.bf16.msra.mxu0 0
      %852 = vmatprep.subr.bf16.mxu0 0
      %853 = vmatpush1.bf16.msra.mxu0 0
      %854 = vmatprep.subr.bf16.mxu0 0
      %855 = vmatpush1.bf16.msra.mxu0 0
      %856 = vmatprep.mubr.bf16.mxu0 0
      %857 = vmatmul.mubr.bf16.gmra.mrb[0].mxu0 %v290
      %v858 = vpop.f32.mrb[0].mxu0
      %v859 = vadd.f32 0.0, %v858
      %v860 = vpop.f32.mrb[0].mxu0
      %v861 = vpop.f32.mrb[0].mxu0
      %v862 = vadd.f32 0.0, %v861
      %v863 = vpop.f32.mrb[0].mxu0
      %864 = vdwg.mxu0
      %v866 = vsel %vm479, %v711, 0
      %v869 = vsel %vm479, %v714, 0
      %v872 = vsel %vm479, %v785, 0
      %v875 = vsel %vm479, %v788, 0
      %877 = vmatprep.subr.mxu0 0.0
      %878 = vmatpush1.xpose.msra.mxu0 %v872
      %879 = vmatprep.subr.mxu0 0.0
      %880 = vmatpush1.xpose.msra.mxu0 %v875
      %881 = vmatprep.subr.mxu0 0.0
      %882 = vmatpush1.xpose.msra.mxu0 0.0
      %883 = vmatprep.subr.mxu0 0.0
      %884 = vmatpush1.xpose.msra.mxu0 0.0
      %885 = vmatprep.subr.mxu0 0.0
      %886 = vmatpush1.xpose.msra.mxu0 0.0
      %887 = vmatprep.subr.mxu0 0.0
      %888 = vmatpush1.xpose.msra.mxu0 0.0
      %889 = vmatprep.subr.mxu0 0.0
      %890 = vmatpush1.xpose.msra.mxu0 0.0
      %891 = vmatprep.subr.mxu0 0.0
      %892 = vmatpush1.xpose.msra.mxu0 0.0
      %893 = vmatprep.subr.mxu0 0.0
      %894 = vmatpush1.xpose.msra.mxu0 0.0
      %895 = vmatprep.subr.mxu0 0.0
      %896 = vmatpush1.xpose.msra.mxu0 0.0
      %897 = vmatprep.subr.mxu0 0.0
      %898 = vmatpush1.xpose.msra.mxu0 0.0
      %899 = vmatprep.subr.mxu0 0.0
      %900 = vmatpush1.xpose.msra.mxu0 0.0
      %901 = vmatprep.subr.mxu0 0.0
      %902 = vmatpush1.xpose.msra.mxu0 0.0
      %903 = vmatprep.subr.mxu0 0.0
      %904 = vmatpush1.xpose.msra.mxu0 0.0
      %905 = vmatprep.subr.mxu0 0.0
      %906 = vmatpush1.xpose.msra.mxu0 0.0
      %907 = vmatprep.subr.mxu0 0.0
      %908 = vmatpush1.xpose.msra.mxu0 0.0
      %909 = vmatprep.subr.mxu0 0.0
      %910 = vmatpush1.xpose.msra.mxu0 0.0
      %911 = vmatprep.subr.mxu0 0.0
      %912 = vmatpush1.xpose.msra.mxu0 0.0
      %913 = vmatprep.subr.mxu0 0.0
      %914 = vmatpush1.xpose.msra.mxu0 0.0
      %915 = vmatprep.subr.mxu0 0.0
      %916 = vmatpush1.xpose.msra.mxu0 0.0
      %917 = vmatprep.subr.mxu0 0.0
      %918 = vmatpush1.xpose.msra.mxu0 0.0
      %919 = vmatprep.subr.mxu0 0.0
      %920 = vmatpush1.xpose.msra.mxu0 0.0
      %921 = vmatprep.subr.mxu0 0.0
      %922 = vmatpush1.xpose.msra.mxu0 0.0
      %923 = vmatprep.subr.mxu0 0.0
      %924 = vmatpush1.xpose.msra.mxu0 0.0
      %925 = vmatprep.subr.mxu0 0.0
      %926 = vmatpush1.xpose.msra.mxu0 0.0
      %927 = vmatprep.subr.mxu0 0.0
      %928 = vmatpush1.xpose.msra.mxu0 0.0
      %929 = vmatprep.subr.mxu0 0.0
      %930 = vmatpush1.xpose.msra.mxu0 0.0
      %931 = vmatprep.subr.mxu0 0.0
      %932 = vmatpush1.xpose.msra.mxu0 0.0
      %933 = vmatprep.subr.mxu0 0.0
      %934 = vmatpush1.xpose.msra.mxu0 0.0
      %935 = vmatprep.subr.mxu0 0.0
      %936 = vmatpush1.xpose.msra.mxu0 0.0
      %937 = vmatprep.subr.mxu0 0.0
      %938 = vmatpush1.xpose.msra.mxu0 0.0
      %939 = vmatprep.subr.mxu0 0.0
      %940 = vmatpush1.xpose.msra.mxu0 0.0
      %941 = vmatprep.mubr.f32.mxu0 0.0
      %942 = vmatmul.mubr.f32.gmra.mrb[0].mxu0 %v866
      %v943 = vpop.f32.mrb[0].mxu0
      %v944 = vadd.f32 0.0, %v943
      %v945 = vpop.f32.mrb[0].mxu0
      %946 = vmatprep.mubr.f32.mxu0 0.0
      %947 = vmatmul.mubr.f32.gmra.mrb[0].mxu0 %v869
      %v948 = vpop.f32.mrb[0].mxu0
      %v949 = vadd.f32 0.0, %v948
      %v950 = vpop.f32.mrb[0].mxu0
      %951 = vdwg.mxu0
      %v952 = vmul.f32 %v944, 0.17677669
      %v953 = vmul.f32 %v949, 0.17677669
      %v954 = vsel %vm569, %v952, -inf
      %955 = vmax.xlane.f32.xlu0 %v954
      %v956 = vpop.xlane.xlu0 %955
      %v957 = vsel %vm569, %v953, -inf
      %958 = vmax.xlane.f32.xlu0 %v957
      %v959 = vpop.xlane.xlu0 %958
      %v960 = vsub.f32 %v952, %v956
      %v961 = vsub.f32 %v953, %v959
      %v962 = vmul.f32 %v960, 1.442695
      %v963 = vpow.pop %v962
      %v964 = vmul.f32 %v961, 1.442695
      %v965 = vpow.pop %v964
      %v966 = vsel %vm569, %v963, 0.0
      %967 = vadd.xlane.f32.xlu0 %v966
      %v968 = vpop.xlane.xlu0 %967
      %v969 = vsel %vm569, %v965, 0.0
      %970 = vadd.xlane.f32.xlu0 %v969
      %v971 = vpop.xlane.xlu0 %970
      %v972 = vrcp.pop %v968
      %v973 = vrcp.pop %v971
      %v974 = vmul.f32 %v963, %v972
      %v975 = vmul.f32 %v965, %v973
      %v976 = vpack.c.bf16 %v975, %v974
      %v977 = vpack.c.bf16 %v862, %v859
      %v979 = vsel %vm569, %v976, 0
      %981 = vmatprep.subr.bf16.mxu0 0
      %982 = vmatpush1.bf16.msra.mxu0 %v977
      %983 = vmatprep.subr.bf16.mxu0 0
      %984 = vmatpush1.bf16.msra.mxu0 0
      %985 = vmatprep.subr.bf16.mxu0 0
      %986 = vmatpush1.bf16.msra.mxu0 0
      %987 = vmatprep.subr.bf16.mxu0 0
      %988 = vmatpush1.bf16.msra.mxu0 0
      %989 = vmatprep.subr.bf16.mxu0 0
      %990 = vmatpush1.bf16.msra.mxu0 0
      %991 = vmatprep.subr.bf16.mxu0 0
      %992 = vmatpush1.bf16.msra.mxu0 0
      %993 = vmatprep.subr.bf16.mxu0 0
      %994 = vmatpush1.bf16.msra.mxu0 0
      %995 = vmatprep.subr.bf16.mxu0 0
      %996 = vmatpush1.bf16.msra.mxu0 0
      %997 = vmatprep.subr.bf16.mxu0 0
      %998 = vmatpush1.bf16.msra.mxu0 0
      %999 = vmatprep.subr.bf16.mxu0 0
      %1000 = vmatpush1.bf16.msra.mxu0 0
      %1001 = vmatprep.subr.bf16.mxu0 0
      %1002 = vmatpush1.bf16.msra.mxu0 0
      %1003 = vmatprep.subr.bf16.mxu0 0
      %1004 = vmatpush1.bf16.msra.mxu0 0
      %1005 = vmatprep.subr.bf16.mxu0 0
      %1006 = vmatpush1.bf16.msra.mxu0 0
      %1007 = vmatprep.subr.bf16.mxu0 0
      %1008 = vmatpush1.bf16.msra.mxu0 0
      %1009 = vmatprep.subr.bf16.mxu0 0
      %1010 = vmatpush1.bf16.msra.mxu0 0
      %1011 = vmatprep.subr.bf16.mxu0 0
      %1012 = vmatpush1.bf16.msra.mxu0 0
      %1013 = vmatprep.mubr.bf16.mxu0 0
      %1014 = vmatmul.mubr.bf16.gmra.mrb[0].mxu0 %v979
      %v1015 = vpop.f32.mrb[0].mxu0
      %v1016 = vadd.f32 0.0, %v1015
      %v1017 = vpop.f32.mrb[0].mxu0
      %v1018 = vpop.f32.mrb[0].mxu0
      %v1019 = vadd.f32 0.0, %v1018
      %v1020 = vpop.f32.mrb[0].mxu0
      %1021 = vdwg.mxu0
      %v1022 = vpack.c.bf16 %v1019, %v1016
      %s1023 = scalar_lea.vmem %s4, 16
      %v1024 = vld [vmem:[%s1023] sm:$0xf]
      %v1025 = vld [vmem:[%s1023 + $0x4] sm:$0xf]
      %v1026 = vld [vmem:[%s1023 + $0x8] sm:$0xf]
      %v1027 = vld [vmem:[%s1023 + $0xc] sm:$0xf]
      %v1032 = vunpack.c.l.b16 %v1024
      %v1033 = vunpack.c.l.b16 %v1025
      %v1034 = vunpack.c.l.b16 %v1026
      %v1035 = vunpack.c.l.b16 %v1027
      %v1036 = vpack.c.b16 %v1033, %v1032
      %v1037 = vpack.c.b16 %v1035, %v1034
      %v1041 = vsel %vm479, %v1022, 0
      %1043 = vmatprep.subr.bf16.mxu0 0
      %1044 = vmatpush1.bf16.msra.mxu0 %v1036
      %1045 = vmatprep.subr.bf16.mxu0 0
      %1046 = vmatpush1.bf16.msra.mxu0 %v1037
      %1047 = vmatprep.subr.bf16.mxu0 0
      %1048 = vmatpush1.bf16.msra.mxu0 0
      %1049 = vmatprep.subr.bf16.mxu0 0
      %1050 = vmatpush1.bf16.msra.mxu0 0
      %1051 = vmatprep.subr.bf16.mxu0 0
      %1052 = vmatpush1.bf16.msra.mxu0 0
      %1053 = vmatprep.subr.bf16.mxu0 0
      %1054 = vmatpush1.bf16.msra.mxu0 0
      %1055 = vmatprep.subr.bf16.mxu0 0
      %1056 = vmatpush1.bf16.msra.mxu0 0
      %1057 = vmatprep.subr.bf16.mxu0 0
      %1058 = vmatpush1.bf16.msra.mxu0 0
      %1059 = vmatprep.subr.bf16.mxu0 0
      %1060 = vmatpush1.bf16.msra.mxu0 0
      %1061 = vmatprep.subr.bf16.mxu0 0
      %1062 = vmatpush1.bf16.msra.mxu0 0
      %1063 = vmatprep.subr.bf16.mxu0 0
      %1064 = vmatpush1.bf16.msra.mxu0 0
      %1065 = vmatprep.subr.bf16.mxu0 0
      %1066 = vmatpush1.bf16.msra.mxu0 0
      %1067 = vmatprep.subr.bf16.mxu0 0
      %1068 = vmatpush1.bf16.msra.mxu0 0
      %1069 = vmatprep.subr.bf16.mxu0 0
      %1070 = vmatpush1.bf16.msra.mxu0 0
      %1071 = vmatprep.subr.bf16.mxu0 0
      %1072 = vmatpush1.bf16.msra.mxu0 0
      %1073 = vmatprep.subr.bf16.mxu0 0
      %1074 = vmatpush1.bf16.msra.mxu0 0
      %1075 = vmatprep.mubr.bf16.mxu0 0
      %1076 = vmatmul.mubr.bf16.gmra.mrb[0].mxu0 %v1041
      %v1077 = vpop.f32.mrb[0].mxu0
      %v1078 = vadd.f32 0.0, %v1077
      %v1079 = vpop.f32.mrb[0].mxu0
      %v1080 = vpop.f32.mrb[0].mxu0
      %v1081 = vadd.f32 0.0, %v1080
      %v1082 = vpop.f32.mrb[0].mxu0
      %1083 = vdwg.mxu0
      %v1088 = vunpack.c.l.b16 %v639
      %v1089 = vunpack.c.l.b16 %v640
      %v1090 = vunpack.c.l.b16 %v641
      %v1091 = vunpack.c.l.b16 %v642
      %v1092 = vpack.c.b16 %v1089, %v1088
      %v1093 = vpack.c.b16 %v1091, %v1090
      %v1097 = vsel %vm479, %v638, 0
      %1099 = vmatprep.subr.bf16.mxu0 0
      %1100 = vmatpush1.bf16.msra.mxu0 %v1092
      %1101 = vmatprep.subr.bf16.mxu0 0
      %1102 = vmatpush1.bf16.msra.mxu0 %v1093
      %1103 = vmatprep.subr.bf16.mxu0 0
      %1104 = vmatpush1.bf16.msra.mxu0 0
      %1105 = vmatprep.subr.bf16.mxu0 0
      %1106 = vmatpush1.bf16.msra.mxu0 0
      %1107 = vmatprep.subr.bf16.mxu0 0
      %1108 = vmatpush1.bf16.msra.mxu0 0
      %1109 = vmatprep.subr.bf16.mxu0 0
      %1110 = vmatpush1.bf16.msra.mxu0 0
      %1111 = vmatprep.subr.bf16.mxu0 0
      %1112 = vmatpush1.bf16.msra.mxu0 0
      %1113 = vmatprep.subr.bf16.mxu0 0
      %1114 = vmatpush1.bf16.msra.mxu0 0
      %1115 = vmatprep.subr.bf16.mxu0 0
      %1116 = vmatpush1.bf16.msra.mxu0 0
      %1117 = vmatprep.subr.bf16.mxu0 0
      %1118 = vmatpush1.bf16.msra.mxu0 0
      %1119 = vmatprep.subr.bf16.mxu0 0
      %1120 = vmatpush1.bf16.msra.mxu0 0
      %1121 = vmatprep.subr.bf16.mxu0 0
      %1122 = vmatpush1.bf16.msra.mxu0 0
      %1123 = vmatprep.subr.bf16.mxu0 0
      %1124 = vmatpush1.bf16.msra.mxu0 0
      %1125 = vmatprep.subr.bf16.mxu0 0
      %1126 = vmatpush1.bf16.msra.mxu0 0
      %1127 = vmatprep.subr.bf16.mxu0 0
      %1128 = vmatpush1.bf16.msra.mxu0 0
      %1129 = vmatprep.subr.bf16.mxu0 0
      %1130 = vmatpush1.bf16.msra.mxu0 0
      %1131 = vmatprep.mubr.bf16.mxu0 0
      %1132 = vmatmul.mubr.bf16.gmra.mrb[0].mxu0 %v1097
      %v1133 = vpop.f32.mrb[0].mxu0
      %v1134 = vadd.f32 %v1078, %v1133
      %v1135 = vpop.f32.mrb[0].mxu0
      %v1136 = vpop.f32.mrb[0].mxu0
      %v1137 = vadd.f32 %v1081, %v1136
      %v1138 = vpop.f32.mrb[0].mxu0
      %1139 = vdwg.mxu0
      %v1140 = vld [vmem:[%s5] sm:$0x1]
      %v1142 = vlaneseq
      %v1143 = vshrl.u32 %v1142, 7
      %v1144 = vsub.s32 0, %v1143
      %v1145 = vrot.slane %v1140, %v1144
      %v1147 = vadd.f32 %v1134, %v1145
      %v1148 = vadd.f32 %v1137, %v1145
      %1149 = vst.msk [vmem:[%s251] sm:$0xff] %vm288, %v1147
      %1150 = vst.msk [vmem:[%s251 + $0x8] sm:$0xff] %vm288, %v1148
      %p1151 = scmp.lt.s32.totalorder %s17, 1
      %s1152 = scalar_select %p1151, %s17, 1
      %s1153 = smul.addr %s1152, 2
      %s1154 = smul.addr %s1153, 8
      %s1155 = scalar_lea.vmem %s6, %s1154
      // Predicated region
      $region45: #{lowformer_block_forward.2} parent=43 // pred_check
        %p1156 = pneg %p166
      $region46: #{lowformer_block_forward.2} parent=43 // pred_check_branch
        %1158 = sbr.rel (%p1156) target = $region48
      $region47: #{lowformer_block_forward.2} parent=43 // pred_region
        _
      $region48: #{lowformer_block_forward.2} parent=43 // pred_fallthru
        _
    $region44: #{lowformer_block_forward.2} parent=5 // pred_fallthru
      _
    %p1159 = scmp.le.s32.totalorder 2, %s12
    // Predicated region
    $region49: #{lowformer_block_forward.2} parent=5 // pred_check
      %p1160 = pneg %p1159
    $region50: #{lowformer_block_forward.2} parent=5 // pred_check_branch
      %1162 = sbr.rel (%p1160) target = $region52
    $region51: #{lowformer_block_forward.2} parent=5 // pred_region
      %s1163 = ssub.s32 %s12, 2
      // Predicated region
      $region53: #{lowformer_block_forward.2} parent=51 // pred_check
        %p1164 = pneg %p172
      $region54: #{lowformer_block_forward.2} parent=51 // pred_check_branch
        %1166 = sbr.rel (%p1164) target = $region56
      $region55: #{lowformer_block_forward.2} parent=51 // pred_region
        %p1167 = scmp.lt.s32.totalorder %s18, 1
        %s1168 = scalar_select %p1167, %s18, 1
        %s1169 = smul.addr %s1168, 2
        %s1170 = smul.addr %s1169, 8
        %s1171 = scalar_lea.vmem %s6, %s1170
      $region56: #{lowformer_block_forward.2} parent=51 // pred_fallthru
        _
    $region52: #{lowformer_block_forward.2} parent=5 // pred_fallthru
      _
  $region6: #{lowformer_block_forward.2} parent=0 // loop_footer
    %s16 = sadd.s32 1, %s12
  $region7: #{lowformer_block_forward.2} parent=0 // loop_footer_branch
    %11 = sbr.rel target = $region3
  $region8: #{lowformer_block_forward.2} parent=0 // loop_exit
    _

// kernel: lowformer_block_forward.3
$region0: #{lowformer_block_forward.3}
  #allocation0 [shape = 'u32[]', space=smem, size = 0x4, offset = 0x4, fixed_abs, tag = 'smem constant byte address 0x4 - core index']
  #allocation1 [shape = 'u32[144,128]{1,0:T(1,128)}', space=vmem, size = 0x12000, scoped, tag = 'internal scratch']
  #allocation2 [shape = 'f32[18,18,256]{2,1,0:T(8,128)}', space=vmem, size = 0x6c000, scoped, tag = 'scratch operand']
  #allocation3 [shape = 'f32[256,256]{1,0:T(8,128)}', space=vmem, size = 0x40000, scoped, tag = 'scratch operand']
  %s0 = inlined_call_operand.vmem [shape: f32[2,16,16,64], index: 0, kind: input, shape index: {}]
  %s1 = inlined_call_operand.vmem [shape: f32[2,16,16,64], index: 1, kind: input, shape index: {}]
  %s2 = inlined_call_operand.vmem [shape: bf16[64,256], index: 2, kind: input, shape index: {}]
  %s3 = inlined_call_operand.vmem [shape: f32[1,256], index: 3, kind: input, shape index: {}]
  %s4 = inlined_call_operand.vmem [shape: f32[9,256], index: 4, kind: input, shape index: {}]
  %s5 = inlined_call_operand.vmem [shape: f32[1,256], index: 5, kind: input, shape index: {}]
  %s6 = inlined_call_operand.vmem [shape: bf16[256,64], index: 6, kind: input, shape index: {}]
  %s7 = inlined_call_operand.vmem [shape: f32[1,64], index: 7, kind: input, shape index: {}]
  %s8 = inlined_call_operand.hbm [shape: f32[2,16,16,64], index: 8, kind: output, shape index: {}]
  %s9 = sld [smem:[#allocation0]]
  $region65: #{lowformer_block_forward.3} parent=0
    _
  %s11 = ssub.s32 1, %s9
  %s12 = scalar_select 0, %s11, %s9
  $region1: #{lowformer_block_forward.3} parent=0
    #allocation4 [shape = 'u8[262144]{0}', space=vmem, size = 0x40000, scoped, tag = 'output window, operand 0']
    #allocation5 [shape = 's32[2]{0}', space=sflag, size = 0x8, scoped, tag = 'scoped memory for lowformer_block_forward.3']
    %13 = vsyncpa [#allocation5], 0
    %s14 = scalar_lea.sflag [#allocation5], 1
    %15 = vsyncpa %s14, 0
    loop: start=0, step=1, limit=4
    $region2: #{lowformer_block_forward.3} parent=1 // loop_pre_header
      _
    $region3: #{lowformer_block_forward.3} parent=1 // loop_header
      %s17 = sphi 0, %s21
      %p18 = scmp.ge.s32.totalorder %s17, 4
      %s27 = sphi 0, %s29
      %s30 = sphi 0, %s27
      %s31 = sphi 0, %s30
      %s47 = sphi 0, %s31
      %s53 = sphi 0, %s55
      %s56 = sphi 0, %s53
      %s57 = sphi 0, %s56
      %s73 = sphi 0, %s57
      %s77 = sphi 0, %s77
      %s79 = sphi 0, %s77
      %s80 = sphi 0, %s79
      %s94 = sphi 0, %s80
      %s98 = sphi 0, %s98
      %s100 = sphi 0, %s98
      %s101 = sphi 0, %s100
      %s115 = sphi 0, %s101
      %s119 = sphi 0, %s119
      %s121 = sphi 0, %s119
      %s122 = sphi 0, %s121
      %s136 = sphi 0, %s122
      %s140 = sphi 0, %s140
      %s142 = sphi 0, %s140
      %s143 = sphi 0, %s142
      %s157 = sphi 0, %s143
      %s161 = sphi 0, %s161
      %s163 = sphi 0, %s161
      %s164 = sphi 0, %s163
      %s178 = sphi 0, %s164
      %s182 = sphi 0, %s182
      %s184 = sphi 0, %s182
      %s185 = sphi 0, %s184
      %s199 = sphi 0, %s185
      %s205 = sphi 0, %s207
      %s208 = sphi 0, %s205
      %s209 = sphi 0, %s208
      %s225 = sphi 0, %s209
    $region4: #{lowformer_block_forward.3} parent=1 // loop_header_branch
      %20 = sbr.rel (%p18) target = $region8
    $region5: #{lowformer_block_forward.3} parent=1 // loop_body
      %s22 = ssub.s32 %s17, 1
      %s23 = ssub.s32 %s17, 2
      %s24 = sadd.s32 %s17, 1
      %s25 = ssub.s32 %s17, %s24
      %p26 = scmp.eq.s32.totalorder %s25, 0
      %s28 = sadd.s32 %s27, 1
      %s29 = scalar_select %p26, %s27, %s28
      %p32 = pneg %p26
      %p33 = scmp.eq.s32.totalorder %s17, 1
      %p34 = por %p32, %p33
      %p35 = scmp.ne.s32.totalorder %s27, %s30
      %p36 = scmp.eq.s32.totalorder %s17, 0
      %p37 = por %p35, %p36
      %p38 = scmp.ne.s32.totalorder %s27, %s30
      %p39 = scmp.eq.s32.totalorder %s22, 1
      %p40 = por %p38, %p39
      %p41 = scmp.ne.s32.totalorder %s30, %s31
      %p42 = scmp.eq.s32.totalorder %s22, 0
      %p43 = por %p41, %p42
      %p44 = scmp.ne.s32.totalorder %s30, %s31
      %p45 = scmp.eq.s32.totalorder %s23, 1
      %p46 = por %p44, %p45
      %p48 = scmp.ne.s32.totalorder %s31, %s47
      %p49 = scmp.eq.s32.totalorder %s23, 0
      %p50 = por %p48, %p49
      %s51 = ssub.s32 %s17, %s24
      %p52 = scmp.eq.s32.totalorder %s51, 0
      %s54 = sadd.s32 %s53, 1
      %s55 = scalar_select %p52, %s53, %s54
      %p58 = pneg %p52
      %p59 = scmp.eq.s32.totalorder %s17, 1
      %p60 = por %p58, %p59
      %p61 = scmp.ne.s32.totalorder %s53, %s56
      %p62 = scmp.eq.s32.totalorder %s17, 0
      %p63 = por %p61, %p62
      %p64 = scmp.ne.s32.totalorder %s53, %s56
      %p65 = scmp.eq.s32.totalorder %s22, 1
      %p66 = por %p64, %p65
      %p67 = scmp.ne.s32.totalorder %s56, %s57
      %p68 = scmp.eq.s32.totalorder %s22, 0
      %p69 = por %p67, %p68
      %p70 = scmp.ne.s32.totalorder %s56, %s57
      %p71 = scmp.eq.s32.totalorder %s23, 1
      %p72 = por %p70, %p71
      %p74 = scmp.ne.s32.totalorder %s57, %s73
      %p75 = scmp.eq.s32.totalorder %s23, 0
      %p76 = por %p74, %p75
      %s78 = sadd.s32 %s77, 1
      %p81 = scmp.eq.s32.totalorder %s17, 1
      %p82 = scmp.ne.s32.totalorder %s77, %s79
      %p83 = scmp.eq.s32.totalorder %s17, 0
      %p84 = por %p82, %p83
      %p85 = scmp.ne.s32.totalorder %s77, %s79
      %p86 = scmp.eq.s32.totalorder %s22, 1
      %p87 = por %p85, %p86
      %p88 = scmp.ne.s32.totalorder %s79, %s80
      %p89 = scmp.eq.s32.totalorder %s22, 0
      %p90 = por %p88, %p89
      %p91 = scmp.ne.s32.totalorder %s79, %s80
      %p92 = scmp.eq.s32.totalorder %s23, 1
      %p93 = por %p91, %p92
      %p95 = scmp.ne.s32.totalorder %s80, %s94
      %p96 = scmp.eq.s32.totalorder %s23, 0
      %p97 = por %p95, %p96
      %s99 = sadd.s32 %s98, 1
      %p102 = scmp.eq.s32.totalorder %s17, 1
      %p103 = scmp.ne.s32.totalorder %s98, %s100
      %p104 = scmp.eq.s32.totalorder %s17, 0
      %p105 = por %p103, %p104
      %p106 = scmp.ne.s32.totalorder %s98, %s100
      %p107 = scmp.eq.s32.totalorder %s22, 1
      %p108 = por %p106, %p107
      %p109 = scmp.ne.s32.totalorder %s100, %s101
      %p110 = scmp.eq.s32.totalorder %s22, 0
      %p111 = por %p109, %p110
      %p112 = scmp.ne.s32.totalorder %s100, %s101
      %p113 = scmp.eq.s32.totalorder %s23, 1
      %p114 = por %p112, %p113
      %p116 = scmp.ne.s32.totalorder %s101, %s115
      %p117 = scmp.eq.s32.totalorder %s23, 0
      %p118 = por %p116, %p117
      %s120 = sadd.s32 %s119, 1
      %p123 = scmp.eq.s32.totalorder %s17, 1
      %p124 = scmp.ne.s32.totalorder %s119, %s121
      %p125 = scmp.eq.s32.totalorder %s17, 0
      %p126 = por %p124, %p125
      %p127 = scmp.ne.s32.totalorder %s119, %s121
      %p128 = scmp.eq.s32.totalorder %s22, 1
      %p129 = por %p127, %p128
      %p130 = scmp.ne.s32.totalorder %s121, %s122
      %p131 = scmp.eq.s32.totalorder %s22, 0
      %p132 = por %p130, %p131
      %p133 = scmp.ne.s32.totalorder %s121, %s122
      %p134 = scmp.eq.s32.totalorder %s23, 1
      %p135 = por %p133, %p134
      %p137 = scmp.ne.s32.totalorder %s122, %s136
      %p138 = scmp.eq.s32.totalorder %s23, 0
      %p139 = por %p137, %p138
      %s141 = sadd.s32 %s140, 1
      %p144 = scmp.eq.s32.totalorder %s17, 1
      %p145 = scmp.ne.s32.totalorder %s140, %s142
      %p146 = scmp.eq.s32.totalorder %s17, 0
      %p147 = por %p145, %p146
      %p148 = scmp.ne.s32.totalorder %s140, %s142
      %p149 = scmp.eq.s32.totalorder %s22, 1
      %p150 = por %p148, %p149
      %p151 = scmp.ne.s32.totalorder %s142, %s143
      %p152 = scmp.eq.s32.totalorder %s22, 0
      %p153 = por %p151, %p152
      %p154 = scmp.ne.s32.totalorder %s142, %s143
      %p155 = scmp.eq.s32.totalorder %s23, 1
      %p156 = por %p154, %p155
      %p158 = scmp.ne.s32.totalorder %s143, %s157
      %p159 = scmp.eq.s32.totalorder %s23, 0
      %p160 = por %p158, %p159
      %s162 = sadd.s32 %s161, 1
      %p165 = scmp.eq.s32.totalorder %s17, 1
      %p166 = scmp.ne.s32.totalorder %s161, %s163
      %p167 = scmp.eq.s32.totalorder %s17, 0
      %p168 = por %p166, %p167
      %p169 = scmp.ne.s32.totalorder %s161, %s163
      %p170 = scmp.eq.s32.totalorder %s22, 1
      %p171 = por %p169, %p170
      %p172 = scmp.ne.s32.totalorder %s163, %s164
      %p173 = scmp.eq.s32.totalorder %s22, 0
      %p174 = por %p172, %p173
      %p175 = scmp.ne.s32.totalorder %s163, %s164
      %p176 = scmp.eq.s32.totalorder %s23, 1
      %p177 = por %p175, %p176
      %p179 = scmp.ne.s32.totalorder %s164, %s178
      %p180 = scmp.eq.s32.totalorder %s23, 0
      %p181 = por %p179, %p180
      %s183 = sadd.s32 %s182, 1
      %p186 = scmp.eq.s32.totalorder %s17, 1
      %p187 = scmp.ne.s32.totalorder %s182, %s184
      %p188 = scmp.eq.s32.totalorder %s17, 0
      %p189 = por %p187, %p188
      %p190 = scmp.ne.s32.totalorder %s182, %s184
      %p191 = scmp.eq.s32.totalorder %s22, 1
      %p192 = por %p190, %p191
      %p193 = scmp.ne.s32.totalorder %s184, %s185
      %p194 = scmp.eq.s32.totalorder %s22, 0
      %p195 = por %p193, %p194
      %p196 = scmp.ne.s32.totalorder %s184, %s185
      %p197 = scmp.eq.s32.totalorder %s23, 1
      %p198 = por %p196, %p197
      %p200 = scmp.ne.s32.totalorder %s185, %s199
      %p201 = scmp.eq.s32.totalorder %s23, 0
      %p202 = por %p200, %p201
      %s203 = ssub.s32 %s17, %s24
      %p204 = scmp.eq.s32.totalorder %s203, 0
      %s206 = sadd.s32 %s205, 1
      %s207 = scalar_select %p204, %s205, %s206
      %p210 = pneg %p204
      %p211 = scmp.eq.s32.totalorder %s17, 1
      %p212 = por %p210, %p211
      %p213 = scmp.ne.s32.totalorder %s205, %s208
      %p214 = scmp.eq.s32.totalorder %s17, 0
      %p215 = por %p213, %p214
      %p216 = scmp.ne.s32.totalorder %s205, %s208
      %p217 = scmp.eq.s32.totalorder %s22, 1
      %p218 = por %p216, %p217
      %p219 = scmp.ne.s32.totalorder %s208, %s209
      %p220 = scmp.eq.s32.totalorder %s22, 0
      %p221 = por %p219, %p220
      %p222 = scmp.ne.s32.totalorder %s208, %s209
      %p223 = scmp.eq.s32.totalorder %s23, 1
      %p224 = por %p222, %p223
      %p226 = scmp.ne.s32.totalorder %s209, %s225
      %p227 = scmp.eq.s32.totalorder %s23, 0
      %p228 = por %p226, %p227
      %p229 = scmp.le.s32.totalorder 1, %s17
      %p230 = scmp.lt.s32.totalorder %s17, 3
      %p231 = pnand %p229, %p230
      %p232 = pneg %p231
      // Predicated region
      $region9: #{lowformer_block_forward.3} parent=5 // pred_check
        _
      $region10: #{lowformer_block_forward.3} parent=5 // pred_check_branch
        %234 = sbr.rel (%p231) target = $region12
      $region11: #{lowformer_block_forward.3} parent=5 // pred_region
        %s235 = ssub.s32 %s17, 1
        // Predicated region
        $region13: #{lowformer_block_forward.3} parent=11 // pred_check
          %p236 = pneg %p90
        $region14: #{lowformer_block_forward.3} parent=11 // pred_check_branch
          %238 = sbr.rel (%p236) target = $region16
        $region15: #{lowformer_block_forward.3} parent=11 // pred_region
          _
        $region16: #{lowformer_block_forward.3} parent=11 // pred_fallthru
          _
        // Predicated region
        $region17: #{lowformer_block_forward.3} parent=11 // pred_check
          %p239 = pneg %p111
        $region18: #{lowformer_block_forward.3} parent=11 // pred_check_branch
          %241 = sbr.rel (%p239) target = $region20
        $region19: #{lowformer_block_forward.3} parent=11 // pred_region
          _
        $region20: #{lowformer_block_forward.3} parent=11 // pred_fallthru
          _
        // Predicated region
        $region21: #{lowformer_block_forward.3} parent=11 // pred_check
          %p242 = pneg %p132
        $region22: #{lowformer_block_forward.3} parent=11 // pred_check_branch
          %244 = sbr.rel (%p242) target = $region24
        $region23: #{lowformer_block_forward.3} parent=11 // pred_region
          _
        $region24: #{lowformer_block_forward.3} parent=11 // pred_fallthru
          _
        // Predicated region
        $region25: #{lowformer_block_forward.3} parent=11 // pred_check
          %p245 = pneg %p153
        $region26: #{lowformer_block_forward.3} parent=11 // pred_check_branch
          %247 = sbr.rel (%p245) target = $region28
        $region27: #{lowformer_block_forward.3} parent=11 // pred_region
          _
        $region28: #{lowformer_block_forward.3} parent=11 // pred_fallthru
          _
        // Predicated region
        $region29: #{lowformer_block_forward.3} parent=11 // pred_check
          %p248 = pneg %p174
        $region30: #{lowformer_block_forward.3} parent=11 // pred_check_branch
          %250 = sbr.rel (%p248) target = $region32
        $region31: #{lowformer_block_forward.3} parent=11 // pred_region
          _
        $region32: #{lowformer_block_forward.3} parent=11 // pred_fallthru
          _
        // Predicated region
        $region33: #{lowformer_block_forward.3} parent=11 // pred_check
          %p251 = pneg %p195
        $region34: #{lowformer_block_forward.3} parent=11 // pred_check_branch
          %253 = sbr.rel (%p251) target = $region36
        $region35: #{lowformer_block_forward.3} parent=11 // pred_region
          _
        $region36: #{lowformer_block_forward.3} parent=11 // pred_fallthru
          _
      $region12: #{lowformer_block_forward.3} parent=5 // pred_fallthru
        _
      %p254 = scmp.lt.s32.totalorder %s17, 2
      // Predicated region
      $region37: #{lowformer_block_forward.3} parent=5 // pred_check
        %p255 = pneg %p254
      $region38: #{lowformer_block_forward.3} parent=5 // pred_check_branch
        %257 = sbr.rel (%p255) target = $region40
      $region39: #{lowformer_block_forward.3} parent=5 // pred_region
        // Predicated region
        $region41: #{lowformer_block_forward.3} parent=39 // pred_check
          %p258 = pneg %p37
        $region42: #{lowformer_block_forward.3} parent=39 // pred_check_branch
          %260 = sbr.rel (%p258) target = $region44
        $region43: #{lowformer_block_forward.3} parent=39 // pred_region
          %p261 = scmp.lt.s32.totalorder %s17, 1
          %s262 = scalar_select %p261, %s17, 1
          %s263 = smul.addr %s262, 32
          %s264 = smul.addr %s263, 8
          %s265 = scalar_lea.vmem %s0, %s264
        $region44: #{lowformer_block_forward.3} parent=39 // pred_fallthru
          _
        // Predicated region
        $region45: #{lowformer_block_forward.3} parent=39 // pred_check
          %p266 = pneg %p63
        $region46: #{lowformer_block_forward.3} parent=39 // pred_check_branch
          %268 = sbr.rel (%p266) target = $region48
        $region47: #{lowformer_block_forward.3} parent=39 // pred_region
          %p269 = scmp.lt.s32.totalorder %s17, 1
          %s270 = scalar_select %p269, %s17, 1
          %s271 = smul.addr %s270, 32
          %s272 = smul.addr %s271, 8
          %s273 = scalar_lea.vmem %s1, %s272
        $region48: #{lowformer_block_forward.3} parent=39 // pred_fallthru
          _
      $region40: #{lowformer_block_forward.3} parent=5 // pred_fallthru
        _
      %p274 = scmp.le.s32.totalorder 1, %s17
      %p275 = scmp.lt.s32.totalorder %s17, 3
      %p276 = pnand %p274, %p275
      %p277 = pneg %p276
      // Predicated region
      $region49: #{lowformer_block_forward.3} parent=5 // pred_check
        _
      $region50: #{lowformer_block_forward.3} parent=5 // pred_check_branch
        %279 = sbr.rel (%p276) target = $region52
      $region51: #{lowformer_block_forward.3} parent=5 // pred_region
        %s280 = ssub.s32 %s17, 1
        %p281 = scmp.lt.s32.totalorder %s22, 1
        %s282 = scalar_select %p281, %s22, 1
        %s283 = smul.addr %s282, 32
        %s284 = smul.addr %s283, 8
        %s285 = scalar_lea.vmem %s0, %s284
        %p286 = pneg %p43
        %p287 = pneg %p40
        %p288 = scmp.lt.s32.totalorder %s22, 1
        %s289 = scalar_select %p288, %s22, 1
        %s290 = smul.addr %s289, 32
        %s291 = smul.addr %s290, 8
        %s292 = scalar_lea.vmem %s1, %s291
        %p293 = pneg %p69
        %p294 = pneg %p66
        %p295 = pneg %p90
        %p296 = pneg %p87
        %p297 = pneg %p111
        %p298 = pneg %p108
        %p299 = pneg %p132
        %p300 = pneg %p129
        %p301 = pneg %p153
        %p302 = pneg %p150
        %p303 = pneg %p174
        %p304 = pneg %p171
        %p305 = pneg %p195
        %p306 = pneg %p192
        %p307 = pneg %p221
        %p308 = pneg %p218
        %s309 = sand.u32 %s208, 1
        %s310 = scalar_lea.sflag [#allocation5], %s309
        %s311 = sand.u32 %s208, 1
        %s312 = smul.addr %s311, 256
        %s313 = scalar_lea.vmem [#allocation4], %s312
        %p314 = scmp.lt.s32.totalorder %s22, 1
        %s315 = scalar_select %p314, %s22, 1
        %s316 = smul.addr %s315, 32
        %s317 = smul.addr %s316, 8
        %s318 = scalar_lea.vmem %s0, %s317
        %p319 = scmp.lt.s32.totalorder %s22, 1
        %s320 = scalar_select %p319, %s22, 1
        %s321 = smul.addr %s320, 32
        %s322 = smul.addr %s321, 8
        %s323 = scalar_lea.vmem %s1, %s322
        %v325 = vld [vmem:[%s318] sm:$0xff]
        %v326 = vld [vmem:[%s318 + $0x8] sm:$0xff]
        %v327 = vld [vmem:[%s318 + $0x10] sm:$0xff]
        %v328 = vld [vmem:[%s318 + $0x18] sm:$0xff]
        %v329 = vld [vmem:[%s318 + $0x20] sm:$0xff]
        %v330 = vld [vmem:[%s318 + $0x28] sm:$0xff]
        %v331 = vld [vmem:[%s318 + $0x30] sm:$0xff]
        %v332 = vld [vmem:[%s318 + $0x38] sm:$0xff]
        %v333 = vld [vmem:[%s318 + $0x40] sm:$0xff]
        %v334 = vld [vmem:[%s318 + $0x48] sm:$0xff]
        %v335 = vld [vmem:[%s318 + $0x50] sm:$0xff]
        %v336 = vld [vmem:[%s318 + $0x58] sm:$0xff]
        %v337 = vld [vmem:[%s318 + $0x60] sm:$0xff]
        %v338 = vld [vmem:[%s318 + $0x68] sm:$0xff]
        %v339 = vld [vmem:[%s318 + $0x70] sm:$0xff]
        %v340 = vld [vmem:[%s318 + $0x78] sm:$0xff]
        %v341 = vld [vmem:[%s318 + $0x80] sm:$0xff]
        %v342 = vld [vmem:[%s318 + $0x88] sm:$0xff]
        %v343 = vld [vmem:[%s318 + $0x90] sm:$0xff]
        %v344 = vld [vmem:[%s318 + $0x98] sm:$0xff]
        %v345 = vld [vmem:[%s318 + $0xa0] sm:$0xff]
        %v346 = vld [vmem:[%s318 + $0xa8] sm:$0xff]
        %v347 = vld [vmem:[%s318 + $0xb0] sm:$0xff]
        %v348 = vld [vmem:[%s318 + $0xb8] sm:$0xff]
        %v349 = vld [vmem:[%s318 + $0xc0] sm:$0xff]
        %v350 = vld [vmem:[%s318 + $0xc8] sm:$0xff]
        %v351 = vld [vmem:[%s318 + $0xd0] sm:$0xff]
        %v352 = vld [vmem:[%s318 + $0xd8] sm:$0xff]
        %v353 = vld [vmem:[%s318 + $0xe0] sm:$0xff]
        %v354 = vld [vmem:[%s318 + $0xe8] sm:$0xff]
        %v355 = vld [vmem:[%s318 + $0xf0] sm:$0xff]
        %v356 = vld [vmem:[%s318 + $0xf8] sm:$0xff]
        %v357 = vld [vmem:[%s323] sm:$0xff]
        %v358 = vld [vmem:[%s323 + $0x8] sm:$0xff]
        %v359 = vld [vmem:[%s323 + $0x10] sm:$0xff]
        %v360 = vld [vmem:[%s323 + $0x18] sm:$0xff]
        %v361 = vld [vmem:[%s323 + $0x20] sm:$0xff]
        %v362 = vld [vmem:[%s323 + $0x28] sm:$0xff]
        %v363 = vld [vmem:[%s323 + $0x30] sm:$0xff]
        %v364 = vld [vmem:[%s323 + $0x38] sm:$0xff]
        %v365 = vld [vmem:[%s323 + $0x40] sm:$0xff]
        %v366 = vld [vmem:[%s323 + $0x48] sm:$0xff]
        %v367 = vld [vmem:[%s323 + $0x50] sm:$0xff]
        %v368 = vld [vmem:[%s323 + $0x58] sm:$0xff]
        %v369 = vld [vmem:[%s323 + $0x60] sm:$0xff]
        %v370 = vld [vmem:[%s323 + $0x68] sm:$0xff]
        %v371 = vld [vmem:[%s323 + $0x70] sm:$0xff]
        %v372 = vld [vmem:[%s323 + $0x78] sm:$0xff]
        %v373 = vld [vmem:[%s323 + $0x80] sm:$0xff]
        %v374 = vld [vmem:[%s323 + $0x88] sm:$0xff]
        %v375 = vld [vmem:[%s323 + $0x90] sm:$0xff]
        %v376 = vld [vmem:[%s323 + $0x98] sm:$0xff]
        %v377 = vld [vmem:[%s323 + $0xa0] sm:$0xff]
        %v378 = vld [vmem:[%s323 + $0xa8] sm:$0xff]
        %v379 = vld [vmem:[%s323 + $0xb0] sm:$0xff]
        %v380 = vld [vmem:[%s323 + $0xb8] sm:$0xff]
        %v381 = vld [vmem:[%s323 + $0xc0] sm:$0xff]
        %v382 = vld [vmem:[%s323 + $0xc8] sm:$0xff]
        %v383 = vld [vmem:[%s323 + $0xd0] sm:$0xff]
        %v384 = vld [vmem:[%s323 + $0xd8] sm:$0xff]
        %v385 = vld [vmem:[%s323 + $0xe0] sm:$0xff]
        %v386 = vld [vmem:[%s323 + $0xe8] sm:$0xff]
        %v387 = vld [vmem:[%s323 + $0xf0] sm:$0xff]
        %v388 = vld [vmem:[%s323 + $0xf8] sm:$0xff]
        %v389 = vadd.f32 %v325, %v357
        %v390 = vadd.f32 %v326, %v358
        %v391 = vadd.f32 %v327, %v359
        %v392 = vadd.f32 %v328, %v360
        %v393 = vadd.f32 %v329, %v361
        %v394 = vadd.f32 %v330, %v362
        %v395 = vadd.f32 %v331, %v363
        %v396 = vadd.f32 %v332, %v364
        %v397 = vadd.f32 %v333, %v365
        %v398 = vadd.f32 %v334, %v366
        %v399 = vadd.f32 %v335, %v367
        %v400 = vadd.f32 %v336, %v368
        %v401 = vadd.f32 %v337, %v369
        %v402 = vadd.f32 %v338, %v370
        %v403 = vadd.f32 %v339, %v371
        %v404 = vadd.f32 %v340, %v372
        %v405 = vadd.f32 %v341, %v373
        %v406 = vadd.f32 %v342, %v374
        %v407 = vadd.f32 %v343, %v375
        %v408 = vadd.f32 %v344, %v376
        %v409 = vadd.f32 %v345, %v377
        %v410 = vadd.f32 %v346, %v378
        %v411 = vadd.f32 %v347, %v379
        %v412 = vadd.f32 %v348, %v380
        %v413 = vadd.f32 %v349, %v381
        %v414 = vadd.f32 %v350, %v382
        %v415 = vadd.f32 %v351, %v383
        %v416 = vadd.f32 %v352, %v384
        %v417 = vadd.f32 %v353, %v385
        %v418 = vadd.f32 %v354, %v386
        %v419 = vadd.f32 %v355, %v387
        %v420 = vadd.f32 %v356, %v388
        %v421 = vpack.c.bf16 %v390, %v389
        %v422 = vpack.c.bf16 %v392, %v391
        %v423 = vpack.c.bf16 %v394, %v393
        %v424 = vpack.c.bf16 %v396, %v395
        %v425 = vpack.c.bf16 %v398, %v397
        %v426 = vpack.c.bf16 %v400, %v399
        %v427 = vpack.c.bf16 %v402, %v401
        %v428 = vpack.c.bf16 %v404, %v403
        %v429 = vpack.c.bf16 %v406, %v405
        %v430 = vpack.c.bf16 %v408, %v407
        %v431 = vpack.c.bf16 %v410, %v409
        %v432 = vpack.c.bf16 %v412, %v411
        %v433 = vpack.c.bf16 %v414, %v413
        %v434 = vpack.c.bf16 %v416, %v415
        %v435 = vpack.c.bf16 %v418, %v417
        %v436 = vpack.c.bf16 %v420, %v419
        %v437 = vld [vmem:[%s2] sm:$0xff]
        %v438 = vld [vmem:[%s2 + $0x8] sm:$0xff]
        %v439 = vld [vmem:[%s2 + $0x10] sm:$0xff]
        %v440 = vld [vmem:[%s2 + $0x18] sm:$0xff]
        %v441 = vld [vmem:[%s2 + $0x20] sm:$0xff]
        %v442 = vld [vmem:[%s2 + $0x28] sm:$0xff]
        %v443 = vld [vmem:[%s2 + $0x30] sm:$0xff]
        %v444 = vld [vmem:[%s2 + $0x38] sm:$0xff]
        %v445 = vld [vmem:[%s3] sm:$0x3]
        %v447 = vlaneseq
        %v448 = vshrl.u32 %v447, 7
        %v449 = vsub.s32 0, %v448
        %v450 = vrot.slane %v445, %v449
        %v451 = vlaneseq
        %v452 = vshrl.u32 %v451, 7
        %v453 = vsub.s32 1, %v452
        %v454 = vrot.slane %v445, %v453
        %v465 = vunpack.c.l.b16 %v437
        %v466 = vunpack.c.h.b16 %v437
        %v467 = vunpack.c.l.b16 %v438
        %v468 = vunpack.c.h.b16 %v438
        %v469 = vunpack.c.l.b16 %v439
        %v470 = vunpack.c.h.b16 %v439
        %v471 = vunpack.c.l.b16 %v440
        %v472 = vunpack.c.h.b16 %v440
        %v473 = vunpack.c.l.b16 %v441
        %v474 = vunpack.c.h.b16 %v441
        %v475 = vunpack.c.l.b16 %v442
        %v476 = vunpack.c.h.b16 %v442
        %v477 = vunpack.c.l.b16 %v443
        %v478 = vunpack.c.h.b16 %v443
        %v479 = vunpack.c.l.b16 %v444
        %v480 = vunpack.c.h.b16 %v444
        %v481 = vpack.c.b16 %v467, %v465
        %v482 = vpack.c.b16 %v468, %v466
        %v483 = vpack.c.b16 %v471, %v469
        %v484 = vpack.c.b16 %v472, %v470
        %v485 = vpack.c.b16 %v475, %v473
        %v486 = vpack.c.b16 %v476, %v474
        %v487 = vpack.c.b16 %v479, %v477
        %v488 = vpack.c.b16 %v480, %v478
        %vm497 = vcmask 523264
        %v499 = vsel %vm497, %v421, 0
        %v502 = vsel %vm497, %v422, 0
        %v505 = vsel %vm497, %v423, 0
        %v508 = vsel %vm497, %v424, 0
        %v511 = vsel %vm497, %v425, 0
        %v514 = vsel %vm497, %v426, 0
        %v517 = vsel %vm497, %v427, 0
        %v520 = vsel %vm497, %v428, 0
        %v523 = vsel %vm497, %v429, 0
        %v526 = vsel %vm497, %v430, 0
        %v529 = vsel %vm497, %v431, 0
        %v532 = vsel %vm497, %v432, 0
        %v535 = vsel %vm497, %v433, 0
        %v538 = vsel %vm497, %v434, 0
        %v541 = vsel %vm497, %v435, 0
        %v544 = vsel %vm497, %v436, 0
        %546 = vmatprep.subr.bf16.mxu0 %v482
        %547 = vmatpush1.bf16.msra.mxu0 %v481
        %548 = vmatprep.subr.bf16.mxu0 %v484
        %549 = vmatpush1.bf16.msra.mxu0 %v483
        %550 = vmatprep.subr.bf16.mxu0 %v486
        %551 = vmatpush1.bf16.msra.mxu0 %v485
        %552 = vmatprep.subr.bf16.mxu0 %v488
        %553 = vmatpush1.bf16.msra.mxu0 %v487
        %554 = vmatprep.subr.bf16.mxu0 0
        %555 = vmatpush1.bf16.msra.mxu0 0
        %556 = vmatprep.subr.bf16.mxu0 0
        %557 = vmatpush1.bf16.msra.mxu0 0
        %558 = vmatprep.subr.bf16.mxu0 0
        %559 = vmatpush1.bf16.msra.mxu0 0
        %560 = vmatprep.subr.bf16.mxu0 0
        %561 = vmatpush1.bf16.msra.mxu0 0
        %562 = vmatprep.subr.bf16.mxu0 0
        %563 = vmatpush1.bf16.msra.mxu0 0
        %564 = vmatprep.subr.bf16.mxu0 0
        %565 = vmatpush1.bf16.msra.mxu0 0
        %566 = vmatprep.subr.bf16.mxu0 0
        %567 = vmatpush1.bf16.msra.mxu0 0
        %568 = vmatprep.subr.bf16.mxu0 0
        %569 = vmatpush1.bf16.msra.mxu0 0
        %570 = vmatprep.subr.bf16.mxu0 0
        %571 = vmatpush1.bf16.msra.mxu0 0
        %572 = vmatprep.subr.bf16.mxu0 0
        %573 = vmatpush1.bf16.msra.mxu0 0
        %574 = vmatprep.subr.bf16.mxu0 0
        %575 = vmatpush1.bf16.msra.mxu0 0
        %576 = vmatprep.subr.bf16.mxu0 0
        %577 = vmatpush1.bf16.msra.mxu0 0
        %578 = vmatprep.mubr.bf16.mxu0 0
        %579 = vmatmul.mubr.bf16.gmra.mrb[0].mxu0 %v499
        %v580 = vpop.f32.mrb[0].mxu0
        %v581 = vadd.f32 %v450, %v580
        %v582 = vpop.f32.mrb[0].mxu0
        %v583 = vadd.f32 %v454, %v582
        %v584 = vpop.f32.mrb[0].mxu0
        %v585 = vadd.f32 %v450, %v584
        %v586 = vpop.f32.mrb[0].mxu0
        %v587 = vadd.f32 %v454, %v586
        %588 = vmatprep.mubr.bf16.mxu0 0
        %589 = vmatmul.mubr.bf16.gmra.mrb[0].mxu0 %v502
        %v590 = vpop.f32.mrb[0].mxu0
        %v591 = vadd.f32 %v450, %v590
        %v592 = vpop.f32.mrb[0].mxu0
        %v593 = vadd.f32 %v454, %v592
        %v594 = vpop.f32.mrb[0].mxu0
        %v595 = vadd.f32 %v450, %v594
        %v596 = vpop.f32.mrb[0].mxu0
        %v597 = vadd.f32 %v454, %v596
        %598 = vmatprep.mubr.bf16.mxu0 0
        %599 = vmatmul.mubr.bf16.gmra.mrb[0].mxu0 %v505
        %v600 = vpop.f32.mrb[0].mxu0
        %v601 = vadd.f32 %v450, %v600
        %v602 = vpop.f32.mrb[0].mxu0
        %v603 = vadd.f32 %v454, %v602
        %v604 = vpop.f32.mrb[0].mxu0
        %v605 = vadd.f32 %v450, %v604
        %v606 = vpop.f32.mrb[0].mxu0
        %v607 = vadd.f32 %v454, %v606
        %608 = vmatprep.mubr.bf16.mxu0 0
        %609 = vmatmul.mubr.bf16.gmra.mrb[0].mxu0 %v508
        %v610 = vpop.f32.mrb[0].mxu0
        %v611 = vadd.f32 %v450, %v610
        %v612 = vpop.f32.mrb[0].mxu0
        %v613 = vadd.f32 %v454, %v612
        %v614 = vpop.f32.mrb[0].mxu0
        %v615 = vadd.f32 %v450, %v614
        %v616 = vpop.f32.mrb[0].mxu0
        %v617 = vadd.f32 %v454, %v616
        %618 = vmatprep.mubr.bf16.mxu0 0
        %619 = vmatmul.mubr.bf16.gmra.mrb[0].mxu0 %v511
        %v620 = vpop.f32.mrb[0].mxu0
        %v621 = vadd.f32 %v450, %v620
        %v622 = vpop.f32.mrb[0].mxu0
        %v623 = vadd.f32 %v454, %v622
        %v624 = vpop.f32.mrb[0].mxu0
        %v625 = vadd.f32 %v450, %v624
        %v626 = vpop.f32.mrb[0].mxu0
        %v627 = vadd.f32 %v454, %v626
        %628 = vmatprep.mubr.bf16.mxu0 0
        %629 = vmatmul.mubr.bf16.gmra.mrb[0].mxu0 %v514
        %v630 = vpop.f32.mrb[0].mxu0
        %v631 = vadd.f32 %v450, %v630
        %v632 = vpop.f32.mrb[0].mxu0
        %v633 = vadd.f32 %v454, %v632
        %v634 = vpop.f32.mrb[0].mxu0
        %v635 = vadd.f32 %v450, %v634
        %v636 = vpop.f32.mrb[0].mxu0
        %v637 = vadd.f32 %v454, %v636
        %638 = vmatprep.mubr.bf16.mxu0 0
        %639 = vmatmul.mubr.bf16.gmra.mrb[0].mxu0 %v517
        %v640 = vpop.f32.mrb[0].mxu0
        %v641 = vadd.f32 %v450, %v640
        %v642 = vpop.f32.mrb[0].mxu0
        %v643 = vadd.f32 %v454, %v642
        %v644 = vpop.f32.mrb[0].mxu0
        %v645 = vadd.f32 %v450, %v644
        %v646 = vpop.f32.mrb[0].mxu0
        %v647 = vadd.f32 %v454, %v646
        %648 = vmatprep.mubr.bf16.mxu0 0
        %649 = vmatmul.mubr.bf16.gmra.mrb[0].mxu0 %v520
        %v650 = vpop.f32.mrb[0].mxu0
        %v651 = vadd.f32 %v450, %v650
        %v652 = vpop.f32.mrb[0].mxu0
        %v653 = vadd.f32 %v454, %v652
        %v654 = vpop.f32.mrb[0].mxu0
        %v655 = vadd.f32 %v450, %v654
        %v656 = vpop.f32.mrb[0].mxu0
        %v657 = vadd.f32 %v454, %v656
        %658 = vmatprep.mubr.bf16.mxu0 0
        %659 = vmatmul.mubr.bf16.gmra.mrb[0].mxu0 %v523
        %v660 = vpop.f32.mrb[0].mxu0
        %v661 = vadd.f32 %v450, %v660
        %v662 = vpop.f32.mrb[0].mxu0
        %v663 = vadd.f32 %v454, %v662
        %v664 = vpop.f32.mrb[0].mxu0
        %v665 = vadd.f32 %v450, %v664
        %v666 = vpop.f32.mrb[0].mxu0
        %v667 = vadd.f32 %v454, %v666
        %668 = vmatprep.mubr.bf16.mxu0 0
        %669 = vmatmul.mubr.bf16.gmra.mrb[0].mxu0 %v526
        %v670 = vpop.f32.mrb[0].mxu0
        %v671 = vadd.f32 %v450, %v670
        %v672 = vpop.f32.mrb[0].mxu0
        %v673 = vadd.f32 %v454, %v672
        %v674 = vpop.f32.mrb[0].mxu0
        %v675 = vadd.f32 %v450, %v674
        %v676 = vpop.f32.mrb[0].mxu0
        %v677 = vadd.f32 %v454, %v676
        %678 = vmatprep.mubr.bf16.mxu0 0
        %679 = vmatmul.mubr.bf16.gmra.mrb[0].mxu0 %v529
        %v680 = vpop.f32.mrb[0].mxu0
        %v681 = vadd.f32 %v450, %v680
        %v682 = vpop.f32.mrb[0].mxu0
        %v683 = vadd.f32 %v454, %v682
        %v684 = vpop.f32.mrb[0].mxu0
        %v685 = vadd.f32 %v450, %v684
        %v686 = vpop.f32.mrb[0].mxu0
        %v687 = vadd.f32 %v454, %v686
        %688 = vmatprep.mubr.bf16.mxu0 0
        %689 = vmatmul.mubr.bf16.gmra.mrb[0].mxu0 %v532
        %v690 = vpop.f32.mrb[0].mxu0
        %v691 = vadd.f32 %v450, %v690
        %v692 = vpop.f32.mrb[0].mxu0
        %v693 = vadd.f32 %v454, %v692
        %v694 = vpop.f32.mrb[0].mxu0
        %v695 = vadd.f32 %v450, %v694
        %v696 = vpop.f32.mrb[0].mxu0
        %v697 = vadd.f32 %v454, %v696
        %698 = vmatprep.mubr.bf16.mxu0 0
        %699 = vmatmul.mubr.bf16.gmra.mrb[0].mxu0 %v535
        %v700 = vpop.f32.mrb[0].mxu0
        %v701 = vadd.f32 %v450, %v700
        %v702 = vpop.f32.mrb[0].mxu0
        %v703 = vadd.f32 %v454, %v702
        %v704 = vpop.f32.mrb[0].mxu0
        %v705 = vadd.f32 %v450, %v704
        %v706 = vpop.f32.mrb[0].mxu0
        %v707 = vadd.f32 %v454, %v706
        %708 = vmatprep.mubr.bf16.mxu0 0
        %709 = vmatmul.mubr.bf16.gmra.mrb[0].mxu0 %v538
        %v710 = vpop.f32.mrb[0].mxu0
        %v711 = vadd.f32 %v450, %v710
        %v712 = vpop.f32.mrb[0].mxu0
        %v713 = vadd.f32 %v454, %v712
        %v714 = vpop.f32.mrb[0].mxu0
        %v715 = vadd.f32 %v450, %v714
        %v716 = vpop.f32.mrb[0].mxu0
        %v717 = vadd.f32 %v454, %v716
        %718 = vmatprep.mubr.bf16.mxu0 0
        %719 = vmatmul.mubr.bf16.gmra.mrb[0].mxu0 %v541
        %v720 = vpop.f32.mrb[0].mxu0
        %v721 = vadd.f32 %v450, %v720
        %v722 = vpop.f32.mrb[0].mxu0
        %v723 = vadd.f32 %v454, %v722
        %v724 = vpop.f32.mrb[0].mxu0
        %v725 = vadd.f32 %v450, %v724
        %v726 = vpop.f32.mrb[0].mxu0
        %v727 = vadd.f32 %v454, %v726
        %728 = vmatprep.mubr.bf16.mxu0 0
        %729 = vmatmul.mubr.bf16.gmra.mrb[0].mxu0 %v544
        %v730 = vpop.f32.mrb[0].mxu0
        %v731 = vadd.f32 %v450, %v730
        %v732 = vpop.f32.mrb[0].mxu0
        %v733 = vadd.f32 %v454, %v732
        %v734 = vpop.f32.mrb[0].mxu0
        %v735 = vadd.f32 %v450, %v734
        %v736 = vpop.f32.mrb[0].mxu0
        %v737 = vadd.f32 %v454, %v736
        %738 = vdwg.mxu0
        %v739 = vadd.f32 %v581, 3.0
        %v740 = vadd.f32 %v583, 3.0
        %v741 = vadd.f32 %v585, 3.0
        %v742 = vadd.f32 %v587, 3.0
        %v743 = vadd.f32 %v591, 3.0
        %v744 = vadd.f32 %v593, 3.0
        %v745 = vadd.f32 %v595, 3.0
        %v746 = vadd.f32 %v597, 3.0
        %v747 = vadd.f32 %v601, 3.0
        %v748 = vadd.f32 %v603, 3.0
        %v749 = vadd.f32 %v605, 3.0
        %v750 = vadd.f32 %v607, 3.0
        %v751 = vadd.f32 %v611, 3.0
        %v752 = vadd.f32 %v613, 3.0
        %v753 = vadd.f32 %v615, 3.0
        %v754 = vadd.f32 %v617, 3.0
        %v755 = vadd.f32 %v621, 3.0
        %v756 = vadd.f32 %v623, 3.0
        %v757 = vadd.f32 %v625, 3.0
        %v758 = vadd.f32 %v627, 3.0
        %v759 = vadd.f32 %v631, 3.0
        %v760 = vadd.f32 %v633, 3.0
        %v761 = vadd.f32 %v635, 3.0
        %v762 = vadd.f32 %v637, 3.0
        %v763 = vadd.f32 %v641, 3.0
        %v764 = vadd.f32 %v643, 3.0
        %v765 = vadd.f32 %v645, 3.0
        %v766 = vadd.f32 %v647, 3.0
        %v767 = vadd.f32 %v651, 3.0
        %v768 = vadd.f32 %v653, 3.0
        %v769 = vadd.f32 %v655, 3.0
        %v770 = vadd.f32 %v657, 3.0
        %v771 = vadd.f32 %v661, 3.0
        %v772 = vadd.f32 %v663, 3.0
        %v773 = vadd.f32 %v665, 3.0
        %v774 = vadd.f32 %v667, 3.0
        %v775 = vadd.f32 %v671, 3.0
        %v776 = vadd.f32 %v673, 3.0
        %v777 = vadd.f32 %v675, 3.0
        %v778 = vadd.f32 %v677, 3.0
        %v779 = vadd.f32 %v681, 3.0
        %v780 = vadd.f32 %v683, 3.0
        %v781 = vadd.f32 %v685, 3.0
        %v782 = vadd.f32 %v687, 3.0
        %v783 = vadd.f32 %v691, 3.0
        %v784 = vadd.f32 %v693, 3.0
        %v785 = vadd.f32 %v695, 3.0
        %v786 = vadd.f32 %v697, 3.0
        %v787 = vadd.f32 %v701, 3.0
        %v788 = vadd.f32 %v703, 3.0
        %v789 = vadd.f32 %v705, 3.0
        %v790 = vadd.f32 %v707, 3.0
        %v791 = vadd.f32 %v711, 3.0
        %v792 = vadd.f32 %v713, 3.0
        %v793 = vadd.f32 %v715, 3.0
        %v794 = vadd.f32 %v717, 3.0
        %v795 = vadd.f32 %v721, 3.0
        %v796 = vadd.f32 %v723, 3.0
        %v797 = vadd.f32 %v725, 3.0
        %v798 = vadd.f32 %v727, 3.0
        %v799 = vadd.f32 %v731, 3.0
        %v800 = vadd.f32 %v733, 3.0
        %v801 = vadd.f32 %v735, 3.0
        %v802 = vadd.f32 %v737, 3.0
        %v803 = vmax.f32 %v739, 0.0
        %v804 = vmax.f32 %v740, 0.0
        %v805 = vmax.f32 %v741, 0.0
        %v806 = vmax.f32 %v742, 0.0
        %v807 = vmax.f32 %v743, 0.0
        %v808 = vmax.f32 %v744, 0.0
        %v809 = vmax.f32 %v745, 0.0
        %v810 = vmax.f32 %v746, 0.0
        %v811 = vmax.f32 %v747, 0.0
        %v812 = vmax.f32 %v748, 0.0
        %v813 = vmax.f32 %v749, 0.0
        %v814 = vmax.f32 %v750, 0.0
        %v815 = vmax.f32 %v751, 0.0
        %v816 = vmax.f32 %v752, 0.0
        %v817 = vmax.f32 %v753, 0.0
        %v818 = vmax.f32 %v754, 0.0
        %v819 = vmax.f32 %v755, 0.0
        %v820 = vmax.f32 %v756, 0.0
        %v821 = vmax.f32 %v757, 0.0
        %v822 = vmax.f32 %v758, 0.0
        %v823 = vmax.f32 %v759, 0.0
        %v824 = vmax.f32 %v760, 0.0
        %v825 = vmax.f32 %v761, 0.0
        %v826 = vmax.f32 %v762, 0.0
        %v827 = vmax.f32 %v763, 0.0
        %v828 = vmax.f32 %v764, 0.0
        %v829 = vmax.f32 %v765, 0.0
        %v830 = vmax.f32 %v766, 0.0
        %v831 = vmax.f32 %v767, 0.0
        %v832 = vmax.f32 %v768, 0.0
        %v833 = vmax.f32 %v769, 0.0
        %v834 = vmax.f32 %v770, 0.0
        %v835 = vmax.f32 %v771, 0.0
        %v836 = vmax.f32 %v772, 0.0
        %v837 = vmax.f32 %v773, 0.0
        %v838 = vmax.f32 %v774, 0.0
        %v839 = vmax.f32 %v775, 0.0
        %v840 = vmax.f32 %v776, 0.0
        %v841 = vmax.f32 %v777, 0.0
        %v842 = vmax.f32 %v778, 0.0
        %v843 = vmax.f32 %v779, 0.0
        %v844 = vmax.f32 %v780, 0.0
        %v845 = vmax.f32 %v781, 0.0
        %v846 = vmax.f32 %v782, 0.0
        %v847 = vmax.f32 %v783, 0.0
        %v848 = vmax.f32 %v784, 0.0
        %v849 = vmax.f32 %v785, 0.0
        %v850 = vmax.f32 %v786, 0.0
        %v851 = vmax.f32 %v787, 0.0
        %v852 = vmax.f32 %v788, 0.0
        %v853 = vmax.f32 %v789, 0.0
        %v854 = vmax.f32 %v790, 0.0
        %v855 = vmax.f32 %v791, 0.0
        %v856 = vmax.f32 %v792, 0.0
        %v857 = vmax.f32 %v793, 0.0
        %v858 = vmax.f32 %v794, 0.0
        %v859 = vmax.f32 %v795, 0.0
        %v860 = vmax.f32 %v796, 0.0
        %v861 = vmax.f32 %v797, 0.0
        %v862 = vmax.f32 %v798, 0.0
        %v863 = vmax.f32 %v799, 0.0
        %v864 = vmax.f32 %v800, 0.0
        %v865 = vmax.f32 %v801, 0.0
        %v866 = vmax.f32 %v802, 0.0
        %v867 = vmin.f32 %v803, 6.0
        %v868 = vmin.f32 %v804, 6.0
        %v869 = vmin.f32 %v805, 6.0
        %v870 = vmin.f32 %v806, 6.0
        %v871 = vmin.f32 %v807, 6.0
        %v872 = vmin.f32 %v808, 6.0
        %v873 = vmin.f32 %v809, 6.0
        %v874 = vmin.f32 %v810, 6.0
        %v875 = vmin.f32 %v811, 6.0
        %v876 = vmin.f32 %v812, 6.0
        %v877 = vmin.f32 %v813, 6.0
        %v878 = vmin.f32 %v814, 6.0
        %v879 = vmin.f32 %v815, 6.0
        %v880 = vmin.f32 %v816, 6.0
        %v881 = vmin.f32 %v817, 6.0
        %v882 = vmin.f32 %v818, 6.0
        %v883 = vmin.f32 %v819, 6.0
        %v884 = vmin.f32 %v820, 6.0
        %v885 = vmin.f32 %v821, 6.0
        %v886 = vmin.f32 %v822, 6.0
        %v887 = vmin.f32 %v823, 6.0
        %v888 = vmin.f32 %v824, 6.0
        %v889 = vmin.f32 %v825, 6.0
        %v890 = vmin.f32 %v826, 6.0
        %v891 = vmin.f32 %v827, 6.0
        %v892 = vmin.f32 %v828, 6.0
        %v893 = vmin.f32 %v829, 6.0
        %v894 = vmin.f32 %v830, 6.0
        %v895 = vmin.f32 %v831, 6.0
        %v896 = vmin.f32 %v832, 6.0
        %v897 = vmin.f32 %v833, 6.0
        %v898 = vmin.f32 %v834, 6.0
        %v899 = vmin.f32 %v835, 6.0
        %v900 = vmin.f32 %v836, 6.0
        %v901 = vmin.f32 %v837, 6.0
        %v902 = vmin.f32 %v838, 6.0
        %v903 = vmin.f32 %v839, 6.0
        %v904 = vmin.f32 %v840, 6.0
        %v905 = vmin.f32 %v841, 6.0
        %v906 = vmin.f32 %v842, 6.0
        %v907 = vmin.f32 %v843, 6.0
        %v908 = vmin.f32 %v844, 6.0
        %v909 = vmin.f32 %v845, 6.0
        %v910 = vmin.f32 %v846, 6.0
        %v911 = vmin.f32 %v847, 6.0
        %v912 = vmin.f32 %v848, 6.0
        %v913 = vmin.f32 %v849, 6.0
        %v914 = vmin.f32 %v850, 6.0
        %v915 = vmin.f32 %v851, 6.0
        %v916 = vmin.f32 %v852, 6.0
        %v917 = vmin.f32 %v853, 6.0
        %v918 = vmin.f32 %v854, 6.0
        %v919 = vmin.f32 %v855, 6.0
        %v920 = vmin.f32 %v856, 6.0
        %v921 = vmin.f32 %v857, 6.0
        %v922 = vmin.f32 %v858, 6.0
        %v923 = vmin.f32 %v859, 6.0
        %v924 = vmin.f32 %v860, 6.0
        %v925 = vmin.f32 %v861, 6.0
        %v926 = vmin.f32 %v862, 6.0
        %v927 = vmin.f32 %v863, 6.0
        %v928 = vmin.f32 %v864, 6.0
        %v929 = vmin.f32 %v865, 6.0
        %v930 = vmin.f32 %v866, 6.0
        %v931 = vmul.f32 %v581, %v867
        %v932 = vmul.f32 %v583, %v868
        %v933 = vmul.f32 %v585, %v869
        %v934 = vmul.f32 %v587, %v870
        %v935 = vmul.f32 %v591, %v871
        %v936 = vmul.f32 %v593, %v872
        %v937 = vmul.f32 %v595, %v873
        %v938 = vmul.f32 %v597, %v874
        %v939 = vmul.f32 %v601, %v875
        %v940 = vmul.f32 %v603, %v876
        %v941 = vmul.f32 %v605, %v877
        %v942 = vmul.f32 %v607, %v878
        %v943 = vmul.f32 %v611, %v879
        %v944 = vmul.f32 %v613, %v880
        %v945 = vmul.f32 %v615, %v881
        %v946 = vmul.f32 %v617, %v882
        %v947 = vmul.f32 %v621, %v883
        %v948 = vmul.f32 %v623, %v884
        %v949 = vmul.f32 %v625, %v885
        %v950 = vmul.f32 %v627, %v886
        %v951 = vmul.f32 %v631, %v887
        %v952 = vmul.f32 %v633, %v888
        %v953 = vmul.f32 %v635, %v889
        %v954 = vmul.f32 %v637, %v890
        %v955 = vmul.f32 %v641, %v891
        %v956 = vmul.f32 %v643, %v892
        %v957 = vmul.f32 %v645, %v893
        %v958 = vmul.f32 %v647, %v894
        %v959 = vmul.f32 %v651, %v895
        %v960 = vmul.f32 %v653, %v896
        %v961 = vmul.f32 %v655, %v897
        %v962 = vmul.f32 %v657, %v898
        %v963 = vmul.f32 %v661, %v899
        %v964 = vmul.f32 %v663, %v900
        %v965 = vmul.f32 %v665, %v901
        %v966 = vmul.f32 %v667, %v902
        %v967 = vmul.f32 %v671, %v903
        %v968 = vmul.f32 %v673, %v904
        %v969 = vmul.f32 %v675, %v905
        %v970 = vmul.f32 %v677, %v906
        %v971 = vmul.f32 %v681, %v907
        %v972 = vmul.f32 %v683, %v908
        %v973 = vmul.f32 %v685, %v909
        %v974 = vmul.f32 %v687, %v910
        %v975 = vmul.f32 %v691, %v911
        %v976 = vmul.f32 %v693, %v912
        %v977 = vmul.f32 %v695, %v913
        %v978 = vmul.f32 %v697, %v914
        %v979 = vmul.f32 %v701, %v915
        %v980 = vmul.f32 %v703, %v916
        %v981 = vmul.f32 %v705, %v917
        %v982 = vmul.f32 %v707, %v918
        %v983 = vmul.f32 %v711, %v919
        %v984 = vmul.f32 %v713, %v920
        %v985 = vmul.f32 %v715, %v921
        %v986 = vmul.f32 %v717, %v922
        %v987 = vmul.f32 %v721, %v923
        %v988 = vmul.f32 %v723, %v924
        %v989 = vmul.f32 %v725, %v925
        %v990 = vmul.f32 %v727, %v926
        %v991 = vmul.f32 %v731, %v927
        %v992 = vmul.f32 %v733, %v928
        %v993 = vmul.f32 %v735, %v929
        %v994 = vmul.f32 %v737, %v930
        %v995 = vmul.f32 %v931, 0.16666667
        %v996 = vmul.f32 %v932, 0.16666667
        %v997 = vmul.f32 %v933, 0.16666667
        %v998 = vmul.f32 %v934, 0.16666667
        %v999 = vmul.f32 %v935, 0.16666667
        %v1000 = vmul.f32 %v936, 0.16666667
        %v1001 = vmul.f32 %v937, 0.16666667
        %v1002 = vmul.f32 %v938, 0.16666667
        %v1003 = vmul.f32 %v939, 0.16666667
        %v1004 = vmul.f32 %v940, 0.16666667
        %v1005 = vmul.f32 %v941, 0.16666667
        %v1006 = vmul.f32 %v942, 0.16666667
        %v1007 = vmul.f32 %v943, 0.16666667
        %v1008 = vmul.f32 %v944, 0.16666667
        %v1009 = vmul.f32 %v945, 0.16666667
        %v1010 = vmul.f32 %v946, 0.16666667
        %v1011 = vmul.f32 %v947, 0.16666667
        %v1012 = vmul.f32 %v948, 0.16666667
        %v1013 = vmul.f32 %v949, 0.16666667
        %v1014 = vmul.f32 %v950, 0.16666667
        %v1015 = vmul.f32 %v951, 0.16666667
        %v1016 = vmul.f32 %v952, 0.16666667
        %v1017 = vmul.f32 %v953, 0.16666667
        %v1018 = vmul.f32 %v954, 0.16666667
        %v1019 = vmul.f32 %v955, 0.16666667
        %v1020 = vmul.f32 %v956, 0.16666667
        %v1021 = vmul.f32 %v957, 0.16666667
        %v1022 = vmul.f32 %v958, 0.16666667
        %v1023 = vmul.f32 %v959, 0.16666667
        %v1024 = vmul.f32 %v960, 0.16666667
        %v1025 = vmul.f32 %v961, 0.16666667
        %v1026 = vmul.f32 %v962, 0.16666667
        %v1027 = vmul.f32 %v963, 0.16666667
        %v1028 = vmul.f32 %v964, 0.16666667
        %v1029 = vmul.f32 %v965, 0.16666667
        %v1030 = vmul.f32 %v966, 0.16666667
        %v1031 = vmul.f32 %v967, 0.16666667
        %v1032 = vmul.f32 %v968, 0.16666667
        %v1033 = vmul.f32 %v969, 0.16666667
        %v1034 = vmul.f32 %v970, 0.16666667
        %v1035 = vmul.f32 %v971, 0.16666667
        %v1036 = vmul.f32 %v972, 0.16666667
        %v1037 = vmul.f32 %v973, 0.16666667
        %v1038 = vmul.f32 %v974, 0.16666667
        %v1039 = vmul.f32 %v975, 0.16666667
        %v1040 = vmul.f32 %v976, 0.16666667
        %v1041 = vmul.f32 %v977, 0.16666667
        %v1042 = vmul.f32 %v978, 0.16666667
        %v1043 = vmul.f32 %v979, 0.16666667
        %v1044 = vmul.f32 %v980, 0.16666667
        %v1045 = vmul.f32 %v981, 0.16666667
        %v1046 = vmul.f32 %v982, 0.16666667
        %v1047 = vmul.f32 %v983, 0.16666667
        %v1048 = vmul.f32 %v984, 0.16666667
        %v1049 = vmul.f32 %v985, 0.16666667
        %v1050 = vmul.f32 %v986, 0.16666667
        %v1051 = vmul.f32 %v987, 0.16666667
        %v1052 = vmul.f32 %v988, 0.16666667
        %v1053 = vmul.f32 %v989, 0.16666667
        %v1054 = vmul.f32 %v990, 0.16666667
        %v1055 = vmul.f32 %v991, 0.16666667
        %v1056 = vmul.f32 %v992, 0.16666667
        %v1057 = vmul.f32 %v993, 0.16666667
        %v1058 = vmul.f32 %v994, 0.16666667
        %1059 = vst [vmem:[#allocation2] sm:$0xff] 0.0
        %1060 = vst [vmem:[#allocation2 + $0x8] sm:$0xff] 0.0
        %1061 = vst [vmem:[#allocation2 + $0x10] sm:$0xff] 0.0
        %1062 = vst [vmem:[#allocation2 + $0x18] sm:$0xff] 0.0
        %1063 = vst [vmem:[#allocation2 + $0x20] sm:$0x3] 0.0
        %1064 = vst [vmem:[#allocation2 + $0x28] sm:$0x3] 0.0
        %1065 = vst [vmem:[#allocation2 + $0x30] sm:$0xff] 0.0
        %1066 = vst [vmem:[#allocation2 + $0x38] sm:$0xff] 0.0
        %1067 = vst [vmem:[#allocation2 + $0x40] sm:$0xff] 0.0
        %1068 = vst [vmem:[#allocation2 + $0x48] sm:$0xff] 0.0
        %1069 = vst [vmem:[#allocation2 + $0x50] sm:$0x3] 0.0
        %1070 = vst [vmem:[#allocation2 + $0x58] sm:$0x3] 0.0
        %1071 = vst [vmem:[#allocation2 + $0x60] sm:$0xff] 0.0
        %1072 = vst [vmem:[#allocation2 + $0x68] sm:$0xff] 0.0
        %1073 = vst [vmem:[#allocation2 + $0x70] sm:$0xff] 0.0
        %1074 = vst [vmem:[#allocation2 + $0x78] sm:$0xff] 0.0
        %1075 = vst [vmem:[#allocation2 + $0x80] sm:$0x3] 0.0
        %1076 = vst [vmem:[#allocation2 + $0x88] sm:$0x3] 0.0
        %1077 = vst [vmem:[#allocation2 + $0x90] sm:$0xff] 0.0
        %1078 = vst [vmem:[#allocation2 + $0x98] sm:$0xff] 0.0
        %1079 = vst [vmem:[#allocation2 + $0xa0] sm:$0xff] 0.0
        %1080 = vst [vmem:[#allocation2 + $0xa8] sm:$0xff] 0.0
        %1081 = vst [vmem:[#allocation2 + $0xb0] sm:$0x3] 0.0
        %1082 = vst [vmem:[#allocation2 + $0xb8] sm:$0x3] 0.0
        %1083 = vst [vmem:[#allocation2 + $0xc0] sm:$0xff] 0.0
        %1084 = vst [vmem:[#allocation2 + $0xc8] sm:$0xff] 0.0
        %1085 = vst [vmem:[#allocation2 + $0xd0] sm:$0xff] 0.0
        %1086 = vst [vmem:[#allocation2 + $0xd8] sm:$0xff] 0.0
        %1087 = vst [vmem:[#allocation2 + $0xe0] sm:$0x3] 0.0
        %1088 = vst [vmem:[#allocation2 + $0xe8] sm:$0x3] 0.0
        %1089 = vst [vmem:[#allocation2 + $0xf0] sm:$0xff] 0.0
        %1090 = vst [vmem:[#allocation2 + $0xf8] sm:$0xff] 0.0
        %1091 = vst [vmem:[#allocation2 + $0x100] sm:$0xff] 0.0
        %1092 = vst [vmem:[#allocation2 + $0x108] sm:$0xff] 0.0
        %1093 = vst [vmem:[#allocation2 + $0x110] sm:$0x3] 0.0
        %1094 = vst [vmem:[#allocation2 + $0x118] sm:$0x3] 0.0
        %1095 = vst [vmem:[#allocation2 + $0x120] sm:$0xff] 0.0
        %1096 = vst [vmem:[#allocation2 + $0x128] sm:$0xff] 0.0
        %1097 = vst [vmem:[#allocation2 + $0x130] sm:$0xff] 0.0
        %1098 = vst [vmem:[#allocation2 + $0x138] sm:$0xff] 0.0
        %1099 = vst [vmem:[#allocation2 + $0x140] sm:$0x3] 0.0
        %1100 = vst [vmem:[#allocation2 + $0x148] sm:$0x3] 0.0
        %1101 = vst [vmem:[#allocation2 + $0x150] sm:$0xff] 0.0
        %1102 = vst [vmem:[#allocation2 + $0x158] sm:$0xff] 0.0
        %1103 = vst [vmem:[#allocation2 + $0x160] sm:$0xff] 0.0
        %1104 = vst [vmem:[#allocation2 + $0x168] sm:$0xff] 0.0
        %1105 = vst [vmem:[#allocation2 + $0x170] sm:$0x3] 0.0
        %1106 = vst [vmem:[#allocation2 + $0x178] sm:$0x3] 0.0
        %1107 = vst [vmem:[#allocation2 + $0x180] sm:$0xff] 0.0
        %1108 = vst [vmem:[#allocation2 + $0x188] sm:$0xff] 0.0
        %1109 = vst [vmem:[#allocation2 + $0x190] sm:$0xff] 0.0
        %1110 = vst [vmem:[#allocation2 + $0x198] sm:$0xff] 0.0
        %1111 = vst [vmem:[#allocation2 + $0x1a0] sm:$0x3] 0.0
        %1112 = vst [vmem:[#allocation2 + $0x1a8] sm:$0x3] 0.0
        %1113 = vst [vmem:[#allocation2 + $0x1b0] sm:$0xff] 0.0
        %1114 = vst [vmem:[#allocation2 + $0x1b8] sm:$0xff] 0.0
        %1115 = vst [vmem:[#allocation2 + $0x1c0] sm:$0xff] 0.0
        %1116 = vst [vmem:[#allocation2 + $0x1c8] sm:$0xff] 0.0
        %1117 = vst [vmem:[#allocation2 + $0x1d0] sm:$0x3] 0.0
        %1118 = vst [vmem:[#allocation2 + $0x1d8] sm:$0x3] 0.0
        %1119 = vst [vmem:[#allocation2 + $0x1e0] sm:$0xff] 0.0
        %1120 = vst [vmem:[#allocation2 + $0x1e8] sm:$0xff] 0.0
        %1121 = vst [vmem:[#allocation2 + $0x1f0] sm:$0xff] 0.0
        %1122 = vst [vmem:[#allocation2 + $0x1f8] sm:$0xff] 0.0
        %1123 = vst [vmem:[#allocation2 + $0x200] sm:$0x3] 0.0
        %1124 = vst [vmem:[#allocation2 + $0x208] sm:$0x3] 0.0
        %1125 = vst [vmem:[#allocation2 + $0x210] sm:$0xff] 0.0
        %1126 = vst [vmem:[#allocation2 + $0x218] sm:$0xff] 0.0
        %1127 = vst [vmem:[#allocation2 + $0x220] sm:$0xff] 0.0
        %1128 = vst [vmem:[#allocation2 + $0x228] sm:$0xff] 0.0
        %1129 = vst [vmem:[#allocation2 + $0x230] sm:$0x3] 0.0
        %1130 = vst [vmem:[#allocation2 + $0x238] sm:$0x3] 0.0
        %1131 = vst [vmem:[#allocation2 + $0x240] sm:$0xff] 0.0
        %1132 = vst [vmem:[#allocation2 + $0x248] sm:$0xff] 0.0
        %1133 = vst [vmem:[#allocation2 + $0x250] sm:$0xff] 0.0
        %1134 = vst [vmem:[#allocation2 + $0x258] sm:$0xff] 0.0
        %1135 = vst [vmem:[#allocation2 + $0x260] sm:$0x3] 0.0
        %1136 = vst [vmem:[#allocation2 + $0x268] sm:$0x3] 0.0
        %1137 = vst [vmem:[#allocation2 + $0x270] sm:$0xff] 0.0
        %1138 = vst [vmem:[#allocation2 + $0x278] sm:$0xff] 0.0
        %1139 = vst [vmem:[#allocation2 + $0x280] sm:$0xff] 0.0
        %1140 = vst [vmem:[#allocation2 + $0x288] sm:$0xff] 0.0
        %1141 = vst [vmem:[#allocation2 + $0x290] sm:$0x3] 0.0
        %1142 = vst [vmem:[#allocation2 + $0x298] sm:$0x3] 0.0
        %1143 = vst [vmem:[#allocation2 + $0x2a0] sm:$0xff] 0.0
        %1144 = vst [vmem:[#allocation2 + $0x2a8] sm:$0xff] 0.0
        %1145 = vst [vmem:[#allocation2 + $0x2b0] sm:$0xff] 0.0
        %1146 = vst [vmem:[#allocation2 + $0x2b8] sm:$0xff] 0.0
        %1147 = vst [vmem:[#allocation2 + $0x2c0] sm:$0x3] 0.0
        %1148 = vst [vmem:[#allocation2 + $0x2c8] sm:$0x3] 0.0
        %1149 = vst [vmem:[#allocation2 + $0x2d0] sm:$0xff] 0.0
        %1150 = vst [vmem:[#allocation2 + $0x2d8] sm:$0xff] 0.0
        %1151 = vst [vmem:[#allocation2 + $0x2e0] sm:$0xff] 0.0
        %1152 = vst [vmem:[#allocation2 + $0x2e8] sm:$0xff] 0.0
        %1153 = vst [vmem:[#allocation2 + $0x2f0] sm:$0x3] 0.0
        %1154 = vst [vmem:[#allocation2 + $0x2f8] sm:$0x3] 0.0
        %1155 = vst [vmem:[#allocation2 + $0x300] sm:$0xff] 0.0
        %1156 = vst [vmem:[#allocation2 + $0x308] sm:$0xff] 0.0
        %1157 = vst [vmem:[#allocation2 + $0x310] sm:$0xff] 0.0
        %1158 = vst [vmem:[#allocation2 + $0x318] sm:$0xff] 0.0
        %1159 = vst [vmem:[#allocation2 + $0x320] sm:$0x3] 0.0
        %1160 = vst [vmem:[#allocation2 + $0x328] sm:$0x3] 0.0
        %1161 = vst [vmem:[#allocation2 + $0x330] sm:$0xff] 0.0
        %1162 = vst [vmem:[#allocation2 + $0x338] sm:$0xff] 0.0
        %1163 = vst [vmem:[#allocation2 + $0x340] sm:$0xff] 0.0
        %1164 = vst [vmem:[#allocation2 + $0x348] sm:$0xff] 0.0
        %1165 = vst [vmem:[#allocation2 + $0x350] sm:$0x3] 0.0
        %1166 = vst [vmem:[#allocation2 + $0x358] sm:$0x3] 0.0
        %vm1231 = vcmask 1040384
        %v1232 = vrot.slane %v995, 7
        %v1233 = vrot.slane %v996, 7
        %v1234 = vrot.slane %v997, 7
        %v1235 = vsel %vm1231, %v1232, %v1234
        %v1236 = vrot.slane %v998, 7
        %v1237 = vsel %vm1231, %v1233, %v1236
        %v1238 = vrot.slane %v999, 7
        %v1239 = vrot.slane %v1000, 7
        %v1240 = vrot.slane %v1001, 7
        %v1241 = vsel %vm1231, %v1238, %v1240
        %v1242 = vrot.slane %v1002, 7
        %v1243 = vsel %vm1231, %v1239, %v1242
        %v1244 = vrot.slane %v1003, 7
        %v1245 = vrot.slane %v1004, 7
        %v1246 = vrot.slane %v1005, 7
        %v1247 = vsel %vm1231, %v1244, %v1246
        %v1248 = vrot.slane %v1006, 7
        %v1249 = vsel %vm1231, %v1245, %v1248
        %v1250 = vrot.slane %v1007, 7
        %v1251 = vrot.slane %v1008, 7
        %v1252 = vrot.slane %v1009, 7
        %v1253 = vsel %vm1231, %v1250, %v1252
        %v1254 = vrot.slane %v1010, 7
        %v1255 = vsel %vm1231, %v1251, %v1254
        %v1256 = vrot.slane %v1011, 7
        %v1257 = vrot.slane %v1012, 7
        %v1258 = vrot.slane %v1013, 7
        %v1259 = vsel %vm1231, %v1256, %v1258
        %v1260 = vrot.slane %v1014, 7
        %v1261 = vsel %vm1231, %v1257, %v1260
        %v1262 = vrot.slane %v1015, 7
        %v1263 = vrot.slane %v1016, 7
        %v1264 = vrot.slane %v1017, 7
        %v1265 = vsel %vm1231, %v1262, %v1264
        %v1266 = vrot.slane %v1018, 7
        %v1267 = vsel %vm1231, %v1263, %v1266
        %v1268 = vrot.slane %v1019, 7
        %v1269 = vrot.slane %v1020, 7
        %v1270 = vrot.slane %v1021, 7
        %v1271 = vsel %vm1231, %v1268, %v1270
        %v1272 = vrot.slane %v1022, 7
        %v1273 = vsel %vm1231, %v1269, %v1272
        %v1274 = vrot.slane %v1023, 7
        %v1275 = vrot.slane %v1024, 7
        %v1276 = vrot.slane %v1025, 7
        %v1277 = vsel %vm1231, %v1274, %v1276
        %v1278 = vrot.slane %v1026, 7
        %v1279 = vsel %vm1231, %v1275, %v1278
        %v1280 = vrot.slane %v1027, 7
        %v1281 = vrot.slane %v1028, 7
        %v1282 = vrot.slane %v1029, 7
        %v1283 = vsel %vm1231, %v1280, %v1282
        %v1284 = vrot.slane %v1030, 7
        %v1285 = vsel %vm1231, %v1281, %v1284
        %v1286 = vrot.slane %v1031, 7
        %v1287 = vrot.slane %v1032, 7
        %v1288 = vrot.slane %v1033, 7
        %v1289 = vsel %vm1231, %v1286, %v1288
        %v1290 = vrot.slane %v1034, 7
        %v1291 = vsel %vm1231, %v1287, %v1290
        %v1292 = vrot.slane %v1035, 7
        %v1293 = vrot.slane %v1036, 7
        %v1294 = vrot.slane %v1037, 7
        %v1295 = vsel %vm1231, %v1292, %v1294
        %v1296 = vrot.slane %v1038, 7
        %v1297 = vsel %vm1231, %v1293, %v1296
        %v1298 = vrot.slane %v1039, 7
        %v1299 = vrot.slane %v1040, 7
        %v1300 = vrot.slane %v1041, 7
        %v1301 = vsel %vm1231, %v1298, %v1300
        %v1302 = vrot.slane %v1042, 7
        %v1303 = vsel %vm1231, %v1299, %v1302
        %v1304 = vrot.slane %v1043, 7
        %v1305 = vrot.slane %v1044, 7
        %v1306 = vrot.slane %v1045, 7
        %v1307 = vsel %vm1231, %v1304, %v1306
        %v1308 = vrot.slane %v1046, 7
        %v1309 = vsel %vm1231, %v1305, %v1308
        %v1310 = vrot.slane %v1047, 7
        %v1311 = vrot.slane %v1048, 7
        %v1312 = vrot.slane %v1049, 7
        %v1313 = vsel %vm1231, %v1310, %v1312
        %v1314 = vrot.slane %v1050, 7
        %v1315 = vsel %vm1231, %v1311, %v1314
        %v1316 = vrot.slane %v1051, 7
        %v1317 = vrot.slane %v1052, 7
        %v1318 = vrot.slane %v1053, 7
        %v1319 = vsel %vm1231, %v1316, %v1318
        %v1320 = vrot.slane %v1054, 7
        %v1321 = vsel %vm1231, %v1317, %v1320
        %v1322 = vrot.slane %v1055, 7
        %v1323 = vrot.slane %v1056, 7
        %v1324 = vrot.slane %v1057, 7
        %v1325 = vsel %vm1231, %v1322, %v1324
        %v1326 = vrot.slane %v1058, 7
        %v1327 = vsel %vm1231, %v1323, %v1326
        %s1424 = scalar_lea.vmem [#allocation2], 48
        %1425 = vst [vmem:[%s1424] sm:$0xfe] %v1232
        %1426 = vst [vmem:[%s1424 + $0x8] sm:$0xfe] %v1233
        %1427 = vst [vmem:[%s1424 + $0x10] sm:$0xff] %v1235
        %1428 = vst [vmem:[%s1424 + $0x18] sm:$0xff] %v1237
        %1429 = vst [vmem:[%s1424 + $0x20] sm:$0x1] %v1234
        %1430 = vst [vmem:[%s1424 + $0x28] sm:$0x1] %v1236
        %1431 = vst [vmem:[%s1424 + $0x30] sm:$0xfe] %v1238
        %1432 = vst [vmem:[%s1424 + $0x38] sm:$0xfe] %v1239
        %1433 = vst [vmem:[%s1424 + $0x40] sm:$0xff] %v1241
        %1434 = vst [vmem:[%s1424 + $0x48] sm:$0xff] %v1243
        %1435 = vst [vmem:[%s1424 + $0x50] sm:$0x1] %v1240
        %1436 = vst [vmem:[%s1424 + $0x58] sm:$0x1] %v1242
        %1437 = vst [vmem:[%s1424 + $0x60] sm:$0xfe] %v1244
        %1438 = vst [vmem:[%s1424 + $0x68] sm:$0xfe] %v1245
        %1439 = vst [vmem:[%s1424 + $0x70] sm:$0xff] %v1247
        %1440 = vst [vmem:[%s1424 + $0x78] sm:$0xff] %v1249
        %1441 = vst [vmem:[%s1424 + $0x80] sm:$0x1] %v1246
        %1442 = vst [vmem:[%s1424 + $0x88] sm:$0x1] %v1248
        %1443 = vst [vmem:[%s1424 + $0x90] sm:$0xfe] %v1250
        %1444 = vst [vmem:[%s1424 + $0x98] sm:$0xfe] %v1251
        %1445 = vst [vmem:[%s1424 + $0xa0] sm:$0xff] %v1253
        %1446 = vst [vmem:[%s1424 + $0xa8] sm:$0xff] %v1255
        %1447 = vst [vmem:[%s1424 + $0xb0] sm:$0x1] %v1252
        %1448 = vst [vmem:[%s1424 + $0xb8] sm:$0x1] %v1254
        %1449 = vst [vmem:[%s1424 + $0xc0] sm:$0xfe] %v1256
        %1450 = vst [vmem:[%s1424 + $0xc8] sm:$0xfe] %v1257
        %1451 = vst [vmem:[%s1424 + $0xd0] sm:$0xff] %v1259
        %1452 = vst [vmem:[%s1424 + $0xd8] sm:$0xff] %v1261
        %1453 = vst [vmem:[%s1424 + $0xe0] sm:$0x1] %v1258
        %1454 = vst [vmem:[%s1424 + $0xe8] sm:$0x1] %v1260
        %1455 = vst [vmem:[%s1424 + $0xf0] sm:$0xfe] %v1262
        %1456 = vst [vmem:[%s1424 + $0xf8] sm:$0xfe] %v1263
        %1457 = vst [vmem:[%s1424 + $0x100] sm:$0xff] %v1265
        %1458 = vst [vmem:[%s1424 + $0x108] sm:$0xff] %v1267
        %1459 = vst [vmem:[%s1424 + $0x110] sm:$0x1] %v1264
        %1460 = vst [vmem:[%s1424 + $0x118] sm:$0x1] %v1266
        %1461 = vst [vmem:[%s1424 + $0x120] sm:$0xfe] %v1268
        %1462 = vst [vmem:[%s1424 + $0x128] sm:$0xfe] %v1269
        %1463 = vst [vmem:[%s1424 + $0x130] sm:$0xff] %v1271
        %1464 = vst [vmem:[%s1424 + $0x138] sm:$0xff] %v1273
        %1465 = vst [vmem:[%s1424 + $0x140] sm:$0x1] %v1270
        %1466 = vst [vmem:[%s1424 + $0x148] sm:$0x1] %v1272
        %1467 = vst [vmem:[%s1424 + $0x150] sm:$0xfe] %v1274
        %1468 = vst [vmem:[%s1424 + $0x158] sm:$0xfe] %v1275
        %1469 = vst [vmem:[%s1424 + $0x160] sm:$0xff] %v1277
        %1470 = vst [vmem:[%s1424 + $0x168] sm:$0xff] %v1279
        %1471 = vst [vmem:[%s1424 + $0x170] sm:$0x1] %v1276
        %1472 = vst [vmem:[%s1424 + $0x178] sm:$0x1] %v1278
        %1473 = vst [vmem:[%s1424 + $0x180] sm:$0xfe] %v1280
        %1474 = vst [vmem:[%s1424 + $0x188] sm:$0xfe] %v1281
        %1475 = vst [vmem:[%s1424 + $0x190] sm:$0xff] %v1283
        %1476 = vst [vmem:[%s1424 + $0x198] sm:$0xff] %v1285
        %1477 = vst [vmem:[%s1424 + $0x1a0] sm:$0x1] %v1282
        %1478 = vst [vmem:[%s1424 + $0x1a8] sm:$0x1] %v1284
        %1479 = vst [vmem:[%s1424 + $0x1b0] sm:$0xfe] %v1286
        %1480 = vst [vmem:[%s1424 + $0x1b8] sm:$0xfe] %v1287
        %1481 = vst [vmem:[%s1424 + $0x1c0] sm:$0xff] %v1289
        %1482 = vst [vmem:[%s1424 + $0x1c8] sm:$0xff] %v1291
        %1483 = vst [vmem:[%s1424 + $0x1d0] sm:$0x1] %v1288
        %1484 = vst [vmem:[%s1424 + $0x1d8] sm:$0x1] %v1290
        %1485 = vst [vmem:[%s1424 + $0x1e0] sm:$0xfe] %v1292
        %1486 = vst [vmem:[%s1424 + $0x1e8] sm:$0xfe] %v1293
        %1487 = vst [vmem:[%s1424 + $0x1f0] sm:$0xff] %v1295
        %1488 = vst [vmem:[%s1424 + $0x1f8] sm:$0xff] %v1297
        %1489 = vst [vmem:[%s1424 + $0x200] sm:$0x1] %v1294
        %1490 = vst [vmem:[%s1424 + $0x208] sm:$0x1] %v1296
        %1491 = vst [vmem:[%s1424 + $0x210] sm:$0xfe] %v1298
        %1492 = vst [vmem:[%s1424 + $0x218] sm:$0xfe] %v1299
        %1493 = vst [vmem:[%s1424 + $0x220] sm:$0xff] %v1301
        %1494 = vst [vmem:[%s1424 + $0x228] sm:$0xff] %v1303
        %1495 = vst [vmem:[%s1424 + $0x230] sm:$0x1] %v1300
        %1496 = vst [vmem:[%s1424 + $0x238] sm:$0x1] %v1302
        %1497 = vst [vmem:[%s1424 + $0x240] sm:$0xfe] %v1304
        %1498 = vst [vmem:[%s1424 + $0x248] sm:$0xfe] %v1305
        %1499 = vst [vmem:[%s1424 + $0x250] sm:$0xff] %v1307
        %1500 = vst [vmem:[%s1424 + $0x258] sm:$0xff] %v1309
        %1501 = vst [vmem:[%s1424 + $0x260] sm:$0x1] %v1306
        %1502 = vst [vmem:[%s1424 + $0x268] sm:$0x1] %v1308
        %1503 = vst [vmem:[%s1424 + $0x270] sm:$0xfe] %v1310
        %1504 = vst [vmem:[%s1424 + $0x278] sm:$0xfe] %v1311
        %1505 = vst [vmem:[%s1424 + $0x280] sm:$0xff] %v1313
        %1506 = vst [vmem:[%s1424 + $0x288] sm:$0xff] %v1315
        %1507 = vst [vmem:[%s1424 + $0x290] sm:$0x1] %v1312
        %1508 = vst [vmem:[%s1424 + $0x298] sm:$0x1] %v1314
        %1509 = vst [vmem:[%s1424 + $0x2a0] sm:$0xfe] %v1316
        %1510 = vst [vmem:[%s1424 + $0x2a8] sm:$0xfe] %v1317
        %1511 = vst [vmem:[%s1424 + $0x2b0] sm:$0xff] %v1319
        %1512 = vst [vmem:[%s1424 + $0x2b8] sm:$0xff] %v1321
        %1513 = vst [vmem:[%s1424 + $0x2c0] sm:$0x1] %v1318
        %1514 = vst [vmem:[%s1424 + $0x2c8] sm:$0x1] %v1320
        %1515 = vst [vmem:[%s1424 + $0x2d0] sm:$0xfe] %v1322
        %1516 = vst [vmem:[%s1424 + $0x2d8] sm:$0xfe] %v1323
        %1517 = vst [vmem:[%s1424 + $0x2e0] sm:$0xff] %v1325
        %1518 = vst [vmem:[%s1424 + $0x2e8] sm:$0xff] %v1327
        %1519 = vst [vmem:[%s1424 + $0x2f0] sm:$0x1] %v1324
        %1520 = vst [vmem:[%s1424 + $0x2f8] sm:$0x1] %v1326
        %v1521 = vld [vmem:[%s4] sm:$0xff]
        %v1522 = vld [vmem:[%s4 + $0x8] sm:$0xff]
        %v1523 = vld [vmem:[%s4 + $0x10] sm:$0x1]
        %v1524 = vld [vmem:[%s4 + $0x18] sm:$0x1]
        %v1525 = vlaneseq
        %v1526 = vshrl.u32 %v1525, 7
        %v1527 = vsub.s32 0, %v1526
        %v1528 = vrot.slane %v1521, %v1527
        %v1529 = vlaneseq
        %v1530 = vshrl.u32 %v1529, 7
        %v1531 = vsub.s32 0, %v1530
        %v1532 = vrot.slane %v1522, %v1531
        %v1533 = vlaneseq
        %v1534 = vshrl.u32 %v1533, 7
        %v1535 = vsub.s32 1, %v1534
        %v1536 = vrot.slane %v1521, %v1535
        %v1537 = vlaneseq
        %v1538 = vshrl.u32 %v1537, 7
        %v1539 = vsub.s32 1, %v1538
        %v1540 = vrot.slane %v1522, %v1539
        %v1541 = vlaneseq
        %v1542 = vshrl.u32 %v1541, 7
        %v1543 = vsub.s32 2, %v1542
        %v1544 = vrot.slane %v1521, %v1543
        %v1545 = vlaneseq
        %v1546 = vshrl.u32 %v1545, 7
        %v1547 = vsub.s32 2, %v1546
        %v1548 = vrot.slane %v1522, %v1547
        %v1549 = vlaneseq
        %v1550 = vshrl.u32 %v1549, 7
        %v1551 = vsub.s32 3, %v1550
        %v1552 = vrot.slane %v1521, %v1551
        %v1553 = vlaneseq
        %v1554 = vshrl.u32 %v1553, 7
        %v1555 = vsub.s32 3, %v1554
        %v1556 = vrot.slane %v1522, %v1555
        %v1557 = vlaneseq
        %v1558 = vshrl.u32 %v1557, 7
        %v1559 = vsub.s32 4, %v1558
        %v1560 = vrot.slane %v1521, %v1559
        %v1561 = vlaneseq
        %v1562 = vshrl.u32 %v1561, 7
        %v1563 = vsub.s32 4, %v1562
        %v1564 = vrot.slane %v1522, %v1563
        %v1565 = vlaneseq
        %v1566 = vshrl.u32 %v1565, 7
        %v1567 = vsub.s32 5, %v1566
        %v1568 = vrot.slane %v1521, %v1567
        %v1569 = vlaneseq
        %v1570 = vshrl.u32 %v1569, 7
        %v1571 = vsub.s32 5, %v1570
        %v1572 = vrot.slane %v1522, %v1571
        %v1573 = vlaneseq
        %v1574 = vshrl.u32 %v1573, 7
        %v1575 = vsub.s32 6, %v1574
        %v1576 = vrot.slane %v1521, %v1575
        %v1577 = vlaneseq
        %v1578 = vshrl.u32 %v1577, 7
        %v1579 = vsub.s32 6, %v1578
        %v1580 = vrot.slane %v1522, %v1579
        %v1581 = vlaneseq
        %v1582 = vshrl.u32 %v1581, 7
        %v1583 = vsub.s32 7, %v1582
        %v1584 = vrot.slane %v1521, %v1583
        %v1585 = vlaneseq
        %v1586 = vshrl.u32 %v1585, 7
        %v1587 = vsub.s32 7, %v1586
        %v1588 = vrot.slane %v1522, %v1587
        %v1589 = vlaneseq
        %v1590 = vshrl.u32 %v1589, 7
        %v1591 = vsub.s32 0, %v1590
        %v1592 = vrot.slane %v1523, %v1591
        %v1593 = vlaneseq
        %v1594 = vshrl.u32 %v1593, 7
        %v1595 = vsub.s32 0, %v1594
        %v1596 = vrot.slane %v1524, %v1595
        %v1597 = vld [vmem:[%s5] sm:$0x3]
        %v1599 = vlaneseq
        %v1600 = vshrl.u32 %v1599, 7
        %v1601 = vsub.s32 0, %v1600
        %v1602 = vrot.slane %v1597, %v1601
        %v1603 = vlaneseq
        %v1604 = vshrl.u32 %v1603, 7
        %v1605 = vsub.s32 1, %v1604
        %v1606 = vrot.slane %v1597, %v1605
        %v1609 = vld [vmem:[#allocation2] sm:$0xff]
        %v1610 = vld [vmem:[#allocation2 + $0x8] sm:$0xff]
        %v1611 = vld [vmem:[#allocation2 + $0x10] sm:$0xff]
        %v1612 = vld [vmem:[#allocation2 + $0x18] sm:$0xff]
        %v1613 = vld [vmem:[#allocation2 + $0x20] sm:$0x3]
        %v1614 = vld [vmem:[#allocation2 + $0x28] sm:$0x3]
        %v1615 = vmul.f32 %v1609, %v1528
        %v1616 = vmul.f32 %v1610, %v1532
        %v1617 = vmul.f32 %v1611, %v1528
        %v1618 = vmul.f32 %v1612, %v1532
        %v1619 = vadd.f32 %v1602, %v1615
        %v1620 = vadd.f32 %v1606, %v1616
        %v1621 = vadd.f32 %v1602, %v1617
        %v1622 = vadd.f32 %v1606, %v1618
        %v1623 = vmul.f32 %v1609, %v1536
        %v1624 = vmul.f32 %v1610, %v1540
        %v1625 = vmul.f32 %v1611, %v1536
        %v1626 = vmul.f32 %v1612, %v1540
        %v1627 = vmul.f32 %v1613, %v1536
        %v1628 = vmul.f32 %v1614, %v1540
        %vm1635 = vcmask 1046528
        %v1636 = vrot.slane %v1623, 1
        %v1637 = vrot.slane %v1625, 1
        %v1638 = vsel %vm1635, %v1636, %v1637
        %v1639 = vrot.slane %v1624, 1
        %v1640 = vrot.slane %v1626, 1
        %v1641 = vsel %vm1635, %v1639, %v1640
        %v1642 = vrot.slane %v1627, 1
        %v1643 = vsel %vm1635, %v1637, %v1642
        %v1644 = vrot.slane %v1628, 1
        %v1645 = vsel %vm1635, %v1640, %v1644
        %v1650 = vadd.f32 %v1619, %v1638
        %v1651 = vadd.f32 %v1620, %v1641
        %v1652 = vadd.f32 %v1621, %v1643
        %v1653 = vadd.f32 %v1622, %v1645
        %v1654 = vmul.f32 %v1609, %v1544
        %v1655 = vmul.f32 %v1610, %v1548
        %v1656 = vmul.f32 %v1611, %v1544
        %v1657 = vmul.f32 %v1612, %v1548
        %v1658 = vmul.f32 %v1613, %v1544
        %v1659 = vmul.f32 %v1614, %v1548
        %vm1666 = vcmask 1045504
        %v1667 = vrot.slane %v1654, 2
        %v1668 = vrot.slane %v1656, 2
        %v1669 = vsel %vm1666, %v1667, %v1668
        %v1670 = vrot.slane %v1655, 2
        %v1671 = vrot.slane %v1657, 2
        %v1672 = vsel %vm1666, %v1670, %v1671
        %v1673 = vrot.slane %v1658, 2
        %v1674 = vsel %vm1666, %v1668, %v1673
        %v1675 = vrot.slane %v1659, 2
        %v1676 = vsel %vm1666, %v1671, %v1675
        %v1681 = vadd.f32 %v1650, %v1669
        %v1682 = vadd.f32 %v1651, %v1672
        %v1683 = vadd.f32 %v1652, %v1674
        %v1684 = vadd.f32 %v1653, %v1676
        %v1685 = vld [vmem:[%s1424] sm:$0xff]
        %v1686 = vld [vmem:[%s1424 + $0x8] sm:$0xff]
        %v1687 = vld [vmem:[%s1424 + $0x10] sm:$0xff]
        %v1688 = vld [vmem:[%s1424 + $0x18] sm:$0xff]
        %v1689 = vld [vmem:[%s1424 + $0x20] sm:$0x3]
        %v1690 = vld [vmem:[%s1424 + $0x28] sm:$0x3]
        %v1691 = vmul.f32 %v1685, %v1552
        %v1692 = vmul.f32 %v1686, %v1556
        %v1693 = vmul.f32 %v1687, %v1552
        %v1694 = vmul.f32 %v1688, %v1556
        %v1695 = vadd.f32 %v1681, %v1691
        %v1696 = vadd.f32 %v1682, %v1692
        %v1697 = vadd.f32 %v1683, %v1693
        %v1698 = vadd.f32 %v1684, %v1694
        %v1699 = vmul.f32 %v1685, %v1560
        %v1700 = vmul.f32 %v1686, %v1564
        %v1701 = vmul.f32 %v1687, %v1560
        %v1702 = vmul.f32 %v1688, %v1564
        %v1703 = vmul.f32 %v1689, %v1560
        %v1704 = vmul.f32 %v1690, %v1564
        %v1711 = vrot.slane %v1699, 1
        %v1712 = vrot.slane %v1701, 1
        %v1713 = vsel %vm1635, %v1711, %v1712
        %v1714 = vrot.slane %v1700, 1
        %v1715 = vrot.slane %v1702, 1
        %v1716 = vsel %vm1635, %v1714, %v1715
        %v1717 = vrot.slane %v1703, 1
        %v1718 = vsel %vm1635, %v1712, %v1717
        %v1719 = vrot.slane %v1704, 1
        %v1720 = vsel %vm1635, %v1715, %v1719
        %v1725 = vadd.f32 %v1695, %v1713
        %v1726 = vadd.f32 %v1696, %v1716
        %v1727 = vadd.f32 %v1697, %v1718
        %v1728 = vadd.f32 %v1698, %v1720
        %v1729 = vmul.f32 %v1685, %v1568
        %v1730 = vmul.f32 %v1686, %v1572
        %v1731 = vmul.f32 %v1687, %v1568
        %v1732 = vmul.f32 %v1688, %v1572
        %v1733 = vmul.f32 %v1689, %v1568
        %v1734 = vmul.f32 %v1690, %v1572
        %v1741 = vrot.slane %v1729, 2
        %v1742 = vrot.slane %v1731, 2
        %v1743 = vsel %vm1666, %v1741, %v1742
        %v1744 = vrot.slane %v1730, 2
        %v1745 = vrot.slane %v1732, 2
        %v1746 = vsel %vm1666, %v1744, %v1745
        %v1747 = vrot.slane %v1733, 2
        %v1748 = vsel %vm1666, %v1742, %v1747
        %v1749 = vrot.slane %v1734, 2
        %v1750 = vsel %vm1666, %v1745, %v1749
        %v1755 = vadd.f32 %v1725, %v1743
        %v1756 = vadd.f32 %v1726, %v1746
        %v1757 = vadd.f32 %v1727, %v1748
        %v1758 = vadd.f32 %v1728, %v1750
        %s1759 = scalar_lea.vmem [#allocation2], 96
        %v1760 = vld [vmem:[%s1759] sm:$0xff]
        %v1761 = vld [vmem:[%s1759 + $0x8] sm:$0xff]
        %v1762 = vld [vmem:[%s1759 + $0x10] sm:$0xff]
        %v1763 = vld [vmem:[%s1759 + $0x18] sm:$0xff]
        %v1764 = vld [vmem:[%s1759 + $0x20] sm:$0x3]
        %v1765 = vld [vmem:[%s1759 + $0x28] sm:$0x3]
        %v1766 = vmul.f32 %v1760, %v1576
        %v1767 = vmul.f32 %v1761, %v1580
        %v1768 = vmul.f32 %v1762, %v1576
        %v1769 = vmul.f32 %v1763, %v1580
        %v1770 = vadd.f32 %v1755, %v1766
        %v1771 = vadd.f32 %v1756, %v1767
        %v1772 = vadd.f32 %v1757, %v1768
        %v1773 = vadd.f32 %v1758, %v1769
        %v1774 = vmul.f32 %v1760, %v1584
        %v1775 = vmul.f32 %v1761, %v1588
        %v1776 = vmul.f32 %v1762, %v1584
        %v1777 = vmul.f32 %v1763, %v1588
        %v1778 = vmul.f32 %v1764, %v1584
        %v1779 = vmul.f32 %v1765, %v1588
        %v1786 = vrot.slane %v1774, 1
        %v1787 = vrot.slane %v1776, 1
        %v1788 = vsel %vm1635, %v1786, %v1787
        %v1789 = vrot.slane %v1775, 1
        %v1790 = vrot.slane %v1777, 1
        %v1791 = vsel %vm1635, %v1789, %v1790
        %v1792 = vrot.slane %v1778, 1
        %v1793 = vsel %vm1635, %v1787, %v1792
        %v1794 = vrot.slane %v1779, 1
        %v1795 = vsel %vm1635, %v1790, %v1794
        %v1800 = vadd.f32 %v1770, %v1788
        %v1801 = vadd.f32 %v1771, %v1791
        %v1802 = vadd.f32 %v1772, %v1793
        %v1803 = vadd.f32 %v1773, %v1795
        %v1804 = vmul.f32 %v1760, %v1592
        %v1805 = vmul.f32 %v1761, %v1596
        %v1806 = vmul.f32 %v1762, %v1592
        %v1807 = vmul.f32 %v1763, %v1596
        %v1808 = vmul.f32 %v1764, %v1592
        %v1809 = vmul.f32 %v1765, %v1596
        %v1816 = vrot.slane %v1804, 2
        %v1817 = vrot.slane %v1806, 2
        %v1818 = vsel %vm1666, %v1816, %v1817
        %v1819 = vrot.slane %v1805, 2
        %v1820 = vrot.slane %v1807, 2
        %v1821 = vsel %vm1666, %v1819, %v1820
        %v1822 = vrot.slane %v1808, 2
        %v1823 = vsel %vm1666, %v1817, %v1822
        %v1824 = vrot.slane %v1809, 2
        %v1825 = vsel %vm1666, %v1820, %v1824
        %v1830 = vadd.f32 %v1800, %v1818
        %v1831 = vadd.f32 %v1801, %v1821
        %v1832 = vadd.f32 %v1802, %v1823
        %v1833 = vadd.f32 %v1803, %v1825
        %v1834 = vadd.f32 %v1830, 3.0
        %v1835 = vadd.f32 %v1831, 3.0
        %v1836 = vadd.f32 %v1832, 3.0
        %v1837 = vadd.f32 %v1833, 3.0
        %v1838 = vmax.f32 %v1834, 0.0
        %v1839 = vmax.f32 %v1835, 0.0
        %v1840 = vmax.f32 %v1836, 0.0
        %v1841 = vmax.f32 %v1837, 0.0
        %v1842 = vmin.f32 %v1838, 6.0
        %v1843 = vmin.f32 %v1839, 6.0
        %v1844 = vmin.f32 %v1840, 6.0
        %v1845 = vmin.f32 %v1841, 6.0
        %v1846 = vmul.f32 %v1830, %v1842
        %v1847 = vmul.f32 %v1831, %v1843
        %v1848 = vmul.f32 %v1832, %v1844
        %v1849 = vmul.f32 %v1833, %v1845
        %v1850 = vmul.f32 %v1846, 0.16666667
        %v1851 = vmul.f32 %v1847, 0.16666667
        %v1852 = vmul.f32 %v1848, 0.16666667
        %v1853 = vmul.f32 %v1849, 0.16666667
        %1854 = vst [vmem:[#allocation3] sm:$0xff] %v1850
        %1855 = vst [vmem:[#allocation3 + $0x8] sm:$0xff] %v1851
        %1856 = vst [vmem:[#allocation3 + $0x10] sm:$0xff] %v1852
        %1857 = vst [vmem:[#allocation3 + $0x18] sm:$0xff] %v1853
        %v1858 = vld [vmem:[%s1424] sm:$0xff]
        %v1859 = vld [vmem:[%s1424 + $0x8] sm:$0xff]
        %v1860 = vld [vmem:[%s1424 + $0x10] sm:$0xff]
        %v1861 = vld [vmem:[%s1424 + $0x18] sm:$0xff]
        %v1862 = vld [vmem:[%s1424 + $0x20] sm:$0x3]
        %v1863 = vld [vmem:[%s1424 + $0x28] sm:$0x3]
        %v1864 = vmul.f32 %v1858, %v1528
        %v1865 = vmul.f32 %v1859, %v1532
        %v1866 = vmul.f32 %v1860, %v1528
        %v1867 = vmul.f32 %v1861, %v1532
        %v1868 = vadd.f32 %v1602, %v1864
        %v1869 = vadd.f32 %v1606, %v1865
        %v1870 = vadd.f32 %v1602, %v1866
        %v1871 = vadd.f32 %v1606, %v1867
        %v1872 = vmul.f32 %v1858, %v1536
        %v1873 = vmul.f32 %v1859, %v1540
        %v1874 = vmul.f32 %v1860, %v1536
        %v1875 = vmul.f32 %v1861, %v1540
        %v1876 = vmul.f32 %v1862, %v1536
        %v1877 = vmul.f32 %v1863, %v1540
        %v1884 = vrot.slane %v1872, 1
        %v1885 = vrot.slane %v1874, 1
        %v1886 = vsel %vm1635, %v1884, %v1885
        %v1887 = vrot.slane %v1873, 1
        %v1888 = vrot.slane %v1875, 1
        %v1889 = vsel %vm1635, %v1887, %v1888
        %v1890 = vrot.slane %v1876, 1
        %v1891 = vsel %vm1635, %v1885, %v1890
        %v1892 = vrot.slane %v1877, 1
        %v1893 = vsel %vm1635, %v1888, %v1892
        %v1898 = vadd.f32 %v1868, %v1886
        %v1899 = vadd.f32 %v1869, %v1889
        %v1900 = vadd.f32 %v1870, %v1891
        %v1901 = vadd.f32 %v1871, %v1893
        %v1902 = vmul.f32 %v1858, %v1544
        %v1903 = vmul.f32 %v1859, %v1548
        %v1904 = vmul.f32 %v1860, %v1544
        %v1905 = vmul.f32 %v1861, %v1548
        %v1906 = vmul.f32 %v1862, %v1544
        %v1907 = vmul.f32 %v1863, %v1548
        %v1914 = vrot.slane %v1902, 2
        %v1915 = vrot.slane %v1904, 2
        %v1916 = vsel %vm1666, %v1914, %v1915
        %v1917 = vrot.slane %v1903, 2
        %v1918 = vrot.slane %v1905, 2
        %v1919 = vsel %vm1666, %v1917, %v1918
        %v1920 = vrot.slane %v1906, 2
        %v1921 = vsel %vm1666, %v1915, %v1920
        %v1922 = vrot.slane %v1907, 2
        %v1923 = vsel %vm1666, %v1918, %v1922
        %v1928 = vadd.f32 %v1898, %v1916
        %v1929 = vadd.f32 %v1899, %v1919
        %v1930 = vadd.f32 %v1900, %v1921
        %v1931 = vadd.f32 %v1901, %v1923
        %v1932 = vld [vmem:[%s1759] sm:$0xff]
        %v1933 = vld [vmem:[%s1759 + $0x8] sm:$0xff]
        %v1934 = vld [vmem:[%s1759 + $0x10] sm:$0xff]
        %v1935 = vld [vmem:[%s1759 + $0x18] sm:$0xff]
        %v1936 = vld [vmem:[%s1759 + $0x20] sm:$0x3]
        %v1937 = vld [vmem:[%s1759 + $0x28] sm:$0x3]
        %v1938 = vmul.f32 %v1932, %v1552
        %v1939 = vmul.f32 %v1933, %v1556
        %v1940 = vmul.f32 %v1934, %v1552
        %v1941 = vmul.f32 %v1935, %v1556
        %v1942 = vadd.f32 %v1928, %v1938
        %v1943 = vadd.f32 %v1929, %v1939
        %v1944 = vadd.f32 %v1930, %v1940
        %v1945 = vadd.f32 %v1931, %v1941
        %v1946 = vmul.f32 %v1932, %v1560
        %v1947 = vmul.f32 %v1933, %v1564
        %v1948 = vmul.f32 %v1934, %v1560
        %v1949 = vmul.f32 %v1935, %v1564
        %v1950 = vmul.f32 %v1936, %v1560
        %v1951 = vmul.f32 %v1937, %v1564
        %v1958 = vrot.slane %v1946, 1
        %v1959 = vrot.slane %v1948, 1
        %v1960 = vsel %vm1635, %v1958, %v1959
        %v1961 = vrot.slane %v1947, 1
        %v1962 = vrot.slane %v1949, 1
        %v1963 = vsel %vm1635, %v1961, %v1962
        %v1964 = vrot.slane %v1950, 1
        %v1965 = vsel %vm1635, %v1959, %v1964
        %v1966 = vrot.slane %v1951, 1
        %v1967 = vsel %vm1635, %v1962, %v1966
        %v1972 = vadd.f32 %v1942, %v1960
        %v1973 = vadd.f32 %v1943, %v1963
        %v1974 = vadd.f32 %v1944, %v1965
        %v1975 = vadd.f32 %v1945, %v1967
        %v1976 = vmul.f32 %v1932, %v1568
        %v1977 = vmul.f32 %v1933, %v1572
        %v1978 = vmul.f32 %v1934, %v1568
        %v1979 = vmul.f32 %v1935, %v1572
        %v1980 = vmul.f32 %v1936, %v1568
        %v1981 = vmul.f32 %v1937, %v1572
        %v1988 = vrot.slane %v1976, 2
        %v1989 = vrot.slane %v1978, 2
        %v1990 = vsel %vm1666, %v1988, %v1989
        %v1991 = vrot.slane %v1977, 2
        %v1992 = vrot.slane %v1979, 2
        %v1993 = vsel %vm1666, %v1991, %v1992
        %v1994 = vrot.slane %v1980, 2
        %v1995 = vsel %vm1666, %v1989, %v1994
        %v1996 = vrot.slane %v1981, 2
        %v1997 = vsel %vm1666, %v1992, %v1996
        %v2002 = vadd.f32 %v1972, %v1990
        %v2003 = vadd.f32 %v1973, %v1993
        %v2004 = vadd.f32 %v1974, %v1995
        %v2005 = vadd.f32 %v1975, %v1997
        %s2006 = scalar_lea.vmem [#allocation2], 144
        %v2007 = vld [vmem:[%s2006] sm:$0xff]
        %v2008 = vld [vmem:[%s2006 + $0x8] sm:$0xff]
        %v2009 = vld [vmem:[%s2006 + $0x10] sm:$0xff]
        %v2010 = vld [vmem:[%s2006 + $0x18] sm:$0xff]
        %v2011 = vld [vmem:[%s2006 + $0x20] sm:$0x3]
        %v2012 = vld [vmem:[%s2006 + $0x28] sm:$0x3]
        %v2013 = vmul.f32 %v2007, %v1576
        %v2014 = vmul.f32 %v2008, %v1580
        %v2015 = vmul.f32 %v2009, %v1576
        %v2016 = vmul.f32 %v2010, %v1580
        %v2017 = vadd.f32 %v2002, %v2013
        %v2018 = vadd.f32 %v2003, %v2014
        %v2019 = vadd.f32 %v2004, %v2015
        %v2020 = vadd.f32 %v2005, %v2016
        %v2021 = vmul.f32 %v2007, %v1584
        %v2022 = vmul.f32 %v2008, %v1588
        %v2023 = vmul.f32 %v2009, %v1584
        %v2024 = vmul.f32 %v2010, %v1588
        %v2025 = vmul.f32 %v2011, %v1584
        %v2026 = vmul.f32 %v2012, %v1588
        %v2033 = vrot.slane %v2021, 1
        %v2034 = vrot.slane %v2023, 1
        %v2035 = vsel %vm1635, %v2033, %v2034
        %v2036 = vrot.slane %v2022, 1
        %v2037 = vrot.slane %v2024, 1
        %v2038 = vsel %vm1635, %v2036, %v2037
        %v2039 = vrot.slane %v2025, 1
        %v2040 = vsel %vm1635, %v2034, %v2039
        %v2041 = vrot.slane %v2026, 1
        %v2042 = vsel %vm1635, %v2037, %v2041
        %v2047 = vadd.f32 %v2017, %v2035
        %v2048 = vadd.f32 %v2018, %v2038
        %v2049 = vadd.f32 %v2019, %v2040
        %v2050 = vadd.f32 %v2020, %v2042
        %v2051 = vmul.f32 %v2007, %v1592
        %v2052 = vmul.f32 %v2008, %v1596
        %v2053 = vmul.f32 %v2009, %v1592
        %v2054 = vmul.f32 %v2010, %v1596
        %v2055 = vmul.f32 %v2011, %v1592
        %v2056 = vmul.f32 %v2012, %v1596
        %v2063 = vrot.slane %v2051, 2
        %v2064 = vrot.slane %v2053, 2
        %v2065 = vsel %vm1666, %v2063, %v2064
        %v2066 = vrot.slane %v2052, 2
        %v2067 = vrot.slane %v2054, 2
        %v2068 = vsel %vm1666, %v2066, %v2067
        %v2069 = vrot.slane %v2055, 2
        %v2070 = vsel %vm1666, %v2064, %v2069
        %v2071 = vrot.slane %v2056, 2
        %v2072 = vsel %vm1666, %v2067, %v2071
        %v2077 = vadd.f32 %v2047, %v2065
        %v2078 = vadd.f32 %v2048, %v2068
        %v2079 = vadd.f32 %v2049, %v2070
        %v2080 = vadd.f32 %v2050, %v2072
        %v2081 = vadd.f32 %v2077, 3.0
        %v2082 = vadd.f32 %v2078, 3.0
        %v2083 = vadd.f32 %v2079, 3.0
        %v2084 = vadd.f32 %v2080, 3.0
        %v2085 = vmax.f32 %v2081, 0.0
        %v2086 = vmax.f32 %v2082, 0.0
        %v2087 = vmax.f32 %v2083, 0.0
        %v2088 = vmax.f32 %v2084, 0.0
        %v2089 = vmin.f32 %v2085, 6.0
        %v2090 = vmin.f32 %v2086, 6.0
        %v2091 = vmin.f32 %v2087, 6.0
        %v2092 = vmin.f32 %v2088, 6.0
        %v2093 = vmul.f32 %v2077, %v2089
        %v2094 = vmul.f32 %v2078, %v2090
        %v2095 = vmul.f32 %v2079, %v2091
        %v2096 = vmul.f32 %v2080, %v2092
        %v2097 = vmul.f32 %v2093, 0.16666667
        %v2098 = vmul.f32 %v2094, 0.16666667
        %v2099 = vmul.f32 %v2095, 0.16666667
        %v2100 = vmul.f32 %v2096, 0.16666667
        %2101 = vst [vmem:[#allocation3 + $0x20] sm:$0xff] %v2097
        %2102 = vst [vmem:[#allocation3 + $0x28] sm:$0xff] %v2098
        %2103 = vst [vmem:[#allocation3 + $0x30] sm:$0xff] %v2099
        %2104 = vst [vmem:[#allocation3 + $0x38] sm:$0xff] %v2100
        %v2105 = vld [vmem:[%s1759] sm:$0xff]
        %v2106 = vld [vmem:[%s1759 + $0x8] sm:$0xff]
        %v2107 = vld [vmem:[%s1759 + $0x10] sm:$0xff]
        %v2108 = vld [vmem:[%s1759 + $0x18] sm:$0xff]
        %v2109 = vld [vmem:[%s1759 + $0x20] sm:$0x3]
        %v2110 = vld [vmem:[%s1759 + $0x28] sm:$0x3]
        %v2111 = vmul.f32 %v2105, %v1528
        %v2112 = vmul.f32 %v2106, %v1532
        %v2113 = vmul.f32 %v2107, %v1528
        %v2114 = vmul.f32 %v2108, %v1532
        %v2115 = vadd.f32 %v1602, %v2111
        %v2116 = vadd.f32 %v1606, %v2112
        %v2117 = vadd.f32 %v1602, %v2113
        %v2118 = vadd.f32 %v1606, %v2114
        %v2119 = vmul.f32 %v2105, %v1536
        %v2120 = vmul.f32 %v2106, %v1540
        %v2121 = vmul.f32 %v2107, %v1536
        %v2122 = vmul.f32 %v2108, %v1540
        %v2123 = vmul.f32 %v2109, %v1536
        %v2124 = vmul.f32 %v2110, %v1540
        %v2131 = vrot.slane %v2119, 1
        %v2132 = vrot.slane %v2121, 1
        %v2133 = vsel %vm1635, %v2131, %v2132
        %v2134 = vrot.slane %v2120, 1
        %v2135 = vrot.slane %v2122, 1
        %v2136 = vsel %vm1635, %v2134, %v2135
        %v2137 = vrot.slane %v2123, 1
        %v2138 = vsel %vm1635, %v2132, %v2137
        %v2139 = vrot.slane %v2124, 1
        %v2140 = vsel %vm1635, %v2135, %v2139
        %v2145 = vadd.f32 %v2115, %v2133
        %v2146 = vadd.f32 %v2116, %v2136
        %v2147 = vadd.f32 %v2117, %v2138
        %v2148 = vadd.f32 %v2118, %v2140
        %v2149 = vmul.f32 %v2105, %v1544
        %v2150 = vmul.f32 %v2106, %v1548
        %v2151 = vmul.f32 %v2107, %v1544
        %v2152 = vmul.f32 %v2108, %v1548
        %v2153 = vmul.f32 %v2109, %v1544
        %v2154 = vmul.f32 %v2110, %v1548
        %v2161 = vrot.slane %v2149, 2
        %v2162 = vrot.slane %v2151, 2
        %v2163 = vsel %vm1666, %v2161, %v2162
        %v2164 = vrot.slane %v2150, 2
        %v2165 = vrot.slane %v2152, 2
        %v2166 = vsel %vm1666, %v2164, %v2165
        %v2167 = vrot.slane %v2153, 2
        %v2168 = vsel %vm1666, %v2162, %v2167
        %v2169 = vrot.slane %v2154, 2
        %v2170 = vsel %vm1666, %v2165, %v2169
        %v2175 = vadd.f32 %v2145, %v2163
        %v2176 = vadd.f32 %v2146, %v2166
        %v2177 = vadd.f32 %v2147, %v2168
        %v2178 = vadd.f32 %v2148, %v2170
        %v2179 = vld [vmem:[%s2006] sm:$0xff]
        %v2180 = vld [vmem:[%s2006 + $0x8] sm:$0xff]
        %v2181 = vld [vmem:[%s2006 + $0x10] sm:$0xff]
        %v2182 = vld [vmem:[%s2006 + $0x18] sm:$0xff]
        %v2183 = vld [vmem:[%s2006 + $0x20] sm:$0x3]
        %v2184 = vld [vmem:[%s2006 + $0x28] sm:$0x3]
        %v2185 = vmul.f32 %v2179, %v1552
        %v2186 = vmul.f32 %v2180, %v1556
        %v2187 = vmul.f32 %v2181, %v1552
        %v2188 = vmul.f32 %v2182, %v1556
        %v2189 = vadd.f32 %v2175, %v2185
        %v2190 = vadd.f32 %v2176, %v2186
        %v2191 = vadd.f32 %v2177, %v2187
        %v2192 = vadd.f32 %v2178, %v2188
        %v2193 = vmul.f32 %v2179, %v1560
        %v2194 = vmul.f32 %v2180, %v1564
        %v2195 = vmul.f32 %v2181, %v1560
        %v2196 = vmul.f32 %v2182, %v1564
        %v2197 = vmul.f32 %v2183, %v1560
        %v2198 = vmul.f32 %v2184, %v1564
        %v2205 = vrot.slane %v2193, 1
        %v2206 = vrot.slane %v2195, 1
        %v2207 = vsel %vm1635, %v2205, %v2206
        %v2208 = vrot.slane %v2194, 1
        %v2209 = vrot.slane %v2196, 1
        %v2210 = vsel %vm1635, %v2208, %v2209
        %v2211 = vrot.slane %v2197, 1
        %v2212 = vsel %vm1635, %v2206, %v2211
        %v2213 = vrot.slane %v2198, 1
        %v2214 = vsel %vm1635, %v2209, %v2213
        %v2219 = vadd.f32 %v2189, %v2207
        %v2220 = vadd.f32 %v2190, %v2210
        %v2221 = vadd.f32 %v2191, %v2212
        %v2222 = vadd.f32 %v2192, %v2214
        %v2223 = vmul.f32 %v2179, %v1568
        %v2224 = vmul.f32 %v2180, %v1572
        %v2225 = vmul.f32 %v2181, %v1568
        %v2226 = vmul.f32 %v2182, %v1572
        %v2227 = vmul.f32 %v2183, %v1568
        %v2228 = vmul.f32 %v2184, %v1572
        %v2235 = vrot.slane %v2223, 2
        %v2236 = vrot.slane %v2225, 2
        %v2237 = vsel %vm1666, %v2235, %v2236
        %v2238 = vrot.slane %v2224, 2
        %v2239 = vrot.slane %v2226, 2
        %v2240 = vsel %vm1666, %v2238, %v2239
        %v2241 = vrot.slane %v2227, 2
        %v2242 = vsel %vm1666, %v2236, %v2241
        %v2243 = vrot.slane %v2228, 2
        %v2244 = vsel %vm1666, %v2239, %v2243
        %v2249 = vadd.f32 %v2219, %v2237
        %v2250 = vadd.f32 %v2220, %v2240
        %v2251 = vadd.f32 %v2221, %v2242
        %v2252 = vadd.f32 %v2222, %v2244
        %s2253 = scalar_lea.vmem [#allocation2], 192
        %v2254 = vld [vmem:[%s2253] sm:$0xff]
        %v2255 = vld [vmem:[%s2253 + $0x8] sm:$0xff]
        %v2256 = vld [vmem:[%s2253 + $0x10] sm:$0xff]
        %v2257 = vld [vmem:[%s2253 + $0x18] sm:$0xff]
        %v2258 = vld [vmem:[%s2253 + $0x20] sm:$0x3]
        %v2259 = vld [vmem:[%s2253 + $0x28] sm:$0x3]
        %v2260 = vmul.f32 %v2254, %v1576
        %v2261 = vmul.f32 %v2255, %v1580
        %v2262 = vmul.f32 %v2256, %v1576
        %v2263 = vmul.f32 %v2257, %v1580
        %v2264 = vadd.f32 %v2249, %v2260
        %v2265 = vadd.f32 %v2250, %v2261
        %v2266 = vadd.f32 %v2251, %v2262
        %v2267 = vadd.f32 %v2252, %v2263
        %v2268 = vmul.f32 %v2254, %v1584
        %v2269 = vmul.f32 %v2255, %v1588
        %v2270 = vmul.f32 %v2256, %v1584
        %v2271 = vmul.f32 %v2257, %v1588
        %v2272 = vmul.f32 %v2258, %v1584
        %v2273 = vmul.f32 %v2259, %v1588
        %v2280 = vrot.slane %v2268, 1
        %v2281 = vrot.slane %v2270, 1
        %v2282 = vsel %vm1635, %v2280, %v2281
        %v2283 = vrot.slane %v2269, 1
        %v2284 = vrot.slane %v2271, 1
        %v2285 = vsel %vm1635, %v2283, %v2284
        %v2286 = vrot.slane %v2272, 1
        %v2287 = vsel %vm1635, %v2281, %v2286
        %v2288 = vrot.slane %v2273, 1
        %v2289 = vsel %vm1635, %v2284, %v2288
        %v2294 = vadd.f32 %v2264, %v2282
        %v2295 = vadd.f32 %v2265, %v2285
        %v2296 = vadd.f32 %v2266, %v2287
        %v2297 = vadd.f32 %v2267, %v2289
        %v2298 = vmul.f32 %v2254, %v1592
        %v2299 = vmul.f32 %v2255, %v1596
        %v2300 = vmul.f32 %v2256, %v1592
        %v2301 = vmul.f32 %v2257, %v1596
        %v2302 = vmul.f32 %v2258, %v1592
        %v2303 = vmul.f32 %v2259, %v1596
        %v2310 = vrot.slane %v2298, 2
        %v2311 = vrot.slane %v2300, 2
        %v2312 = vsel %vm1666, %v2310, %v2311
        %v2313 = vrot.slane %v2299, 2
        %v2314 = vrot.slane %v2301, 2
        %v2315 = vsel %vm1666, %v2313, %v2314
        %v2316 = vrot.slane %v2302, 2
        %v2317 = vsel %vm1666, %v2311, %v2316
        %v2318 = vrot.slane %v2303, 2
        %v2319 = vsel %vm1666, %v2314, %v2318
        %v2324 = vadd.f32 %v2294, %v2312
        %v2325 = vadd.f32 %v2295, %v2315
        %v2326 = vadd.f32 %v2296, %v2317
        %v2327 = vadd.f32 %v2297, %v2319
        %v2328 = vadd.f32 %v2324, 3.0
        %v2329 = vadd.f32 %v2325, 3.0
        %v2330 = vadd.f32 %v2326, 3.0
        %v2331 = vadd.f32 %v2327, 3.0
        %v2332 = vmax.f32 %v2328, 0.0
        %v2333 = vmax.f32 %v2329, 0.0
        %v2334 = vmax.f32 %v2330, 0.0
        %v2335 = vmax.f32 %v2331, 0.0
        %v2336 = vmin.f32 %v2332, 6.0
        %v2337 = vmin.f32 %v2333, 6.0
        %v2338 = vmin.f32 %v2334, 6.0
        %v2339 = vmin.f32 %v2335, 6.0
        %v2340 = vmul.f32 %v2324, %v2336
        %v2341 = vmul.f32 %v2325, %v2337
        %v2342 = vmul.f32 %v2326, %v2338
        %v2343 = vmul.f32 %v2327, %v2339
        %v2344 = vmul.f32 %v2340, 0.16666667
        %v2345 = vmul.f32 %v2341, 0.16666667
        %v2346 = vmul.f32 %v2342, 0.16666667
        %v2347 = vmul.f32 %v2343, 0.16666667
        %2348 = vst [vmem:[#allocation3 + $0x40] sm:$0xff] %v2344
        %2349 = vst [vmem:[#allocation3 + $0x48] sm:$0xff] %v2345
        %2350 = vst [vmem:[#allocation3 + $0x50] sm:$0xff] %v2346
        %2351 = vst [vmem:[#allocation3 + $0x58] sm:$0xff] %v2347
        %v2352 = vld [vmem:[%s2006] sm:$0xff]
        %v2353 = vld [vmem:[%s2006 + $0x8] sm:$0xff]
        %v2354 = vld [vmem:[%s2006 + $0x10] sm:$0xff]
        %v2355 = vld [vmem:[%s2006 + $0x18] sm:$0xff]
        %v2356 = vld [vmem:[%s2006 + $0x20] sm:$0x3]
        %v2357 = vld [vmem:[%s2006 + $0x28] sm:$0x3]
        %v2358 = vmul.f32 %v2352, %v1528
        %v2359 = vmul.f32 %v2353, %v1532
        %v2360 = vmul.f32 %v2354, %v1528
        %v2361 = vmul.f32 %v2355, %v1532
        %v2362 = vadd.f32 %v1602, %v2358
        %v2363 = vadd.f32 %v1606, %v2359
        %v2364 = vadd.f32 %v1602, %v2360
        %v2365 = vadd.f32 %v1606, %v2361
        %v2366 = vmul.f32 %v2352, %v1536
        %v2367 = vmul.f32 %v2353, %v1540
        %v2368 = vmul.f32 %v2354, %v1536
        %v2369 = vmul.f32 %v2355, %v1540
        %v2370 = vmul.f32 %v2356, %v1536
        %v2371 = vmul.f32 %v2357, %v1540
        %v2378 = vrot.slane %v2366, 1
        %v2379 = vrot.slane %v2368, 1
        %v2380 = vsel %vm1635, %v2378, %v2379
        %v2381 = vrot.slane %v2367, 1
        %v2382 = vrot.slane %v2369, 1
        %v2383 = vsel %vm1635, %v2381, %v2382
        %v2384 = vrot.slane %v2370, 1
        %v2385 = vsel %vm1635, %v2379, %v2384
        %v2386 = vrot.slane %v2371, 1
        %v2387 = vsel %vm1635, %v2382, %v2386
        %v2392 = vadd.f32 %v2362, %v2380
        %v2393 = vadd.f32 %v2363, %v2383
        %v2394 = vadd.f32 %v2364, %v2385
        %v2395 = vadd.f32 %v2365, %v2387
        %v2396 = vmul.f32 %v2352, %v1544
        %v2397 = vmul.f32 %v2353, %v1548
        %v2398 = vmul.f32 %v2354, %v1544
        %v2399 = vmul.f32 %v2355, %v1548
        %v2400 = vmul.f32 %v2356, %v1544
        %v2401 = vmul.f32 %v2357, %v1548
        %v2408 = vrot.slane %v2396, 2
        %v2409 = vrot.slane %v2398, 2
        %v2410 = vsel %vm1666, %v2408, %v2409
        %v2411 = vrot.slane %v2397, 2
        %v2412 = vrot.slane %v2399, 2
        %v2413 = vsel %vm1666, %v2411, %v2412
        %v2414 = vrot.slane %v2400, 2
        %v2415 = vsel %vm1666, %v2409, %v2414
        %v2416 = vrot.slane %v2401, 2
        %v2417 = vsel %vm1666, %v2412, %v2416
        %v2422 = vadd.f32 %v2392, %v2410
        %v2423 = vadd.f32 %v2393, %v2413
        %v2424 = vadd.f32 %v2394, %v2415
        %v2425 = vadd.f32 %v2395, %v2417
        %v2426 = vld [vmem:[%s2253] sm:$0xff]
        %v2427 = vld [vmem:[%s2253 + $0x8] sm:$0xff]
        %v2428 = vld [vmem:[%s2253 + $0x10] sm:$0xff]
        %v2429 = vld [vmem:[%s2253 + $0x18] sm:$0xff]
        %v2430 = vld [vmem:[%s2253 + $0x20] sm:$0x3]
        %v2431 = vld [vmem:[%s2253 + $0x28] sm:$0x3]
        %v2432 = vmul.f32 %v2426, %v1552
        %v2433 = vmul.f32 %v2427, %v1556
        %v2434 = vmul.f32 %v2428, %v1552
        %v2435 = vmul.f32 %v2429, %v1556
        %v2436 = vadd.f32 %v2422, %v2432
        %v2437 = vadd.f32 %v2423, %v2433
        %v2438 = vadd.f32 %v2424, %v2434
        %v2439 = vadd.f32 %v2425, %v2435
        %v2440 = vmul.f32 %v2426, %v1560
        %v2441 = vmul.f32 %v2427, %v1564
        %v2442 = vmul.f32 %v2428, %v1560
        %v2443 = vmul.f32 %v2429, %v1564
        %v2444 = vmul.f32 %v2430, %v1560
        %v2445 = vmul.f32 %v2431, %v1564
        %v2452 = vrot.slane %v2440, 1
        %v2453 = vrot.slane %v2442, 1
        %v2454 = vsel %vm1635, %v2452, %v2453
        %v2455 = vrot.slane %v2441, 1
        %v2456 = vrot.slane %v2443, 1
        %v2457 = vsel %vm1635, %v2455, %v2456
        %v2458 = vrot.slane %v2444, 1
        %v2459 = vsel %vm1635, %v2453, %v2458
        %v2460 = vrot.slane %v2445, 1
        %v2461 = vsel %vm1635, %v2456, %v2460
        %v2466 = vadd.f32 %v2436, %v2454
        %v2467 = vadd.f32 %v2437, %v2457
        %v2468 = vadd.f32 %v2438, %v2459
        %v2469 = vadd.f32 %v2439, %v2461
        %v2470 = vmul.f32 %v2426, %v1568
        %v2471 = vmul.f32 %v2427, %v1572
        %v2472 = vmul.f32 %v2428, %v1568
        %v2473 = vmul.f32 %v2429, %v1572
        %v2474 = vmul.f32 %v2430, %v1568
        %v2475 = vmul.f32 %v2431, %v1572
        %v2482 = vrot.slane %v2470, 2
        %v2483 = vrot.slane %v2472, 2
        %v2484 = vsel %vm1666, %v2482, %v2483
        %v2485 = vrot.slane %v2471, 2
        %v2486 = vrot.slane %v2473, 2
        %v2487 = vsel %vm1666, %v2485, %v2486
        %v2488 = vrot.slane %v2474, 2
        %v2489 = vsel %vm1666, %v2483, %v2488
        %v2490 = vrot.slane %v2475, 2
        %v2491 = vsel %vm1666, %v2486, %v2490
        %v2496 = vadd.f32 %v2466, %v2484
        %v2497 = vadd.f32 %v2467, %v2487
        %v2498 = vadd.f32 %v2468, %v2489
        %v2499 = vadd.f32 %v2469, %v2491
        %s2500 = scalar_lea.vmem [#allocation2], 240
        %v2501 = vld [vmem:[%s2500] sm:$0xff]
        %v2502 = vld [vmem:[%s2500 + $0x8] sm:$0xff]
        %v2503 = vld [vmem:[%s2500 + $0x10] sm:$0xff]
        %v2504 = vld [vmem:[%s2500 + $0x18] sm:$0xff]
        %v2505 = vld [vmem:[%s2500 + $0x20] sm:$0x3]
        %v2506 = vld [vmem:[%s2500 + $0x28] sm:$0x3]
        %v2507 = vmul.f32 %v2501, %v1576
        %v2508 = vmul.f32 %v2502, %v1580
        %v2509 = vmul.f32 %v2503, %v1576
        %v2510 = vmul.f32 %v2504, %v1580
        %v2511 = vadd.f32 %v2496, %v2507
        %v2512 = vadd.f32 %v2497, %v2508
        %v2513 = vadd.f32 %v2498, %v2509
        %v2514 = vadd.f32 %v2499, %v2510
        %v2515 = vmul.f32 %v2501, %v1584
        %v2516 = vmul.f32 %v2502, %v1588
        %v2517 = vmul.f32 %v2503, %v1584
        %v2518 = vmul.f32 %v2504, %v1588
        %v2519 = vmul.f32 %v2505, %v1584
        %v2520 = vmul.f32 %v2506, %v1588
        %v2527 = vrot.slane %v2515, 1
        %v2528 = vrot.slane %v2517, 1
        %v2529 = vsel %vm1635, %v2527, %v2528
        %v2530 = vrot.slane %v2516, 1
        %v2531 = vrot.slane %v2518, 1
        %v2532 = vsel %vm1635, %v2530, %v2531
        %v2533 = vrot.slane %v2519, 1
        %v2534 = vsel %vm1635, %v2528, %v2533
        %v2535 = vrot.slane %v2520, 1
        %v2536 = vsel %vm1635, %v2531, %v2535
        %v2541 = vadd.f32 %v2511, %v2529
        %v2542 = vadd.f32 %v2512, %v2532
        %v2543 = vadd.f32 %v2513, %v2534
        %v2544 = vadd.f32 %v2514, %v2536
        %v2545 = vmul.f32 %v2501, %v1592
        %v2546 = vmul.f32 %v2502, %v1596
        %v2547 = vmul.f32 %v2503, %v1592
        %v2548 = vmul.f32 %v2504, %v1596
        %v2549 = vmul.f32 %v2505, %v1592
        %v2550 = vmul.f32 %v2506, %v1596
        %v2557 = vrot.slane %v2545, 2
        %v2558 = vrot.slane %v2547, 2
        %v2559 = vsel %vm1666, %v2557, %v2558
        %v2560 = vrot.slane %v2546, 2
        %v2561 = vrot.slane %v2548, 2
        %v2562 = vsel %vm1666, %v2560, %v2561
        %v2563 = vrot.slane %v2549, 2
        %v2564 = vsel %vm1666, %v2558, %v2563
        %v2565 = vrot.slane %v2550, 2
        %v2566 = vsel %vm1666, %v2561, %v2565
        %v2571 = vadd.f32 %v2541, %v2559
        %v2572 = vadd.f32 %v2542, %v2562
        %v2573 = vadd.f32 %v2543, %v2564
        %v2574 = vadd.f32 %v2544, %v2566
        %v2575 = vadd.f32 %v2571, 3.0
        %v2576 = vadd.f32 %v2572, 3.0
        %v2577 = vadd.f32 %v2573, 3.0
        %v2578 = vadd.f32 %v2574, 3.0
        %v2579 = vmax.f32 %v2575, 0.0
        %v2580 = vmax.f32 %v2576, 0.0
        %v2581 = vmax.f32 %v2577, 0.0
        %v2582 = vmax.f32 %v2578, 0.0
        %v2583 = vmin.f32 %v2579, 6.0
        %v2584 = vmin.f32 %v2580, 6.0
        %v2585 = vmin.f32 %v2581, 6.0
        %v2586 = vmin.f32 %v2582, 6.0
        %v2587 = vmul.f32 %v2571, %v2583
        %v2588 = vmul.f32 %v2572, %v2584
        %v2589 = vmul.f32 %v2573, %v2585
        %v2590 = vmul.f32 %v2574, %v2586
        %v2591 = vmul.f32 %v2587, 0.16666667
        %v2592 = vmul.f32 %v2588, 0.16666667
        %v2593 = vmul.f32 %v2589, 0.16666667
        %v2594 = vmul.f32 %v2590, 0.16666667
        %2595 = vst [vmem:[#allocation3 + $0x60] sm:$0xff] %v2591
        %2596 = vst [vmem:[#allocation3 + $0x68] sm:$0xff] %v2592
        %2597 = vst [vmem:[#allocation3 + $0x70] sm:$0xff] %v2593
        %2598 = vst [vmem:[#allocation3 + $0x78] sm:$0xff] %v2594
        %v2599 = vld [vmem:[%s2253] sm:$0xff]
        %v2600 = vld [vmem:[%s2253 + $0x8] sm:$0xff]
        %v2601 = vld [vmem:[%s2253 + $0x10] sm:$0xff]
        %v2602 = vld [vmem:[%s2253 + $0x18] sm:$0xff]
        %v2603 = vld [vmem:[%s2253 + $0x20] sm:$0x3]
        %v2604 = vld [vmem:[%s2253 + $0x28] sm:$0x3]
        %v2605 = vmul.f32 %v2599, %v1528
        %v2606 = vmul.f32 %v2600, %v1532
        %v2607 = vmul.f32 %v2601, %v1528
        %v2608 = vmul.f32 %v2602, %v1532
        %v2609 = vadd.f32 %v1602, %v2605
        %v2610 = vadd.f32 %v1606, %v2606
        %v2611 = vadd.f32 %v1602, %v2607
        %v2612 = vadd.f32 %v1606, %v2608
        %v2613 = vmul.f32 %v2599, %v1536
        %v2614 = vmul.f32 %v2600, %v1540
        %v2615 = vmul.f32 %v2601, %v1536
        %v2616 = vmul.f32 %v2602, %v1540
        %v2617 = vmul.f32 %v2603, %v1536
        %v2618 = vmul.f32 %v2604, %v1540
        %v2625 = vrot.slane %v2613, 1
        %v2626 = vrot.slane %v2615, 1
        %v2627 = vsel %vm1635, %v2625, %v2626
        %v2628 = vrot.slane %v2614, 1
        %v2629 = vrot.slane %v2616, 1
        %v2630 = vsel %vm1635, %v2628, %v2629
        %v2631 = vrot.slane %v2617, 1
        %v2632 = vsel %vm1635, %v2626, %v2631
        %v2633 = vrot.slane %v2618, 1
        %v2634 = vsel %vm1635, %v2629, %v2633
        %v2639 = vadd.f32 %v2609, %v2627
        %v2640 = vadd.f32 %v2610, %v2630
        %v2641 = vadd.f32 %v2611, %v2632
        %v2642 = vadd.f32 %v2612, %v2634
        %v2643 = vmul.f32 %v2599, %v1544
        %v2644 = vmul.f32 %v2600, %v1548
        %v2645 = vmul.f32 %v2601, %v1544
        %v2646 = vmul.f32 %v2602, %v1548
        %v2647 = vmul.f32 %v2603, %v1544
        %v2648 = vmul.f32 %v2604, %v1548
        %v2655 = vrot.slane %v2643, 2
        %v2656 = vrot.slane %v2645, 2
        %v2657 = vsel %vm1666, %v2655, %v2656
        %v2658 = vrot.slane %v2644, 2
        %v2659 = vrot.slane %v2646, 2
        %v2660 = vsel %vm1666, %v2658, %v2659
        %v2661 = vrot.slane %v2647, 2
        %v2662 = vsel %vm1666, %v2656, %v2661
        %v2663 = vrot.slane %v2648, 2
        %v2664 = vsel %vm1666, %v2659, %v2663
        %v2669 = vadd.f32 %v2639, %v2657
        %v2670 = vadd.f32 %v2640, %v2660
        %v2671 = vadd.f32 %v2641, %v2662
        %v2672 = vadd.f32 %v2642, %v2664
        %v2673 = vld [vmem:[%s2500] sm:$0xff]
        %v2674 = vld [vmem:[%s2500 + $0x8] sm:$0xff]
        %v2675 = vld [vmem:[%s2500 + $0x10] sm:$0xff]
        %v2676 = vld [vmem:[%s2500 + $0x18] sm:$0xff]
        %v2677 = vld [vmem:[%s2500 + $0x20] sm:$0x3]
        %v2678 = vld [vmem:[%s2500 + $0x28] sm:$0x3]
        %v2679 = vmul.f32 %v2673, %v1552
        %v2680 = vmul.f32 %v2674, %v1556
        %v2681 = vmul.f32 %v2675, %v1552
        %v2682 = vmul.f32 %v2676, %v1556
        %v2683 = vadd.f32 %v2669, %v2679
        %v2684 = vadd.f32 %v2670, %v2680
        %v2685 = vadd.f32 %v2671, %v2681
        %v2686 = vadd.f32 %v2672, %v2682
        %v2687 = vmul.f32 %v2673, %v1560
        %v2688 = vmul.f32 %v2674, %v1564
        %v2689 = vmul.f32 %v2675, %v1560
        %v2690 = vmul.f32 %v2676, %v1564
        %v2691 = vmul.f32 %v2677, %v1560
        %v2692 = vmul.f32 %v2678, %v1564
        %v2699 = vrot.slane %v2687, 1
        %v2700 = vrot.slane %v2689, 1
        %v2701 = vsel %vm1635, %v2699, %v2700
        %v2702 = vrot.slane %v2688, 1
        %v2703 = vrot.slane %v2690, 1
        %v2704 = vsel %vm1635, %v2702, %v2703
        %v2705 = vrot.slane %v2691, 1
        %v2706 = vsel %vm1635, %v2700, %v2705
        %v2707 = vrot.slane %v2692, 1
        %v2708 = vsel %vm1635, %v2703, %v2707
        %v2713 = vadd.f32 %v2683, %v2701
        %v2714 = vadd.f32 %v2684, %v2704
        %v2715 = vadd.f32 %v2685, %v2706
        %v2716 = vadd.f32 %v2686, %v2708
        %v2717 = vmul.f32 %v2673, %v1568
        %v2718 = vmul.f32 %v2674, %v1572
        %v2719 = vmul.f32 %v2675, %v1568
        %v2720 = vmul.f32 %v2676, %v1572
        %v2721 = vmul.f32 %v2677, %v1568
        %v2722 = vmul.f32 %v2678, %v1572
        %v2729 = vrot.slane %v2717, 2
        %v2730 = vrot.slane %v2719, 2
        %v2731 = vsel %vm1666, %v2729, %v2730
        %v2732 = vrot.slane %v2718, 2
        %v2733 = vrot.slane %v2720, 2
        %v2734 = vsel %vm1666, %v2732, %v2733
        %v2735 = vrot.slane %v2721, 2
        %v2736 = vsel %vm1666, %v2730, %v2735
        %v2737 = vrot.slane %v2722, 2
        %v2738 = vsel %vm1666, %v2733, %v2737
        %v2743 = vadd.f32 %v2713, %v2731
        %v2744 = vadd.f32 %v2714, %v2734
        %v2745 = vadd.f32 %v2715, %v2736
        %v2746 = vadd.f32 %v2716, %v2738
        %s2747 = scalar_lea.vmem [#allocation2], 288
        %v2748 = vld [vmem:[%s2747] sm:$0xff]
        %v2749 = vld [vmem:[%s2747 + $0x8] sm:$0xff]
        %v2750 = vld [vmem:[%s2747 + $0x10] sm:$0xff]
        %v2751 = vld [vmem:[%s2747 + $0x18] sm:$0xff]
        %v2752 = vld [vmem:[%s2747 + $0x20] sm:$0x3]
        %v2753 = vld [vmem:[%s2747 + $0x28] sm:$0x3]
        %v2754 = vmul.f32 %v2748, %v1576
        %v2755 = vmul.f32 %v2749, %v1580
        %v2756 = vmul.f32 %v2750, %v1576
        %v2757 = vmul.f32 %v2751, %v1580
        %v2758 = vadd.f32 %v2743, %v2754
        %v2759 = vadd.f32 %v2744, %v2755
        %v2760 = vadd.f32 %v2745, %v2756
        %v2761 = vadd.f32 %v2746, %v2757
        %v2762 = vmul.f32 %v2748, %v1584
        %v2763 = vmul.f32 %v2749, %v1588
        %v2764 = vmul.f32 %v2750, %v1584
        %v2765 = vmul.f32 %v2751, %v1588
        %v2766 = vmul.f32 %v2752, %v1584
        %v2767 = vmul.f32 %v2753, %v1588
        %v2774 = vrot.slane %v2762, 1
        %v2775 = vrot.slane %v2764, 1
        %v2776 = vsel %vm1635, %v2774, %v2775
        %v2777 = vrot.slane %v2763, 1
        %v2778 = vrot.slane %v2765, 1
        %v2779 = vsel %vm1635, %v2777, %v2778
        %v2780 = vrot.slane %v2766, 1
        %v2781 = vsel %vm1635, %v2775, %v2780
        %v2782 = vrot.slane %v2767, 1
        %v2783 = vsel %vm1635, %v2778, %v2782
        %v2788 = vadd.f32 %v2758, %v2776
        %v2789 = vadd.f32 %v2759, %v2779
        %v2790 = vadd.f32 %v2760, %v2781
        %v2791 = vadd.f32 %v2761, %v2783
        %v2792 = vmul.f32 %v2748, %v1592
        %v2793 = vmul.f32 %v2749, %v1596
        %v2794 = vmul.f32 %v2750, %v1592
        %v2795 = vmul.f32 %v2751, %v1596
        %v2796 = vmul.f32 %v2752, %v1592
        %v2797 = vmul.f32 %v2753, %v1596
        %v2804 = vrot.slane %v2792, 2
        %v2805 = vrot.slane %v2794, 2
        %v2806 = vsel %vm1666, %v2804, %v2805
        %v2807 = vrot.slane %v2793, 2
        %v2808 = vrot.slane %v2795, 2
        %v2809 = vsel %vm1666, %v2807, %v2808
        %v2810 = vrot.slane %v2796, 2
        %v2811 = vsel %vm1666, %v2805, %v2810
        %v2812 = vrot.slane %v2797, 2
        %v2813 = vsel %vm1666, %v2808, %v2812
        %v2818 = vadd.f32 %v2788, %v2806
        %v2819 = vadd.f32 %v2789, %v2809
        %v2820 = vadd.f32 %v2790, %v2811
        %v2821 = vadd.f32 %v2791, %v2813
        %v2822 = vadd.f32 %v2818, 3.0
        %v2823 = vadd.f32 %v2819, 3.0
        %v2824 = vadd.f32 %v2820, 3.0
        %v2825 = vadd.f32 %v2821, 3.0
        %v2826 = vmax.f32 %v2822, 0.0
        %v2827 = vmax.f32 %v2823, 0.0
        %v2828 = vmax.f32 %v2824, 0.0
        %v2829 = vmax.f32 %v2825, 0.0
        %v2830 = vmin.f32 %v2826, 6.0
        %v2831 = vmin.f32 %v2827, 6.0
        %v2832 = vmin.f32 %v2828, 6.0
        %v2833 = vmin.f32 %v2829, 6.0
        %v2834 = vmul.f32 %v2818, %v2830
        %v2835 = vmul.f32 %v2819, %v2831
        %v2836 = vmul.f32 %v2820, %v2832
        %v2837 = vmul.f32 %v2821, %v2833
        %v2838 = vmul.f32 %v2834, 0.16666667
        %v2839 = vmul.f32 %v2835, 0.16666667
        %v2840 = vmul.f32 %v2836, 0.16666667
        %v2841 = vmul.f32 %v2837, 0.16666667
        %2842 = vst [vmem:[#allocation3 + $0x80] sm:$0xff] %v2838
        %2843 = vst [vmem:[#allocation3 + $0x88] sm:$0xff] %v2839
        %2844 = vst [vmem:[#allocation3 + $0x90] sm:$0xff] %v2840
        %2845 = vst [vmem:[#allocation3 + $0x98] sm:$0xff] %v2841
        %v2846 = vld [vmem:[%s2500] sm:$0xff]
        %v2847 = vld [vmem:[%s2500 + $0x8] sm:$0xff]
        %v2848 = vld [vmem:[%s2500 + $0x10] sm:$0xff]
        %v2849 = vld [vmem:[%s2500 + $0x18] sm:$0xff]
        %v2850 = vld [vmem:[%s2500 + $0x20] sm:$0x3]
        %v2851 = vld [vmem:[%s2500 + $0x28] sm:$0x3]
        %v2852 = vmul.f32 %v2846, %v1528
        %v2853 = vmul.f32 %v2847, %v1532
        %v2854 = vmul.f32 %v2848, %v1528
        %v2855 = vmul.f32 %v2849, %v1532
        %v2856 = vadd.f32 %v1602, %v2852
        %v2857 = vadd.f32 %v1606, %v2853
        %v2858 = vadd.f32 %v1602, %v2854
        %v2859 = vadd.f32 %v1606, %v2855
        %v2860 = vmul.f32 %v2846, %v1536
        %v2861 = vmul.f32 %v2847, %v1540
        %v2862 = vmul.f32 %v2848, %v1536
        %v2863 = vmul.f32 %v2849, %v1540
        %v2864 = vmul.f32 %v2850, %v1536
        %v2865 = vmul.f32 %v2851, %v1540
        %v2872 = vrot.slane %v2860, 1
        %v2873 = vrot.slane %v2862, 1
        %v2874 = vsel %vm1635, %v2872, %v2873
        %v2875 = vrot.slane %v2861, 1
        %v2876 = vrot.slane %v2863, 1
        %v2877 = vsel %vm1635, %v2875, %v2876
        %v2878 = vrot.slane %v2864, 1
        %v2879 = vsel %vm1635, %v2873, %v2878
        %v2880 = vrot.slane %v2865, 1
        %v2881 = vsel %vm1635, %v2876, %v2880
        %v2886 = vadd.f32 %v2856, %v2874
        %v2887 = vadd.f32 %v2857, %v2877
        %v2888 = vadd.f32 %v2858, %v2879
        %v2889 = vadd.f32 %v2859, %v2881
        %v2890 = vmul.f32 %v2846, %v1544
        %v2891 = vmul.f32 %v2847, %v1548
        %v2892 = vmul.f32 %v2848, %v1544
        %v2893 = vmul.f32 %v2849, %v1548
        %v2894 = vmul.f32 %v2850, %v1544
        %v2895 = vmul.f32 %v2851, %v1548
        %v2902 = vrot.slane %v2890, 2
        %v2903 = vrot.slane %v2892, 2
        %v2904 = vsel %vm1666, %v2902, %v2903
        %v2905 = vrot.slane %v2891, 2
        %v2906 = vrot.slane %v2893, 2
        %v2907 = vsel %vm1666, %v2905, %v2906
        %v2908 = vrot.slane %v2894, 2
        %v2909 = vsel %vm1666, %v2903, %v2908
        %v2910 = vrot.slane %v2895, 2
        %v2911 = vsel %vm1666, %v2906, %v2910
        %v2916 = vadd.f32 %v2886, %v2904
        %v2917 = vadd.f32 %v2887, %v2907
        %v2918 = vadd.f32 %v2888, %v2909
        %v2919 = vadd.f32 %v2889, %v2911
        %v2920 = vld [vmem:[%s2747] sm:$0xff]
        %v2921 = vld [vmem:[%s2747 + $0x8] sm:$0xff]
        %v2922 = vld [vmem:[%s2747 + $0x10] sm:$0xff]
        %v2923 = vld [vmem:[%s2747 + $0x18] sm:$0xff]
        %v2924 = vld [vmem:[%s2747 + $0x20] sm:$0x3]
        %v2925 = vld [vmem:[%s2747 + $0x28] sm:$0x3]
        %v2926 = vmul.f32 %v2920, %v1552
        %v2927 = vmul.f32 %v2921, %v1556
        %v2928 = vmul.f32 %v2922, %v1552
        %v2929 = vmul.f32 %v2923, %v1556
        %v2930 = vadd.f32 %v2916, %v2926
        %v2931 = vadd.f32 %v2917, %v2927
        %v2932 = vadd.f32 %v2918, %v2928
        %v2933 = vadd.f32 %v2919, %v2929
        %v2934 = vmul.f32 %v2920, %v1560
        %v2935 = vmul.f32 %v2921, %v1564
        %v2936 = vmul.f32 %v2922, %v1560
        %v2937 = vmul.f32 %v2923, %v1564
        %v2938 = vmul.f32 %v2924, %v1560
        %v2939 = vmul.f32 %v2925, %v1564
        %v2946 = vrot.slane %v2934, 1
        %v2947 = vrot.slane %v2936, 1
        %v2948 = vsel %vm1635, %v2946, %v2947
        %v2949 = vrot.slane %v2935, 1
        %v2950 = vrot.slane %v2937, 1
        %v2951 = vsel %vm1635, %v2949, %v2950
        %v2952 = vrot.slane %v2938, 1
        %v2953 = vsel %vm1635, %v2947, %v2952
        %v2954 = vrot.slane %v2939, 1
        %v2955 = vsel %vm1635, %v2950, %v2954
        %v2960 = vadd.f32 %v2930, %v2948
        %v2961 = vadd.f32 %v2931, %v2951
        %v2962 = vadd.f32 %v2932, %v2953
        %v2963 = vadd.f32 %v2933, %v2955
        %v2964 = vmul.f32 %v2920, %v1568
        %v2965 = vmul.f32 %v2921, %v1572
        %v2966 = vmul.f32 %v2922, %v1568
        %v2967 = vmul.f32 %v2923, %v1572
        %v2968 = vmul.f32 %v2924, %v1568
        %v2969 = vmul.f32 %v2925, %v1572
        %v2976 = vrot.slane %v2964, 2
        %v2977 = vrot.slane %v2966, 2
        %v2978 = vsel %vm1666, %v2976, %v2977
        %v2979 = vrot.slane %v2965, 2
        %v2980 = vrot.slane %v2967, 2
        %v2981 = vsel %vm1666, %v2979, %v2980
        %v2982 = vrot.slane %v2968, 2
        %v2983 = vsel %vm1666, %v2977, %v2982
        %v2984 = vrot.slane %v2969, 2
        %v2985 = vsel %vm1666, %v2980, %v2984
        %v2990 = vadd.f32 %v2960, %v2978
        %v2991 = vadd.f32 %v2961, %v2981
        %v2992 = vadd.f32 %v2962, %v2983
        %v2993 = vadd.f32 %v2963, %v2985
        %s2994 = scalar_lea.vmem [#allocation2], 336
        %v2995 = vld [vmem:[%s2994] sm:$0xff]
        %v2996 = vld [vmem:[%s2994 + $0x8] sm:$0xff]
        %v2997 = vld [vmem:[%s2994 + $0x10] sm:$0xff]
        %v2998 = vld [vmem:[%s2994 + $0x18] sm:$0xff]
        %v2999 = vld [vmem:[%s2994 + $0x20] sm:$0x3]
        %v3000 = vld [vmem:[%s2994 + $0x28] sm:$0x3]
        %v3001 = vmul.f32 %v2995, %v1576
        %v3002 = vmul.f32 %v2996, %v1580
        %v3003 = vmul.f32 %v2997, %v1576
        %v3004 = vmul.f32 %v2998, %v1580
        %v3005 = vadd.f32 %v2990, %v3001
        %v3006 = vadd.f32 %v2991, %v3002
        %v3007 = vadd.f32 %v2992, %v3003
        %v3008 = vadd.f32 %v2993, %v3004
        %v3009 = vmul.f32 %v2995, %v1584
        %v3010 = vmul.f32 %v2996, %v1588
        %v3011 = vmul.f32 %v2997, %v1584
        %v3012 = vmul.f32 %v2998, %v1588
        %v3013 = vmul.f32 %v2999, %v1584
        %v3014 = vmul.f32 %v3000, %v1588
        %v3021 = vrot.slane %v3009, 1
        %v3022 = vrot.slane %v3011, 1
        %v3023 = vsel %vm1635, %v3021, %v3022
        %v3024 = vrot.slane %v3010, 1
        %v3025 = vrot.slane %v3012, 1
        %v3026 = vsel %vm1635, %v3024, %v3025
        %v3027 = vrot.slane %v3013, 1
        %v3028 = vsel %vm1635, %v3022, %v3027
        %v3029 = vrot.slane %v3014, 1
        %v3030 = vsel %vm1635, %v3025, %v3029
        %v3035 = vadd.f32 %v3005, %v3023
        %v3036 = vadd.f32 %v3006, %v3026
        %v3037 = vadd.f32 %v3007, %v3028
        %v3038 = vadd.f32 %v3008, %v3030
        %v3039 = vmul.f32 %v2995, %v1592
        %v3040 = vmul.f32 %v2996, %v1596
        %v3041 = vmul.f32 %v2997, %v1592
        %v3042 = vmul.f32 %v2998, %v1596
        %v3043 = vmul.f32 %v2999, %v1592
        %v3044 = vmul.f32 %v3000, %v1596
        %v3051 = vrot.slane %v3039, 2
        %v3052 = vrot.slane %v3041, 2
        %v3053 = vsel %vm1666, %v3051, %v3052
        %v3054 = vrot.slane %v3040, 2
        %v3055 = vrot.slane %v3042, 2
        %v3056 = vsel %vm1666, %v3054, %v3055
        %v3057 = vrot.slane %v3043, 2
        %v3058 = vsel %vm1666, %v3052, %v3057
        %v3059 = vrot.slane %v3044, 2
        %v3060 = vsel %vm1666, %v3055, %v3059
        %v3065 = vadd.f32 %v3035, %v3053
        %v3066 = vadd.f32 %v3036, %v3056
        %v3067 = vadd.f32 %v3037, %v3058
        %v3068 = vadd.f32 %v3038, %v3060
        %v3069 = vadd.f32 %v3065, 3.0
        %v3070 = vadd.f32 %v3066, 3.0
        %v3071 = vadd.f32 %v3067, 3.0
        %v3072 = vadd.f32 %v3068, 3.0
        %v3073 = vmax.f32 %v3069, 0.0
        %v3074 = vmax.f32 %v3070, 0.0
        %v3075 = vmax.f32 %v3071, 0.0
        %v3076 = vmax.f32 %v3072, 0.0
        %v3077 = vmin.f32 %v3073, 6.0
        %v3078 = vmin.f32 %v3074, 6.0
        %v3079 = vmin.f32 %v3075, 6.0
        %v3080 = vmin.f32 %v3076, 6.0
        %v3081 = vmul.f32 %v3065, %v3077
        %v3082 = vmul.f32 %v3066, %v3078
        %v3083 = vmul.f32 %v3067, %v3079
        %v3084 = vmul.f32 %v3068, %v3080
        %v3085 = vmul.f32 %v3081, 0.16666667
        %v3086 = vmul.f32 %v3082, 0.16666667
        %v3087 = vmul.f32 %v3083, 0.16666667
        %v3088 = vmul.f32 %v3084, 0.16666667
        %3089 = vst [vmem:[#allocation3 + $0xa0] sm:$0xff] %v3085
        %3090 = vst [vmem:[#allocation3 + $0xa8] sm:$0xff] %v3086
        %3091 = vst [vmem:[#allocation3 + $0xb0] sm:$0xff] %v3087
        %3092 = vst [vmem:[#allocation3 + $0xb8] sm:$0xff] %v3088
        %v3093 = vld [vmem:[%s2747] sm:$0xff]
        %v3094 = vld [vmem:[%s2747 + $0x8] sm:$0xff]
        %v3095 = vld [vmem:[%s2747 + $0x10] sm:$0xff]
        %v3096 = vld [vmem:[%s2747 + $0x18] sm:$0xff]
        %v3097 = vld [vmem:[%s2747 + $0x20] sm:$0x3]
        %v3098 = vld [vmem:[%s2747 + $0x28] sm:$0x3]
        %v3099 = vmul.f32 %v3093, %v1528
        %v3100 = vmul.f32 %v3094, %v1532
        %v3101 = vmul.f32 %v3095, %v1528
        %v3102 = vmul.f32 %v3096, %v1532
        %v3103 = vadd.f32 %v1602, %v3099
        %v3104 = vadd.f32 %v1606, %v3100
        %v3105 = vadd.f32 %v1602, %v3101
        %v3106 = vadd.f32 %v1606, %v3102
        %v3107 = vmul.f32 %v3093, %v1536
        %v3108 = vmul.f32 %v3094, %v1540
        %v3109 = vmul.f32 %v3095, %v1536
        %v3110 = vmul.f32 %v3096, %v1540
        %v3111 = vmul.f32 %v3097, %v1536
        %v3112 = vmul.f32 %v3098, %v1540
        %v3119 = vrot.slane %v3107, 1
        %v3120 = vrot.slane %v3109, 1
        %v3121 = vsel %vm1635, %v3119, %v3120
        %v3122 = vrot.slane %v3108, 1
        %v3123 = vrot.slane %v3110, 1
        %v3124 = vsel %vm1635, %v3122, %v3123
        %v3125 = vrot.slane %v3111, 1
        %v3126 = vsel %vm1635, %v3120, %v3125
        %v3127 = vrot.slane %v3112, 1
        %v3128 = vsel %vm1635, %v3123, %v3127
        %v3133 = vadd.f32 %v3103, %v3121
        %v3134 = vadd.f32 %v3104, %v3124
        %v3135 = vadd.f32 %v3105, %v3126
        %v3136 = vadd.f32 %v3106, %v3128
        %v3137 = vmul.f32 %v3093, %v1544
        %v3138 = vmul.f32 %v3094, %v1548
        %v3139 = vmul.f32 %v3095, %v1544
        %v3140 = vmul.f32 %v3096, %v1548
        %v3141 = vmul.f32 %v3097, %v1544
        %v3142 = vmul.f32 %v3098, %v1548
        %v3149 = vrot.slane %v3137, 2
        %v3150 = vrot.slane %v3139, 2
        %v3151 = vsel %vm1666, %v3149, %v3150
        %v3152 = vrot.slane %v3138, 2
        %v3153 = vrot.slane %v3140, 2
        %v3154 = vsel %vm1666, %v3152, %v3153
        %v3155 = vrot.slane %v3141, 2
        %v3156 = vsel %vm1666, %v3150, %v3155
        %v3157 = vrot.slane %v3142, 2
        %v3158 = vsel %vm1666, %v3153, %v3157
        %v3163 = vadd.f32 %v3133, %v3151
        %v3164 = vadd.f32 %v3134, %v3154
        %v3165 = vadd.f32 %v3135, %v3156
        %v3166 = vadd.f32 %v3136, %v3158
        %v3167 = vld [vmem:[%s2994] sm:$0xff]
        %v3168 = vld [vmem:[%s2994 + $0x8] sm:$0xff]
        %v3169 = vld [vmem:[%s2994 + $0x10] sm:$0xff]
        %v3170 = vld [vmem:[%s2994 + $0x18] sm:$0xff]
        %v3171 = vld [vmem:[%s2994 + $0x20] sm:$0x3]
        %v3172 = vld [vmem:[%s2994 + $0x28] sm:$0x3]
        %v3173 = vmul.f32 %v3167, %v1552
        %v3174 = vmul.f32 %v3168, %v1556
        %v3175 = vmul.f32 %v3169, %v1552
        %v3176 = vmul.f32 %v3170, %v1556
        %v3177 = vadd.f32 %v3163, %v3173
        %v3178 = vadd.f32 %v3164, %v3174
        %v3179 = vadd.f32 %v3165, %v3175
        %v3180 = vadd.f32 %v3166, %v3176
        %v3181 = vmul.f32 %v3167, %v1560
        %v3182 = vmul.f32 %v3168, %v1564
        %v3183 = vmul.f32 %v3169, %v1560
        %v3184 = vmul.f32 %v3170, %v1564
        %v3185 = vmul.f32 %v3171, %v1560
        %v3186 = vmul.f32 %v3172, %v1564
        %v3193 = vrot.slane %v3181, 1
        %v3194 = vrot.slane %v3183, 1
        %v3195 = vsel %vm1635, %v3193, %v3194
        %v3196 = vrot.slane %v3182, 1
        %v3197 = vrot.slane %v3184, 1
        %v3198 = vsel %vm1635, %v3196, %v3197
        %v3199 = vrot.slane %v3185, 1
        %v3200 = vsel %vm1635, %v3194, %v3199
        %v3201 = vrot.slane %v3186, 1
        %v3202 = vsel %vm1635, %v3197, %v3201
        %v3207 = vadd.f32 %v3177, %v3195
        %v3208 = vadd.f32 %v3178, %v3198
        %v3209 = vadd.f32 %v3179, %v3200
        %v3210 = vadd.f32 %v3180, %v3202
        %v3211 = vmul.f32 %v3167, %v1568
        %v3212 = vmul.f32 %v3168, %v1572
        %v3213 = vmul.f32 %v3169, %v1568
        %v3214 = vmul.f32 %v3170, %v1572
        %v3215 = vmul.f32 %v3171, %v1568
        %v3216 = vmul.f32 %v3172, %v1572
        %v3223 = vrot.slane %v3211, 2
        %v3224 = vrot.slane %v3213, 2
        %v3225 = vsel %vm1666, %v3223, %v3224
        %v3226 = vrot.slane %v3212, 2
        %v3227 = vrot.slane %v3214, 2
        %v3228 = vsel %vm1666, %v3226, %v3227
        %v3229 = vrot.slane %v3215, 2
        %v3230 = vsel %vm1666, %v3224, %v3229
        %v3231 = vrot.slane %v3216, 2
        %v3232 = vsel %vm1666, %v3227, %v3231
        %v3237 = vadd.f32 %v3207, %v3225
        %v3238 = vadd.f32 %v3208, %v3228
        %v3239 = vadd.f32 %v3209, %v3230
        %v3240 = vadd.f32 %v3210, %v3232
        %s3241 = scalar_lea.vmem [#allocation2], 384
        %v3242 = vld [vmem:[%s3241] sm:$0xff]
        %v3243 = vld [vmem:[%s3241 + $0x8] sm:$0xff]
        %v3244 = vld [vmem:[%s3241 + $0x10] sm:$0xff]
        %v3245 = vld [vmem:[%s3241 + $0x18] sm:$0xff]
        %v3246 = vld [vmem:[%s3241 + $0x20] sm:$0x3]
        %v3247 = vld [vmem:[%s3241 + $0x28] sm:$0x3]
        %v3248 = vmul.f32 %v3242, %v1576
        %v3249 = vmul.f32 %v3243, %v1580
        %v3250 = vmul.f32 %v3244, %v1576
        %v3251 = vmul.f32 %v3245, %v1580
        %v3252 = vadd.f32 %v3237, %v3248
        %v3253 = vadd.f32 %v3238, %v3249
        %v3254 = vadd.f32 %v3239, %v3250
        %v3255 = vadd.f32 %v3240, %v3251
        %v3256 = vmul.f32 %v3242, %v1584
        %v3257 = vmul.f32 %v3243, %v1588
        %v3258 = vmul.f32 %v3244, %v1584
        %v3259 = vmul.f32 %v3245, %v1588
        %v3260 = vmul.f32 %v3246, %v1584
        %v3261 = vmul.f32 %v3247, %v1588
        %v3268 = vrot.slane %v3256, 1
        %v3269 = vrot.slane %v3258, 1
        %v3270 = vsel %vm1635, %v3268, %v3269
        %v3271 = vrot.slane %v3257, 1
        %v3272 = vrot.slane %v3259, 1
        %v3273 = vsel %vm1635, %v3271, %v3272
        %v3274 = vrot.slane %v3260, 1
        %v3275 = vsel %vm1635, %v3269, %v3274
        %v3276 = vrot.slane %v3261, 1
        %v3277 = vsel %vm1635, %v3272, %v3276
        %v3282 = vadd.f32 %v3252, %v3270
        %v3283 = vadd.f32 %v3253, %v3273
        %v3284 = vadd.f32 %v3254, %v3275
        %v3285 = vadd.f32 %v3255, %v3277
        %v3286 = vmul.f32 %v3242, %v1592
        %v3287 = vmul.f32 %v3243, %v1596
        %v3288 = vmul.f32 %v3244, %v1592
        %v3289 = vmul.f32 %v3245, %v1596
        %v3290 = vmul.f32 %v3246, %v1592
        %v3291 = vmul.f32 %v3247, %v1596
        %v3298 = vrot.slane %v3286, 2
        %v3299 = vrot.slane %v3288, 2
        %v3300 = vsel %vm1666, %v3298, %v3299
        %v3301 = vrot.slane %v3287, 2
        %v3302 = vrot.slane %v3289, 2
        %v3303 = vsel %vm1666, %v3301, %v3302
        %v3304 = vrot.slane %v3290, 2
        %v3305 = vsel %vm1666, %v3299, %v3304
        %v3306 = vrot.slane %v3291, 2
        %v3307 = vsel %vm1666, %v3302, %v3306
        %v3312 = vadd.f32 %v3282, %v3300
        %v3313 = vadd.f32 %v3283, %v3303
        %v3314 = vadd.f32 %v3284, %v3305
        %v3315 = vadd.f32 %v3285, %v3307
        %v3316 = vadd.f32 %v3312, 3.0
        %v3317 = vadd.f32 %v3313, 3.0
        %v3318 = vadd.f32 %v3314, 3.0
        %v3319 = vadd.f32 %v3315, 3.0
        %v3320 = vmax.f32 %v3316, 0.0
        %v3321 = vmax.f32 %v3317, 0.0
        %v3322 = vmax.f32 %v3318, 0.0
        %v3323 = vmax.f32 %v3319, 0.0
        %v3324 = vmin.f32 %v3320, 6.0
        %v3325 = vmin.f32 %v3321, 6.0
        %v3326 = vmin.f32 %v3322, 6.0
        %v3327 = vmin.f32 %v3323, 6.0
        %v3328 = vmul.f32 %v3312, %v3324
        %v3329 = vmul.f32 %v3313, %v3325
        %v3330 = vmul.f32 %v3314, %v3326
        %v3331 = vmul.f32 %v3315, %v3327
        %v3332 = vmul.f32 %v3328, 0.16666667
        %v3333 = vmul.f32 %v3329, 0.16666667
        %v3334 = vmul.f32 %v3330, 0.16666667
        %v3335 = vmul.f32 %v3331, 0.16666667
        %3336 = vst [vmem:[#allocation3 + $0xc0] sm:$0xff] %v3332
        %3337 = vst [vmem:[#allocation3 + $0xc8] sm:$0xff] %v3333
        %3338 = vst [vmem:[#allocation3 + $0xd0] sm:$0xff] %v3334
        %3339 = vst [vmem:[#allocation3 + $0xd8] sm:$0xff] %v3335
        %v3340 = vld [vmem:[%s2994] sm:$0xff]
        %v3341 = vld [vmem:[%s2994 + $0x8] sm:$0xff]
        %v3342 = vld [vmem:[%s2994 + $0x10] sm:$0xff]
        %v3343 = vld [vmem:[%s2994 + $0x18] sm:$0xff]
        %v3344 = vld [vmem:[%s2994 + $0x20] sm:$0x3]
        %v3345 = vld [vmem:[%s2994 + $0x28] sm:$0x3]
        %v3346 = vmul.f32 %v3340, %v1528
        %v3347 = vmul.f32 %v3341, %v1532
        %v3348 = vmul.f32 %v3342, %v1528
        %v3349 = vmul.f32 %v3343, %v1532
        %v3350 = vadd.f32 %v1602, %v3346
        %v3351 = vadd.f32 %v1606, %v3347
        %v3352 = vadd.f32 %v1602, %v3348
        %v3353 = vadd.f32 %v1606, %v3349
        %v3354 = vmul.f32 %v3340, %v1536
        %v3355 = vmul.f32 %v3341, %v1540
        %v3356 = vmul.f32 %v3342, %v1536
        %v3357 = vmul.f32 %v3343, %v1540
        %v3358 = vmul.f32 %v3344, %v1536
        %v3359 = vmul.f32 %v3345, %v1540
        %v3366 = vrot.slane %v3354, 1
        %v3367 = vrot.slane %v3356, 1
        %v3368 = vsel %vm1635, %v3366, %v3367
        %v3369 = vrot.slane %v3355, 1
        %v3370 = vrot.slane %v3357, 1
        %v3371 = vsel %vm1635, %v3369, %v3370
        %v3372 = vrot.slane %v3358, 1
        %v3373 = vsel %vm1635, %v3367, %v3372
        %v3374 = vrot.slane %v3359, 1
        %v3375 = vsel %vm1635, %v3370, %v3374
        %v3380 = vadd.f32 %v3350, %v3368
        %v3381 = vadd.f32 %v3351, %v3371
        %v3382 = vadd.f32 %v3352, %v3373
        %v3383 = vadd.f32 %v3353, %v3375
        %v3384 = vmul.f32 %v3340, %v1544
        %v3385 = vmul.f32 %v3341, %v1548
        %v3386 = vmul.f32 %v3342, %v1544
        %v3387 = vmul.f32 %v3343, %v1548
        %v3388 = vmul.f32 %v3344, %v1544
        %v3389 = vmul.f32 %v3345, %v1548
        %v3396 = vrot.slane %v3384, 2
        %v3397 = vrot.slane %v3386, 2
        %v3398 = vsel %vm1666, %v3396, %v3397
        %v3399 = vrot.slane %v3385, 2
        %v3400 = vrot.slane %v3387, 2
        %v3401 = vsel %vm1666, %v3399, %v3400
        %v3402 = vrot.slane %v3388, 2
        %v3403 = vsel %vm1666, %v3397, %v3402
        %v3404 = vrot.slane %v3389, 2
        %v3405 = vsel %vm1666, %v3400, %v3404
        %v3410 = vadd.f32 %v3380, %v3398
        %v3411 = vadd.f32 %v3381, %v3401
        %v3412 = vadd.f32 %v3382, %v3403
        %v3413 = vadd.f32 %v3383, %v3405
        %v3414 = vld [vmem:[%s3241] sm:$0xff]
        %v3415 = vld [vmem:[%s3241 + $0x8] sm:$0xff]
        %v3416 = vld [vmem:[%s3241 + $0x10] sm:$0xff]
        %v3417 = vld [vmem:[%s3241 + $0x18] sm:$0xff]
        %v3418 = vld [vmem:[%s3241 + $0x20] sm:$0x3]
        %v3419 = vld [vmem:[%s3241 + $0x28] sm:$0x3]
        %v3420 = vmul.f32 %v3414, %v1552
        %v3421 = vmul.f32 %v3415, %v1556
        %v3422 = vmul.f32 %v3416, %v1552
        %v3423 = vmul.f32 %v3417, %v1556
        %v3424 = vadd.f32 %v3410, %v3420
        %v3425 = vadd.f32 %v3411, %v3421
        %v3426 = vadd.f32 %v3412, %v3422
        %v3427 = vadd.f32 %v3413, %v3423
        %v3428 = vmul.f32 %v3414, %v1560
        %v3429 = vmul.f32 %v3415, %v1564
        %v3430 = vmul.f32 %v3416, %v1560
        %v3431 = vmul.f32 %v3417, %v1564
        %v3432 = vmul.f32 %v3418, %v1560
        %v3433 = vmul.f32 %v3419, %v1564
        %v3440 = vrot.slane %v3428, 1
        %v3441 = vrot.slane %v3430, 1
        %v3442 = vsel %vm1635, %v3440, %v3441
        %v3443 = vrot.slane %v3429, 1
        %v3444 = vrot.slane %v3431, 1
        %v3445 = vsel %vm1635, %v3443, %v3444
        %v3446 = vrot.slane %v3432, 1
        %v3447 = vsel %vm1635, %v3441, %v3446
        %v3448 = vrot.slane %v3433, 1
        %v3449 = vsel %vm1635, %v3444, %v3448
        %v3454 = vadd.f32 %v3424, %v3442
        %v3455 = vadd.f32 %v3425, %v3445
        %v3456 = vadd.f32 %v3426, %v3447
        %v3457 = vadd.f32 %v3427, %v3449
        %v3458 = vmul.f32 %v3414, %v1568
        %v3459 = vmul.f32 %v3415, %v1572
        %v3460 = vmul.f32 %v3416, %v1568
        %v3461 = vmul.f32 %v3417, %v1572
        %v3462 = vmul.f32 %v3418, %v1568
        %v3463 = vmul.f32 %v3419, %v1572
        %v3470 = vrot.slane %v3458, 2
        %v3471 = vrot.slane %v3460, 2
        %v3472 = vsel %vm1666, %v3470, %v3471
        %v3473 = vrot.slane %v3459, 2
        %v3474 = vrot.slane %v3461, 2
        %v3475 = vsel %vm1666, %v3473, %v3474
        %v3476 = vrot.slane %v3462, 2
        %v3477 = vsel %vm1666, %v3471, %v3476
        %v3478 = vrot.slane %v3463, 2
        %v3479 = vsel %vm1666, %v3474, %v3478
        %v3484 = vadd.f32 %v3454, %v3472
        %v3485 = vadd.f32 %v3455, %v3475
        %v3486 = vadd.f32 %v3456, %v3477
        %v3487 = vadd.f32 %v3457, %v3479
        %s3488 = scalar_lea.vmem [#allocation2], 432
        %v3489 = vld [vmem:[%s3488] sm:$0xff]
        %v3490 = vld [vmem:[%s3488 + $0x8] sm:$0xff]
        %v3491 = vld [vmem:[%s3488 + $0x10] sm:$0xff]
        %v3492 = vld [vmem:[%s3488 + $0x18] sm:$0xff]
        %v3493 = vld [vmem:[%s3488 + $0x20] sm:$0x3]
        %v3494 = vld [vmem:[%s3488 + $0x28] sm:$0x3]
        %v3495 = vmul.f32 %v3489, %v1576
        %v3496 = vmul.f32 %v3490, %v1580
        %v3497 = vmul.f32 %v3491, %v1576
        %v3498 = vmul.f32 %v3492, %v1580
        %v3499 = vadd.f32 %v3484, %v3495
        %v3500 = vadd.f32 %v3485, %v3496
        %v3501 = vadd.f32 %v3486, %v3497
        %v3502 = vadd.f32 %v3487, %v3498
        %v3503 = vmul.f32 %v3489, %v1584
        %v3504 = vmul.f32 %v3490, %v1588
        %v3505 = vmul.f32 %v3491, %v1584
        %v3506 = vmul.f32 %v3492, %v1588
        %v3507 = vmul.f32 %v3493, %v1584
        %v3508 = vmul.f32 %v3494, %v1588
        %v3515 = vrot.slane %v3503, 1
        %v3516 = vrot.slane %v3505, 1
        %v3517 = vsel %vm1635, %v3515, %v3516
        %v3518 = vrot.slane %v3504, 1
        %v3519 = vrot.slane %v3506, 1
        %v3520 = vsel %vm1635, %v3518, %v3519
        %v3521 = vrot.slane %v3507, 1
        %v3522 = vsel %vm1635, %v3516, %v3521
        %v3523 = vrot.slane %v3508, 1
        %v3524 = vsel %vm1635, %v3519, %v3523
        %v3529 = vadd.f32 %v3499, %v3517
        %v3530 = vadd.f32 %v3500, %v3520
        %v3531 = vadd.f32 %v3501, %v3522
        %v3532 = vadd.f32 %v3502, %v3524
        %v3533 = vmul.f32 %v3489, %v1592
        %v3534 = vmul.f32 %v3490, %v1596
        %v3535 = vmul.f32 %v3491, %v1592
        %v3536 = vmul.f32 %v3492, %v1596
        %v3537 = vmul.f32 %v3493, %v1592
        %v3538 = vmul.f32 %v3494, %v1596
        %v3545 = vrot.slane %v3533, 2
        %v3546 = vrot.slane %v3535, 2
        %v3547 = vsel %vm1666, %v3545, %v3546
        %v3548 = vrot.slane %v3534, 2
        %v3549 = vrot.slane %v3536, 2
        %v3550 = vsel %vm1666, %v3548, %v3549
        %v3551 = vrot.slane %v3537, 2
        %v3552 = vsel %vm1666, %v3546, %v3551
        %v3553 = vrot.slane %v3538, 2
        %v3554 = vsel %vm1666, %v3549, %v3553
        %v3559 = vadd.f32 %v3529, %v3547
        %v3560 = vadd.f32 %v3530, %v3550
        %v3561 = vadd.f32 %v3531, %v3552
        %v3562 = vadd.f32 %v3532, %v3554
        %v3563 = vadd.f32 %v3559, 3.0
        %v3564 = vadd.f32 %v3560, 3.0
        %v3565 = vadd.f32 %v3561, 3.0
        %v3566 = vadd.f32 %v3562, 3.0
        %v3567 = vmax.f32 %v3563, 0.0
        %v3568 = vmax.f32 %v3564, 0.0
        %v3569 = vmax.f32 %v3565, 0.0
        %v3570 = vmax.f32 %v3566, 0.0
        %v3571 = vmin.f32 %v3567, 6.0
        %v3572 = vmin.f32 %v3568, 6.0
        %v3573 = vmin.f32 %v3569, 6.0
        %v3574 = vmin.f32 %v3570, 6.0
        %v3575 = vmul.f32 %v3559, %v3571
        %v3576 = vmul.f32 %v3560, %v3572
        %v3577 = vmul.f32 %v3561, %v3573
        %v3578 = vmul.f32 %v3562, %v3574
        %v3579 = vmul.f32 %v3575, 0.16666667
        %v3580 = vmul.f32 %v3576, 0.16666667
        %v3581 = vmul.f32 %v3577, 0.16666667
        %v3582 = vmul.f32 %v3578, 0.16666667
        %3583 = vst [vmem:[#allocation3 + $0xe0] sm:$0xff] %v3579
        %3584 = vst [vmem:[#allocation3 + $0xe8] sm:$0xff] %v3580
        %3585 = vst [vmem:[#allocation3 + $0xf0] sm:$0xff] %v3581
        %3586 = vst [vmem:[#allocation3 + $0xf8] sm:$0xff] %v3582
        %v3587 = vld [vmem:[%s3241] sm:$0xff]
        %v3588 = vld [vmem:[%s3241 + $0x8] sm:$0xff]
        %v3589 = vld [vmem:[%s3241 + $0x10] sm:$0xff]
        %v3590 = vld [vmem:[%s3241 + $0x18] sm:$0xff]
        %v3591 = vld [vmem:[%s3241 + $0x20] sm:$0x3]
        %v3592 = vld [vmem:[%s3241 + $0x28] sm:$0x3]
        %v3593 = vmul.f32 %v3587, %v1528
        %v3594 = vmul.f32 %v3588, %v1532
        %v3595 = vmul.f32 %v3589, %v1528
        %v3596 = vmul.f32 %v3590, %v1532
        %v3597 = vadd.f32 %v1602, %v3593
        %v3598 = vadd.f32 %v1606, %v3594
        %v3599 = vadd.f32 %v1602, %v3595
        %v3600 = vadd.f32 %v1606, %v3596
        %v3601 = vmul.f32 %v3587, %v1536
        %v3602 = vmul.f32 %v3588, %v1540
        %v3603 = vmul.f32 %v3589, %v1536
        %v3604 = vmul.f32 %v3590, %v1540
        %v3605 = vmul.f32 %v3591, %v1536
        %v3606 = vmul.f32 %v3592, %v1540
        %v3613 = vrot.slane %v3601, 1
        %v3614 = vrot.slane %v3603, 1
        %v3615 = vsel %vm1635, %v3613, %v3614
        %v3616 = vrot.slane %v3602, 1
        %v3617 = vrot.slane %v3604, 1
        %v3618 = vsel %vm1635, %v3616, %v3617
        %v3619 = vrot.slane %v3605, 1
        %v3620 = vsel %vm1635, %v3614, %v3619
        %v3621 = vrot.slane %v3606, 1
        %v3622 = vsel %vm1635, %v3617, %v3621
        %v3627 = vadd.f32 %v3597, %v3615
        %v3628 = vadd.f32 %v3598, %v3618
        %v3629 = vadd.f32 %v3599, %v3620
        %v3630 = vadd.f32 %v3600, %v3622
        %v3631 = vmul.f32 %v3587, %v1544
        %v3632 = vmul.f32 %v3588, %v1548
        %v3633 = vmul.f32 %v3589, %v1544
        %v3634 = vmul.f32 %v3590, %v1548
        %v3635 = vmul.f32 %v3591, %v1544
        %v3636 = vmul.f32 %v3592, %v1548
        %v3643 = vrot.slane %v3631, 2
        %v3644 = vrot.slane %v3633, 2
        %v3645 = vsel %vm1666, %v3643, %v3644
        %v3646 = vrot.slane %v3632, 2
        %v3647 = vrot.slane %v3634, 2
        %v3648 = vsel %vm1666, %v3646, %v3647
        %v3649 = vrot.slane %v3635, 2
        %v3650 = vsel %vm1666, %v3644, %v3649
        %v3651 = vrot.slane %v3636, 2
        %v3652 = vsel %vm1666, %v3647, %v3651
        %v3657 = vadd.f32 %v3627, %v3645
        %v3658 = vadd.f32 %v3628, %v3648
        %v3659 = vadd.f32 %v3629, %v3650
        %v3660 = vadd.f32 %v3630, %v3652
        %v3661 = vld [vmem:[%s3488] sm:$0xff]
        %v3662 = vld [vmem:[%s3488 + $0x8] sm:$0xff]
        %v3663 = vld [vmem:[%s3488 + $0x10] sm:$0xff]
        %v3664 = vld [vmem:[%s3488 + $0x18] sm:$0xff]
        %v3665 = vld [vmem:[%s3488 + $0x20] sm:$0x3]
        %v3666 = vld [vmem:[%s3488 + $0x28] sm:$0x3]
        %v3667 = vmul.f32 %v3661, %v1552
        %v3668 = vmul.f32 %v3662, %v1556
        %v3669 = vmul.f32 %v3663, %v1552
        %v3670 = vmul.f32 %v3664, %v1556
        %v3671 = vadd.f32 %v3657, %v3667
        %v3672 = vadd.f32 %v3658, %v3668
        %v3673 = vadd.f32 %v3659, %v3669
        %v3674 = vadd.f32 %v3660, %v3670
        %v3675 = vmul.f32 %v3661, %v1560
        %v3676 = vmul.f32 %v3662, %v1564
        %v3677 = vmul.f32 %v3663, %v1560
        %v3678 = vmul.f32 %v3664, %v1564
        %v3679 = vmul.f32 %v3665, %v1560
        %v3680 = vmul.f32 %v3666, %v1564
        %v3687 = vrot.slane %v3675, 1
        %v3688 = vrot.slane %v3677, 1
        %v3689 = vsel %vm1635, %v3687, %v3688
        %v3690 = vrot.slane %v3676, 1
        %v3691 = vrot.slane %v3678, 1
        %v3692 = vsel %vm1635, %v3690, %v3691
        %v3693 = vrot.slane %v3679, 1
        %v3694 = vsel %vm1635, %v3688, %v3693
        %v3695 = vrot.slane %v3680, 1
        %v3696 = vsel %vm1635, %v3691, %v3695
        %v3701 = vadd.f32 %v3671, %v3689
        %v3702 = vadd.f32 %v3672, %v3692
        %v3703 = vadd.f32 %v3673, %v3694
        %v3704 = vadd.f32 %v3674, %v3696
        %v3705 = vmul.f32 %v3661, %v1568
        %v3706 = vmul.f32 %v3662, %v1572
        %v3707 = vmul.f32 %v3663, %v1568
        %v3708 = vmul.f32 %v3664, %v1572
        %v3709 = vmul.f32 %v3665, %v1568
        %v3710 = vmul.f32 %v3666, %v1572
        %v3717 = vrot.slane %v3705, 2
        %v3718 = vrot.slane %v3707, 2
        %v3719 = vsel %vm1666, %v3717, %v3718
        %v3720 = vrot.slane %v3706, 2
        %v3721 = vrot.slane %v3708, 2
        %v3722 = vsel %vm1666, %v3720, %v3721
        %v3723 = vrot.slane %v3709, 2
        %v3724 = vsel %vm1666, %v3718, %v3723
        %v3725 = vrot.slane %v3710, 2
        %v3726 = vsel %vm1666, %v3721, %v3725
        %v3731 = vadd.f32 %v3701, %v3719
        %v3732 = vadd.f32 %v3702, %v3722
        %v3733 = vadd.f32 %v3703, %v3724
        %v3734 = vadd.f32 %v3704, %v3726
        %s3735 = scalar_lea.vmem [#allocation2], 480
        %v3736 = vld [vmem:[%s3735] sm:$0xff]
        %v3737 = vld [vmem:[%s3735 + $0x8] sm:$0xff]
        %v3738 = vld [vmem:[%s3735 + $0x10] sm:$0xff]
        %v3739 = vld [vmem:[%s3735 + $0x18] sm:$0xff]
        %v3740 = vld [vmem:[%s3735 + $0x20] sm:$0x3]
        %v3741 = vld [vmem:[%s3735 + $0x28] sm:$0x3]
        %v3742 = vmul.f32 %v3736, %v1576
        %v3743 = vmul.f32 %v3737, %v1580
        %v3744 = vmul.f32 %v3738, %v1576
        %v3745 = vmul.f32 %v3739, %v1580
        %v3746 = vadd.f32 %v3731, %v3742
        %v3747 = vadd.f32 %v3732, %v3743
        %v3748 = vadd.f32 %v3733, %v3744
        %v3749 = vadd.f32 %v3734, %v3745
        %v3750 = vmul.f32 %v3736, %v1584
        %v3751 = vmul.f32 %v3737, %v1588
        %v3752 = vmul.f32 %v3738, %v1584
        %v3753 = vmul.f32 %v3739, %v1588
        %v3754 = vmul.f32 %v3740, %v1584
        %v3755 = vmul.f32 %v3741, %v1588
        %v3762 = vrot.slane %v3750, 1
        %v3763 = vrot.slane %v3752, 1
        %v3764 = vsel %vm1635, %v3762, %v3763
        %v3765 = vrot.slane %v3751, 1
        %v3766 = vrot.slane %v3753, 1
        %v3767 = vsel %vm1635, %v3765, %v3766
        %v3768 = vrot.slane %v3754, 1
        %v3769 = vsel %vm1635, %v3763, %v3768
        %v3770 = vrot.slane %v3755, 1
        %v3771 = vsel %vm1635, %v3766, %v3770
        %v3776 = vadd.f32 %v3746, %v3764
        %v3777 = vadd.f32 %v3747, %v3767
        %v3778 = vadd.f32 %v3748, %v3769
        %v3779 = vadd.f32 %v3749, %v3771
        %v3780 = vmul.f32 %v3736, %v1592
        %v3781 = vmul.f32 %v3737, %v1596
        %v3782 = vmul.f32 %v3738, %v1592
        %v3783 = vmul.f32 %v3739, %v1596
        %v3784 = vmul.f32 %v3740, %v1592
        %v3785 = vmul.f32 %v3741, %v1596
        %v3792 = vrot.slane %v3780, 2
        %v3793 = vrot.slane %v3782, 2
        %v3794 = vsel %vm1666, %v3792, %v3793
        %v3795 = vrot.slane %v3781, 2
        %v3796 = vrot.slane %v3783, 2
        %v3797 = vsel %vm1666, %v3795, %v3796
        %v3798 = vrot.slane %v3784, 2
        %v3799 = vsel %vm1666, %v3793, %v3798
        %v3800 = vrot.slane %v3785, 2
        %v3801 = vsel %vm1666, %v3796, %v3800
        %v3806 = vadd.f32 %v3776, %v3794
        %v3807 = vadd.f32 %v3777, %v3797
        %v3808 = vadd.f32 %v3778, %v3799
        %v3809 = vadd.f32 %v3779, %v3801
        %v3810 = vadd.f32 %v3806, 3.0
        %v3811 = vadd.f32 %v3807, 3.0
        %v3812 = vadd.f32 %v3808, 3.0
        %v3813 = vadd.f32 %v3809, 3.0
        %v3814 = vmax.f32 %v3810, 0.0
        %v3815 = vmax.f32 %v3811, 0.0
        %v3816 = vmax.f32 %v3812, 0.0
        %v3817 = vmax.f32 %v3813, 0.0
        %v3818 = vmin.f32 %v3814, 6.0
        %v3819 = vmin.f32 %v3815, 6.0
        %v3820 = vmin.f32 %v3816, 6.0
        %v3821 = vmin.f32 %v3817, 6.0
        %v3822 = vmul.f32 %v3806, %v3818
        %v3823 = vmul.f32 %v3807, %v3819
        %v3824 = vmul.f32 %v3808, %v3820
        %v3825 = vmul.f32 %v3809, %v3821
        %v3826 = vmul.f32 %v3822, 0.16666667
        %v3827 = vmul.f32 %v3823, 0.16666667
        %v3828 = vmul.f32 %v3824, 0.16666667
        %v3829 = vmul.f32 %v3825, 0.16666667
        %3830 = vst [vmem:[#allocation3 + $0x100] sm:$0xff] %v3826
        %3831 = vst [vmem:[#allocation3 + $0x108] sm:$0xff] %v3827
        %3832 = vst [vmem:[#allocation3 + $0x110] sm:$0xff] %v3828
        %3833 = vst [vmem:[#allocation3 + $0x118] sm:$0xff] %v3829
        %v3834 = vld [vmem:[%s3488] sm:$0xff]
        %v3835 = vld [vmem:[%s3488 + $0x8] sm:$0xff]
        %v3836 = vld [vmem:[%s3488 + $0x10] sm:$0xff]
        %v3837 = vld [vmem:[%s3488 + $0x18] sm:$0xff]
        %v3838 = vld [vmem:[%s3488 + $0x20] sm:$0x3]
        %v3839 = vld [vmem:[%s3488 + $0x28] sm:$0x3]
        %v3840 = vmul.f32 %v3834, %v1528
        %v3841 = vmul.f32 %v3835, %v1532
        %v3842 = vmul.f32 %v3836, %v1528
        %v3843 = vmul.f32 %v3837, %v1532
        %v3844 = vadd.f32 %v1602, %v3840
        %v3845 = vadd.f32 %v1606, %v3841
        %v3846 = vadd.f32 %v1602, %v3842
        %v3847 = vadd.f32 %v1606, %v3843
        %v3848 = vmul.f32 %v3834, %v1536
        %v3849 = vmul.f32 %v3835, %v1540
        %v3850 = vmul.f32 %v3836, %v1536
        %v3851 = vmul.f32 %v3837, %v1540
        %v3852 = vmul.f32 %v3838, %v1536
        %v3853 = vmul.f32 %v3839, %v1540
        %v3860 = vrot.slane %v3848, 1
        %v3861 = vrot.slane %v3850, 1
        %v3862 = vsel %vm1635, %v3860, %v3861
        %v3863 = vrot.slane %v3849, 1
        %v3864 = vrot.slane %v3851, 1
        %v3865 = vsel %vm1635, %v3863, %v3864
        %v3866 = vrot.slane %v3852, 1
        %v3867 = vsel %vm1635, %v3861, %v3866
        %v3868 = vrot.slane %v3853, 1
        %v3869 = vsel %vm1635, %v3864, %v3868
        %v3874 = vadd.f32 %v3844, %v3862
        %v3875 = vadd.f32 %v3845, %v3865
        %v3876 = vadd.f32 %v3846, %v3867
        %v3877 = vadd.f32 %v3847, %v3869
        %v3878 = vmul.f32 %v3834, %v1544
        %v3879 = vmul.f32 %v3835, %v1548
        %v3880 = vmul.f32 %v3836, %v1544
        %v3881 = vmul.f32 %v3837, %v1548
        %v3882 = vmul.f32 %v3838, %v1544
        %v3883 = vmul.f32 %v3839, %v1548
        %v3890 = vrot.slane %v3878, 2
        %v3891 = vrot.slane %v3880, 2
        %v3892 = vsel %vm1666, %v3890, %v3891
        %v3893 = vrot.slane %v3879, 2
        %v3894 = vrot.slane %v3881, 2
        %v3895 = vsel %vm1666, %v3893, %v3894
        %v3896 = vrot.slane %v3882, 2
        %v3897 = vsel %vm1666, %v3891, %v3896
        %v3898 = vrot.slane %v3883, 2
        %v3899 = vsel %vm1666, %v3894, %v3898
        %v3904 = vadd.f32 %v3874, %v3892
        %v3905 = vadd.f32 %v3875, %v3895
        %v3906 = vadd.f32 %v3876, %v3897
        %v3907 = vadd.f32 %v3877, %v3899
        %v3908 = vld [vmem:[%s3735] sm:$0xff]
        %v3909 = vld [vmem:[%s3735 + $0x8] sm:$0xff]
        %v3910 = vld [vmem:[%s3735 + $0x10] sm:$0xff]
        %v3911 = vld [vmem:[%s3735 + $0x18] sm:$0xff]
        %v3912 = vld [vmem:[%s3735 + $0x20] sm:$0x3]
        %v3913 = vld [vmem:[%s3735 + $0x28] sm:$0x3]
        %v3914 = vmul.f32 %v3908, %v1552
        %v3915 = vmul.f32 %v3909, %v1556
        %v3916 = vmul.f32 %v3910, %v1552
        %v3917 = vmul.f32 %v3911, %v1556
        %v3918 = vadd.f32 %v3904, %v3914
        %v3919 = vadd.f32 %v3905, %v3915
        %v3920 = vadd.f32 %v3906, %v3916
        %v3921 = vadd.f32 %v3907, %v3917
        %v3922 = vmul.f32 %v3908, %v1560
        %v3923 = vmul.f32 %v3909, %v1564
        %v3924 = vmul.f32 %v3910, %v1560
        %v3925 = vmul.f32 %v3911, %v1564
        %v3926 = vmul.f32 %v3912, %v1560
        %v3927 = vmul.f32 %v3913, %v1564
        %v3934 = vrot.slane %v3922, 1
        %v3935 = vrot.slane %v3924, 1
        %v3936 = vsel %vm1635, %v3934, %v3935
        %v3937 = vrot.slane %v3923, 1
        %v3938 = vrot.slane %v3925, 1
        %v3939 = vsel %vm1635, %v3937, %v3938
        %v3940 = vrot.slane %v3926, 1
        %v3941 = vsel %vm1635, %v3935, %v3940
        %v3942 = vrot.slane %v3927, 1
        %v3943 = vsel %vm1635, %v3938, %v3942
        %v3948 = vadd.f32 %v3918, %v3936
        %v3949 = vadd.f32 %v3919, %v3939
        %v3950 = vadd.f32 %v3920, %v3941
        %v3951 = vadd.f32 %v3921, %v3943
        %v3952 = vmul.f32 %v3908, %v1568
        %v3953 = vmul.f32 %v3909, %v1572
        %v3954 = vmul.f32 %v3910, %v1568
        %v3955 = vmul.f32 %v3911, %v1572
        %v3956 = vmul.f32 %v3912, %v1568
        %v3957 = vmul.f32 %v3913, %v1572
        %v3964 = vrot.slane %v3952, 2
        %v3965 = vrot.slane %v3954, 2
        %v3966 = vsel %vm1666, %v3964, %v3965
        %v3967 = vrot.slane %v3953, 2
        %v3968 = vrot.slane %v3955, 2
        %v3969 = vsel %vm1666, %v3967, %v3968
        %v3970 = vrot.slane %v3956, 2
        %v3971 = vsel %vm1666, %v3965, %v3970
        %v3972 = vrot.slane %v3957, 2
        %v3973 = vsel %vm1666, %v3968, %v3972
        %v3978 = vadd.f32 %v3948, %v3966
        %v3979 = vadd.f32 %v3949, %v3969
        %v3980 = vadd.f32 %v3950, %v3971
        %v3981 = vadd.f32 %v3951, %v3973
        %s3982 = scalar_lea.vmem [#allocation2], 528
        %v3983 = vld [vmem:[%s3982] sm:$0xff]
        %v3984 = vld [vmem:[%s3982 + $0x8] sm:$0xff]
        %v3985 = vld [vmem:[%s3982 + $0x10] sm:$0xff]
        %v3986 = vld [vmem:[%s3982 + $0x18] sm:$0xff]
        %v3987 = vld [vmem:[%s3982 + $0x20] sm:$0x3]
        %v3988 = vld [vmem:[%s3982 + $0x28] sm:$0x3]
        %v3989 = vmul.f32 %v3983, %v1576
        %v3990 = vmul.f32 %v3984, %v1580
        %v3991 = vmul.f32 %v3985, %v1576
        %v3992 = vmul.f32 %v3986, %v1580
        %v3993 = vadd.f32 %v3978, %v3989
        %v3994 = vadd.f32 %v3979, %v3990
        %v3995 = vadd.f32 %v3980, %v3991
        %v3996 = vadd.f32 %v3981, %v3992
        %v3997 = vmul.f32 %v3983, %v1584
        %v3998 = vmul.f32 %v3984, %v1588
        %v3999 = vmul.f32 %v3985, %v1584
        %v4000 = vmul.f32 %v3986, %v1588
        %v4001 = vmul.f32 %v3987, %v1584
        %v4002 = vmul.f32 %v3988, %v1588
        %v4009 = vrot.slane %v3997, 1
        %v4010 = vrot.slane %v3999, 1
        %v4011 = vsel %vm1635, %v4009, %v4010
        %v4012 = vrot.slane %v3998, 1
        %v4013 = vrot.slane %v4000, 1
        %v4014 = vsel %vm1635, %v4012, %v4013
        %v4015 = vrot.slane %v4001, 1
        %v4016 = vsel %vm1635, %v4010, %v4015
        %v4017 = vrot.slane %v4002, 1
        %v4018 = vsel %vm1635, %v4013, %v4017
        %v4023 = vadd.f32 %v3993, %v4011
        %v4024 = vadd.f32 %v3994, %v4014
        %v4025 = vadd.f32 %v3995, %v4016
        %v4026 = vadd.f32 %v3996, %v4018
        %v4027 = vmul.f32 %v3983, %v1592
        %v4028 = vmul.f32 %v3984, %v1596
        %v4029 = vmul.f32 %v3985, %v1592
        %v4030 = vmul.f32 %v3986, %v1596
        %v4031 = vmul.f32 %v3987, %v1592
        %v4032 = vmul.f32 %v3988, %v1596
        %v4039 = vrot.slane %v4027, 2
        %v4040 = vrot.slane %v4029, 2
        %v4041 = vsel %vm1666, %v4039, %v4040
        %v4042 = vrot.slane %v4028, 2
        %v4043 = vrot.slane %v4030, 2
        %v4044 = vsel %vm1666, %v4042, %v4043
        %v4045 = vrot.slane %v4031, 2
        %v4046 = vsel %vm1666, %v4040, %v4045
        %v4047 = vrot.slane %v4032, 2
        %v4048 = vsel %vm1666, %v4043, %v4047
        %v4053 = vadd.f32 %v4023, %v4041
        %v4054 = vadd.f32 %v4024, %v4044
        %v4055 = vadd.f32 %v4025, %v4046
        %v4056 = vadd.f32 %v4026, %v4048
        %v4057 = vadd.f32 %v4053, 3.0
        %v4058 = vadd.f32 %v4054, 3.0
        %v4059 = vadd.f32 %v4055, 3.0
        %v4060 = vadd.f32 %v4056, 3.0
        %v4061 = vmax.f32 %v4057, 0.0
        %v4062 = vmax.f32 %v4058, 0.0
        %v4063 = vmax.f32 %v4059, 0.0
        %v4064 = vmax.f32 %v4060, 0.0
        %v4065 = vmin.f32 %v4061, 6.0
        %v4066 = vmin.f32 %v4062, 6.0
        %v4067 = vmin.f32 %v4063, 6.0
        %v4068 = vmin.f32 %v4064, 6.0
        %v4069 = vmul.f32 %v4053, %v4065
        %v4070 = vmul.f32 %v4054, %v4066
        %v4071 = vmul.f32 %v4055, %v4067
        %v4072 = vmul.f32 %v4056, %v4068
        %v4073 = vmul.f32 %v4069, 0.16666667
        %v4074 = vmul.f32 %v4070, 0.16666667
        %v4075 = vmul.f32 %v4071, 0.16666667
        %v4076 = vmul.f32 %v4072, 0.16666667
        %4077 = vst [vmem:[#allocation3 + $0x120] sm:$0xff] %v4073
        %4078 = vst [vmem:[#allocation3 + $0x128] sm:$0xff] %v4074
        %4079 = vst [vmem:[#allocation3 + $0x130] sm:$0xff] %v4075
        %4080 = vst [vmem:[#allocation3 + $0x138] sm:$0xff] %v4076
        %v4081 = vld [vmem:[%s3735] sm:$0xff]
        %v4082 = vld [vmem:[%s3735 + $0x8] sm:$0xff]
        %v4083 = vld [vmem:[%s3735 + $0x10] sm:$0xff]
        %v4084 = vld [vmem:[%s3735 + $0x18] sm:$0xff]
        %v4085 = vld [vmem:[%s3735 + $0x20] sm:$0x3]
        %v4086 = vld [vmem:[%s3735 + $0x28] sm:$0x3]
        %v4087 = vmul.f32 %v4081, %v1528
        %v4088 = vmul.f32 %v4082, %v1532
        %v4089 = vmul.f32 %v4083, %v1528
        %v4090 = vmul.f32 %v4084, %v1532
        %v4091 = vadd.f32 %v1602, %v4087
        %v4092 = vadd.f32 %v1606, %v4088
        %v4093 = vadd.f32 %v1602, %v4089
        %v4094 = vadd.f32 %v1606, %v4090
        %v4095 = vmul.f32 %v4081, %v1536
        %v4096 = vmul.f32 %v4082, %v1540
        %v4097 = vmul.f32 %v4083, %v1536
        %v4098 = vmul.f32 %v4084, %v1540
        %v4099 = vmul.f32 %v4085, %v1536
        %v4100 = vmul.f32 %v4086, %v1540
        %v4107 = vrot.slane %v4095, 1
        %v4108 = vrot.slane %v4097, 1
        %v4109 = vsel %vm1635, %v4107, %v4108
        %v4110 = vrot.slane %v4096, 1
        %v4111 = vrot.slane %v4098, 1
        %v4112 = vsel %vm1635, %v4110, %v4111
        %v4113 = vrot.slane %v4099, 1
        %v4114 = vsel %vm1635, %v4108, %v4113
        %v4115 = vrot.slane %v4100, 1
        %v4116 = vsel %vm1635, %v4111, %v4115
        %v4121 = vadd.f32 %v4091, %v4109
        %v4122 = vadd.f32 %v4092, %v4112
        %v4123 = vadd.f32 %v4093, %v4114
        %v4124 = vadd.f32 %v4094, %v4116
        %v4125 = vmul.f32 %v4081, %v1544
        %v4126 = vmul.f32 %v4082, %v1548
        %v4127 = vmul.f32 %v4083, %v1544
        %v4128 = vmul.f32 %v4084, %v1548
        %v4129 = vmul.f32 %v4085, %v1544
        %v4130 = vmul.f32 %v4086, %v1548
        %v4137 = vrot.slane %v4125, 2
        %v4138 = vrot.slane %v4127, 2
        %v4139 = vsel %vm1666, %v4137, %v4138
        %v4140 = vrot.slane %v4126, 2
        %v4141 = vrot.slane %v4128, 2
        %v4142 = vsel %vm1666, %v4140, %v4141
        %v4143 = vrot.slane %v4129, 2
        %v4144 = vsel %vm1666, %v4138, %v4143
        %v4145 = vrot.slane %v4130, 2
        %v4146 = vsel %vm1666, %v4141, %v4145
        %v4151 = vadd.f32 %v4121, %v4139
        %v4152 = vadd.f32 %v4122, %v4142
        %v4153 = vadd.f32 %v4123, %v4144
        %v4154 = vadd.f32 %v4124, %v4146
        %v4155 = vld [vmem:[%s3982] sm:$0xff]
        %v4156 = vld [vmem:[%s3982 + $0x8] sm:$0xff]
        %v4157 = vld [vmem:[%s3982 + $0x10] sm:$0xff]
        %v4158 = vld [vmem:[%s3982 + $0x18] sm:$0xff]
        %v4159 = vld [vmem:[%s3982 + $0x20] sm:$0x3]
        %v4160 = vld [vmem:[%s3982 + $0x28] sm:$0x3]
        %v4161 = vmul.f32 %v4155, %v1552
        %v4162 = vmul.f32 %v4156, %v1556
        %v4163 = vmul.f32 %v4157, %v1552
        %v4164 = vmul.f32 %v4158, %v1556
        %v4165 = vadd.f32 %v4151, %v4161
        %v4166 = vadd.f32 %v4152, %v4162
        %v4167 = vadd.f32 %v4153, %v4163
        %v4168 = vadd.f32 %v4154, %v4164
        %v4169 = vmul.f32 %v4155, %v1560
        %v4170 = vmul.f32 %v4156, %v1564
        %v4171 = vmul.f32 %v4157, %v1560
        %v4172 = vmul.f32 %v4158, %v1564
        %v4173 = vmul.f32 %v4159, %v1560
        %v4174 = vmul.f32 %v4160, %v1564
        %v4181 = vrot.slane %v4169, 1
        %v4182 = vrot.slane %v4171, 1
        %v4183 = vsel %vm1635, %v4181, %v4182
        %v4184 = vrot.slane %v4170, 1
        %v4185 = vrot.slane %v4172, 1
        %v4186 = vsel %vm1635, %v4184, %v4185
        %v4187 = vrot.slane %v4173, 1
        %v4188 = vsel %vm1635, %v4182, %v4187
        %v4189 = vrot.slane %v4174, 1
        %v4190 = vsel %vm1635, %v4185, %v4189
        %v4195 = vadd.f32 %v4165, %v4183
        %v4196 = vadd.f32 %v4166, %v4186
        %v4197 = vadd.f32 %v4167, %v4188
        %v4198 = vadd.f32 %v4168, %v4190
        %v4199 = vmul.f32 %v4155, %v1568
        %v4200 = vmul.f32 %v4156, %v1572
        %v4201 = vmul.f32 %v4157, %v1568
        %v4202 = vmul.f32 %v4158, %v1572
        %v4203 = vmul.f32 %v4159, %v1568
        %v4204 = vmul.f32 %v4160, %v1572
        %v4211 = vrot.slane %v4199, 2
        %v4212 = vrot.slane %v4201, 2
        %v4213 = vsel %vm1666, %v4211, %v4212
        %v4214 = vrot.slane %v4200, 2
        %v4215 = vrot.slane %v4202, 2
        %v4216 = vsel %vm1666, %v4214, %v4215
        %v4217 = vrot.slane %v4203, 2
        %v4218 = vsel %vm1666, %v4212, %v4217
        %v4219 = vrot.slane %v4204, 2
        %v4220 = vsel %vm1666, %v4215, %v4219
        %v4225 = vadd.f32 %v4195, %v4213
        %v4226 = vadd.f32 %v4196, %v4216
        %v4227 = vadd.f32 %v4197, %v4218
        %v4228 = vadd.f32 %v4198, %v4220
        %s4229 = scalar_lea.vmem [#allocation2], 576
        %v4230 = vld [vmem:[%s4229] sm:$0xff]
        %v4231 = vld [vmem:[%s4229 + $0x8] sm:$0xff]
        %v4232 = vld [vmem:[%s4229 + $0x10] sm:$0xff]
        %v4233 = vld [vmem:[%s4229 + $0x18] sm:$0xff]
        %v4234 = vld [vmem:[%s4229 + $0x20] sm:$0x3]
        %v4235 = vld [vmem:[%s4229 + $0x28] sm:$0x3]
        %v4236 = vmul.f32 %v4230, %v1576
        %v4237 = vmul.f32 %v4231, %v1580
        %v4238 = vmul.f32 %v4232, %v1576
        %v4239 = vmul.f32 %v4233, %v1580
        %v4240 = vadd.f32 %v4225, %v4236
        %v4241 = vadd.f32 %v4226, %v4237
        %v4242 = vadd.f32 %v4227, %v4238
        %v4243 = vadd.f32 %v4228, %v4239
        %v4244 = vmul.f32 %v4230, %v1584
        %v4245 = vmul.f32 %v4231, %v1588
        %v4246 = vmul.f32 %v4232, %v1584
        %v4247 = vmul.f32 %v4233, %v1588
        %v4248 = vmul.f32 %v4234, %v1584
        %v4249 = vmul.f32 %v4235, %v1588
        %v4256 = vrot.slane %v4244, 1
        %v4257 = vrot.slane %v4246, 1
        %v4258 = vsel %vm1635, %v4256, %v4257
        %v4259 = vrot.slane %v4245, 1
        %v4260 = vrot.slane %v4247, 1
        %v4261 = vsel %vm1635, %v4259, %v4260
        %v4262 = vrot.slane %v4248, 1
        %v4263 = vsel %vm1635, %v4257, %v4262
        %v4264 = vrot.slane %v4249, 1
        %v4265 = vsel %vm1635, %v4260, %v4264
        %v4270 = vadd.f32 %v4240, %v4258
        %v4271 = vadd.f32 %v4241, %v4261
        %v4272 = vadd.f32 %v4242, %v4263
        %v4273 = vadd.f32 %v4243, %v4265
        %v4274 = vmul.f32 %v4230, %v1592
        %v4275 = vmul.f32 %v4231, %v1596
        %v4276 = vmul.f32 %v4232, %v1592
        %v4277 = vmul.f32 %v4233, %v1596
        %v4278 = vmul.f32 %v4234, %v1592
        %v4279 = vmul.f32 %v4235, %v1596
        %v4286 = vrot.slane %v4274, 2
        %v4287 = vrot.slane %v4276, 2
        %v4288 = vsel %vm1666, %v4286, %v4287
        %v4289 = vrot.slane %v4275, 2
        %v4290 = vrot.slane %v4277, 2
        %v4291 = vsel %vm1666, %v4289, %v4290
        %v4292 = vrot.slane %v4278, 2
        %v4293 = vsel %vm1666, %v4287, %v4292
        %v4294 = vrot.slane %v4279, 2
        %v4295 = vsel %vm1666, %v4290, %v4294
        %v4300 = vadd.f32 %v4270, %v4288
        %v4301 = vadd.f32 %v4271, %v4291
        %v4302 = vadd.f32 %v4272, %v4293
        %v4303 = vadd.f32 %v4273, %v4295
        %v4304 = vadd.f32 %v4300, 3.0
        %v4305 = vadd.f32 %v4301, 3.0
        %v4306 = vadd.f32 %v4302, 3.0
        %v4307 = vadd.f32 %v4303, 3.0
        %v4308 = vmax.f32 %v4304, 0.0
        %v4309 = vmax.f32 %v4305, 0.0
        %v4310 = vmax.f32 %v4306, 0.0
        %v4311 = vmax.f32 %v4307, 0.0
        %v4312 = vmin.f32 %v4308, 6.0
        %v4313 = vmin.f32 %v4309, 6.0
        %v4314 = vmin.f32 %v4310, 6.0
        %v4315 = vmin.f32 %v4311, 6.0
        %v4316 = vmul.f32 %v4300, %v4312
        %v4317 = vmul.f32 %v4301, %v4313
        %v4318 = vmul.f32 %v4302, %v4314
        %v4319 = vmul.f32 %v4303, %v4315
        %v4320 = vmul.f32 %v4316, 0.16666667
        %v4321 = vmul.f32 %v4317, 0.16666667
        %v4322 = vmul.f32 %v4318, 0.16666667
        %v4323 = vmul.f32 %v4319, 0.16666667
        %4324 = vst [vmem:[#allocation3 + $0x140] sm:$0xff] %v4320
        %4325 = vst [vmem:[#allocation3 + $0x148] sm:$0xff] %v4321
        %4326 = vst [vmem:[#allocation3 + $0x150] sm:$0xff] %v4322
        %4327 = vst [vmem:[#allocation3 + $0x158] sm:$0xff] %v4323
        %v4328 = vld [vmem:[%s3982] sm:$0xff]
        %v4329 = vld [vmem:[%s3982 + $0x8] sm:$0xff]
        %v4330 = vld [vmem:[%s3982 + $0x10] sm:$0xff]
        %v4331 = vld [vmem:[%s3982 + $0x18] sm:$0xff]
        %v4332 = vld [vmem:[%s3982 + $0x20] sm:$0x3]
        %v4333 = vld [vmem:[%s3982 + $0x28] sm:$0x3]
        %v4334 = vmul.f32 %v4328, %v1528
        %v4335 = vmul.f32 %v4329, %v1532
        %v4336 = vmul.f32 %v4330, %v1528
        %v4337 = vmul.f32 %v4331, %v1532
        %v4338 = vadd.f32 %v1602, %v4334
        %v4339 = vadd.f32 %v1606, %v4335
        %v4340 = vadd.f32 %v1602, %v4336
        %v4341 = vadd.f32 %v1606, %v4337
        %v4342 = vmul.f32 %v4328, %v1536
        %v4343 = vmul.f32 %v4329, %v1540
        %v4344 = vmul.f32 %v4330, %v1536
        %v4345 = vmul.f32 %v4331, %v1540
        %v4346 = vmul.f32 %v4332, %v1536
        %v4347 = vmul.f32 %v4333, %v1540
        %v4354 = vrot.slane %v4342, 1
        %v4355 = vrot.slane %v4344, 1
        %v4356 = vsel %vm1635, %v4354, %v4355
        %v4357 = vrot.slane %v4343, 1
        %v4358 = vrot.slane %v4345, 1
        %v4359 = vsel %vm1635, %v4357, %v4358
        %v4360 = vrot.slane %v4346, 1
        %v4361 = vsel %vm1635, %v4355, %v4360
        %v4362 = vrot.slane %v4347, 1
        %v4363 = vsel %vm1635, %v4358, %v4362
        %v4368 = vadd.f32 %v4338, %v4356
        %v4369 = vadd.f32 %v4339, %v4359
        %v4370 = vadd.f32 %v4340, %v4361
        %v4371 = vadd.f32 %v4341, %v4363
        %v4372 = vmul.f32 %v4328, %v1544
        %v4373 = vmul.f32 %v4329, %v1548
        %v4374 = vmul.f32 %v4330, %v1544
        %v4375 = vmul.f32 %v4331, %v1548
        %v4376 = vmul.f32 %v4332, %v1544
        %v4377 = vmul.f32 %v4333, %v1548
        %v4384 = vrot.slane %v4372, 2
        %v4385 = vrot.slane %v4374, 2
        %v4386 = vsel %vm1666, %v4384, %v4385
        %v4387 = vrot.slane %v4373, 2
        %v4388 = vrot.slane %v4375, 2
        %v4389 = vsel %vm1666, %v4387, %v4388
        %v4390 = vrot.slane %v4376, 2
        %v4391 = vsel %vm1666, %v4385, %v4390
        %v4392 = vrot.slane %v4377, 2
        %v4393 = vsel %vm1666, %v4388, %v4392
        %v4398 = vadd.f32 %v4368, %v4386
        %v4399 = vadd.f32 %v4369, %v4389
        %v4400 = vadd.f32 %v4370, %v4391
        %v4401 = vadd.f32 %v4371, %v4393
        %v4402 = vld [vmem:[%s4229] sm:$0xff]
        %v4403 = vld [vmem:[%s4229 + $0x8] sm:$0xff]
        %v4404 = vld [vmem:[%s4229 + $0x10] sm:$0xff]
        %v4405 = vld [vmem:[%s4229 + $0x18] sm:$0xff]
        %v4406 = vld [vmem:[%s4229 + $0x20] sm:$0x3]
        %v4407 = vld [vmem:[%s4229 + $0x28] sm:$0x3]
        %v4408 = vmul.f32 %v4402, %v1552
        %v4409 = vmul.f32 %v4403, %v1556
        %v4410 = vmul.f32 %v4404, %v1552
        %v4411 = vmul.f32 %v4405, %v1556
        %v4412 = vadd.f32 %v4398, %v4408
        %v4413 = vadd.f32 %v4399, %v4409
        %v4414 = vadd.f32 %v4400, %v4410
        %v4415 = vadd.f32 %v4401, %v4411
        %v4416 = vmul.f32 %v4402, %v1560
        %v4417 = vmul.f32 %v4403, %v1564
        %v4418 = vmul.f32 %v4404, %v1560
        %v4419 = vmul.f32 %v4405, %v1564
        %v4420 = vmul.f32 %v4406, %v1560
        %v4421 = vmul.f32 %v4407, %v1564
        %v4428 = vrot.slane %v4416, 1
        %v4429 = vrot.slane %v4418, 1
        %v4430 = vsel %vm1635, %v4428, %v4429
        %v4431 = vrot.slane %v4417, 1
        %v4432 = vrot.slane %v4419, 1
        %v4433 = vsel %vm1635, %v4431, %v4432
        %v4434 = vrot.slane %v4420, 1
        %v4435 = vsel %vm1635, %v4429, %v4434
        %v4436 = vrot.slane %v4421, 1
        %v4437 = vsel %vm1635, %v4432, %v4436
        %v4442 = vadd.f32 %v4412, %v4430
        %v4443 = vadd.f32 %v4413, %v4433
        %v4444 = vadd.f32 %v4414, %v4435
        %v4445 = vadd.f32 %v4415, %v4437
        %v4446 = vmul.f32 %v4402, %v1568
        %v4447 = vmul.f32 %v4403, %v1572
        %v4448 = vmul.f32 %v4404, %v1568
        %v4449 = vmul.f32 %v4405, %v1572
        %v4450 = vmul.f32 %v4406, %v1568
        %v4451 = vmul.f32 %v4407, %v1572
        %v4458 = vrot.slane %v4446, 2
        %v4459 = vrot.slane %v4448, 2
        %v4460 = vsel %vm1666, %v4458, %v4459
        %v4461 = vrot.slane %v4447, 2
        %v4462 = vrot.slane %v4449, 2
        %v4463 = vsel %vm1666, %v4461, %v4462
        %v4464 = vrot.slane %v4450, 2
        %v4465 = vsel %vm1666, %v4459, %v4464
        %v4466 = vrot.slane %v4451, 2
        %v4467 = vsel %vm1666, %v4462, %v4466
        %v4472 = vadd.f32 %v4442, %v4460
        %v4473 = vadd.f32 %v4443, %v4463
        %v4474 = vadd.f32 %v4444, %v4465
        %v4475 = vadd.f32 %v4445, %v4467
        %s4476 = scalar_lea.vmem [#allocation2], 624
        %v4477 = vld [vmem:[%s4476] sm:$0xff]
        %v4478 = vld [vmem:[%s4476 + $0x8] sm:$0xff]
        %v4479 = vld [vmem:[%s4476 + $0x10] sm:$0xff]
        %v4480 = vld [vmem:[%s4476 + $0x18] sm:$0xff]
        %v4481 = vld [vmem:[%s4476 + $0x20] sm:$0x3]
        %v4482 = vld [vmem:[%s4476 + $0x28] sm:$0x3]
        %v4483 = vmul.f32 %v4477, %v1576
        %v4484 = vmul.f32 %v4478, %v1580
        %v4485 = vmul.f32 %v4479, %v1576
        %v4486 = vmul.f32 %v4480, %v1580
        %v4487 = vadd.f32 %v4472, %v4483
        %v4488 = vadd.f32 %v4473, %v4484
        %v4489 = vadd.f32 %v4474, %v4485
        %v4490 = vadd.f32 %v4475, %v4486
        %v4491 = vmul.f32 %v4477, %v1584
        %v4492 = vmul.f32 %v4478, %v1588
        %v4493 = vmul.f32 %v4479, %v1584
        %v4494 = vmul.f32 %v4480, %v1588
        %v4495 = vmul.f32 %v4481, %v1584
        %v4496 = vmul.f32 %v4482, %v1588
        %v4503 = vrot.slane %v4491, 1
        %v4504 = vrot.slane %v4493, 1
        %v4505 = vsel %vm1635, %v4503, %v4504
        %v4506 = vrot.slane %v4492, 1
        %v4507 = vrot.slane %v4494, 1
        %v4508 = vsel %vm1635, %v4506, %v4507
        %v4509 = vrot.slane %v4495, 1
        %v4510 = vsel %vm1635, %v4504, %v4509
        %v4511 = vrot.slane %v4496, 1
        %v4512 = vsel %vm1635, %v4507, %v4511
        %v4517 = vadd.f32 %v4487, %v4505
        %v4518 = vadd.f32 %v4488, %v4508
        %v4519 = vadd.f32 %v4489, %v4510
        %v4520 = vadd.f32 %v4490, %v4512
        %v4521 = vmul.f32 %v4477, %v1592
        %v4522 = vmul.f32 %v4478, %v1596
        %v4523 = vmul.f32 %v4479, %v1592
        %v4524 = vmul.f32 %v4480, %v1596
        %v4525 = vmul.f32 %v4481, %v1592
        %v4526 = vmul.f32 %v4482, %v1596
        %v4533 = vrot.slane %v4521, 2
        %v4534 = vrot.slane %v4523, 2
        %v4535 = vsel %vm1666, %v4533, %v4534
        %v4536 = vrot.slane %v4522, 2
        %v4537 = vrot.slane %v4524, 2
        %v4538 = vsel %vm1666, %v4536, %v4537
        %v4539 = vrot.slane %v4525, 2
        %v4540 = vsel %vm1666, %v4534, %v4539
        %v4541 = vrot.slane %v4526, 2
        %v4542 = vsel %vm1666, %v4537, %v4541
        %v4547 = vadd.f32 %v4517, %v4535
        %v4548 = vadd.f32 %v4518, %v4538
        %v4549 = vadd.f32 %v4519, %v4540
        %v4550 = vadd.f32 %v4520, %v4542
        %v4551 = vadd.f32 %v4547, 3.0
        %v4552 = vadd.f32 %v4548, 3.0
        %v4553 = vadd.f32 %v4549, 3.0
        %v4554 = vadd.f32 %v4550, 3.0
        %v4555 = vmax.f32 %v4551, 0.0
        %v4556 = vmax.f32 %v4552, 0.0
        %v4557 = vmax.f32 %v4553, 0.0
        %v4558 = vmax.f32 %v4554, 0.0
        %v4559 = vmin.f32 %v4555, 6.0
        %v4560 = vmin.f32 %v4556, 6.0
        %v4561 = vmin.f32 %v4557, 6.0
        %v4562 = vmin.f32 %v4558, 6.0
        %v4563 = vmul.f32 %v4547, %v4559
        %v4564 = vmul.f32 %v4548, %v4560
        %v4565 = vmul.f32 %v4549, %v4561
        %v4566 = vmul.f32 %v4550, %v4562
        %v4567 = vmul.f32 %v4563, 0.16666667
        %v4568 = vmul.f32 %v4564, 0.16666667
        %v4569 = vmul.f32 %v4565, 0.16666667
        %v4570 = vmul.f32 %v4566, 0.16666667
        %4571 = vst [vmem:[#allocation3 + $0x160] sm:$0xff] %v4567
        %4572 = vst [vmem:[#allocation3 + $0x168] sm:$0xff] %v4568
        %4573 = vst [vmem:[#allocation3 + $0x170] sm:$0xff] %v4569
        %4574 = vst [vmem:[#allocation3 + $0x178] sm:$0xff] %v4570
        %v4575 = vld [vmem:[%s4229] sm:$0xff]
        %v4576 = vld [vmem:[%s4229 + $0x8] sm:$0xff]
        %v4577 = vld [vmem:[%s4229 + $0x10] sm:$0xff]
        %v4578 = vld [vmem:[%s4229 + $0x18] sm:$0xff]
        %v4579 = vld [vmem:[%s4229 + $0x20] sm:$0x3]
        %v4580 = vld [vmem:[%s4229 + $0x28] sm:$0x3]
        %v4581 = vmul.f32 %v4575, %v1528
        %v4582 = vmul.f32 %v4576, %v1532
        %v4583 = vmul.f32 %v4577, %v1528
        %v4584 = vmul.f32 %v4578, %v1532
        %v4585 = vadd.f32 %v1602, %v4581
        %v4586 = vadd.f32 %v1606, %v4582
        %v4587 = vadd.f32 %v1602, %v4583
        %v4588 = vadd.f32 %v1606, %v4584
        %v4589 = vmul.f32 %v4575, %v1536
        %v4590 = vmul.f32 %v4576, %v1540
        %v4591 = vmul.f32 %v4577, %v1536
        %v4592 = vmul.f32 %v4578, %v1540
        %v4593 = vmul.f32 %v4579, %v1536
        %v4594 = vmul.f32 %v4580, %v1540
        %v4601 = vrot.slane %v4589, 1
        %v4602 = vrot.slane %v4591, 1
        %v4603 = vsel %vm1635, %v4601, %v4602
        %v4604 = vrot.slane %v4590, 1
        %v4605 = vrot.slane %v4592, 1
        %v4606 = vsel %vm1635, %v4604, %v4605
        %v4607 = vrot.slane %v4593, 1
        %v4608 = vsel %vm1635, %v4602, %v4607
        %v4609 = vrot.slane %v4594, 1
        %v4610 = vsel %vm1635, %v4605, %v4609
        %v4615 = vadd.f32 %v4585, %v4603
        %v4616 = vadd.f32 %v4586, %v4606
        %v4617 = vadd.f32 %v4587, %v4608
        %v4618 = vadd.f32 %v4588, %v4610
        %v4619 = vmul.f32 %v4575, %v1544
        %v4620 = vmul.f32 %v4576, %v1548
        %v4621 = vmul.f32 %v4577, %v1544
        %v4622 = vmul.f32 %v4578, %v1548
        %v4623 = vmul.f32 %v4579, %v1544
        %v4624 = vmul.f32 %v4580, %v1548
        %v4631 = vrot.slane %v4619, 2
        %v4632 = vrot.slane %v4621, 2
        %v4633 = vsel %vm1666, %v4631, %v4632
        %v4634 = vrot.slane %v4620, 2
        %v4635 = vrot.slane %v4622, 2
        %v4636 = vsel %vm1666, %v4634, %v4635
        %v4637 = vrot.slane %v4623, 2
        %v4638 = vsel %vm1666, %v4632, %v4637
        %v4639 = vrot.slane %v4624, 2
        %v4640 = vsel %vm1666, %v4635, %v4639
        %v4645 = vadd.f32 %v4615, %v4633
        %v4646 = vadd.f32 %v4616, %v4636
        %v4647 = vadd.f32 %v4617, %v4638
        %v4648 = vadd.f32 %v4618, %v4640
        %v4649 = vld [vmem:[%s4476] sm:$0xff]
        %v4650 = vld [vmem:[%s4476 + $0x8] sm:$0xff]
        %v4651 = vld [vmem:[%s4476 + $0x10] sm:$0xff]
        %v4652 = vld [vmem:[%s4476 + $0x18] sm:$0xff]
        %v4653 = vld [vmem:[%s4476 + $0x20] sm:$0x3]
        %v4654 = vld [vmem:[%s4476 + $0x28] sm:$0x3]
        %v4655 = vmul.f32 %v4649, %v1552
        %v4656 = vmul.f32 %v4650, %v1556
        %v4657 = vmul.f32 %v4651, %v1552
        %v4658 = vmul.f32 %v4652, %v1556
        %v4659 = vadd.f32 %v4645, %v4655
        %v4660 = vadd.f32 %v4646, %v4656
        %v4661 = vadd.f32 %v4647, %v4657
        %v4662 = vadd.f32 %v4648, %v4658
        %v4663 = vmul.f32 %v4649, %v1560
        %v4664 = vmul.f32 %v4650, %v1564
        %v4665 = vmul.f32 %v4651, %v1560
        %v4666 = vmul.f32 %v4652, %v1564
        %v4667 = vmul.f32 %v4653, %v1560
        %v4668 = vmul.f32 %v4654, %v1564
        %v4675 = vrot.slane %v4663, 1
        %v4676 = vrot.slane %v4665, 1
        %v4677 = vsel %vm1635, %v4675, %v4676
        %v4678 = vrot.slane %v4664, 1
        %v4679 = vrot.slane %v4666, 1
        %v4680 = vsel %vm1635, %v4678, %v4679
        %v4681 = vrot.slane %v4667, 1
        %v4682 = vsel %vm1635, %v4676, %v4681
        %v4683 = vrot.slane %v4668, 1
        %v4684 = vsel %vm1635, %v4679, %v4683
        %v4689 = vadd.f32 %v4659, %v4677
        %v4690 = vadd.f32 %v4660, %v4680
        %v4691 = vadd.f32 %v4661, %v4682
        %v4692 = vadd.f32 %v4662, %v4684
        %v4693 = vmul.f32 %v4649, %v1568
        %v4694 = vmul.f32 %v4650, %v1572
        %v4695 = vmul.f32 %v4651, %v1568
        %v4696 = vmul.f32 %v4652, %v1572
        %v4697 = vmul.f32 %v4653, %v1568
        %v4698 = vmul.f32 %v4654, %v1572
        %v4705 = vrot.slane %v4693, 2
        %v4706 = vrot.slane %v4695, 2
        %v4707 = vsel %vm1666, %v4705, %v4706
        %v4708 = vrot.slane %v4694, 2
        %v4709 = vrot.slane %v4696, 2
        %v4710 = vsel %vm1666, %v4708, %v4709
        %v4711 = vrot.slane %v4697, 2
        %v4712 = vsel %vm1666, %v4706, %v4711
        %v4713 = vrot.slane %v4698, 2
        %v4714 = vsel %vm1666, %v4709, %v4713
        %v4719 = vadd.f32 %v4689, %v4707
        %v4720 = vadd.f32 %v4690, %v4710
        %v4721 = vadd.f32 %v4691, %v4712
        %v4722 = vadd.f32 %v4692, %v4714
        %s4723 = scalar_lea.vmem [#allocation2], 672
        %v4724 = vld [vmem:[%s4723] sm:$0xff]
        %v4725 = vld [vmem:[%s4723 + $0x8] sm:$0xff]
        %v4726 = vld [vmem:[%s4723 + $0x10] sm:$0xff]
        %v4727 = vld [vmem:[%s4723 + $0x18] sm:$0xff]
        %v4728 = vld [vmem:[%s4723 + $0x20] sm:$0x3]
        %v4729 = vld [vmem:[%s4723 + $0x28] sm:$0x3]
        %v4730 = vmul.f32 %v4724, %v1576
        %v4731 = vmul.f32 %v4725, %v1580
        %v4732 = vmul.f32 %v4726, %v1576
        %v4733 = vmul.f32 %v4727, %v1580
        %v4734 = vadd.f32 %v4719, %v4730
        %v4735 = vadd.f32 %v4720, %v4731
        %v4736 = vadd.f32 %v4721, %v4732
        %v4737 = vadd.f32 %v4722, %v4733
        %v4738 = vmul.f32 %v4724, %v1584
        %v4739 = vmul.f32 %v4725, %v1588
        %v4740 = vmul.f32 %v4726, %v1584
        %v4741 = vmul.f32 %v4727, %v1588
        %v4742 = vmul.f32 %v4728, %v1584
        %v4743 = vmul.f32 %v4729, %v1588
        %v4750 = vrot.slane %v4738, 1
        %v4751 = vrot.slane %v4740, 1
        %v4752 = vsel %vm1635, %v4750, %v4751
        %v4753 = vrot.slane %v4739, 1
        %v4754 = vrot.slane %v4741, 1
        %v4755 = vsel %vm1635, %v4753, %v4754
        %v4756 = vrot.slane %v4742, 1
        %v4757 = vsel %vm1635, %v4751, %v4756
        %v4758 = vrot.slane %v4743, 1
        %v4759 = vsel %vm1635, %v4754, %v4758
        %v4764 = vadd.f32 %v4734, %v4752
        %v4765 = vadd.f32 %v4735, %v4755
        %v4766 = vadd.f32 %v4736, %v4757
        %v4767 = vadd.f32 %v4737, %v4759
        %v4768 = vmul.f32 %v4724, %v1592
        %v4769 = vmul.f32 %v4725, %v1596
        %v4770 = vmul.f32 %v4726, %v1592
        %v4771 = vmul.f32 %v4727, %v1596
        %v4772 = vmul.f32 %v4728, %v1592
        %v4773 = vmul.f32 %v4729, %v1596
        %v4780 = vrot.slane %v4768, 2
        %v4781 = vrot.slane %v4770, 2
        %v4782 = vsel %vm1666, %v4780, %v4781
        %v4783 = vrot.slane %v4769, 2
        %v4784 = vrot.slane %v4771, 2
        %v4785 = vsel %vm1666, %v4783, %v4784
        %v4786 = vrot.slane %v4772, 2
        %v4787 = vsel %vm1666, %v4781, %v4786
        %v4788 = vrot.slane %v4773, 2
        %v4789 = vsel %vm1666, %v4784, %v4788
        %v4794 = vadd.f32 %v4764, %v4782
        %v4795 = vadd.f32 %v4765, %v4785
        %v4796 = vadd.f32 %v4766, %v4787
        %v4797 = vadd.f32 %v4767, %v4789
        %v4798 = vadd.f32 %v4794, 3.0
        %v4799 = vadd.f32 %v4795, 3.0
        %v4800 = vadd.f32 %v4796, 3.0
        %v4801 = vadd.f32 %v4797, 3.0
        %v4802 = vmax.f32 %v4798, 0.0
        %v4803 = vmax.f32 %v4799, 0.0
        %v4804 = vmax.f32 %v4800, 0.0
        %v4805 = vmax.f32 %v4801, 0.0
        %v4806 = vmin.f32 %v4802, 6.0
        %v4807 = vmin.f32 %v4803, 6.0
        %v4808 = vmin.f32 %v4804, 6.0
        %v4809 = vmin.f32 %v4805, 6.0
        %v4810 = vmul.f32 %v4794, %v4806
        %v4811 = vmul.f32 %v4795, %v4807
        %v4812 = vmul.f32 %v4796, %v4808
        %v4813 = vmul.f32 %v4797, %v4809
        %v4814 = vmul.f32 %v4810, 0.16666667
        %v4815 = vmul.f32 %v4811, 0.16666667
        %v4816 = vmul.f32 %v4812, 0.16666667
        %v4817 = vmul.f32 %v4813, 0.16666667
        %4818 = vst [vmem:[#allocation3 + $0x180] sm:$0xff] %v4814
        %4819 = vst [vmem:[#allocation3 + $0x188] sm:$0xff] %v4815
        %4820 = vst [vmem:[#allocation3 + $0x190] sm:$0xff] %v4816
        %4821 = vst [vmem:[#allocation3 + $0x198] sm:$0xff] %v4817
        %v4822 = vld [vmem:[%s4476] sm:$0xff]
        %v4823 = vld [vmem:[%s4476 + $0x8] sm:$0xff]
        %v4824 = vld [vmem:[%s4476 + $0x10] sm:$0xff]
        %v4825 = vld [vmem:[%s4476 + $0x18] sm:$0xff]
        %v4826 = vld [vmem:[%s4476 + $0x20] sm:$0x3]
        %v4827 = vld [vmem:[%s4476 + $0x28] sm:$0x3]
        %v4828 = vmul.f32 %v4822, %v1528
        %v4829 = vmul.f32 %v4823, %v1532
        %v4830 = vmul.f32 %v4824, %v1528
        %v4831 = vmul.f32 %v4825, %v1532
        %v4832 = vadd.f32 %v1602, %v4828
        %v4833 = vadd.f32 %v1606, %v4829
        %v4834 = vadd.f32 %v1602, %v4830
        %v4835 = vadd.f32 %v1606, %v4831
        %v4836 = vmul.f32 %v4822, %v1536
        %v4837 = vmul.f32 %v4823, %v1540
        %v4838 = vmul.f32 %v4824, %v1536
        %v4839 = vmul.f32 %v4825, %v1540
        %v4840 = vmul.f32 %v4826, %v1536
        %v4841 = vmul.f32 %v4827, %v1540
        %v4848 = vrot.slane %v4836, 1
        %v4849 = vrot.slane %v4838, 1
        %v4850 = vsel %vm1635, %v4848, %v4849
        %v4851 = vrot.slane %v4837, 1
        %v4852 = vrot.slane %v4839, 1
        %v4853 = vsel %vm1635, %v4851, %v4852
        %v4854 = vrot.slane %v4840, 1
        %v4855 = vsel %vm1635, %v4849, %v4854
        %v4856 = vrot.slane %v4841, 1
        %v4857 = vsel %vm1635, %v4852, %v4856
        %v4862 = vadd.f32 %v4832, %v4850
        %v4863 = vadd.f32 %v4833, %v4853
        %v4864 = vadd.f32 %v4834, %v4855
        %v4865 = vadd.f32 %v4835, %v4857
        %v4866 = vmul.f32 %v4822, %v1544
        %v4867 = vmul.f32 %v4823, %v1548
        %v4868 = vmul.f32 %v4824, %v1544
        %v4869 = vmul.f32 %v4825, %v1548
        %v4870 = vmul.f32 %v4826, %v1544
        %v4871 = vmul.f32 %v4827, %v1548
        %v4878 = vrot.slane %v4866, 2
        %v4879 = vrot.slane %v4868, 2
        %v4880 = vsel %vm1666, %v4878, %v4879
        %v4881 = vrot.slane %v4867, 2
        %v4882 = vrot.slane %v4869, 2
        %v4883 = vsel %vm1666, %v4881, %v4882
        %v4884 = vrot.slane %v4870, 2
        %v4885 = vsel %vm1666, %v4879, %v4884
        %v4886 = vrot.slane %v4871, 2
        %v4887 = vsel %vm1666, %v4882, %v4886
        %v4892 = vadd.f32 %v4862, %v4880
        %v4893 = vadd.f32 %v4863, %v4883
        %v4894 = vadd.f32 %v4864, %v4885
        %v4895 = vadd.f32 %v4865, %v4887
        %v4896 = vld [vmem:[%s4723] sm:$0xff]
        %v4897 = vld [vmem:[%s4723 + $0x8] sm:$0xff]
        %v4898 = vld [vmem:[%s4723 + $0x10] sm:$0xff]
        %v4899 = vld [vmem:[%s4723 + $0x18] sm:$0xff]
        %v4900 = vld [vmem:[%s4723 + $0x20] sm:$0x3]
        %v4901 = vld [vmem:[%s4723 + $0x28] sm:$0x3]
        %v4902 = vmul.f32 %v4896, %v1552
        %v4903 = vmul.f32 %v4897, %v1556
        %v4904 = vmul.f32 %v4898, %v1552
        %v4905 = vmul.f32 %v4899, %v1556
        %v4906 = vadd.f32 %v4892, %v4902
        %v4907 = vadd.f32 %v4893, %v4903
        %v4908 = vadd.f32 %v4894, %v4904
        %v4909 = vadd.f32 %v4895, %v4905
        %v4910 = vmul.f32 %v4896, %v1560
        %v4911 = vmul.f32 %v4897, %v1564
        %v4912 = vmul.f32 %v4898, %v1560
        %v4913 = vmul.f32 %v4899, %v1564
        %v4914 = vmul.f32 %v4900, %v1560
        %v4915 = vmul.f32 %v4901, %v1564
        %v4922 = vrot.slane %v4910, 1
        %v4923 = vrot.slane %v4912, 1
        %v4924 = vsel %vm1635, %v4922, %v4923
        %v4925 = vrot.slane %v4911, 1
        %v4926 = vrot.slane %v4913, 1
        %v4927 = vsel %vm1635, %v4925, %v4926
        %v4928 = vrot.slane %v4914, 1
        %v4929 = vsel %vm1635, %v4923, %v4928
        %v4930 = vrot.slane %v4915, 1
        %v4931 = vsel %vm1635, %v4926, %v4930
        %v4936 = vadd.f32 %v4906, %v4924
        %v4937 = vadd.f32 %v4907, %v4927
        %v4938 = vadd.f32 %v4908, %v4929
        %v4939 = vadd.f32 %v4909, %v4931
        %v4940 = vmul.f32 %v4896, %v1568
        %v4941 = vmul.f32 %v4897, %v1572
        %v4942 = vmul.f32 %v4898, %v1568
        %v4943 = vmul.f32 %v4899, %v1572
        %v4944 = vmul.f32 %v4900, %v1568
        %v4945 = vmul.f32 %v4901, %v1572
        %v4952 = vrot.slane %v4940, 2
        %v4953 = vrot.slane %v4942, 2
        %v4954 = vsel %vm1666, %v4952, %v4953
        %v4955 = vrot.slane %v4941, 2
        %v4956 = vrot.slane %v4943, 2
        %v4957 = vsel %vm1666, %v4955, %v4956
        %v4958 = vrot.slane %v4944, 2
        %v4959 = vsel %vm1666, %v4953, %v4958
        %v4960 = vrot.slane %v4945, 2
        %v4961 = vsel %vm1666, %v4956, %v4960
        %v4966 = vadd.f32 %v4936, %v4954
        %v4967 = vadd.f32 %v4937, %v4957
        %v4968 = vadd.f32 %v4938, %v4959
        %v4969 = vadd.f32 %v4939, %v4961
        %s4970 = scalar_lea.vmem [#allocation2], 720
        %v4971 = vld [vmem:[%s4970] sm:$0xff]
        %v4972 = vld [vmem:[%s4970 + $0x8] sm:$0xff]
        %v4973 = vld [vmem:[%s4970 + $0x10] sm:$0xff]
        %v4974 = vld [vmem:[%s4970 + $0x18] sm:$0xff]
        %v4975 = vld [vmem:[%s4970 + $0x20] sm:$0x3]
        %v4976 = vld [vmem:[%s4970 + $0x28] sm:$0x3]
        %v4977 = vmul.f32 %v4971, %v1576
        %v4978 = vmul.f32 %v4972, %v1580
        %v4979 = vmul.f32 %v4973, %v1576
        %v4980 = vmul.f32 %v4974, %v1580
        %v4981 = vadd.f32 %v4966, %v4977
        %v4982 = vadd.f32 %v4967, %v4978
        %v4983 = vadd.f32 %v4968, %v4979
        %v4984 = vadd.f32 %v4969, %v4980
        %v4985 = vmul.f32 %v4971, %v1584
        %v4986 = vmul.f32 %v4972, %v1588
        %v4987 = vmul.f32 %v4973, %v1584
        %v4988 = vmul.f32 %v4974, %v1588
        %v4989 = vmul.f32 %v4975, %v1584
        %v4990 = vmul.f32 %v4976, %v1588
        %v4997 = vrot.slane %v4985, 1
        %v4998 = vrot.slane %v4987, 1
        %v4999 = vsel %vm1635, %v4997, %v4998
        %v5000 = vrot.slane %v4986, 1
        %v5001 = vrot.slane %v4988, 1
        %v5002 = vsel %vm1635, %v5000, %v5001
        %v5003 = vrot.slane %v4989, 1
        %v5004 = vsel %vm1635, %v4998, %v5003
        %v5005 = vrot.slane %v4990, 1
        %v5006 = vsel %vm1635, %v5001, %v5005
        %v5011 = vadd.f32 %v4981, %v4999
        %v5012 = vadd.f32 %v4982, %v5002
        %v5013 = vadd.f32 %v4983, %v5004
        %v5014 = vadd.f32 %v4984, %v5006
        %v5015 = vmul.f32 %v4971, %v1592
        %v5016 = vmul.f32 %v4972, %v1596
        %v5017 = vmul.f32 %v4973, %v1592
        %v5018 = vmul.f32 %v4974, %v1596
        %v5019 = vmul.f32 %v4975, %v1592
        %v5020 = vmul.f32 %v4976, %v1596
        %v5027 = vrot.slane %v5015, 2
        %v5028 = vrot.slane %v5017, 2
        %v5029 = vsel %vm1666, %v5027, %v5028
        %v5030 = vrot.slane %v5016, 2
        %v5031 = vrot.slane %v5018, 2
        %v5032 = vsel %vm1666, %v5030, %v5031
        %v5033 = vrot.slane %v5019, 2
        %v5034 = vsel %vm1666, %v5028, %v5033
        %v5035 = vrot.slane %v5020, 2
        %v5036 = vsel %vm1666, %v5031, %v5035
        %v5041 = vadd.f32 %v5011, %v5029
        %v5042 = vadd.f32 %v5012, %v5032
        %v5043 = vadd.f32 %v5013, %v5034
        %v5044 = vadd.f32 %v5014, %v5036
        %v5045 = vadd.f32 %v5041, 3.0
        %v5046 = vadd.f32 %v5042, 3.0
        %v5047 = vadd.f32 %v5043, 3.0
        %v5048 = vadd.f32 %v5044, 3.0
        %v5049 = vmax.f32 %v5045, 0.0
        %v5050 = vmax.f32 %v5046, 0.0
        %v5051 = vmax.f32 %v5047, 0.0
        %v5052 = vmax.f32 %v5048, 0.0
        %v5053 = vmin.f32 %v5049, 6.0
        %v5054 = vmin.f32 %v5050, 6.0
        %v5055 = vmin.f32 %v5051, 6.0
        %v5056 = vmin.f32 %v5052, 6.0
        %v5057 = vmul.f32 %v5041, %v5053
        %v5058 = vmul.f32 %v5042, %v5054
        %v5059 = vmul.f32 %v5043, %v5055
        %v5060 = vmul.f32 %v5044, %v5056
        %v5061 = vmul.f32 %v5057, 0.16666667
        %v5062 = vmul.f32 %v5058, 0.16666667
        %v5063 = vmul.f32 %v5059, 0.16666667
        %v5064 = vmul.f32 %v5060, 0.16666667
        %5065 = vst [vmem:[#allocation3 + $0x1a0] sm:$0xff] %v5061
        %5066 = vst [vmem:[#allocation3 + $0x1a8] sm:$0xff] %v5062
        %5067 = vst [vmem:[#allocation3 + $0x1b0] sm:$0xff] %v5063
        %5068 = vst [vmem:[#allocation3 + $0x1b8] sm:$0xff] %v5064
        %v5069 = vld [vmem:[%s4723] sm:$0xff]
        %v5070 = vld [vmem:[%s4723 + $0x8] sm:$0xff]
        %v5071 = vld [vmem:[%s4723 + $0x10] sm:$0xff]
        %v5072 = vld [vmem:[%s4723 + $0x18] sm:$0xff]
        %v5073 = vld [vmem:[%s4723 + $0x20] sm:$0x3]
        %v5074 = vld [vmem:[%s4723 + $0x28] sm:$0x3]
        %v5075 = vmul.f32 %v5069, %v1528
        %v5076 = vmul.f32 %v5070, %v1532
        %v5077 = vmul.f32 %v5071, %v1528
        %v5078 = vmul.f32 %v5072, %v1532
        %v5079 = vadd.f32 %v1602, %v5075
        %v5080 = vadd.f32 %v1606, %v5076
        %v5081 = vadd.f32 %v1602, %v5077
        %v5082 = vadd.f32 %v1606, %v5078
        %v5083 = vmul.f32 %v5069, %v1536
        %v5084 = vmul.f32 %v5070, %v1540
        %v5085 = vmul.f32 %v5071, %v1536
        %v5086 = vmul.f32 %v5072, %v1540
        %v5087 = vmul.f32 %v5073, %v1536
        %v5088 = vmul.f32 %v5074, %v1540
        %v5095 = vrot.slane %v5083, 1
        %v5096 = vrot.slane %v5085, 1
        %v5097 = vsel %vm1635, %v5095, %v5096
        %v5098 = vrot.slane %v5084, 1
        %v5099 = vrot.slane %v5086, 1
        %v5100 = vsel %vm1635, %v5098, %v5099
        %v5101 = vrot.slane %v5087, 1
        %v5102 = vsel %vm1635, %v5096, %v5101
        %v5103 = vrot.slane %v5088, 1
        %v5104 = vsel %vm1635, %v5099, %v5103
        %v5109 = vadd.f32 %v5079, %v5097
        %v5110 = vadd.f32 %v5080, %v5100
        %v5111 = vadd.f32 %v5081, %v5102
        %v5112 = vadd.f32 %v5082, %v5104
        %v5113 = vmul.f32 %v5069, %v1544
        %v5114 = vmul.f32 %v5070, %v1548
        %v5115 = vmul.f32 %v5071, %v1544
        %v5116 = vmul.f32 %v5072, %v1548
        %v5117 = vmul.f32 %v5073, %v1544
        %v5118 = vmul.f32 %v5074, %v1548
        %v5125 = vrot.slane %v5113, 2
        %v5126 = vrot.slane %v5115, 2
        %v5127 = vsel %vm1666, %v5125, %v5126
        %v5128 = vrot.slane %v5114, 2
        %v5129 = vrot.slane %v5116, 2
        %v5130 = vsel %vm1666, %v5128, %v5129
        %v5131 = vrot.slane %v5117, 2
        %v5132 = vsel %vm1666, %v5126, %v5131
        %v5133 = vrot.slane %v5118, 2
        %v5134 = vsel %vm1666, %v5129, %v5133
        %v5139 = vadd.f32 %v5109, %v5127
        %v5140 = vadd.f32 %v5110, %v5130
        %v5141 = vadd.f32 %v5111, %v5132
        %v5142 = vadd.f32 %v5112, %v5134
        %v5143 = vld [vmem:[%s4970] sm:$0xff]
        %v5144 = vld [vmem:[%s4970 + $0x8] sm:$0xff]
        %v5145 = vld [vmem:[%s4970 + $0x10] sm:$0xff]
        %v5146 = vld [vmem:[%s4970 + $0x18] sm:$0xff]
        %v5147 = vld [vmem:[%s4970 + $0x20] sm:$0x3]
        %v5148 = vld [vmem:[%s4970 + $0x28] sm:$0x3]
        %v5149 = vmul.f32 %v5143, %v1552
        %v5150 = vmul.f32 %v5144, %v1556
        %v5151 = vmul.f32 %v5145, %v1552
        %v5152 = vmul.f32 %v5146, %v1556
        %v5153 = vadd.f32 %v5139, %v5149
        %v5154 = vadd.f32 %v5140, %v5150
        %v5155 = vadd.f32 %v5141, %v5151
        %v5156 = vadd.f32 %v5142, %v5152
        %v5157 = vmul.f32 %v5143, %v1560
        %v5158 = vmul.f32 %v5144, %v1564
        %v5159 = vmul.f32 %v5145, %v1560
        %v5160 = vmul.f32 %v5146, %v1564
        %v5161 = vmul.f32 %v5147, %v1560
        %v5162 = vmul.f32 %v5148, %v1564
        %v5169 = vrot.slane %v5157, 1
        %v5170 = vrot.slane %v5159, 1
        %v5171 = vsel %vm1635, %v5169, %v5170
        %v5172 = vrot.slane %v5158, 1
        %v5173 = vrot.slane %v5160, 1
        %v5174 = vsel %vm1635, %v5172, %v5173
        %v5175 = vrot.slane %v5161, 1
        %v5176 = vsel %vm1635, %v5170, %v5175
        %v5177 = vrot.slane %v5162, 1
        %v5178 = vsel %vm1635, %v5173, %v5177
        %v5183 = vadd.f32 %v5153, %v5171
        %v5184 = vadd.f32 %v5154, %v5174
        %v5185 = vadd.f32 %v5155, %v5176
        %v5186 = vadd.f32 %v5156, %v5178
        %v5187 = vmul.f32 %v5143, %v1568
        %v5188 = vmul.f32 %v5144, %v1572
        %v5189 = vmul.f32 %v5145, %v1568
        %v5190 = vmul.f32 %v5146, %v1572
        %v5191 = vmul.f32 %v5147, %v1568
        %v5192 = vmul.f32 %v5148, %v1572
        %v5199 = vrot.slane %v5187, 2
        %v5200 = vrot.slane %v5189, 2
        %v5201 = vsel %vm1666, %v5199, %v5200
        %v5202 = vrot.slane %v5188, 2
        %v5203 = vrot.slane %v5190, 2
        %v5204 = vsel %vm1666, %v5202, %v5203
        %v5205 = vrot.slane %v5191, 2
        %v5206 = vsel %vm1666, %v5200, %v5205
        %v5207 = vrot.slane %v5192, 2
        %v5208 = vsel %vm1666, %v5203, %v5207
        %v5213 = vadd.f32 %v5183, %v5201
        %v5214 = vadd.f32 %v5184, %v5204
        %v5215 = vadd.f32 %v5185, %v5206
        %v5216 = vadd.f32 %v5186, %v5208
        %s5217 = scalar_lea.vmem [#allocation2], 768
        %v5218 = vld [vmem:[%s5217] sm:$0xff]
        %v5219 = vld [vmem:[%s5217 + $0x8] sm:$0xff]
        %v5220 = vld [vmem:[%s5217 + $0x10] sm:$0xff]
        %v5221 = vld [vmem:[%s5217 + $0x18] sm:$0xff]
        %v5222 = vld [vmem:[%s5217 + $0x20] sm:$0x3]
        %v5223 = vld [vmem:[%s5217 + $0x28] sm:$0x3]
        %v5224 = vmul.f32 %v5218, %v1576
        %v5225 = vmul.f32 %v5219, %v1580
        %v5226 = vmul.f32 %v5220, %v1576
        %v5227 = vmul.f32 %v5221, %v1580
        %v5228 = vadd.f32 %v5213, %v5224
        %v5229 = vadd.f32 %v5214, %v5225
        %v5230 = vadd.f32 %v5215, %v5226
        %v5231 = vadd.f32 %v5216, %v5227
        %v5232 = vmul.f32 %v5218, %v1584
        %v5233 = vmul.f32 %v5219, %v1588
        %v5234 = vmul.f32 %v5220, %v1584
        %v5235 = vmul.f32 %v5221, %v1588
        %v5236 = vmul.f32 %v5222, %v1584
        %v5237 = vmul.f32 %v5223, %v1588
        %v5244 = vrot.slane %v5232, 1
        %v5245 = vrot.slane %v5234, 1
        %v5246 = vsel %vm1635, %v5244, %v5245
        %v5247 = vrot.slane %v5233, 1
        %v5248 = vrot.slane %v5235, 1
        %v5249 = vsel %vm1635, %v5247, %v5248
        %v5250 = vrot.slane %v5236, 1
        %v5251 = vsel %vm1635, %v5245, %v5250
        %v5252 = vrot.slane %v5237, 1
        %v5253 = vsel %vm1635, %v5248, %v5252
        %v5258 = vadd.f32 %v5228, %v5246
        %v5259 = vadd.f32 %v5229, %v5249
        %v5260 = vadd.f32 %v5230, %v5251
        %v5261 = vadd.f32 %v5231, %v5253
        %v5262 = vmul.f32 %v5218, %v1592
        %v5263 = vmul.f32 %v5219, %v1596
        %v5264 = vmul.f32 %v5220, %v1592
        %v5265 = vmul.f32 %v5221, %v1596
        %v5266 = vmul.f32 %v5222, %v1592
        %v5267 = vmul.f32 %v5223, %v1596
        %v5274 = vrot.slane %v5262, 2
        %v5275 = vrot.slane %v5264, 2
        %v5276 = vsel %vm1666, %v5274, %v5275
        %v5277 = vrot.slane %v5263, 2
        %v5278 = vrot.slane %v5265, 2
        %v5279 = vsel %vm1666, %v5277, %v5278
        %v5280 = vrot.slane %v5266, 2
        %v5281 = vsel %vm1666, %v5275, %v5280
        %v5282 = vrot.slane %v5267, 2
        %v5283 = vsel %vm1666, %v5278, %v5282
        %v5288 = vadd.f32 %v5258, %v5276
        %v5289 = vadd.f32 %v5259, %v5279
        %v5290 = vadd.f32 %v5260, %v5281
        %v5291 = vadd.f32 %v5261, %v5283
        %v5292 = vadd.f32 %v5288, 3.0
        %v5293 = vadd.f32 %v5289, 3.0
        %v5294 = vadd.f32 %v5290, 3.0
        %v5295 = vadd.f32 %v5291, 3.0
        %v5296 = vmax.f32 %v5292, 0.0
        %v5297 = vmax.f32 %v5293, 0.0
        %v5298 = vmax.f32 %v5294, 0.0
        %v5299 = vmax.f32 %v5295, 0.0
        %v5300 = vmin.f32 %v5296, 6.0
        %v5301 = vmin.f32 %v5297, 6.0
        %v5302 = vmin.f32 %v5298, 6.0
        %v5303 = vmin.f32 %v5299, 6.0
        %v5304 = vmul.f32 %v5288, %v5300
        %v5305 = vmul.f32 %v5289, %v5301
        %v5306 = vmul.f32 %v5290, %v5302
        %v5307 = vmul.f32 %v5291, %v5303
        %v5308 = vmul.f32 %v5304, 0.16666667
        %v5309 = vmul.f32 %v5305, 0.16666667
        %v5310 = vmul.f32 %v5306, 0.16666667
        %v5311 = vmul.f32 %v5307, 0.16666667
        %5312 = vst [vmem:[#allocation3 + $0x1c0] sm:$0xff] %v5308
        %5313 = vst [vmem:[#allocation3 + $0x1c8] sm:$0xff] %v5309
        %5314 = vst [vmem:[#allocation3 + $0x1d0] sm:$0xff] %v5310
        %5315 = vst [vmem:[#allocation3 + $0x1d8] sm:$0xff] %v5311
        %v5316 = vld [vmem:[%s4970] sm:$0xff]
        %v5317 = vld [vmem:[%s4970 + $0x8] sm:$0xff]
        %v5318 = vld [vmem:[%s4970 + $0x10] sm:$0xff]
        %v5319 = vld [vmem:[%s4970 + $0x18] sm:$0xff]
        %v5320 = vld [vmem:[%s4970 + $0x20] sm:$0x3]
        %v5321 = vld [vmem:[%s4970 + $0x28] sm:$0x3]
        %v5322 = vmul.f32 %v5316, %v1528
        %v5323 = vmul.f32 %v5317, %v1532
        %v5324 = vmul.f32 %v5318, %v1528
        %v5325 = vmul.f32 %v5319, %v1532
        %v5326 = vadd.f32 %v1602, %v5322
        %v5327 = vadd.f32 %v1606, %v5323
        %v5328 = vadd.f32 %v1602, %v5324
        %v5329 = vadd.f32 %v1606, %v5325
        %v5330 = vmul.f32 %v5316, %v1536
        %v5331 = vmul.f32 %v5317, %v1540
        %v5332 = vmul.f32 %v5318, %v1536
        %v5333 = vmul.f32 %v5319, %v1540
        %v5334 = vmul.f32 %v5320, %v1536
        %v5335 = vmul.f32 %v5321, %v1540
        %v5342 = vrot.slane %v5330, 1
        %v5343 = vrot.slane %v5332, 1
        %v5344 = vsel %vm1635, %v5342, %v5343
        %v5345 = vrot.slane %v5331, 1
        %v5346 = vrot.slane %v5333, 1
        %v5347 = vsel %vm1635, %v5345, %v5346
        %v5348 = vrot.slane %v5334, 1
        %v5349 = vsel %vm1635, %v5343, %v5348
        %v5350 = vrot.slane %v5335, 1
        %v5351 = vsel %vm1635, %v5346, %v5350
        %v5356 = vadd.f32 %v5326, %v5344
        %v5357 = vadd.f32 %v5327, %v5347
        %v5358 = vadd.f32 %v5328, %v5349
        %v5359 = vadd.f32 %v5329, %v5351
        %v5360 = vmul.f32 %v5316, %v1544
        %v5361 = vmul.f32 %v5317, %v1548
        %v5362 = vmul.f32 %v5318, %v1544
        %v5363 = vmul.f32 %v5319, %v1548
        %v5364 = vmul.f32 %v5320, %v1544
        %v5365 = vmul.f32 %v5321, %v1548
        %v5372 = vrot.slane %v5360, 2
        %v5373 = vrot.slane %v5362, 2
        %v5374 = vsel %vm1666, %v5372, %v5373
        %v5375 = vrot.slane %v5361, 2
        %v5376 = vrot.slane %v5363, 2
        %v5377 = vsel %vm1666, %v5375, %v5376
        %v5378 = vrot.slane %v5364, 2
        %v5379 = vsel %vm1666, %v5373, %v5378
        %v5380 = vrot.slane %v5365, 2
        %v5381 = vsel %vm1666, %v5376, %v5380
        %v5386 = vadd.f32 %v5356, %v5374
        %v5387 = vadd.f32 %v5357, %v5377
        %v5388 = vadd.f32 %v5358, %v5379
        %v5389 = vadd.f32 %v5359, %v5381
        %v5390 = vld [vmem:[%s5217] sm:$0xff]
        %v5391 = vld [vmem:[%s5217 + $0x8] sm:$0xff]
        %v5392 = vld [vmem:[%s5217 + $0x10] sm:$0xff]
        %v5393 = vld [vmem:[%s5217 + $0x18] sm:$0xff]
        %v5394 = vld [vmem:[%s5217 + $0x20] sm:$0x3]
        %v5395 = vld [vmem:[%s5217 + $0x28] sm:$0x3]
        %v5396 = vmul.f32 %v5390, %v1552
        %v5397 = vmul.f32 %v5391, %v1556
        %v5398 = vmul.f32 %v5392, %v1552
        %v5399 = vmul.f32 %v5393, %v1556
        %v5400 = vadd.f32 %v5386, %v5396
        %v5401 = vadd.f32 %v5387, %v5397
        %v5402 = vadd.f32 %v5388, %v5398
        %v5403 = vadd.f32 %v5389, %v5399
        %v5404 = vmul.f32 %v5390, %v1560
        %v5405 = vmul.f32 %v5391, %v1564
        %v5406 = vmul.f32 %v5392, %v1560
        %v5407 = vmul.f32 %v5393, %v1564
        %v5408 = vmul.f32 %v5394, %v1560
        %v5409 = vmul.f32 %v5395, %v1564
        %v5416 = vrot.slane %v5404, 1
        %v5417 = vrot.slane %v5406, 1
        %v5418 = vsel %vm1635, %v5416, %v5417
        %v5419 = vrot.slane %v5405, 1
        %v5420 = vrot.slane %v5407, 1
        %v5421 = vsel %vm1635, %v5419, %v5420
        %v5422 = vrot.slane %v5408, 1
        %v5423 = vsel %vm1635, %v5417, %v5422
        %v5424 = vrot.slane %v5409, 1
        %v5425 = vsel %vm1635, %v5420, %v5424
        %v5430 = vadd.f32 %v5400, %v5418
        %v5431 = vadd.f32 %v5401, %v5421
        %v5432 = vadd.f32 %v5402, %v5423
        %v5433 = vadd.f32 %v5403, %v5425
        %v5434 = vmul.f32 %v5390, %v1568
        %v5435 = vmul.f32 %v5391, %v1572
        %v5436 = vmul.f32 %v5392, %v1568
        %v5437 = vmul.f32 %v5393, %v1572
        %v5438 = vmul.f32 %v5394, %v1568
        %v5439 = vmul.f32 %v5395, %v1572
        %v5446 = vrot.slane %v5434, 2
        %v5447 = vrot.slane %v5436, 2
        %v5448 = vsel %vm1666, %v5446, %v5447
        %v5449 = vrot.slane %v5435, 2
        %v5450 = vrot.slane %v5437, 2
        %v5451 = vsel %vm1666, %v5449, %v5450
        %v5452 = vrot.slane %v5438, 2
        %v5453 = vsel %vm1666, %v5447, %v5452
        %v5454 = vrot.slane %v5439, 2
        %v5455 = vsel %vm1666, %v5450, %v5454
        %v5460 = vadd.f32 %v5430, %v5448
        %v5461 = vadd.f32 %v5431, %v5451
        %v5462 = vadd.f32 %v5432, %v5453
        %v5463 = vadd.f32 %v5433, %v5455
        %s5464 = scalar_lea.vmem [#allocation2], 816
        %v5465 = vld [vmem:[%s5464] sm:$0xff]
        %v5466 = vld [vmem:[%s5464 + $0x8] sm:$0xff]
        %v5467 = vld [vmem:[%s5464 + $0x10] sm:$0xff]
        %v5468 = vld [vmem:[%s5464 + $0x18] sm:$0xff]
        %v5469 = vld [vmem:[%s5464 + $0x20] sm:$0x3]
        %v5470 = vld [vmem:[%s5464 + $0x28] sm:$0x3]
        %v5471 = vmul.f32 %v5465, %v1576
        %v5472 = vmul.f32 %v5466, %v1580
        %v5473 = vmul.f32 %v5467, %v1576
        %v5474 = vmul.f32 %v5468, %v1580
        %v5475 = vadd.f32 %v5460, %v5471
        %v5476 = vadd.f32 %v5461, %v5472
        %v5477 = vadd.f32 %v5462, %v5473
        %v5478 = vadd.f32 %v5463, %v5474
        %v5479 = vmul.f32 %v5465, %v1584
        %v5480 = vmul.f32 %v5466, %v1588
        %v5481 = vmul.f32 %v5467, %v1584
        %v5482 = vmul.f32 %v5468, %v1588
        %v5483 = vmul.f32 %v5469, %v1584
        %v5484 = vmul.f32 %v5470, %v1588
        %v5491 = vrot.slane %v5479, 1
        %v5492 = vrot.slane %v5481, 1
        %v5493 = vsel %vm1635, %v5491, %v5492
        %v5494 = vrot.slane %v5480, 1
        %v5495 = vrot.slane %v5482, 1
        %v5496 = vsel %vm1635, %v5494, %v5495
        %v5497 = vrot.slane %v5483, 1
        %v5498 = vsel %vm1635, %v5492, %v5497
        %v5499 = vrot.slane %v5484, 1
        %v5500 = vsel %vm1635, %v5495, %v5499
        %v5505 = vadd.f32 %v5475, %v5493
        %v5506 = vadd.f32 %v5476, %v5496
        %v5507 = vadd.f32 %v5477, %v5498
        %v5508 = vadd.f32 %v5478, %v5500
        %v5509 = vmul.f32 %v5465, %v1592
        %v5510 = vmul.f32 %v5466, %v1596
        %v5511 = vmul.f32 %v5467, %v1592
        %v5512 = vmul.f32 %v5468, %v1596
        %v5513 = vmul.f32 %v5469, %v1592
        %v5514 = vmul.f32 %v5470, %v1596
        %v5521 = vrot.slane %v5509, 2
        %v5522 = vrot.slane %v5511, 2
        %v5523 = vsel %vm1666, %v5521, %v5522
        %v5524 = vrot.slane %v5510, 2
        %v5525 = vrot.slane %v5512, 2
        %v5526 = vsel %vm1666, %v5524, %v5525
        %v5527 = vrot.slane %v5513, 2
        %v5528 = vsel %vm1666, %v5522, %v5527
        %v5529 = vrot.slane %v5514, 2
        %v5530 = vsel %vm1666, %v5525, %v5529
        %v5535 = vadd.f32 %v5505, %v5523
        %v5536 = vadd.f32 %v5506, %v5526
        %v5537 = vadd.f32 %v5507, %v5528
        %v5538 = vadd.f32 %v5508, %v5530
        %v5539 = vadd.f32 %v5535, 3.0
        %v5540 = vadd.f32 %v5536, 3.0
        %v5541 = vadd.f32 %v5537, 3.0
        %v5542 = vadd.f32 %v5538, 3.0
        %v5543 = vmax.f32 %v5539, 0.0
        %v5544 = vmax.f32 %v5540, 0.0
        %v5545 = vmax.f32 %v5541, 0.0
        %v5546 = vmax.f32 %v5542, 0.0
        %v5547 = vmin.f32 %v5543, 6.0
        %v5548 = vmin.f32 %v5544, 6.0
        %v5549 = vmin.f32 %v5545, 6.0
        %v5550 = vmin.f32 %v5546, 6.0
        %v5551 = vmul.f32 %v5535, %v5547
        %v5552 = vmul.f32 %v5536, %v5548
        %v5553 = vmul.f32 %v5537, %v5549
        %v5554 = vmul.f32 %v5538, %v5550
        %v5555 = vmul.f32 %v5551, 0.16666667
        %v5556 = vmul.f32 %v5552, 0.16666667
        %v5557 = vmul.f32 %v5553, 0.16666667
        %v5558 = vmul.f32 %v5554, 0.16666667
        %5559 = vst [vmem:[#allocation3 + $0x1e0] sm:$0xff] %v5555
        %5560 = vst [vmem:[#allocation3 + $0x1e8] sm:$0xff] %v5556
        %5561 = vst [vmem:[#allocation3 + $0x1f0] sm:$0xff] %v5557
        %5562 = vst [vmem:[#allocation3 + $0x1f8] sm:$0xff] %v5558
        %v5563 = vld [vmem:[#allocation3] sm:$0xff]
        %v5564 = vld [vmem:[#allocation3 + $0x8] sm:$0xff]
        %v5565 = vld [vmem:[#allocation3 + $0x10] sm:$0xff]
        %v5566 = vld [vmem:[#allocation3 + $0x18] sm:$0xff]
        %v5567 = vld [vmem:[#allocation3 + $0x20] sm:$0xff]
        %v5568 = vld [vmem:[#allocation3 + $0x28] sm:$0xff]
        %v5569 = vld [vmem:[#allocation3 + $0x30] sm:$0xff]
        %v5570 = vld [vmem:[#allocation3 + $0x38] sm:$0xff]
        %v5571 = vld [vmem:[#allocation3 + $0x40] sm:$0xff]
        %v5572 = vld [vmem:[#allocation3 + $0x48] sm:$0xff]
        %v5573 = vld [vmem:[#allocation3 + $0x50] sm:$0xff]
        %v5574 = vld [vmem:[#allocation3 + $0x58] sm:$0xff]
        %v5575 = vld [vmem:[#allocation3 + $0x60] sm:$0xff]
        %v5576 = vld [vmem:[#allocation3 + $0x68] sm:$0xff]
        %v5577 = vld [vmem:[#allocation3 + $0x70] sm:$0xff]
        %v5578 = vld [vmem:[#allocation3 + $0x78] sm:$0xff]
        %v5579 = vld [vmem:[#allocation3 + $0x80] sm:$0xff]
        %v5580 = vld [vmem:[#allocation3 + $0x88] sm:$0xff]
        %v5581 = vld [vmem:[#allocation3 + $0x90] sm:$0xff]
        %v5582 = vld [vmem:[#allocation3 + $0x98] sm:$0xff]
        %v5583 = vld [vmem:[#allocation3 + $0xa0] sm:$0xff]
        %v5584 = vld [vmem:[#allocation3 + $0xa8] sm:$0xff]
        %v5585 = vld [vmem:[#allocation3 + $0xb0] sm:$0xff]
        %v5586 = vld [vmem:[#allocation3 + $0xb8] sm:$0xff]
        %v5587 = vld [vmem:[#allocation3 + $0xc0] sm:$0xff]
        %v5588 = vld [vmem:[#allocation3 + $0xc8] sm:$0xff]
        %v5589 = vld [vmem:[#allocation3 + $0xd0] sm:$0xff]
        %v5590 = vld [vmem:[#allocation3 + $0xd8] sm:$0xff]
        %v5591 = vld [vmem:[#allocation3 + $0xe0] sm:$0xff]
        %v5592 = vld [vmem:[#allocation3 + $0xe8] sm:$0xff]
        %v5593 = vld [vmem:[#allocation3 + $0xf0] sm:$0xff]
        %v5594 = vld [vmem:[#allocation3 + $0xf8] sm:$0xff]
        %v5595 = vld [vmem:[#allocation3 + $0x100] sm:$0xff]
        %v5596 = vld [vmem:[#allocation3 + $0x108] sm:$0xff]
        %v5597 = vld [vmem:[#allocation3 + $0x110] sm:$0xff]
        %v5598 = vld [vmem:[#allocation3 + $0x118] sm:$0xff]
        %v5599 = vld [vmem:[#allocation3 + $0x120] sm:$0xff]
        %v5600 = vld [vmem:[#allocation3 + $0x128] sm:$0xff]
        %v5601 = vld [vmem:[#allocation3 + $0x130] sm:$0xff]
        %v5602 = vld [vmem:[#allocation3 + $0x138] sm:$0xff]
        %v5603 = vld [vmem:[#allocation3 + $0x140] sm:$0xff]
        %v5604 = vld [vmem:[#allocation3 + $0x148] sm:$0xff]
        %v5605 = vld [vmem:[#allocation3 + $0x150] sm:$0xff]
        %v5606 = vld [vmem:[#allocation3 + $0x158] sm:$0xff]
        %v5607 = vld [vmem:[#allocation3 + $0x160] sm:$0xff]
        %v5608 = vld [vmem:[#allocation3 + $0x168] sm:$0xff]
        %v5609 = vld [vmem:[#allocation3 + $0x170] sm:$0xff]
        %v5610 = vld [vmem:[#allocation3 + $0x178] sm:$0xff]
        %v5611 = vld [vmem:[#allocation3 + $0x180] sm:$0xff]
        %v5612 = vld [vmem:[#allocation3 + $0x188] sm:$0xff]
        %v5613 = vld [vmem:[#allocation3 + $0x190] sm:$0xff]
        %v5614 = vld [vmem:[#allocation3 + $0x198] sm:$0xff]
        %v5615 = vld [vmem:[#allocation3 + $0x1a0] sm:$0xff]
        %v5616 = vld [vmem:[#allocation3 + $0x1a8] sm:$0xff]
        %v5617 = vld [vmem:[#allocation3 + $0x1b0] sm:$0xff]
        %v5618 = vld [vmem:[#allocation3 + $0x1b8] sm:$0xff]
        %v5619 = vld [vmem:[#allocation3 + $0x1c0] sm:$0xff]
        %v5620 = vld [vmem:[#allocation3 + $0x1c8] sm:$0xff]
        %v5621 = vld [vmem:[#allocation3 + $0x1d0] sm:$0xff]
        %v5622 = vld [vmem:[#allocation3 + $0x1d8] sm:$0xff]
        %v5623 = vld [vmem:[#allocation3 + $0x1e0] sm:$0xff]
        %v5624 = vld [vmem:[#allocation3 + $0x1e8] sm:$0xff]
        %v5625 = vld [vmem:[#allocation3 + $0x1f0] sm:$0xff]
        %v5626 = vld [vmem:[#allocation3 + $0x1f8] sm:$0xff]
        %v5627 = vpack.c.bf16 %v5565, %v5563
        %v5628 = vpack.c.bf16 %v5566, %v5564
        %v5629 = vpack.c.bf16 %v5569, %v5567
        %v5630 = vpack.c.bf16 %v5570, %v5568
        %v5631 = vpack.c.bf16 %v5573, %v5571
        %v5632 = vpack.c.bf16 %v5574, %v5572
        %v5633 = vpack.c.bf16 %v5577, %v5575
        %v5634 = vpack.c.bf16 %v5578, %v5576
        %v5635 = vpack.c.bf16 %v5581, %v5579
        %v5636 = vpack.c.bf16 %v5582, %v5580
        %v5637 = vpack.c.bf16 %v5585, %v5583
        %v5638 = vpack.c.bf16 %v5586, %v5584
        %v5639 = vpack.c.bf16 %v5589, %v5587
        %v5640 = vpack.c.bf16 %v5590, %v5588
        %v5641 = vpack.c.bf16 %v5593, %v5591
        %v5642 = vpack.c.bf16 %v5594, %v5592
        %v5643 = vpack.c.bf16 %v5597, %v5595
        %v5644 = vpack.c.bf16 %v5598, %v5596
        %v5645 = vpack.c.bf16 %v5601, %v5599
        %v5646 = vpack.c.bf16 %v5602, %v5600
        %v5647 = vpack.c.bf16 %v5605, %v5603
        %v5648 = vpack.c.bf16 %v5606, %v5604
        %v5649 = vpack.c.bf16 %v5609, %v5607
        %v5650 = vpack.c.bf16 %v5610, %v5608
        %v5651 = vpack.c.bf16 %v5613, %v5611
        %v5652 = vpack.c.bf16 %v5614, %v5612
        %v5653 = vpack.c.bf16 %v5617, %v5615
        %v5654 = vpack.c.bf16 %v5618, %v5616
        %v5655 = vpack.c.bf16 %v5621, %v5619
        %v5656 = vpack.c.bf16 %v5622, %v5620
        %v5657 = vpack.c.bf16 %v5625, %v5623
        %v5658 = vpack.c.bf16 %v5626, %v5624
        %v5659 = vld [vmem:[%s6] sm:$0xf]
        %v5660 = vld [vmem:[%s6 + $0x4] sm:$0xf]
        %v5661 = vld [vmem:[%s6 + $0x8] sm:$0xf]
        %v5662 = vld [vmem:[%s6 + $0xc] sm:$0xf]
        %v5663 = vld [vmem:[%s6 + $0x10] sm:$0xf]
        %v5664 = vld [vmem:[%s6 + $0x14] sm:$0xf]
        %v5665 = vld [vmem:[%s6 + $0x18] sm:$0xf]
        %v5666 = vld [vmem:[%s6 + $0x1c] sm:$0xf]
        %v5667 = vld [vmem:[%s6 + $0x20] sm:$0xf]
        %v5668 = vld [vmem:[%s6 + $0x24] sm:$0xf]
        %v5669 = vld [vmem:[%s6 + $0x28] sm:$0xf]
        %v5670 = vld [vmem:[%s6 + $0x2c] sm:$0xf]
        %v5671 = vld [vmem:[%s6 + $0x30] sm:$0xf]
        %v5672 = vld [vmem:[%s6 + $0x34] sm:$0xf]
        %v5673 = vld [vmem:[%s6 + $0x38] sm:$0xf]
        %v5674 = vld [vmem:[%s6 + $0x3c] sm:$0xf]
        %v5675 = vld [vmem:[%s6 + $0x40] sm:$0xf]
        %v5676 = vld [vmem:[%s6 + $0x44] sm:$0xf]
        %v5677 = vld [vmem:[%s6 + $0x48] sm:$0xf]
        %v5678 = vld [vmem:[%s6 + $0x4c] sm:$0xf]
        %v5679 = vld [vmem:[%s6 + $0x50] sm:$0xf]
        %v5680 = vld [vmem:[%s6 + $0x54] sm:$0xf]
        %v5681 = vld [vmem:[%s6 + $0x58] sm:$0xf]
        %v5682 = vld [vmem:[%s6 + $0x5c] sm:$0xf]
        %v5683 = vld [vmem:[%s6 + $0x60] sm:$0xf]
        %v5684 = vld [vmem:[%s6 + $0x64] sm:$0xf]
        %v5685 = vld [vmem:[%s6 + $0x68] sm:$0xf]
        %v5686 = vld [vmem:[%s6 + $0x6c] sm:$0xf]
        %v5687 = vld [vmem:[%s6 + $0x70] sm:$0xf]
        %v5688 = vld [vmem:[%s6 + $0x74] sm:$0xf]
        %v5689 = vld [vmem:[%s6 + $0x78] sm:$0xf]
        %v5690 = vld [vmem:[%s6 + $0x7c] sm:$0xf]
        %v5691 = vld [vmem:[%s7] sm:$0x1]
        %v5693 = vlaneseq
        %v5694 = vshrl.u32 %v5693, 7
        %v5695 = vsub.s32 0, %v5694
        %v5696 = vrot.slane %v5691, %v5695
        %v5730 = vunpack.c.l.b16 %v5659
        %v5731 = vunpack.c.l.b16 %v5660
        %v5732 = vunpack.c.l.b16 %v5661
        %v5733 = vunpack.c.l.b16 %v5662
        %v5734 = vunpack.c.l.b16 %v5663
        %v5735 = vunpack.c.l.b16 %v5664
        %v5736 = vunpack.c.l.b16 %v5665
        %v5737 = vunpack.c.l.b16 %v5666
        %v5738 = vunpack.c.l.b16 %v5667
        %v5739 = vunpack.c.l.b16 %v5668
        %v5740 = vunpack.c.l.b16 %v5669
        %v5741 = vunpack.c.l.b16 %v5670
        %v5742 = vunpack.c.l.b16 %v5671
        %v5743 = vunpack.c.l.b16 %v5672
        %v5744 = vunpack.c.l.b16 %v5673
        %v5745 = vunpack.c.l.b16 %v5674
        %v5746 = vunpack.c.l.b16 %v5675
        %v5747 = vunpack.c.l.b16 %v5676
        %v5748 = vunpack.c.l.b16 %v5677
        %v5749 = vunpack.c.l.b16 %v5678
        %v5750 = vunpack.c.l.b16 %v5679
        %v5751 = vunpack.c.l.b16 %v5680
        %v5752 = vunpack.c.l.b16 %v5681
        %v5753 = vunpack.c.l.b16 %v5682
        %v5754 = vunpack.c.l.b16 %v5683
        %v5755 = vunpack.c.l.b16 %v5684
        %v5756 = vunpack.c.l.b16 %v5685
        %v5757 = vunpack.c.l.b16 %v5686
        %v5758 = vunpack.c.l.b16 %v5687
        %v5759 = vunpack.c.l.b16 %v5688
        %v5760 = vunpack.c.l.b16 %v5689
        %v5761 = vunpack.c.l.b16 %v5690
        %v5762 = vpack.c.b16 %v5731, %v5730
        %v5763 = vpack.c.b16 %v5733, %v5732
        %v5764 = vpack.c.b16 %v5735, %v5734
        %v5765 = vpack.c.b16 %v5737, %v5736
        %v5766 = vpack.c.b16 %v5739, %v5738
        %v5767 = vpack.c.b16 %v5741, %v5740
        %v5768 = vpack.c.b16 %v5743, %v5742
        %v5769 = vpack.c.b16 %v5745, %v5744
        %v5770 = vpack.c.b16 %v5747, %v5746
        %v5771 = vpack.c.b16 %v5749, %v5748
        %v5772 = vpack.c.b16 %v5751, %v5750
        %v5773 = vpack.c.b16 %v5753, %v5752
        %v5774 = vpack.c.b16 %v5755, %v5754
        %v5775 = vpack.c.b16 %v5757, %v5756
        %v5776 = vpack.c.b16 %v5759, %v5758
        %v5777 = vpack.c.b16 %v5761, %v5760
        %5794 = vmatprep.subr.bf16.mxu0 0
        %5795 = vmatpush1.bf16.msra.mxu0 %v5762
        %5796 = vmatprep.subr.bf16.mxu0 0
        %5797 = vmatpush1.bf16.msra.mxu0 %v5763
        %5798 = vmatprep.subr.bf16.mxu0 0
        %5799 = vmatpush1.bf16.msra.mxu0 %v5764
        %5800 = vmatprep.subr.bf16.mxu0 0
        %5801 = vmatpush1.bf16.msra.mxu0 %v5765
        %5802 = vmatprep.subr.bf16.mxu0 0
        %5803 = vmatpush1.bf16.msra.mxu0 %v5766
        %5804 = vmatprep.subr.bf16.mxu0 0
        %5805 = vmatpush1.bf16.msra.mxu0 %v5767
        %5806 = vmatprep.subr.bf16.mxu0 0
        %5807 = vmatpush1.bf16.msra.mxu0 %v5768
        %5808 = vmatprep.subr.bf16.mxu0 0
        %5809 = vmatpush1.bf16.msra.mxu0 %v5769
        %5810 = vmatprep.subr.bf16.mxu0 0
        %5811 = vmatpush1.bf16.msra.mxu0 %v5770
        %5812 = vmatprep.subr.bf16.mxu0 0
        %5813 = vmatpush1.bf16.msra.mxu0 %v5771
        %5814 = vmatprep.subr.bf16.mxu0 0
        %5815 = vmatpush1.bf16.msra.mxu0 %v5772
        %5816 = vmatprep.subr.bf16.mxu0 0
        %5817 = vmatpush1.bf16.msra.mxu0 %v5773
        %5818 = vmatprep.subr.bf16.mxu0 0
        %5819 = vmatpush1.bf16.msra.mxu0 %v5774
        %5820 = vmatprep.subr.bf16.mxu0 0
        %5821 = vmatpush1.bf16.msra.mxu0 %v5775
        %5822 = vmatprep.subr.bf16.mxu0 0
        %5823 = vmatpush1.bf16.msra.mxu0 %v5776
        %5824 = vmatprep.subr.bf16.mxu0 0
        %5825 = vmatpush1.bf16.msra.mxu0 %v5777
        %5826 = vmatprep.mubr.bf16.mxu0 %v5628
        %5827 = vmatmul.mubr.bf16.gmra.mrb[0].mxu0 %v5627
        %v5828 = vpop.f32.mrb[0].mxu0
        %v5829 = vadd.f32 %v5696, %v5828
        %v5830 = vpop.f32.mrb[0].mxu0
        %v5831 = vpop.f32.mrb[0].mxu0
        %v5832 = vadd.f32 %v5696, %v5831
        %v5833 = vpop.f32.mrb[0].mxu0
        %5834 = vmatprep.mubr.bf16.mxu0 %v5630
        %5835 = vmatmul.mubr.bf16.gmra.mrb[0].mxu0 %v5629
        %v5836 = vpop.f32.mrb[0].mxu0
        %v5837 = vadd.f32 %v5696, %v5836
        %v5838 = vpop.f32.mrb[0].mxu0
        %v5839 = vpop.f32.mrb[0].mxu0
        %v5840 = vadd.f32 %v5696, %v5839
        %v5841 = vpop.f32.mrb[0].mxu0
        %5842 = vmatprep.mubr.bf16.mxu0 %v5632
        %5843 = vmatmul.mubr.bf16.gmra.mrb[0].mxu0 %v5631
        %v5844 = vpop.f32.mrb[0].mxu0
        %v5845 = vadd.f32 %v5696, %v5844
        %v5846 = vpop.f32.mrb[0].mxu0
        %v5847 = vpop.f32.mrb[0].mxu0
        %v5848 = vadd.f32 %v5696, %v5847
        %v5849 = vpop.f32.mrb[0].mxu0
        %5850 = vmatprep.mubr.bf16.mxu0 %v5634
        %5851 = vmatmul.mubr.bf16.gmra.mrb[0].mxu0 %v5633
        %v5852 = vpop.f32.mrb[0].mxu0
        %v5853 = vadd.f32 %v5696, %v5852
        %v5854 = vpop.f32.mrb[0].mxu0
        %v5855 = vpop.f32.mrb[0].mxu0
        %v5856 = vadd.f32 %v5696, %v5855
        %v5857 = vpop.f32.mrb[0].mxu0
        %5858 = vmatprep.mubr.bf16.mxu0 %v5636
        %5859 = vmatmul.mubr.bf16.gmra.mrb[0].mxu0 %v5635
        %v5860 = vpop.f32.mrb[0].mxu0
        %v5861 = vadd.f32 %v5696, %v5860
        %v5862 = vpop.f32.mrb[0].mxu0
        %v5863 = vpop.f32.mrb[0].mxu0
        %v5864 = vadd.f32 %v5696, %v5863
        %v5865 = vpop.f32.mrb[0].mxu0
        %5866 = vmatprep.mubr.bf16.mxu0 %v5638
        %5867 = vmatmul.mubr.bf16.gmra.mrb[0].mxu0 %v5637
        %v5868 = vpop.f32.mrb[0].mxu0
        %v5869 = vadd.f32 %v5696, %v5868
        %v5870 = vpop.f32.mrb[0].mxu0
        %v5871 = vpop.f32.mrb[0].mxu0
        %v5872 = vadd.f32 %v5696, %v5871
        %v5873 = vpop.f32.mrb[0].mxu0
        %5874 = vmatprep.mubr.bf16.mxu0 %v5640
        %5875 = vmatmul.mubr.bf16.gmra.mrb[0].mxu0 %v5639
        %v5876 = vpop.f32.mrb[0].mxu0
        %v5877 = vadd.f32 %v5696, %v5876
        %v5878 = vpop.f32.mrb[0].mxu0
        %v5879 = vpop.f32.mrb[0].mxu0
        %v5880 = vadd.f32 %v5696, %v5879
        %v5881 = vpop.f32.mrb[0].mxu0
        %5882 = vmatprep.mubr.bf16.mxu0 %v5642
        %5883 = vmatmul.mubr.bf16.gmra.mrb[0].mxu0 %v5641
        %v5884 = vpop.f32.mrb[0].mxu0
        %v5885 = vadd.f32 %v5696, %v5884
        %v5886 = vpop.f32.mrb[0].mxu0
        %v5887 = vpop.f32.mrb[0].mxu0
        %v5888 = vadd.f32 %v5696, %v5887
        %v5889 = vpop.f32.mrb[0].mxu0
        %5890 = vmatprep.mubr.bf16.mxu0 %v5644
        %5891 = vmatmul.mubr.bf16.gmra.mrb[0].mxu0 %v5643
        %v5892 = vpop.f32.mrb[0].mxu0
        %v5893 = vadd.f32 %v5696, %v5892
        %v5894 = vpop.f32.mrb[0].mxu0
        %v5895 = vpop.f32.mrb[0].mxu0
        %v5896 = vadd.f32 %v5696, %v5895
        %v5897 = vpop.f32.mrb[0].mxu0
        %5898 = vmatprep.mubr.bf16.mxu0 %v5646
        %5899 = vmatmul.mubr.bf16.gmra.mrb[0].mxu0 %v5645
        %v5900 = vpop.f32.mrb[0].mxu0
        %v5901 = vadd.f32 %v5696, %v5900
        %v5902 = vpop.f32.mrb[0].mxu0
        %v5903 = vpop.f32.mrb[0].mxu0
        %v5904 = vadd.f32 %v5696, %v5903
        %v5905 = vpop.f32.mrb[0].mxu0
        %5906 = vmatprep.mubr.bf16.mxu0 %v5648
        %5907 = vmatmul.mubr.bf16.gmra.mrb[0].mxu0 %v5647
        %v5908 = vpop.f32.mrb[0].mxu0
        %v5909 = vadd.f32 %v5696, %v5908
        %v5910 = vpop.f32.mrb[0].mxu0
        %v5911 = vpop.f32.mrb[0].mxu0
        %v5912 = vadd.f32 %v5696, %v5911
        %v5913 = vpop.f32.mrb[0].mxu0
        %5914 = vmatprep.mubr.bf16.mxu0 %v5650
        %5915 = vmatmul.mubr.bf16.gmra.mrb[0].mxu0 %v5649
        %v5916 = vpop.f32.mrb[0].mxu0
        %v5917 = vadd.f32 %v5696, %v5916
        %v5918 = vpop.f32.mrb[0].mxu0
        %v5919 = vpop.f32.mrb[0].mxu0
        %v5920 = vadd.f32 %v5696, %v5919
        %v5921 = vpop.f32.mrb[0].mxu0
        %5922 = vmatprep.mubr.bf16.mxu0 %v5652
        %5923 = vmatmul.mubr.bf16.gmra.mrb[0].mxu0 %v5651
        %v5924 = vpop.f32.mrb[0].mxu0
        %v5925 = vadd.f32 %v5696, %v5924
        %v5926 = vpop.f32.mrb[0].mxu0
        %v5927 = vpop.f32.mrb[0].mxu0
        %v5928 = vadd.f32 %v5696, %v5927
        %v5929 = vpop.f32.mrb[0].mxu0
        %5930 = vmatprep.mubr.bf16.mxu0 %v5654
        %5931 = vmatmul.mubr.bf16.gmra.mrb[0].mxu0 %v5653
        %v5932 = vpop.f32.mrb[0].mxu0
        %v5933 = vadd.f32 %v5696, %v5932
        %v5934 = vpop.f32.mrb[0].mxu0
        %v5935 = vpop.f32.mrb[0].mxu0
        %v5936 = vadd.f32 %v5696, %v5935
        %v5937 = vpop.f32.mrb[0].mxu0
        %5938 = vmatprep.mubr.bf16.mxu0 %v5656
        %5939 = vmatmul.mubr.bf16.gmra.mrb[0].mxu0 %v5655
        %v5940 = vpop.f32.mrb[0].mxu0
        %v5941 = vadd.f32 %v5696, %v5940
        %v5942 = vpop.f32.mrb[0].mxu0
        %v5943 = vpop.f32.mrb[0].mxu0
        %v5944 = vadd.f32 %v5696, %v5943
        %v5945 = vpop.f32.mrb[0].mxu0
        %5946 = vmatprep.mubr.bf16.mxu0 %v5658
        %5947 = vmatmul.mubr.bf16.gmra.mrb[0].mxu0 %v5657
        %v5948 = vpop.f32.mrb[0].mxu0
        %v5949 = vadd.f32 %v5696, %v5948
        %v5950 = vpop.f32.mrb[0].mxu0
        %v5951 = vpop.f32.mrb[0].mxu0
        %v5952 = vadd.f32 %v5696, %v5951
        %v5953 = vpop.f32.mrb[0].mxu0
        %5954 = vdwg.mxu0
        %v5955 = vld [vmem:[%s318] sm:$0xff]
        %v5956 = vld [vmem:[%s318 + $0x8] sm:$0xff]
        %v5957 = vld [vmem:[%s318 + $0x10] sm:$0xff]
        %v5958 = vld [vmem:[%s318 + $0x18] sm:$0xff]
        %v5959 = vld [vmem:[%s318 + $0x20] sm:$0xff]
        %v5960 = vld [vmem:[%s318 + $0x28] sm:$0xff]
        %v5961 = vld [vmem:[%s318 + $0x30] sm:$0xff]
        %v5962 = vld [vmem:[%s318 + $0x38] sm:$0xff]
        %v5963 = vld [vmem:[%s318 + $0x40] sm:$0xff]
        %v5964 = vld [vmem:[%s318 + $0x48] sm:$0xff]
        %v5965 = vld [vmem:[%s318 + $0x50] sm:$0xff]
        %v5966 = vld [vmem:[%s318 + $0x58] sm:$0xff]
        %v5967 = vld [vmem:[%s318 + $0x60] sm:$0xff]
        %v5968 = vld [vmem:[%s318 + $0x68] sm:$0xff]
        %v5969 = vld [vmem:[%s318 + $0x70] sm:$0xff]
        %v5970 = vld [vmem:[%s318 + $0x78] sm:$0xff]
        %v5971 = vld [vmem:[%s318 + $0x80] sm:$0xff]
        %v5972 = vld [vmem:[%s318 + $0x88] sm:$0xff]
        %v5973 = vld [vmem:[%s318 + $0x90] sm:$0xff]
        %v5974 = vld [vmem:[%s318 + $0x98] sm:$0xff]
        %v5975 = vld [vmem:[%s318 + $0xa0] sm:$0xff]
        %v5976 = vld [vmem:[%s318 + $0xa8] sm:$0xff]
        %v5977 = vld [vmem:[%s318 + $0xb0] sm:$0xff]
        %v5978 = vld [vmem:[%s318 + $0xb8] sm:$0xff]
        %v5979 = vld [vmem:[%s318 + $0xc0] sm:$0xff]
        %v5980 = vld [vmem:[%s318 + $0xc8] sm:$0xff]
        %v5981 = vld [vmem:[%s318 + $0xd0] sm:$0xff]
        %v5982 = vld [vmem:[%s318 + $0xd8] sm:$0xff]
        %v5983 = vld [vmem:[%s318 + $0xe0] sm:$0xff]
        %v5984 = vld [vmem:[%s318 + $0xe8] sm:$0xff]
        %v5985 = vld [vmem:[%s318 + $0xf0] sm:$0xff]
        %v5986 = vld [vmem:[%s318 + $0xf8] sm:$0xff]
        %v5987 = vld [vmem:[%s323] sm:$0xff]
        %v5988 = vld [vmem:[%s323 + $0x8] sm:$0xff]
        %v5989 = vld [vmem:[%s323 + $0x10] sm:$0xff]
        %v5990 = vld [vmem:[%s323 + $0x18] sm:$0xff]
        %v5991 = vld [vmem:[%s323 + $0x20] sm:$0xff]
        %v5992 = vld [vmem:[%s323 + $0x28] sm:$0xff]
        %v5993 = vld [vmem:[%s323 + $0x30] sm:$0xff]
        %v5994 = vld [vmem:[%s323 + $0x38] sm:$0xff]
        %v5995 = vld [vmem:[%s323 + $0x40] sm:$0xff]
        %v5996 = vld [vmem:[%s323 + $0x48] sm:$0xff]
        %v5997 = vld [vmem:[%s323 + $0x50] sm:$0xff]
        %v5998 = vld [vmem:[%s323 + $0x58] sm:$0xff]
        %v5999 = vld [vmem:[%s323 + $0x60] sm:$0xff]
        %v6000 = vld [vmem:[%s323 + $0x68] sm:$0xff]
        %v6001 = vld [vmem:[%s323 + $0x70] sm:$0xff]
        %v6002 = vld [vmem:[%s323 + $0x78] sm:$0xff]
        %v6003 = vld [vmem:[%s323 + $0x80] sm:$0xff]
        %v6004 = vld [vmem:[%s323 + $0x88] sm:$0xff]
        %v6005 = vld [vmem:[%s323 + $0x90] sm:$0xff]
        %v6006 = vld [vmem:[%s323 + $0x98] sm:$0xff]
        %v6007 = vld [vmem:[%s323 + $0xa0] sm:$0xff]
        %v6008 = vld [vmem:[%s323 + $0xa8] sm:$0xff]
        %v6009 = vld [vmem:[%s323 + $0xb0] sm:$0xff]
        %v6010 = vld [vmem:[%s323 + $0xb8] sm:$0xff]
        %v6011 = vld [vmem:[%s323 + $0xc0] sm:$0xff]
        %v6012 = vld [vmem:[%s323 + $0xc8] sm:$0xff]
        %v6013 = vld [vmem:[%s323 + $0xd0] sm:$0xff]
        %v6014 = vld [vmem:[%s323 + $0xd8] sm:$0xff]
        %v6015 = vld [vmem:[%s323 + $0xe0] sm:$0xff]
        %v6016 = vld [vmem:[%s323 + $0xe8] sm:$0xff]
        %v6017 = vld [vmem:[%s323 + $0xf0] sm:$0xff]
        %v6018 = vld [vmem:[%s323 + $0xf8] sm:$0xff]
        %v6019 = vadd.f32 %v5955, %v5987
        %v6020 = vadd.f32 %v5956, %v5988
        %v6021 = vadd.f32 %v5957, %v5989
        %v6022 = vadd.f32 %v5958, %v5990
        %v6023 = vadd.f32 %v5959, %v5991
        %v6024 = vadd.f32 %v5960, %v5992
        %v6025 = vadd.f32 %v5961, %v5993
        %v6026 = vadd.f32 %v5962, %v5994
        %v6027 = vadd.f32 %v5963, %v5995
        %v6028 = vadd.f32 %v5964, %v5996
        %v6029 = vadd.f32 %v5965, %v5997
        %v6030 = vadd.f32 %v5966, %v5998
        %v6031 = vadd.f32 %v5967, %v5999
        %v6032 = vadd.f32 %v5968, %v6000
        %v6033 = vadd.f32 %v5969, %v6001
        %v6034 = vadd.f32 %v5970, %v6002
        %v6035 = vadd.f32 %v5971, %v6003
        %v6036 = vadd.f32 %v5972, %v6004
        %v6037 = vadd.f32 %v5973, %v6005
        %v6038 = vadd.f32 %v5974, %v6006
        %v6039 = vadd.f32 %v5975, %v6007
        %v6040 = vadd.f32 %v5976, %v6008
        %v6041 = vadd.f32 %v5977, %v6009
        %v6042 = vadd.f32 %v5978, %v6010
        %v6043 = vadd.f32 %v5979, %v6011
        %v6044 = vadd.f32 %v5980, %v6012
        %v6045 = vadd.f32 %v5981, %v6013
        %v6046 = vadd.f32 %v5982, %v6014
        %v6047 = vadd.f32 %v5983, %v6015
        %v6048 = vadd.f32 %v5984, %v6016
        %v6049 = vadd.f32 %v5985, %v6017
        %v6050 = vadd.f32 %v5986, %v6018
        %v6051 = vadd.f32 %v5829, %v6019
        %v6052 = vadd.f32 %v5832, %v6020
        %v6053 = vadd.f32 %v5837, %v6021
        %v6054 = vadd.f32 %v5840, %v6022
        %v6055 = vadd.f32 %v5845, %v6023
        %v6056 = vadd.f32 %v5848, %v6024
        %v6057 = vadd.f32 %v5853, %v6025
        %v6058 = vadd.f32 %v5856, %v6026
        %v6059 = vadd.f32 %v5861, %v6027
        %v6060 = vadd.f32 %v5864, %v6028
        %v6061 = vadd.f32 %v5869, %v6029
        %v6062 = vadd.f32 %v5872, %v6030
        %v6063 = vadd.f32 %v5877, %v6031
        %v6064 = vadd.f32 %v5880, %v6032
        %v6065 = vadd.f32 %v5885, %v6033
        %v6066 = vadd.f32 %v5888, %v6034
        %v6067 = vadd.f32 %v5893, %v6035
        %v6068 = vadd.f32 %v5896, %v6036
        %v6069 = vadd.f32 %v5901, %v6037
        %v6070 = vadd.f32 %v5904, %v6038
        %v6071 = vadd.f32 %v5909, %v6039
        %v6072 = vadd.f32 %v5912, %v6040
        %v6073 = vadd.f32 %v5917, %v6041
        %v6074 = vadd.f32 %v5920, %v6042
        %v6075 = vadd.f32 %v5925, %v6043
        %v6076 = vadd.f32 %v5928, %v6044
        %v6077 = vadd.f32 %v5933, %v6045
        %v6078 = vadd.f32 %v5936, %v6046
        %v6079 = vadd.f32 %v5941, %v6047
        %v6080 = vadd.f32 %v5944, %v6048
        %v6081 = vadd.f32 %v5949, %v6049
        %v6082 = vadd.f32 %v5952, %v6050
        %6083 = vst.msk [vmem:[%s313] sm:$0xff] %vm497, %v6051
        %6084 = vst.msk [vmem:[%s313 + $0x8] sm:$0xff] %vm497, %v6052
        %6085 = vst.msk [vmem:[%s313 + $0x10] sm:$0xff] %vm497, %v6053
        %6086 = vst.msk [vmem:[%s313 + $0x18] sm:$0xff] %vm497, %v6054
        %6087 = vst.msk [vmem:[%s313 + $0x20] sm:$0xff] %vm497, %v6055
        %6088 = vst.msk [vmem:[%s313 + $0x28] sm:$0xff] %vm497, %v6056
        %6089 = vst.msk [vmem:[%s313 + $0x30] sm:$0xff] %vm497, %v6057
        %6090 = vst.msk [vmem:[%s313 + $0x38] sm:$0xff] %vm497, %v6058
        %6091 = vst.msk [vmem:[%s313 + $0x40] sm:$0xff] %vm497, %v6059
        %6092 = vst.msk [vmem:[%s313 + $0x48] sm:$0xff] %vm497, %v6060
        %6093 = vst.msk [vmem:[%s313 + $0x50] sm:$0xff] %vm497, %v6061
        %6094 = vst.msk [vmem:[%s313 + $0x58] sm:$0xff] %vm497, %v6062
        %6095 = vst.msk [vmem:[%s313 + $0x60] sm:$0xff] %vm497, %v6063
        %6096 = vst.msk [vmem:[%s313 + $0x68] sm:$0xff] %vm497, %v6064
        %6097 = vst.msk [vmem:[%s313 + $0x70] sm:$0xff] %vm497, %v6065
        %6098 = vst.msk [vmem:[%s313 + $0x78] sm:$0xff] %vm497, %v6066
        %6099 = vst.msk [vmem:[%s313 + $0x80] sm:$0xff] %vm497, %v6067
        %6100 = vst.msk [vmem:[%s313 + $0x88] sm:$0xff] %vm497, %v6068
        %6101 = vst.msk [vmem:[%s313 + $0x90] sm:$0xff] %vm497, %v6069
        %6102 = vst.msk [vmem:[%s313 + $0x98] sm:$0xff] %vm497, %v6070
        %6103 = vst.msk [vmem:[%s313 + $0xa0] sm:$0xff] %vm497, %v6071
        %6104 = vst.msk [vmem:[%s313 + $0xa8] sm:$0xff] %vm497, %v6072
        %6105 = vst.msk [vmem:[%s313 + $0xb0] sm:$0xff] %vm497, %v6073
        %6106 = vst.msk [vmem:[%s313 + $0xb8] sm:$0xff] %vm497, %v6074
        %6107 = vst.msk [vmem:[%s313 + $0xc0] sm:$0xff] %vm497, %v6075
        %6108 = vst.msk [vmem:[%s313 + $0xc8] sm:$0xff] %vm497, %v6076
        %6109 = vst.msk [vmem:[%s313 + $0xd0] sm:$0xff] %vm497, %v6077
        %6110 = vst.msk [vmem:[%s313 + $0xd8] sm:$0xff] %vm497, %v6078
        %6111 = vst.msk [vmem:[%s313 + $0xe0] sm:$0xff] %vm497, %v6079
        %6112 = vst.msk [vmem:[%s313 + $0xe8] sm:$0xff] %vm497, %v6080
        %6113 = vst.msk [vmem:[%s313 + $0xf0] sm:$0xff] %vm497, %v6081
        %6114 = vst.msk [vmem:[%s313 + $0xf8] sm:$0xff] %vm497, %v6082
        %s6115 = sand.u32 %s208, 1
        %s6116 = scalar_lea.sflag [#allocation5], %s6115
        %s6117 = sand.u32 %s208, 1
        %s6118 = smul.addr %s6117, 256
        %s6119 = scalar_lea.vmem [#allocation4], %s6118
        // Predicated region
        $region53: #{lowformer_block_forward.3} parent=51 // pred_check
          %p6120 = pneg %p218
        $region54: #{lowformer_block_forward.3} parent=51 // pred_check_branch
          %6122 = sbr.rel (%p6120) target = $region56
        $region55: #{lowformer_block_forward.3} parent=51 // pred_region
          %s6124 = ssub.s32 4096, 4096
          %6125 = vsyncadd %s6116, %s6124
          %s6126 = smul.addr %s22, 32
          %s6127 = smul.addr %s6126, 128
          %s6128 = scalar_lea.hbm %s8, %s6127
          %s6129 = sshll.u32 %s6119, 4
          %s6130 = int_to_ptr.vmem [resolvable:$true] %s6129
          %6135 = dma.vmem_to_hbm [thread:$0]  %s6130, 4096, %s6128, %s6116, 128, 128, 8
        $region56: #{lowformer_block_forward.3} parent=51 // pred_fallthru
          _
      $region52: #{lowformer_block_forward.3} parent=5 // pred_fallthru
        _
      %p6136 = scmp.le.s32.totalorder 2, %s17
      // Predicated region
      $region57: #{lowformer_block_forward.3} parent=5 // pred_check
        %p6137 = pneg %p6136
      $region58: #{lowformer_block_forward.3} parent=5 // pred_check_branch
        %6139 = sbr.rel (%p6137) target = $region60
      $region59: #{lowformer_block_forward.3} parent=5 // pred_region
        %s6140 = ssub.s32 %s17, 2
        // Predicated region
        $region61: #{lowformer_block_forward.3} parent=59 // pred_check
          %p6141 = pneg %p224
        $region62: #{lowformer_block_forward.3} parent=59 // pred_check_branch
          %6143 = sbr.rel (%p6141) target = $region64
        $region63: #{lowformer_block_forward.3} parent=59 // pred_region
          %s6144 = sand.u32 %s209, 1
          %s6145 = scalar_lea.sflag [#allocation5], %s6144
          %s6146 = sand.u32 %s209, 1
          %s6147 = smul.addr %s6146, 256
          %s6148 = scalar_lea.vmem [#allocation4], %s6147
          %6149 = dma.done %s6145, 4096
        $region64: #{lowformer_block_forward.3} parent=59 // pred_fallthru
          _
      $region60: #{lowformer_block_forward.3} parent=5 // pred_fallthru
        _
    $region6: #{lowformer_block_forward.3} parent=1 // loop_footer
      %s21 = sadd.s32 1, %s17
    $region7: #{lowformer_block_forward.3} parent=1 // loop_footer_branch
      %16 = sbr.rel target = $region3
    $region8: #{lowformer_block_forward.3} parent=1 // loop_exit
      _
    %6150 = vsyncpa [#allocation5], 1
    %s6151 = scalar_lea.sflag [#allocation5], 1
    %6152 = vsyncpa %s6151, 1

</llo_original>
